<compile_context>
chip_gen: v7x
topology: tpu7x:2x2x1
jax: 0.10.0
libtpu: 0.0.40
codegen_flags: <defaults>
</compile_context>

<pallas_src>
import jax
import jax.numpy as jnp
from jax.experimental import pallas as pl
from jax.experimental.pallas import tpu as pltpu

# ---------------------------------------------------------------------------
# Model constants (STAR / SMPL topology)
# ---------------------------------------------------------------------------
NUM_VERTS = 6890
VP = 6912                    # vertex count padded up to a multiple of 128 lanes
NUM_JOINTS = 24
NUM_BETAS = 10
POSE_FEAT_DIM = 93           # 23 joints * 4 quaternion feats + 1 beta
FEAT_TOT = NUM_BETAS + POSE_FEAT_DIM        # 103
NUM_FACES = 16               # small synthetic face list (pass-through buffer)

BLEND_CHUNKS = 6             # even # of parallel steps (v7x 2-core balance)
BLEND_CH = (3 * VP) // BLEND_CHUNKS         # 3456 lanes per chunk
SKIN_STEPS = 2
SKIN_TN = VP // SKIN_STEPS                  # 3456 lanes per chunk

# PARENTS[i] = parent joint of joint (i + 1); standard SMPL/STAR kinematic tree
PARENTS = (0, 0, 0, 1, 2, 3, 4, 5, 6, 7, 8, 9, 9, 9, 12, 13, 14,
           16, 17, 18, 19, 20, 21)
# joints grouped by tree depth (root = joint 0 handled implicitly)
_LEVELS = ((1, 2, 3), (4, 5, 6), (7, 8, 9), (10, 11, 12, 13, 14),
           (15, 16, 17), (18, 19), (20, 21), (22, 23))

_COMPILER_PARAMS = pltpu.CompilerParams(
    dimension_semantics=("parallel",),
    vmem_limit_bytes=32 * 1024 * 1024)


# ---------------------------------------------------------------------------
# Pallas kernels
# ---------------------------------------------------------------------------
def _blend_kernel(lhs_ref, dirs_ref, vt_ref, vshaped_ref, vposed_ref):
    """Fused shape + pose blend shapes.

    Grid axis i = lane chunk of the flattened (component, vertex) axis.
      lhs : (2*RH, 103) bf16   rows [0:B]       = [betas | 0]
                               rows [RH:RH+B]   = [betas | pose_feat]
      dirs: (103, CH)   bf16   stacked [shapedirs ; posedirs] chunk
      vt  : (1, CH)     f32    v_template chunk
    Outputs: v_shaped, v_posed : (B, CH) f32.
    One bf16 MXU matmul produces both blend sums; f32 accumulation.
    """
    B = vshaped_ref.shape[0]
    rh = lhs_ref.shape[0] // 2
    r = jnp.dot(lhs_ref[...], dirs_ref[...],
                preferred_element_type=jnp.float32)       # (2*RH, CH) f32
    vt = vt_ref[...]                                      # (1, CH)
    vshaped_ref[...] = r[0:B] + vt                        # sb + vt
    vposed_ref[...] = r[rh:rh + B] + vt                   # sb + pb + vt


def _skin_kernel(w_ref, g_ref, vp_ref, v_ref):
    """Linear blend skinning, lane-dense (vertex-last) layout.

    Grid axis i = vertex lane chunk of width SKIN_TN.
      w : (24, TN)        bf16   transposed skinning weights chunk
      g : (4*GROUP, 24)   bf16   blended-transform coefficients; row layout is
                                 component-major groups of GROUP (>= 3B, 8-
                                 aligned) rows, rows (b*3 + k) within a group:
                                 group 0..2 = x/y/z rotation columns,
                                 group 3    = translation column.
      vp: (B, 3, TN)      f32    posed vertices chunk
    One bf16 MXU matmul blends all transforms for all batches; the epilogue is
    three sublane-dense multiply/adds (no 1-sublane slices, no concatenate).
    """
    B = vp_ref.shape[0]
    tn = vp_ref.shape[2]
    group = g_ref.shape[0] // 4
    n3 = 3 * B

    A = jnp.dot(g_ref[...], w_ref[...],
                preferred_element_type=jnp.float32)       # (4*GROUP, TN) f32
    vp = vp_ref[...]                                      # (B, 3, TN) f32
    x = vp[:, 0:1, :]
    y = vp[:, 1:2, :]
    z = vp[:, 2:3, :]

    ax = A[0 * group:0 * group + n3].reshape(B, 3, tn)
    ay = A[1 * group:1 * group + n3].reshape(B, 3, tn)
    az = A[2 * group:2 * group + n3].reshape(B, 3, tn)
    at = A[3 * group:3 * group + n3].reshape(B, 3, tn)

    v_ref[...] = ax * x + ay * y + az * z + at            # (B, 3, TN)


# ---------------------------------------------------------------------------
# pallas_call wrappers
# ---------------------------------------------------------------------------
def pallas_blend(lhs, dirs_t, v_template_flat, b):
    rows = lhs.shape[0]
    bytes_accessed = (FEAT_TOT * 3 * VP * 2            # dirs (bf16)
                      + 3 * VP * 4                      # v_template
                      + rows * FEAT_TOT * 2             # lhs
                      + 2 * b * 3 * VP * 4)             # outputs
    cost = pl.CostEstimate(
        flops=2 * rows * FEAT_TOT * 3 * VP,
        transcendentals=0,
        bytes_accessed=bytes_accessed)
    return pl.pallas_call(
        _blend_kernel,
        grid=(BLEND_CHUNKS,),
        in_specs=[
            pl.BlockSpec((rows, FEAT_TOT), lambda i: (0, 0)),
            pl.BlockSpec((FEAT_TOT, BLEND_CH), lambda i: (0, i)),
            pl.BlockSpec((1, BLEND_CH), lambda i: (0, i)),
        ],
        out_specs=(
            pl.BlockSpec((b, BLEND_CH), lambda i: (0, i)),
            pl.BlockSpec((b, BLEND_CH), lambda i: (0, i)),
        ),
        out_shape=(
            jax.ShapeDtypeStruct((b, 3 * VP), jnp.float32),   # v_shaped (c,v)
            jax.ShapeDtypeStruct((b, 3 * VP), jnp.float32),   # v_posed  (c,v)
        ),
        compiler_params=_COMPILER_PARAMS,
        cost_estimate=cost,
    )(lhs, dirs_t, v_template_flat)


def pallas_skin(weights_t, g_pad, v_posed_3):
    b = v_posed_3.shape[0]
    rows = g_pad.shape[0]
    bytes_accessed = (NUM_JOINTS * VP * 2               # weights (bf16)
                      + rows * NUM_JOINTS * 2           # g
                      + b * 3 * VP * 4                  # v_posed
                      + b * 3 * VP * 4)                 # output
    cost = pl.CostEstimate(
        flops=2 * rows * NUM_JOINTS * VP + b * 3 * 7 * VP,
        transcendentals=0,
        bytes_accessed=bytes_accessed)
    return pl.pallas_call(
        _skin_kernel,
        grid=(SKIN_STEPS,),
        in_specs=[
            pl.BlockSpec((NUM_JOINTS, SKIN_TN), lambda i: (0, i)),
            pl.BlockSpec((rows, NUM_JOINTS), lambda i: (0, 0)),
            pl.BlockSpec((b, 3, SKIN_TN), lambda i: (0, 0, i)),
        ],
        out_specs=pl.BlockSpec((b, 3, SKIN_TN), lambda i: (0, 0, i)),
        out_shape=jax.ShapeDtypeStruct((b, 3, VP), jnp.float32),
        compiler_params=_COMPILER_PARAMS,
        cost_estimate=cost,
    )(weights_t, g_pad, v_posed_3)


# ---------------------------------------------------------------------------
# Plain-JAX glue (quaternion / Rodrigues math, kinematic chain)
# ---------------------------------------------------------------------------
def _quat_feat(theta):
    l1 = jnp.linalg.norm(theta + 1e-8, axis=1)
    angle = l1[:, None]
    normalized = theta / angle
    angle = angle * 0.5
    return jnp.concatenate([jnp.sin(angle) * normalized,
                            jnp.cos(angle) - 1.0], axis=1)


def _quat2mat(quat):
    nq = quat / jnp.linalg.norm(quat, axis=1, keepdims=True)
    w, x, y, z = nq[:, 0], nq[:, 1], nq[:, 2], nq[:, 3]
    w2, x2, y2, z2 = w * w, x * x, y * y, z * z
    wx, wy, wz = w * x, w * y, w * z
    xy, xz, yz = x * y, x * z, y * z
    rot = jnp.stack([w2 + x2 - y2 - z2, 2 * xy - 2 * wz, 2 * wy + 2 * xz,
                     2 * wz + 2 * xy, w2 - x2 + y2 - z2, 2 * yz - 2 * wx,
                     2 * xz - 2 * wy, 2 * wx + 2 * yz, w2 - x2 - y2 + z2],
                    axis=1)
    return rot.reshape(-1, 3, 3)


def _rodrigues(theta):
    l1 = jnp.linalg.norm(theta + 1e-8, axis=1)
    angle = l1[:, None]
    normalized = theta / angle
    angle = angle * 0.5
    quat = jnp.concatenate([jnp.cos(angle), jnp.sin(angle) * normalized],
                           axis=1)
    return _quat2mat(quat)


def star_forward(params, pose, betas, rotation=None, translation=None,
                 left_hand=None, right_hand=None, joint_format='openpose'):
    # --- pose assembly (mirrors torch forward) ---
    if rotation is not None:
        pose = jnp.concatenate([rotation, pose], axis=1)
    else:
        rotation = jnp.zeros((1, 3), jnp.float32)
        pose = jnp.concatenate([rotation, pose], axis=1)
    if left_hand is not None and right_hand is not None:
        pose = jnp.concatenate([pose, left_hand, right_hand], axis=1)
    elif pose.shape[-1] < 72:
        left_hand = jnp.zeros_like(rotation)
        right_hand = jnp.zeros_like(rotation)
        pose = jnp.concatenate([pose, left_hand, right_hand], axis=1)
    if translation is None:
        translation = jnp.zeros_like(rotation)
    b = pose.shape[0]

    # --- pose features ---
    pose_quat = _quat_feat(pose.reshape(-1, 3)).reshape(b, -1)              # (b,96)
    pose_feat = jnp.concatenate([pose_quat[:, 4:], betas[:, 1:2]], axis=1)  # (b,93)

    # fused blend LHS: rows [0:b] = [betas|0], rows [rh:rh+b] = [betas|feat];
    # halves are padded to 8 rows so the in-kernel row slices are tile-aligned.
    rh = max(8, ((b + 7) // 8) * 8)
    lhs = jnp.zeros((2 * rh, FEAT_TOT), jnp.float32)
    lhs = lhs.at[:b, :NUM_BETAS].set(betas)
    lhs = lhs.at[rh:rh + b, :NUM_BETAS].set(betas)
    lhs = lhs.at[rh:rh + b, NUM_BETAS:].set(pose_feat)
    lhs = lhs.astype(jnp.bfloat16)

    # --- Pallas: fused shape + pose blend shapes ---
    vshaped_flat, vposed_flat = pallas_blend(
        lhs, params['dirs_t'], params['v_template_flat'], b)
    v_shaped_t = vshaped_flat.reshape(b, 3, VP)                 # lane-dense V
    v_posed_t = vposed_flat.reshape(b, 3, VP)
    v_shaped = jnp.transpose(v_shaped_t[:, :, :NUM_VERTS], (0, 2, 1))  # (b,V,3)
    v_posed = jnp.transpose(v_posed_t[:, :, :NUM_VERTS], (0, 2, 1))

    # --- joint regression, folded into betas at init (exactly linear) ---
    J = params['J_template'][None] + jnp.matmul(
        betas, params['J_shapedirs']).reshape(b, NUM_JOINTS, 3)       # (b,24,3)

    # --- rotations ---
    R = _rodrigues(pose.reshape(-1, 3)).reshape(b, 24, 3, 3)

    # --- relative joint offsets ---
    parent_idx = jnp.array(PARENTS, jnp.int32)
    J_rel = J.at[:, 1:, :].set(J[:, 1:, :] - J[:, parent_idx, :])

    # --- kinematic chain, batched by tree depth (8 levels) ---
    G_local = jnp.concatenate([R, J_rel[..., None]], axis=-1)           # (b,24,3,4)
    pad_row = jnp.broadcast_to(
        jnp.array([0.0, 0.0, 0.0, 1.0], jnp.float32).reshape(1, 1, 1, 4),
        (b, 24, 1, 4))
    G_local = jnp.concatenate([G_local, pad_row], axis=2)               # (b,24,4,4)
    G = G_local                                                         # root ok
    for lvl in _LEVELS:
        idx = jnp.array(lvl, jnp.int32)
        par = jnp.array([PARENTS[i - 1] for i in lvl], jnp.int32)
        G = G.at[:, idx].set(jnp.matmul(G[:, par], G_local[:, idx]))

    # remove rest-pose translation: t_skin = t - R_global @ J  (one einsum)
    Rg = G[:, :, :3, :3]                                                # (b,24,3,3)
    tg = G[:, :, :3, 3]                                                 # (b,24,3)
    t_skin = tg - jnp.einsum('bjrc,bjc->bjr', Rg, J)                    # (b,24,3)

    # pack skinning coefficients component-major with 8-aligned groups:
    # rows [c*group + b*3 + k] = G_skin[b, j, k, c]  (c in {x,y,z,t})
    group = ((3 * b + 7) // 8) * 8
    g4 = jnp.concatenate([jnp.transpose(Rg, (3, 0, 2, 1)),              # (3,b,3,24)
                          jnp.transpose(t_skin, (0, 2, 1))[None]],      # (1,b,3,24)
                         axis=0).reshape(4, 3 * b, NUM_JOINTS)
    g_pad = (jnp.zeros((4, group, NUM_JOINTS), jnp.float32)
             .at[:, :3 * b, :].set(g4)
             .reshape(4 * group, NUM_JOINTS)
             .astype(jnp.bfloat16))
    # TODO(synk): for strict mm-level parity with the f32 torch reference, the
    # translation group (rows [3*group:]) could be blended with f32 weights.

    # --- Pallas: linear blend skinning (lane-dense, one bf16 matmul) ---
    v_t = pallas_skin(params['weights_t'], g_pad, v_posed_t)            # (b,3,VP)
    v = (jnp.transpose(v_t[:, :, :NUM_VERTS], (0, 2, 1))
         + translation[:, None, :])                                     # (b,V,3)

    # posed joints: the torch code re-runs the identical chain; reuse G.
    posed_joints = G[:, :, :3, 3]
    J_transformed = posed_joints + translation[:, None, :]

    # --- openpose joint mapping (functional version of in-place edits) ---
    if joint_format == 'openpose':
        joints = J_transformed
        joints = joints.at[:, 12, :].set(jnp.mean(joints[:, 12:15, :], axis=1))
        joints = joints.at[:, 0, :].set(jnp.mean(joints[:, :3, :], axis=1))
        joints = joints.at[:, 15, :].set(v[:, 331, :])
    else:
        joints = J_transformed

    # TODO(synk): append_face/_extract_face path not implemented (module default
    # append_face=False).
    return {
        'vertices': v,
        'faces': jnp.broadcast_to(params['faces'],
                                  (b,) + params['faces'].shape[1:]),
        'posed': v_posed,
        'shape': v_shaped,
        'joints': joints,
        'betas': betas,
    }


# ---------------------------------------------------------------------------
# Deterministic synthetic parameter initialization (no checkpoint load)
# ---------------------------------------------------------------------------
def init_params(key):
    ks = jax.random.split(key, 6)
    v_template = jax.random.normal(ks[0], (NUM_VERTS, 3), jnp.float32) * 0.1
    shapedirs = jax.random.normal(ks[1], (NUM_VERTS, 3, NUM_BETAS),
                                  jnp.float32) * 0.01
    posedirs = jax.random.normal(ks[2], (NUM_VERTS, 3, POSE_FEAT_DIM),
                                 jnp.float32) * 0.01
    j_reg = jax.random.uniform(ks[3], (NUM_JOINTS, NUM_VERTS), jnp.float32)
    j_reg = j_reg / jnp.sum(j_reg, axis=1, keepdims=True)
    weights = jax.random.uniform(ks[4], (NUM_VERTS, NUM_JOINTS), jnp.float32)
    weights = weights / jnp.sum(weights, axis=1, keepdims=True)
    # torch buffer is int64; TPU-friendly int32 here (pass-through only)
    faces = jax.random.randint(ks[5], (1, NUM_FACES, 3), 0, NUM_VERTS,
                               dtype=jnp.int32)

    pad = VP - NUM_VERTS

    # component-major, lane-dense flattening: flat[c*VP + v] = x[v, c]
    v_template_flat = (jnp.zeros((3, VP), jnp.float32)
                       .at[:, :NUM_VERTS].set(v_template.T)
                       .reshape(1, 3 * VP))

    sd = jnp.transpose(shapedirs, (2, 1, 0))              # (10, 3, V)
    sd = jnp.pad(sd, ((0, 0), (0, 0), (0, pad)))          # (10, 3, VP)
    pdirs = jnp.transpose(posedirs, (2, 1, 0))            # (93, 3, V)
    pdirs = jnp.pad(pdirs, ((0, 0), (0, 0), (0, pad)))    # (93, 3, VP)
    # stacked [shapedirs ; posedirs] constant -> single bf16 stream
    dirs_t = (jnp.concatenate([sd, pdirs], axis=0)
              .reshape(FEAT_TOT, 3 * VP).astype(jnp.bfloat16))

    weights_t = (jnp.zeros((NUM_JOINTS, VP), jnp.float32)
                 .at[:, :NUM_VERTS].set(weights.T)).astype(jnp.bfloat16)

    # fold the joint regressor into the (linear) shape space, exactly:
    #   J(b) = J_regressor @ v_shaped(b) = J_template + betas @ J_shapedirs
    J_template = jnp.matmul(j_reg, v_template)                         # (24, 3)
    J_shapedirs = jnp.einsum('jv,vck->kjc', j_reg,
                             shapedirs).reshape(NUM_BETAS,
                                                NUM_JOINTS * 3)        # (10, 72)

    return {
        'v_template_flat': v_template_flat,   # (1, 3*VP) f32
        'dirs_t': dirs_t,                     # (103, 3*VP) bf16
        'weights_t': weights_t,               # (24, VP)  bf16 (padded cols zero)
        'J_template': J_template,             # (24, 3)   f32
        'J_shapedirs': J_shapedirs,           # (10, 72)  f32
        'faces': faces,                       # (1, 16, 3) int32
    }


if __name__ == "__main__":
    key = jax.random.PRNGKey(0)
    k_param, k_pose, k_beta, k_rot, k_trans = jax.random.split(key, 5)

    params = init_params(k_param)

    B = 2
    pose = jax.random.normal(k_pose, (B, 63), jnp.float32) * 0.1   # body pose
    betas = jax.random.normal(k_beta, (B, NUM_BETAS), jnp.float32)
    rotation = jax.random.normal(k_rot, (B, 3), jnp.float32) * 0.1
    translation = jax.random.normal(k_trans, (B, 3), jnp.float32)

    fwd = jax.jit(star_forward)
    res = fwd(params, pose, betas, rotation, translation)
    jax.block_until_ready(res)

    assert res['vertices'].shape == (B, NUM_VERTS, 3)
    assert res['posed'].shape == (B, NUM_VERTS, 3)
    assert res['shape'].shape == (B, NUM_VERTS, 3)
    assert res['joints'].shape == (B, NUM_JOINTS, 3)
    assert res['faces'].shape == (B, NUM_FACES, 3)
    print("KERNEL_OK")
</pallas_src>

<mosaic_0001>
module attributes {stable_mosaic.version = 11 : i64} {
  func.func @_blend_kernel(%arg0: i32, %arg1: memref<16x103xbf16, #tpu.memory_space<vmem>>, %arg2: memref<103x3456xbf16, #tpu.memory_space<vmem>>, %arg3: memref<1x3456xf32, #tpu.memory_space<vmem>>, %arg4: memref<2x3456xf32, #tpu.memory_space<vmem>>, %arg5: memref<2x3456xf32, #tpu.memory_space<vmem>>) attributes {dimension_semantics = [#tpu.dimension_semantics<parallel>], iteration_bounds = array<i64: 6>, scalar_prefetch = 0 : i64, scratch_operands = 0 : i64, tpu.core_type = #tpu.core_type<tc>, window_params = [{pipeline_mode = #tpu.pipeline_mode<synchronous>, transform_indices = @transform_0, window_bounds = array<i64: 16, 103>}, {transform_indices = @transform_1, window_bounds = array<i64: 103, 3456>}, {transform_indices = @transform_2, window_bounds = array<i64: 1, 3456>}, {transform_indices = @transform_3, window_bounds = array<i64: 2, 3456>}, {transform_indices = @transform_4, window_bounds = array<i64: 2, 3456>}]} {
    %c0 = arith.constant 0 : index
    %c0_0 = arith.constant 0 : index
    %0 = vector.load %arg1[%c0, %c0_0] : memref<16x103xbf16, #tpu.memory_space<vmem>>, vector<16x103xbf16>
    %c0_1 = arith.constant 0 : index
    %c0_2 = arith.constant 0 : index
    %1 = vector.load %arg2[%c0_1, %c0_2] : memref<103x3456xbf16, #tpu.memory_space<vmem>>, vector<103x3456xbf16>
    %cst = arith.constant dense<0.000000e+00> : vector<16x3456xf32>
    %2 = tpu.matmul %0, %1, %cst {dimension_numbers = #tpu.dot_dimension_numbers<[1], [0], [0], [1], [0, 0, 1, 1], [], []>} : vector<16x103xbf16>, vector<103x3456xbf16>, vector<16x3456xf32> -> vector<16x3456xf32>
    %c0_3 = arith.constant 0 : index
    %c0_4 = arith.constant 0 : index
    %3 = vector.load %arg3[%c0_3, %c0_4] : memref<1x3456xf32, #tpu.memory_space<vmem>>, vector<1x3456xf32>
    %4 = vector.extract_strided_slice %2 {offsets = [0, 0], sizes = [2, 3456], strides = [1, 1]} : vector<16x3456xf32> to vector<2x3456xf32>
    %5 = vector.broadcast %3 : vector<1x3456xf32> to vector<2x3456xf32>
    %6 = arith.addf %4, %5 : vector<2x3456xf32>
    %c0_5 = arith.constant 0 : index
    %c0_6 = arith.constant 0 : index
    %7 = vector.load %arg4[%c0_5, %c0_6] : memref<2x3456xf32, #tpu.memory_space<vmem>>, vector<2x3456xf32>
    tpu.vector_store %arg4[%c0_5, %c0_6], %6 {strides = array<i32>} : memref<2x3456xf32, #tpu.memory_space<vmem>>, vector<2x3456xf32>,
    %8 = vector.extract_strided_slice %2 {offsets = [8, 0], sizes = [2, 3456], strides = [1, 1]} : vector<16x3456xf32> to vector<2x3456xf32>
    %9 = vector.broadcast %3 : vector<1x3456xf32> to vector<2x3456xf32>
    %10 = arith.addf %8, %9 : vector<2x3456xf32>
    %c0_7 = arith.constant 0 : index
    %c0_8 = arith.constant 0 : index
    %11 = vector.load %arg5[%c0_7, %c0_8] : memref<2x3456xf32, #tpu.memory_space<vmem>>, vector<2x3456xf32>
    tpu.vector_store %arg5[%c0_7, %c0_8], %10 {strides = array<i32>} : memref<2x3456xf32, #tpu.memory_space<vmem>>, vector<2x3456xf32>,
    return
  }
  func.func @transform_0(%arg0: i32) -> (i32, i32) {
    %c0_i32 = arith.constant 0 : i32
    %c0_i32_0 = arith.constant 0 : i32
    %c0_i32_1 = arith.constant 0 : i32
    return %c0_i32, %c0_i32_0 : i32, i32
  }
  func.func @transform_1(%arg0: i32) -> (i32, i32) {
    %c0_i32 = arith.constant 0 : i32
    %c0_i32_0 = arith.constant 0 : i32
    return %c0_i32, %arg0 : i32, i32
  }
  func.func @transform_2(%arg0: i32) -> (i32, i32) {
    %c0_i32 = arith.constant 0 : i32
    %c0_i32_0 = arith.constant 0 : i32
    return %c0_i32, %arg0 : i32, i32
  }
  func.func @transform_3(%arg0: i32) -> (i32, i32) {
    %c0_i32 = arith.constant 0 : i32
    %c0_i32_0 = arith.constant 0 : i32
    return %c0_i32, %arg0 : i32, i32
  }
  func.func @transform_4(%arg0: i32) -> (i32, i32) {
    %c0_i32 = arith.constant 0 : i32
    %c0_i32_0 = arith.constant 0 : i32
    return %c0_i32, %arg0 : i32, i32
  }
}

module attributes {stable_mosaic.version = 11 : i64} {
  func.func @_skin_kernel(%arg0: i32, %arg1: memref<24x3456xbf16, #tpu.memory_space<vmem>>, %arg2: memref<32x24xbf16, #tpu.memory_space<vmem>>, %arg3: memref<2x3x3456xf32, #tpu.memory_space<vmem>>, %arg4: memref<2x3x3456xf32, #tpu.memory_space<vmem>>) attributes {dimension_semantics = [#tpu.dimension_semantics<parallel>], iteration_bounds = array<i64: 2>, scalar_prefetch = 0 : i64, scratch_operands = 0 : i64, tpu.core_type = #tpu.core_type<tc>, window_params = [{transform_indices = @transform_0, window_bounds = array<i64: 24, 3456>}, {pipeline_mode = #tpu.pipeline_mode<synchronous>, transform_indices = @transform_1, window_bounds = array<i64: 32, 24>}, {transform_indices = @transform_2, window_bounds = array<i64: 2, 3, 3456>}, {transform_indices = @transform_3, window_bounds = array<i64: 2, 3, 3456>}]} {
    %c0 = arith.constant 0 : index
    %c0_0 = arith.constant 0 : index
    %0 = vector.load %arg2[%c0, %c0_0] : memref<32x24xbf16, #tpu.memory_space<vmem>>, vector<32x24xbf16>
    %c0_1 = arith.constant 0 : index
    %c0_2 = arith.constant 0 : index
    %1 = vector.load %arg1[%c0_1, %c0_2] : memref<24x3456xbf16, #tpu.memory_space<vmem>>, vector<24x3456xbf16>
    %cst = arith.constant dense<0.000000e+00> : vector<32x3456xf32>
    %2 = tpu.matmul %0, %1, %cst {dimension_numbers = #tpu.dot_dimension_numbers<[1], [0], [0], [1], [0, 0, 1, 1], [], []>} : vector<32x24xbf16>, vector<24x3456xbf16>, vector<32x3456xf32> -> vector<32x3456xf32>
    %c0_3 = arith.constant 0 : index
    %c0_4 = arith.constant 0 : index
    %c0_5 = arith.constant 0 : index
    %3 = vector.load %arg3[%c0_3, %c0_4, %c0_5] : memref<2x3x3456xf32, #tpu.memory_space<vmem>>, vector<2x3x3456xf32>
    %4 = vector.extract_strided_slice %3 {offsets = [0, 0, 0], sizes = [2, 1, 3456], strides = [1, 1, 1]} : vector<2x3x3456xf32> to vector<2x1x3456xf32>
    %5 = vector.extract_strided_slice %3 {offsets = [0, 1, 0], sizes = [2, 1, 3456], strides = [1, 1, 1]} : vector<2x3x3456xf32> to vector<2x1x3456xf32>
    %6 = vector.extract_strided_slice %3 {offsets = [0, 2, 0], sizes = [2, 1, 3456], strides = [1, 1, 1]} : vector<2x3x3456xf32> to vector<2x1x3456xf32>
    %7 = vector.extract_strided_slice %2 {offsets = [0, 0], sizes = [6, 3456], strides = [1, 1]} : vector<32x3456xf32> to vector<6x3456xf32>
    %8 = vector.shape_cast %7 : vector<6x3456xf32> to vector<2x3x3456xf32>
    %9 = vector.extract_strided_slice %2 {offsets = [8, 0], sizes = [6, 3456], strides = [1, 1]} : vector<32x3456xf32> to vector<6x3456xf32>
    %10 = vector.shape_cast %9 : vector<6x3456xf32> to vector<2x3x3456xf32>
    %11 = vector.extract_strided_slice %2 {offsets = [16, 0], sizes = [6, 3456], strides = [1, 1]} : vector<32x3456xf32> to vector<6x3456xf32>
    %12 = vector.shape_cast %11 : vector<6x3456xf32> to vector<2x3x3456xf32>
    %13 = vector.extract_strided_slice %2 {offsets = [24, 0], sizes = [6, 3456], strides = [1, 1]} : vector<32x3456xf32> to vector<6x3456xf32>
    %14 = vector.shape_cast %13 : vector<6x3456xf32> to vector<2x3x3456xf32>
    %15 = vector.broadcast %4 : vector<2x1x3456xf32> to vector<2x3x3456xf32>
    %16 = arith.mulf %8, %15 : vector<2x3x3456xf32>
    %17 = vector.broadcast %5 : vector<2x1x3456xf32> to vector<2x3x3456xf32>
    %18 = arith.mulf %10, %17 : vector<2x3x3456xf32>
    %19 = arith.addf %16, %18 : vector<2x3x3456xf32>
    %20 = vector.broadcast %6 : vector<2x1x3456xf32> to vector<2x3x3456xf32>
    %21 = arith.mulf %12, %20 : vector<2x3x3456xf32>
    %22 = arith.addf %19, %21 : vector<2x3x3456xf32>
    %23 = arith.addf %22, %14 : vector<2x3x3456xf32>
    %c0_6 = arith.constant 0 : index
    %c0_7 = arith.constant 0 : index
    %c0_8 = arith.constant 0 : index
    %24 = vector.load %arg4[%c0_6, %c0_7, %c0_8] : memref<2x3x3456xf32, #tpu.memory_space<vmem>>, vector<2x3x3456xf32>
    tpu.vector_store %arg4[%c0_6, %c0_7, %c0_8], %23 {strides = array<i32>} : memref<2x3x3456xf32, #tpu.memory_space<vmem>>, vector<2x3x3456xf32>,
    return
  }
  func.func @transform_0(%arg0: i32) -> (i32, i32) {
    %c0_i32 = arith.constant 0 : i32
    %c0_i32_0 = arith.constant 0 : i32
    return %c0_i32, %arg0 : i32, i32
  }
  func.func @transform_1(%arg0: i32) -> (i32, i32) {
    %c0_i32 = arith.constant 0 : i32
    %c0_i32_0 = arith.constant 0 : i32
    %c0_i32_1 = arith.constant 0 : i32
    return %c0_i32, %c0_i32_0 : i32, i32
  }
  func.func @transform_2(%arg0: i32) -> (i32, i32, i32) {
    %c0_i32 = arith.constant 0 : i32
    %c0_i32_0 = arith.constant 0 : i32
    %c0_i32_1 = arith.constant 0 : i32
    return %c0_i32, %c0_i32_0, %arg0 : i32, i32, i32
  }
  func.func @transform_3(%arg0: i32) -> (i32, i32, i32) {
    %c0_i32 = arith.constant 0 : i32
    %c0_i32_0 = arith.constant 0 : i32
    %c0_i32_1 = arith.constant 0 : i32
    return %c0_i32, %c0_i32_0, %arg0 : i32, i32, i32
  }
}

</mosaic_0001>

<llo_original>
// kernel: star_forward.2
$region0: #{star_forward.2}
  #allocation0 [shape = 'u32[]', space=smem, size = 0x4, offset = 0x4, fixed_abs, tag = 'smem constant byte address 0x4 - core index']
  #allocation1 [shape = 'u32[144,128]{1,0:T(1,128)}', space=vmem, size = 0x12000, scoped, tag = 'internal scratch']
  %s0 = inlined_call_operand.vmem [shape: bf16[16,103], index: 0, kind: input, shape index: {}]
  %s1 = inlined_call_operand.hbm [shape: bf16[103,20736], index: 1, kind: input, shape index: {}]
  %s2 = inlined_call_operand.hbm [shape: f32[1,20736], index: 2, kind: input, shape index: {}]
  %s3 = inlined_call_operand.vmem [shape: f32[2,20736], index: 3, kind: output, shape index: {0}]
  %s4 = inlined_call_operand.vmem [shape: f32[2,20736], index: 4, kind: output, shape index: {1}]
  %5 = xla_tuple %s3, %s4
  %s6 = sld [smem:[#allocation0]]
  $region61: #{star_forward.2} parent=0
    _
  %s8 = ssub.s32 1, %s6
  %s9 = scalar_select 0, %s8, %s6
  $region1: #{star_forward.2} parent=0
    #allocation2 [shape = 'u8[1437696]{0}', space=vmem, size = 0x15f000, scoped, tag = 'input window, operand 1']
    #allocation3 [shape = 's32[2]{0}', space=sflag, size = 0x8, scoped, tag = 'scoped memory for star_forward.2']
    #allocation4 [shape = 'u8[27648]{0}', space=vmem, size = 0x6c00, scoped, tag = 'input window, operand 2']
    #allocation5 [shape = 's32[2]{0}', space=sflag, size = 0x8, scoped, tag = 'scoped memory for star_forward.2']
    %10 = vsyncpa [#allocation3], 0
    %s11 = scalar_lea.sflag [#allocation3], 1
    %12 = vsyncpa %s11, 0
    %13 = vsyncpa [#allocation5], 0
    %s14 = scalar_lea.sflag [#allocation5], 1
    %15 = vsyncpa %s14, 0
    loop: start=0, step=1, limit=8
    $region2: #{star_forward.2} parent=1 // loop_pre_header
      _
    $region3: #{star_forward.2} parent=1 // loop_header
      %s17 = sphi 0, %s21
      %p18 = scmp.ge.s32.totalorder %s17, 8
      %s25 = sphi 0, %s25
      %s27 = sphi 0, %s25
      %s28 = sphi 0, %s27
      %s42 = sphi 0, %s28
      %s48 = sphi 0, %s50
      %s51 = sphi 0, %s48
      %s52 = sphi 0, %s51
      %s68 = sphi 0, %s52
      %s74 = sphi 0, %s76
      %s77 = sphi 0, %s74
      %s78 = sphi 0, %s77
      %s94 = sphi 0, %s78
      %s100 = sphi 0, %s102
      %s103 = sphi 0, %s100
      %s104 = sphi 0, %s103
      %s120 = sphi 0, %s104
      %s126 = sphi 0, %s128
      %s129 = sphi 0, %s126
      %s130 = sphi 0, %s129
      %s146 = sphi 0, %s130
    $region4: #{star_forward.2} parent=1 // loop_header_branch
      %20 = sbr.rel (%p18) target = $region8
    $region5: #{star_forward.2} parent=1 // loop_body
      %s22 = ssub.s32 %s17, 1
      %s23 = ssub.s32 %s17, 2
      %s24 = sadd.s32 %s17, 1
      %s26 = sadd.s32 %s25, 1
      %p29 = scmp.eq.s32.totalorder %s17, 5
      %p30 = scmp.ne.s32.totalorder %s25, %s27
      %p31 = scmp.eq.s32.totalorder %s17, 0
      %p32 = por %p30, %p31
      %p33 = scmp.ne.s32.totalorder %s25, %s27
      %p34 = scmp.eq.s32.totalorder %s22, 5
      %p35 = por %p33, %p34
      %p36 = scmp.ne.s32.totalorder %s27, %s28
      %p37 = scmp.eq.s32.totalorder %s22, 0
      %p38 = por %p36, %p37
      %p39 = scmp.ne.s32.totalorder %s27, %s28
      %p40 = scmp.eq.s32.totalorder %s23, 5
      %p41 = por %p39, %p40
      %p43 = scmp.ne.s32.totalorder %s28, %s42
      %p44 = scmp.eq.s32.totalorder %s23, 0
      %p45 = por %p43, %p44
      %s46 = ssub.s32 %s17, %s24
      %p47 = scmp.eq.s32.totalorder %s46, 0
      %s49 = sadd.s32 %s48, 1
      %s50 = scalar_select %p47, %s48, %s49
      %p53 = pneg %p47
      %p54 = scmp.eq.s32.totalorder %s17, 5
      %p55 = por %p53, %p54
      %p56 = scmp.ne.s32.totalorder %s48, %s51
      %p57 = scmp.eq.s32.totalorder %s17, 0
      %p58 = por %p56, %p57
      %p59 = scmp.ne.s32.totalorder %s48, %s51
      %p60 = scmp.eq.s32.totalorder %s22, 5
      %p61 = por %p59, %p60
      %p62 = scmp.ne.s32.totalorder %s51, %s52
      %p63 = scmp.eq.s32.totalorder %s22, 0
      %p64 = por %p62, %p63
      %p65 = scmp.ne.s32.totalorder %s51, %s52
      %p66 = scmp.eq.s32.totalorder %s23, 5
      %p67 = por %p65, %p66
      %p69 = scmp.ne.s32.totalorder %s52, %s68
      %p70 = scmp.eq.s32.totalorder %s23, 0
      %p71 = por %p69, %p70
      %s72 = ssub.s32 %s17, %s24
      %p73 = scmp.eq.s32.totalorder %s72, 0
      %s75 = sadd.s32 %s74, 1
      %s76 = scalar_select %p73, %s74, %s75
      %p79 = pneg %p73
      %p80 = scmp.eq.s32.totalorder %s17, 5
      %p81 = por %p79, %p80
      %p82 = scmp.ne.s32.totalorder %s74, %s77
      %p83 = scmp.eq.s32.totalorder %s17, 0
      %p84 = por %p82, %p83
      %p85 = scmp.ne.s32.totalorder %s74, %s77
      %p86 = scmp.eq.s32.totalorder %s22, 5
      %p87 = por %p85, %p86
      %p88 = scmp.ne.s32.totalorder %s77, %s78
      %p89 = scmp.eq.s32.totalorder %s22, 0
      %p90 = por %p88, %p89
      %p91 = scmp.ne.s32.totalorder %s77, %s78
      %p92 = scmp.eq.s32.totalorder %s23, 5
      %p93 = por %p91, %p92
      %p95 = scmp.ne.s32.totalorder %s78, %s94
      %p96 = scmp.eq.s32.totalorder %s23, 0
      %p97 = por %p95, %p96
      %s98 = ssub.s32 %s17, %s24
      %p99 = scmp.eq.s32.totalorder %s98, 0
      %s101 = sadd.s32 %s100, 1
      %s102 = scalar_select %p99, %s100, %s101
      %p105 = pneg %p99
      %p106 = scmp.eq.s32.totalorder %s17, 5
      %p107 = por %p105, %p106
      %p108 = scmp.ne.s32.totalorder %s100, %s103
      %p109 = scmp.eq.s32.totalorder %s17, 0
      %p110 = por %p108, %p109
      %p111 = scmp.ne.s32.totalorder %s100, %s103
      %p112 = scmp.eq.s32.totalorder %s22, 5
      %p113 = por %p111, %p112
      %p114 = scmp.ne.s32.totalorder %s103, %s104
      %p115 = scmp.eq.s32.totalorder %s22, 0
      %p116 = por %p114, %p115
      %p117 = scmp.ne.s32.totalorder %s103, %s104
      %p118 = scmp.eq.s32.totalorder %s23, 5
      %p119 = por %p117, %p118
      %p121 = scmp.ne.s32.totalorder %s104, %s120
      %p122 = scmp.eq.s32.totalorder %s23, 0
      %p123 = por %p121, %p122
      %s124 = ssub.s32 %s17, %s24
      %p125 = scmp.eq.s32.totalorder %s124, 0
      %s127 = sadd.s32 %s126, 1
      %s128 = scalar_select %p125, %s126, %s127
      %p131 = pneg %p125
      %p132 = scmp.eq.s32.totalorder %s17, 5
      %p133 = por %p131, %p132
      %p134 = scmp.ne.s32.totalorder %s126, %s129
      %p135 = scmp.eq.s32.totalorder %s17, 0
      %p136 = por %p134, %p135
      %p137 = scmp.ne.s32.totalorder %s126, %s129
      %p138 = scmp.eq.s32.totalorder %s22, 5
      %p139 = por %p137, %p138
      %p140 = scmp.ne.s32.totalorder %s129, %s130
      %p141 = scmp.eq.s32.totalorder %s22, 0
      %p142 = por %p140, %p141
      %p143 = scmp.ne.s32.totalorder %s129, %s130
      %p144 = scmp.eq.s32.totalorder %s23, 5
      %p145 = por %p143, %p144
      %p147 = scmp.ne.s32.totalorder %s130, %s146
      %p148 = scmp.eq.s32.totalorder %s23, 0
      %p149 = por %p147, %p148
      %p150 = scmp.le.s32.totalorder 1, %s17
      %p151 = scmp.lt.s32.totalorder %s17, 7
      %p152 = pnand %p150, %p151
      %p153 = pneg %p152
      // Predicated region
      $region9: #{star_forward.2} parent=5 // pred_check
        _
      $region10: #{star_forward.2} parent=5 // pred_check_branch
        %155 = sbr.rel (%p152) target = $region12
      $region11: #{star_forward.2} parent=5 // pred_region
        %s156 = ssub.s32 %s17, 1
        // Predicated region
        $region13: #{star_forward.2} parent=11 // pred_check
          %p157 = pneg %p38
        $region14: #{star_forward.2} parent=11 // pred_check_branch
          %159 = sbr.rel (%p157) target = $region16
        $region15: #{star_forward.2} parent=11 // pred_region
          _
        $region16: #{star_forward.2} parent=11 // pred_fallthru
          _
      $region12: #{star_forward.2} parent=5 // pred_fallthru
        _
      %p160 = scmp.lt.s32.totalorder %s17, 6
      // Predicated region
      $region17: #{star_forward.2} parent=5 // pred_check
        %p161 = pneg %p160
      $region18: #{star_forward.2} parent=5 // pred_check_branch
        %163 = sbr.rel (%p161) target = $region20
      $region19: #{star_forward.2} parent=5 // pred_region
        // Predicated region
        $region21: #{star_forward.2} parent=19 // pred_check
          %p164 = pneg %p58
        $region22: #{star_forward.2} parent=19 // pred_check_branch
          %166 = sbr.rel (%p164) target = $region24
        $region23: #{star_forward.2} parent=19 // pred_region
          %s167 = sand.u32 %s48, 1
          %s168 = scalar_lea.sflag [#allocation3], %s167
          %s169 = sand.u32 %s48, 1
          %s170 = smul.addr %s169, 1404
          %s171 = scalar_lea.vmem [#allocation2], %s170
          %s172 = smul.u32 27, %s17
          %s174 = ssub.s32 22464, 22464
          %175 = vsyncadd %s168, %s174
          %s176 = smul.addr %s172, 64
          %s177 = scalar_lea.hbm %s1, %s176
          %s178 = sshll.u32 %s171, 4
          %s179 = int_to_ptr.vmem [resolvable:$true] %s178
          %184 = dma.hbm_to_vmem [thread:$0]  %s177, 22464, %s179, %s168, 10368, 1728, 108
        $region24: #{star_forward.2} parent=19 // pred_fallthru
          _
        // Predicated region
        $region25: #{star_forward.2} parent=19 // pred_check
          %p185 = pneg %p84
        $region26: #{star_forward.2} parent=19 // pred_check_branch
          %187 = sbr.rel (%p185) target = $region28
        $region27: #{star_forward.2} parent=19 // pred_region
          %s188 = sand.u32 %s74, 1
          %s189 = scalar_lea.sflag [#allocation5], %s188
          %s190 = sand.u32 %s74, 1
          %s191 = smul.addr %s190, 27
          %s192 = scalar_lea.vmem [#allocation4], %s191
          %s193 = smul.u32 27, %s17
          %s195 = ssub.s32 432, 432
          %196 = vsyncadd %s189, %s195
          %s197 = smul.addr %s193, 16
          %s198 = scalar_lea.hbm %s2, %s197
          %s200 = sshll.u32 %s192, 4
          %s201 = int_to_ptr.vmem [resolvable:$true] %s200
          %203 = dma.hbm_to_vmem [thread:$0]  %s198, 432, %s201, %s189
        $region28: #{star_forward.2} parent=19 // pred_fallthru
          _
      $region20: #{star_forward.2} parent=5 // pred_fallthru
        _
      %p204 = scmp.le.s32.totalorder 1, %s17
      %p205 = scmp.lt.s32.totalorder %s17, 7
      %p206 = pnand %p204, %p205
      %p207 = pneg %p206
      // Predicated region
      $region29: #{star_forward.2} parent=5 // pred_check
        _
      $region30: #{star_forward.2} parent=5 // pred_check_branch
        %209 = sbr.rel (%p206) target = $region32
      $region31: #{star_forward.2} parent=5 // pred_region
        %s210 = ssub.s32 %s17, 1
        %s211 = sand.u32 %s51, 1
        %s212 = scalar_lea.sflag [#allocation3], %s211
        %s213 = sand.u32 %s51, 1
        %s214 = smul.addr %s213, 1404
        %s215 = scalar_lea.vmem [#allocation2], %s214
        // Predicated region
        $region33: #{star_forward.2} parent=31 // pred_check
          %p216 = pneg %p64
        $region34: #{star_forward.2} parent=31 // pred_check_branch
          %218 = sbr.rel (%p216) target = $region36
        $region35: #{star_forward.2} parent=31 // pred_region
          %219 = dma.done %s212, 22464
        $region36: #{star_forward.2} parent=31 // pred_fallthru
          _
        %s220 = sand.u32 %s77, 1
        %s221 = scalar_lea.sflag [#allocation5], %s220
        %s222 = sand.u32 %s77, 1
        %s223 = smul.addr %s222, 27
        %s224 = scalar_lea.vmem [#allocation4], %s223
        // Predicated region
        $region37: #{star_forward.2} parent=31 // pred_check
          %p225 = pneg %p90
        $region38: #{star_forward.2} parent=31 // pred_check_branch
          %227 = sbr.rel (%p225) target = $region40
        $region39: #{star_forward.2} parent=31 // pred_region
          %228 = dma.done %s221, 432
        $region40: #{star_forward.2} parent=31 // pred_fallthru
          _
        %p229 = pneg %p38
        %p230 = pneg %p35
        %s231 = sand.u32 %s51, 1
        %s232 = scalar_lea.sflag [#allocation3], %s231
        %s233 = sand.u32 %s51, 1
        %s234 = smul.addr %s233, 1404
        %s235 = scalar_lea.vmem [#allocation2], %s234
        %p236 = pneg %p64
        %p237 = pneg %p61
        %s238 = sand.u32 %s77, 1
        %s239 = scalar_lea.sflag [#allocation5], %s238
        %s240 = sand.u32 %s77, 1
        %s241 = smul.addr %s240, 27
        %s242 = scalar_lea.vmem [#allocation4], %s241
        %p243 = pneg %p90
        %p244 = pneg %p87
        %p245 = pneg %p116
        %p246 = pneg %p113
        %s247 = smul.u32 27, %s22
        %p248 = scmp.lt.s32.totalorder %s247, 161
        %s249 = scalar_select %p248, %s247, 161
        %s250 = smul.addr %s249, 2
        %s251 = scalar_lea.vmem %s3, %s250
        %p252 = pneg %p142
        %p253 = pneg %p139
        %s254 = smul.u32 27, %s22
        %p255 = scmp.lt.s32.totalorder %s254, 161
        %s256 = scalar_select %p255, %s254, 161
        %s257 = smul.addr %s256, 2
        %s258 = scalar_lea.vmem %s4, %s257
        %s259 = smul.u32 27, %s22
        %s260 = smul.u32 27, %s22
        %s261 = smul.u32 27, %s22
        %p262 = scmp.lt.s32.totalorder %s261, 161
        %s263 = scalar_select %p262, %s261, 161
        %s264 = smul.addr %s263, 2
        %s265 = scalar_lea.vmem %s3, %s264
        %s266 = smul.u32 27, %s22
        %s267 = smul.u32 27, %s22
        %p268 = scmp.lt.s32.totalorder %s267, 161
        %s269 = scalar_select %p268, %s267, 161
        %s270 = smul.addr %s269, 2
        %s271 = scalar_lea.vmem %s4, %s270
        %s272 = smul.u32 27, %s22
        %v274 = vld [vmem:[%s0] sm:$0xf]
        %v275 = vld [vmem:[%s0 + $0x4] sm:$0xf]
        %v276 = vld [vmem:[%s215] sm:$0xff]
        %v277 = vld [vmem:[%s215 + $0x8] sm:$0xff]
        %v278 = vld [vmem:[%s215 + $0x10] sm:$0xff]
        %v279 = vld [vmem:[%s215 + $0x18] sm:$0xff]
        %v280 = vld [vmem:[%s215 + $0x20] sm:$0xff]
        %v281 = vld [vmem:[%s215 + $0x28] sm:$0xff]
        %v282 = vld [vmem:[%s215 + $0x30] sm:$0xff]
        %v283 = vld [vmem:[%s215 + $0x38] sm:$0xff]
        %v284 = vld [vmem:[%s215 + $0x40] sm:$0xff]
        %v285 = vld [vmem:[%s215 + $0x48] sm:$0xff]
        %v286 = vld [vmem:[%s215 + $0x50] sm:$0xff]
        %v287 = vld [vmem:[%s215 + $0x58] sm:$0xff]
        %v288 = vld [vmem:[%s215 + $0x60] sm:$0xff]
        %v289 = vld [vmem:[%s215 + $0x68] sm:$0xf]
        %v290 = vld [vmem:[%s215 + $0x6c] sm:$0xff]
        %v291 = vld [vmem:[%s215 + $0x74] sm:$0xff]
        %v292 = vld [vmem:[%s215 + $0x7c] sm:$0xff]
        %v293 = vld [vmem:[%s215 + $0x84] sm:$0xff]
        %v294 = vld [vmem:[%s215 + $0x8c] sm:$0xff]
        %v295 = vld [vmem:[%s215 + $0x94] sm:$0xff]
        %v296 = vld [vmem:[%s215 + $0x9c] sm:$0xff]
        %v297 = vld [vmem:[%s215 + $0xa4] sm:$0xff]
        %v298 = vld [vmem:[%s215 + $0xac] sm:$0xff]
        %v299 = vld [vmem:[%s215 + $0xb4] sm:$0xff]
        %v300 = vld [vmem:[%s215 + $0xbc] sm:$0xff]
        %v301 = vld [vmem:[%s215 + $0xc4] sm:$0xff]
        %v302 = vld [vmem:[%s215 + $0xcc] sm:$0xff]
        %v303 = vld [vmem:[%s215 + $0xd4] sm:$0xf]
        %v304 = vld [vmem:[%s215 + $0xd8] sm:$0xff]
        %v305 = vld [vmem:[%s215 + $0xe0] sm:$0xff]
        %v306 = vld [vmem:[%s215 + $0xe8] sm:$0xff]
        %v307 = vld [vmem:[%s215 + $0xf0] sm:$0xff]
        %v308 = vld [vmem:[%s215 + $0xf8] sm:$0xff]
        %v309 = vld [vmem:[%s215 + $0x100] sm:$0xff]
        %v310 = vld [vmem:[%s215 + $0x108] sm:$0xff]
        %v311 = vld [vmem:[%s215 + $0x110] sm:$0xff]
        %v312 = vld [vmem:[%s215 + $0x118] sm:$0xff]
        %v313 = vld [vmem:[%s215 + $0x120] sm:$0xff]
        %v314 = vld [vmem:[%s215 + $0x128] sm:$0xff]
        %v315 = vld [vmem:[%s215 + $0x130] sm:$0xff]
        %v316 = vld [vmem:[%s215 + $0x138] sm:$0xff]
        %v317 = vld [vmem:[%s215 + $0x140] sm:$0xf]
        %v318 = vld [vmem:[%s215 + $0x144] sm:$0xff]
        %v319 = vld [vmem:[%s215 + $0x14c] sm:$0xff]
        %v320 = vld [vmem:[%s215 + $0x154] sm:$0xff]
        %v321 = vld [vmem:[%s215 + $0x15c] sm:$0xff]
        %v322 = vld [vmem:[%s215 + $0x164] sm:$0xff]
        %v323 = vld [vmem:[%s215 + $0x16c] sm:$0xff]
        %v324 = vld [vmem:[%s215 + $0x174] sm:$0xff]
        %v325 = vld [vmem:[%s215 + $0x17c] sm:$0xff]
        %v326 = vld [vmem:[%s215 + $0x184] sm:$0xff]
        %v327 = vld [vmem:[%s215 + $0x18c] sm:$0xff]
        %v328 = vld [vmem:[%s215 + $0x194] sm:$0xff]
        %v329 = vld [vmem:[%s215 + $0x19c] sm:$0xff]
        %v330 = vld [vmem:[%s215 + $0x1a4] sm:$0xff]
        %v331 = vld [vmem:[%s215 + $0x1ac] sm:$0xf]
        %v332 = vld [vmem:[%s215 + $0x1b0] sm:$0xff]
        %v333 = vld [vmem:[%s215 + $0x1b8] sm:$0xff]
        %v334 = vld [vmem:[%s215 + $0x1c0] sm:$0xff]
        %v335 = vld [vmem:[%s215 + $0x1c8] sm:$0xff]
        %v336 = vld [vmem:[%s215 + $0x1d0] sm:$0xff]
        %v337 = vld [vmem:[%s215 + $0x1d8] sm:$0xff]
        %v338 = vld [vmem:[%s215 + $0x1e0] sm:$0xff]
        %v339 = vld [vmem:[%s215 + $0x1e8] sm:$0xff]
        %v340 = vld [vmem:[%s215 + $0x1f0] sm:$0xff]
        %v341 = vld [vmem:[%s215 + $0x1f8] sm:$0xff]
        %v342 = vld [vmem:[%s215 + $0x200] sm:$0xff]
        %v343 = vld [vmem:[%s215 + $0x208] sm:$0xff]
        %v344 = vld [vmem:[%s215 + $0x210] sm:$0xff]
        %v345 = vld [vmem:[%s215 + $0x218] sm:$0xf]
        %v346 = vld [vmem:[%s215 + $0x21c] sm:$0xff]
        %v347 = vld [vmem:[%s215 + $0x224] sm:$0xff]
        %v348 = vld [vmem:[%s215 + $0x22c] sm:$0xff]
        %v349 = vld [vmem:[%s215 + $0x234] sm:$0xff]
        %v350 = vld [vmem:[%s215 + $0x23c] sm:$0xff]
        %v351 = vld [vmem:[%s215 + $0x244] sm:$0xff]
        %v352 = vld [vmem:[%s215 + $0x24c] sm:$0xff]
        %v353 = vld [vmem:[%s215 + $0x254] sm:$0xff]
        %v354 = vld [vmem:[%s215 + $0x25c] sm:$0xff]
        %v355 = vld [vmem:[%s215 + $0x264] sm:$0xff]
        %v356 = vld [vmem:[%s215 + $0x26c] sm:$0xff]
        %v357 = vld [vmem:[%s215 + $0x274] sm:$0xff]
        %v358 = vld [vmem:[%s215 + $0x27c] sm:$0xff]
        %v359 = vld [vmem:[%s215 + $0x284] sm:$0xf]
        %v360 = vld [vmem:[%s215 + $0x288] sm:$0xff]
        %v361 = vld [vmem:[%s215 + $0x290] sm:$0xff]
        %v362 = vld [vmem:[%s215 + $0x298] sm:$0xff]
        %v363 = vld [vmem:[%s215 + $0x2a0] sm:$0xff]
        %v364 = vld [vmem:[%s215 + $0x2a8] sm:$0xff]
        %v365 = vld [vmem:[%s215 + $0x2b0] sm:$0xff]
        %v366 = vld [vmem:[%s215 + $0x2b8] sm:$0xff]
        %v367 = vld [vmem:[%s215 + $0x2c0] sm:$0xff]
        %v368 = vld [vmem:[%s215 + $0x2c8] sm:$0xff]
        %v369 = vld [vmem:[%s215 + $0x2d0] sm:$0xff]
        %v370 = vld [vmem:[%s215 + $0x2d8] sm:$0xff]
        %v371 = vld [vmem:[%s215 + $0x2e0] sm:$0xff]
        %v372 = vld [vmem:[%s215 + $0x2e8] sm:$0xff]
        %v373 = vld [vmem:[%s215 + $0x2f0] sm:$0xf]
        %v374 = vld [vmem:[%s215 + $0x2f4] sm:$0xff]
        %v375 = vld [vmem:[%s215 + $0x2fc] sm:$0xff]
        %v376 = vld [vmem:[%s215 + $0x304] sm:$0xff]
        %v377 = vld [vmem:[%s215 + $0x30c] sm:$0xff]
        %v378 = vld [vmem:[%s215 + $0x314] sm:$0xff]
        %v379 = vld [vmem:[%s215 + $0x31c] sm:$0xff]
        %v380 = vld [vmem:[%s215 + $0x324] sm:$0xff]
        %v381 = vld [vmem:[%s215 + $0x32c] sm:$0xff]
        %v382 = vld [vmem:[%s215 + $0x334] sm:$0xff]
        %v383 = vld [vmem:[%s215 + $0x33c] sm:$0xff]
        %v384 = vld [vmem:[%s215 + $0x344] sm:$0xff]
        %v385 = vld [vmem:[%s215 + $0x34c] sm:$0xff]
        %v386 = vld [vmem:[%s215 + $0x354] sm:$0xff]
        %v387 = vld [vmem:[%s215 + $0x35c] sm:$0xf]
        %v388 = vld [vmem:[%s215 + $0x360] sm:$0xff]
        %v389 = vld [vmem:[%s215 + $0x368] sm:$0xff]
        %v390 = vld [vmem:[%s215 + $0x370] sm:$0xff]
        %v391 = vld [vmem:[%s215 + $0x378] sm:$0xff]
        %v392 = vld [vmem:[%s215 + $0x380] sm:$0xff]
        %v393 = vld [vmem:[%s215 + $0x388] sm:$0xff]
        %v394 = vld [vmem:[%s215 + $0x390] sm:$0xff]
        %v395 = vld [vmem:[%s215 + $0x398] sm:$0xff]
        %v396 = vld [vmem:[%s215 + $0x3a0] sm:$0xff]
        %v397 = vld [vmem:[%s215 + $0x3a8] sm:$0xff]
        %v398 = vld [vmem:[%s215 + $0x3b0] sm:$0xff]
        %v399 = vld [vmem:[%s215 + $0x3b8] sm:$0xff]
        %v400 = vld [vmem:[%s215 + $0x3c0] sm:$0xff]
        %v401 = vld [vmem:[%s215 + $0x3c8] sm:$0xf]
        %v402 = vld [vmem:[%s215 + $0x3cc] sm:$0xff]
        %v403 = vld [vmem:[%s215 + $0x3d4] sm:$0xff]
        %v404 = vld [vmem:[%s215 + $0x3dc] sm:$0xff]
        %v405 = vld [vmem:[%s215 + $0x3e4] sm:$0xff]
        %v406 = vld [vmem:[%s215 + $0x3ec] sm:$0xff]
        %v407 = vld [vmem:[%s215 + $0x3f4] sm:$0xff]
        %v408 = vld [vmem:[%s215 + $0x3fc] sm:$0xff]
        %v409 = vld [vmem:[%s215 + $0x404] sm:$0xff]
        %v410 = vld [vmem:[%s215 + $0x40c] sm:$0xff]
        %v411 = vld [vmem:[%s215 + $0x414] sm:$0xff]
        %v412 = vld [vmem:[%s215 + $0x41c] sm:$0xff]
        %v413 = vld [vmem:[%s215 + $0x424] sm:$0xff]
        %v414 = vld [vmem:[%s215 + $0x42c] sm:$0xff]
        %v415 = vld [vmem:[%s215 + $0x434] sm:$0xf]
        %v416 = vld [vmem:[%s215 + $0x438] sm:$0xff]
        %v417 = vld [vmem:[%s215 + $0x440] sm:$0xff]
        %v418 = vld [vmem:[%s215 + $0x448] sm:$0xff]
        %v419 = vld [vmem:[%s215 + $0x450] sm:$0xff]
        %v420 = vld [vmem:[%s215 + $0x458] sm:$0xff]
        %v421 = vld [vmem:[%s215 + $0x460] sm:$0xff]
        %v422 = vld [vmem:[%s215 + $0x468] sm:$0xff]
        %v423 = vld [vmem:[%s215 + $0x470] sm:$0xff]
        %v424 = vld [vmem:[%s215 + $0x478] sm:$0xff]
        %v425 = vld [vmem:[%s215 + $0x480] sm:$0xff]
        %v426 = vld [vmem:[%s215 + $0x488] sm:$0xff]
        %v427 = vld [vmem:[%s215 + $0x490] sm:$0xff]
        %v428 = vld [vmem:[%s215 + $0x498] sm:$0xff]
        %v429 = vld [vmem:[%s215 + $0x4a0] sm:$0xf]
        %v430 = vld [vmem:[%s215 + $0x4a4] sm:$0xff]
        %v431 = vld [vmem:[%s215 + $0x4ac] sm:$0xff]
        %v432 = vld [vmem:[%s215 + $0x4b4] sm:$0xff]
        %v433 = vld [vmem:[%s215 + $0x4bc] sm:$0xff]
        %v434 = vld [vmem:[%s215 + $0x4c4] sm:$0xff]
        %v435 = vld [vmem:[%s215 + $0x4cc] sm:$0xff]
        %v436 = vld [vmem:[%s215 + $0x4d4] sm:$0xff]
        %v437 = vld [vmem:[%s215 + $0x4dc] sm:$0xff]
        %v438 = vld [vmem:[%s215 + $0x4e4] sm:$0xff]
        %v439 = vld [vmem:[%s215 + $0x4ec] sm:$0xff]
        %v440 = vld [vmem:[%s215 + $0x4f4] sm:$0xff]
        %v441 = vld [vmem:[%s215 + $0x4fc] sm:$0xff]
        %v442 = vld [vmem:[%s215 + $0x504] sm:$0xff]
        %v443 = vld [vmem:[%s215 + $0x50c] sm:$0xf]
        %v444 = vld [vmem:[%s215 + $0x510] sm:$0xff]
        %v445 = vld [vmem:[%s215 + $0x518] sm:$0xff]
        %v446 = vld [vmem:[%s215 + $0x520] sm:$0xff]
        %v447 = vld [vmem:[%s215 + $0x528] sm:$0xff]
        %v448 = vld [vmem:[%s215 + $0x530] sm:$0xff]
        %v449 = vld [vmem:[%s215 + $0x538] sm:$0xff]
        %v450 = vld [vmem:[%s215 + $0x540] sm:$0xff]
        %v451 = vld [vmem:[%s215 + $0x548] sm:$0xff]
        %v452 = vld [vmem:[%s215 + $0x550] sm:$0xff]
        %v453 = vld [vmem:[%s215 + $0x558] sm:$0xff]
        %v454 = vld [vmem:[%s215 + $0x560] sm:$0xff]
        %v455 = vld [vmem:[%s215 + $0x568] sm:$0xff]
        %v456 = vld [vmem:[%s215 + $0x570] sm:$0xff]
        %v457 = vld [vmem:[%s215 + $0x578] sm:$0xf]
        %v460 = vunpack.c.l.b16 %v274
        %v461 = vunpack.c.l.b16 %v275
        %v462 = vpack.c.b16 %v461, %v460
        %v645 = vunpack.c.l.b16 %v276
        %v646 = vunpack.c.h.b16 %v276
        %v647 = vunpack.c.l.b16 %v277
        %v648 = vunpack.c.h.b16 %v277
        %v649 = vunpack.c.l.b16 %v278
        %v650 = vunpack.c.h.b16 %v278
        %v651 = vunpack.c.l.b16 %v279
        %v652 = vunpack.c.h.b16 %v279
        %v653 = vunpack.c.l.b16 %v280
        %v654 = vunpack.c.h.b16 %v280
        %v655 = vunpack.c.l.b16 %v281
        %v656 = vunpack.c.h.b16 %v281
        %v657 = vunpack.c.l.b16 %v282
        %v658 = vunpack.c.h.b16 %v282
        %v659 = vunpack.c.l.b16 %v283
        %v660 = vunpack.c.h.b16 %v283
        %v661 = vunpack.c.l.b16 %v284
        %v662 = vunpack.c.h.b16 %v284
        %v663 = vunpack.c.l.b16 %v285
        %v664 = vunpack.c.h.b16 %v285
        %v665 = vunpack.c.l.b16 %v286
        %v666 = vunpack.c.h.b16 %v286
        %v667 = vunpack.c.l.b16 %v287
        %v668 = vunpack.c.h.b16 %v287
        %v669 = vunpack.c.l.b16 %v288
        %v670 = vunpack.c.h.b16 %v288
        %v671 = vunpack.c.l.b16 %v289
        %v672 = vunpack.c.l.b16 %v290
        %v673 = vunpack.c.h.b16 %v290
        %v674 = vunpack.c.l.b16 %v291
        %v675 = vunpack.c.h.b16 %v291
        %v676 = vunpack.c.l.b16 %v292
        %v677 = vunpack.c.h.b16 %v292
        %v678 = vunpack.c.l.b16 %v293
        %v679 = vunpack.c.h.b16 %v293
        %v680 = vunpack.c.l.b16 %v294
        %v681 = vunpack.c.h.b16 %v294
        %v682 = vunpack.c.l.b16 %v295
        %v683 = vunpack.c.h.b16 %v295
        %v684 = vunpack.c.l.b16 %v296
        %v685 = vunpack.c.h.b16 %v296
        %v686 = vunpack.c.l.b16 %v297
        %v687 = vunpack.c.h.b16 %v297
        %v688 = vunpack.c.l.b16 %v298
        %v689 = vunpack.c.h.b16 %v298
        %v690 = vunpack.c.l.b16 %v299
        %v691 = vunpack.c.h.b16 %v299
        %v692 = vunpack.c.l.b16 %v300
        %v693 = vunpack.c.h.b16 %v300
        %v694 = vunpack.c.l.b16 %v301
        %v695 = vunpack.c.h.b16 %v301
        %v696 = vunpack.c.l.b16 %v302
        %v697 = vunpack.c.h.b16 %v302
        %v698 = vunpack.c.l.b16 %v303
        %v699 = vunpack.c.l.b16 %v304
        %v700 = vunpack.c.h.b16 %v304
        %v701 = vunpack.c.l.b16 %v305
        %v702 = vunpack.c.h.b16 %v305
        %v703 = vunpack.c.l.b16 %v306
        %v704 = vunpack.c.h.b16 %v306
        %v705 = vunpack.c.l.b16 %v307
        %v706 = vunpack.c.h.b16 %v307
        %v707 = vunpack.c.l.b16 %v308
        %v708 = vunpack.c.h.b16 %v308
        %v709 = vunpack.c.l.b16 %v309
        %v710 = vunpack.c.h.b16 %v309
        %v711 = vunpack.c.l.b16 %v310
        %v712 = vunpack.c.h.b16 %v310
        %v713 = vunpack.c.l.b16 %v311
        %v714 = vunpack.c.h.b16 %v311
        %v715 = vunpack.c.l.b16 %v312
        %v716 = vunpack.c.h.b16 %v312
        %v717 = vunpack.c.l.b16 %v313
        %v718 = vunpack.c.h.b16 %v313
        %v719 = vunpack.c.l.b16 %v314
        %v720 = vunpack.c.h.b16 %v314
        %v721 = vunpack.c.l.b16 %v315
        %v722 = vunpack.c.h.b16 %v315
        %v723 = vunpack.c.l.b16 %v316
        %v724 = vunpack.c.h.b16 %v316
        %v725 = vunpack.c.l.b16 %v317
        %v726 = vunpack.c.l.b16 %v318
        %v727 = vunpack.c.h.b16 %v318
        %v728 = vunpack.c.l.b16 %v319
        %v729 = vunpack.c.h.b16 %v319
        %v730 = vunpack.c.l.b16 %v320
        %v731 = vunpack.c.h.b16 %v320
        %v732 = vunpack.c.l.b16 %v321
        %v733 = vunpack.c.h.b16 %v321
        %v734 = vunpack.c.l.b16 %v322
        %v735 = vunpack.c.h.b16 %v322
        %v736 = vunpack.c.l.b16 %v323
        %v737 = vunpack.c.h.b16 %v323
        %v738 = vunpack.c.l.b16 %v324
        %v739 = vunpack.c.h.b16 %v324
        %v740 = vunpack.c.l.b16 %v325
        %v741 = vunpack.c.h.b16 %v325
        %v742 = vunpack.c.l.b16 %v326
        %v743 = vunpack.c.h.b16 %v326
        %v744 = vunpack.c.l.b16 %v327
        %v745 = vunpack.c.h.b16 %v327
        %v746 = vunpack.c.l.b16 %v328
        %v747 = vunpack.c.h.b16 %v328
        %v748 = vunpack.c.l.b16 %v329
        %v749 = vunpack.c.h.b16 %v329
        %v750 = vunpack.c.l.b16 %v330
        %v751 = vunpack.c.h.b16 %v330
        %v752 = vunpack.c.l.b16 %v331
        %v753 = vunpack.c.l.b16 %v332
        %v754 = vunpack.c.h.b16 %v332
        %v755 = vunpack.c.l.b16 %v333
        %v756 = vunpack.c.h.b16 %v333
        %v757 = vunpack.c.l.b16 %v334
        %v758 = vunpack.c.h.b16 %v334
        %v759 = vunpack.c.l.b16 %v335
        %v760 = vunpack.c.h.b16 %v335
        %v761 = vunpack.c.l.b16 %v336
        %v762 = vunpack.c.h.b16 %v336
        %v763 = vunpack.c.l.b16 %v337
        %v764 = vunpack.c.h.b16 %v337
        %v765 = vunpack.c.l.b16 %v338
        %v766 = vunpack.c.h.b16 %v338
        %v767 = vunpack.c.l.b16 %v339
        %v768 = vunpack.c.h.b16 %v339
        %v769 = vunpack.c.l.b16 %v340
        %v770 = vunpack.c.h.b16 %v340
        %v771 = vunpack.c.l.b16 %v341
        %v772 = vunpack.c.h.b16 %v341
        %v773 = vunpack.c.l.b16 %v342
        %v774 = vunpack.c.h.b16 %v342
        %v775 = vunpack.c.l.b16 %v343
        %v776 = vunpack.c.h.b16 %v343
        %v777 = vunpack.c.l.b16 %v344
        %v778 = vunpack.c.h.b16 %v344
        %v779 = vunpack.c.l.b16 %v345
        %v780 = vunpack.c.l.b16 %v346
        %v781 = vunpack.c.h.b16 %v346
        %v782 = vunpack.c.l.b16 %v347
        %v783 = vunpack.c.h.b16 %v347
        %v784 = vunpack.c.l.b16 %v348
        %v785 = vunpack.c.h.b16 %v348
        %v786 = vunpack.c.l.b16 %v349
        %v787 = vunpack.c.h.b16 %v349
        %v788 = vunpack.c.l.b16 %v350
        %v789 = vunpack.c.h.b16 %v350
        %v790 = vunpack.c.l.b16 %v351
        %v791 = vunpack.c.h.b16 %v351
        %v792 = vunpack.c.l.b16 %v352
        %v793 = vunpack.c.h.b16 %v352
        %v794 = vunpack.c.l.b16 %v353
        %v795 = vunpack.c.h.b16 %v353
        %v796 = vunpack.c.l.b16 %v354
        %v797 = vunpack.c.h.b16 %v354
        %v798 = vunpack.c.l.b16 %v355
        %v799 = vunpack.c.h.b16 %v355
        %v800 = vunpack.c.l.b16 %v356
        %v801 = vunpack.c.h.b16 %v356
        %v802 = vunpack.c.l.b16 %v357
        %v803 = vunpack.c.h.b16 %v357
        %v804 = vunpack.c.l.b16 %v358
        %v805 = vunpack.c.h.b16 %v358
        %v806 = vunpack.c.l.b16 %v359
        %v807 = vunpack.c.l.b16 %v360
        %v808 = vunpack.c.h.b16 %v360
        %v809 = vunpack.c.l.b16 %v361
        %v810 = vunpack.c.h.b16 %v361
        %v811 = vunpack.c.l.b16 %v362
        %v812 = vunpack.c.h.b16 %v362
        %v813 = vunpack.c.l.b16 %v363
        %v814 = vunpack.c.h.b16 %v363
        %v815 = vunpack.c.l.b16 %v364
        %v816 = vunpack.c.h.b16 %v364
        %v817 = vunpack.c.l.b16 %v365
        %v818 = vunpack.c.h.b16 %v365
        %v819 = vunpack.c.l.b16 %v366
        %v820 = vunpack.c.h.b16 %v366
        %v821 = vunpack.c.l.b16 %v367
        %v822 = vunpack.c.h.b16 %v367
        %v823 = vunpack.c.l.b16 %v368
        %v824 = vunpack.c.h.b16 %v368
        %v825 = vunpack.c.l.b16 %v369
        %v826 = vunpack.c.h.b16 %v369
        %v827 = vunpack.c.l.b16 %v370
        %v828 = vunpack.c.h.b16 %v370
        %v829 = vunpack.c.l.b16 %v371
        %v830 = vunpack.c.h.b16 %v371
        %v831 = vunpack.c.l.b16 %v372
        %v832 = vunpack.c.h.b16 %v372
        %v833 = vunpack.c.l.b16 %v373
        %v834 = vunpack.c.l.b16 %v374
        %v835 = vunpack.c.h.b16 %v374
        %v836 = vunpack.c.l.b16 %v375
        %v837 = vunpack.c.h.b16 %v375
        %v838 = vunpack.c.l.b16 %v376
        %v839 = vunpack.c.h.b16 %v376
        %v840 = vunpack.c.l.b16 %v377
        %v841 = vunpack.c.h.b16 %v377
        %v842 = vunpack.c.l.b16 %v378
        %v843 = vunpack.c.h.b16 %v378
        %v844 = vunpack.c.l.b16 %v379
        %v845 = vunpack.c.h.b16 %v379
        %v846 = vunpack.c.l.b16 %v380
        %v847 = vunpack.c.h.b16 %v380
        %v848 = vunpack.c.l.b16 %v381
        %v849 = vunpack.c.h.b16 %v381
        %v850 = vunpack.c.l.b16 %v382
        %v851 = vunpack.c.h.b16 %v382
        %v852 = vunpack.c.l.b16 %v383
        %v853 = vunpack.c.h.b16 %v383
        %v854 = vunpack.c.l.b16 %v384
        %v855 = vunpack.c.h.b16 %v384
        %v856 = vunpack.c.l.b16 %v385
        %v857 = vunpack.c.h.b16 %v385
        %v858 = vunpack.c.l.b16 %v386
        %v859 = vunpack.c.h.b16 %v386
        %v860 = vunpack.c.l.b16 %v387
        %v861 = vunpack.c.l.b16 %v388
        %v862 = vunpack.c.h.b16 %v388
        %v863 = vunpack.c.l.b16 %v389
        %v864 = vunpack.c.h.b16 %v389
        %v865 = vunpack.c.l.b16 %v390
        %v866 = vunpack.c.h.b16 %v390
        %v867 = vunpack.c.l.b16 %v391
        %v868 = vunpack.c.h.b16 %v391
        %v869 = vunpack.c.l.b16 %v392
        %v870 = vunpack.c.h.b16 %v392
        %v871 = vunpack.c.l.b16 %v393
        %v872 = vunpack.c.h.b16 %v393
        %v873 = vunpack.c.l.b16 %v394
        %v874 = vunpack.c.h.b16 %v394
        %v875 = vunpack.c.l.b16 %v395
        %v876 = vunpack.c.h.b16 %v395
        %v877 = vunpack.c.l.b16 %v396
        %v878 = vunpack.c.h.b16 %v396
        %v879 = vunpack.c.l.b16 %v397
        %v880 = vunpack.c.h.b16 %v397
        %v881 = vunpack.c.l.b16 %v398
        %v882 = vunpack.c.h.b16 %v398
        %v883 = vunpack.c.l.b16 %v399
        %v884 = vunpack.c.h.b16 %v399
        %v885 = vunpack.c.l.b16 %v400
        %v886 = vunpack.c.h.b16 %v400
        %v887 = vunpack.c.l.b16 %v401
        %v888 = vunpack.c.l.b16 %v402
        %v889 = vunpack.c.h.b16 %v402
        %v890 = vunpack.c.l.b16 %v403
        %v891 = vunpack.c.h.b16 %v403
        %v892 = vunpack.c.l.b16 %v404
        %v893 = vunpack.c.h.b16 %v404
        %v894 = vunpack.c.l.b16 %v405
        %v895 = vunpack.c.h.b16 %v405
        %v896 = vunpack.c.l.b16 %v406
        %v897 = vunpack.c.h.b16 %v406
        %v898 = vunpack.c.l.b16 %v407
        %v899 = vunpack.c.h.b16 %v407
        %v900 = vunpack.c.l.b16 %v408
        %v901 = vunpack.c.h.b16 %v408
        %v902 = vunpack.c.l.b16 %v409
        %v903 = vunpack.c.h.b16 %v409
        %v904 = vunpack.c.l.b16 %v410
        %v905 = vunpack.c.h.b16 %v410
        %v906 = vunpack.c.l.b16 %v411
        %v907 = vunpack.c.h.b16 %v411
        %v908 = vunpack.c.l.b16 %v412
        %v909 = vunpack.c.h.b16 %v412
        %v910 = vunpack.c.l.b16 %v413
        %v911 = vunpack.c.h.b16 %v413
        %v912 = vunpack.c.l.b16 %v414
        %v913 = vunpack.c.h.b16 %v414
        %v914 = vunpack.c.l.b16 %v415
        %v915 = vunpack.c.l.b16 %v416
        %v916 = vunpack.c.h.b16 %v416
        %v917 = vunpack.c.l.b16 %v417
        %v918 = vunpack.c.h.b16 %v417
        %v919 = vunpack.c.l.b16 %v418
        %v920 = vunpack.c.h.b16 %v418
        %v921 = vunpack.c.l.b16 %v419
        %v922 = vunpack.c.h.b16 %v419
        %v923 = vunpack.c.l.b16 %v420
        %v924 = vunpack.c.h.b16 %v420
        %v925 = vunpack.c.l.b16 %v421
        %v926 = vunpack.c.h.b16 %v421
        %v927 = vunpack.c.l.b16 %v422
        %v928 = vunpack.c.h.b16 %v422
        %v929 = vunpack.c.l.b16 %v423
        %v930 = vunpack.c.h.b16 %v423
        %v931 = vunpack.c.l.b16 %v424
        %v932 = vunpack.c.h.b16 %v424
        %v933 = vunpack.c.l.b16 %v425
        %v934 = vunpack.c.h.b16 %v425
        %v935 = vunpack.c.l.b16 %v426
        %v936 = vunpack.c.h.b16 %v426
        %v937 = vunpack.c.l.b16 %v427
        %v938 = vunpack.c.h.b16 %v427
        %v939 = vunpack.c.l.b16 %v428
        %v940 = vunpack.c.h.b16 %v428
        %v941 = vunpack.c.l.b16 %v429
        %v942 = vunpack.c.l.b16 %v430
        %v943 = vunpack.c.h.b16 %v430
        %v944 = vunpack.c.l.b16 %v431
        %v945 = vunpack.c.h.b16 %v431
        %v946 = vunpack.c.l.b16 %v432
        %v947 = vunpack.c.h.b16 %v432
        %v948 = vunpack.c.l.b16 %v433
        %v949 = vunpack.c.h.b16 %v433
        %v950 = vunpack.c.l.b16 %v434
        %v951 = vunpack.c.h.b16 %v434
        %v952 = vunpack.c.l.b16 %v435
        %v953 = vunpack.c.h.b16 %v435
        %v954 = vunpack.c.l.b16 %v436
        %v955 = vunpack.c.h.b16 %v436
        %v956 = vunpack.c.l.b16 %v437
        %v957 = vunpack.c.h.b16 %v437
        %v958 = vunpack.c.l.b16 %v438
        %v959 = vunpack.c.h.b16 %v438
        %v960 = vunpack.c.l.b16 %v439
        %v961 = vunpack.c.h.b16 %v439
        %v962 = vunpack.c.l.b16 %v440
        %v963 = vunpack.c.h.b16 %v440
        %v964 = vunpack.c.l.b16 %v441
        %v965 = vunpack.c.h.b16 %v441
        %v966 = vunpack.c.l.b16 %v442
        %v967 = vunpack.c.h.b16 %v442
        %v968 = vunpack.c.l.b16 %v443
        %v969 = vunpack.c.l.b16 %v444
        %v970 = vunpack.c.h.b16 %v444
        %v971 = vunpack.c.l.b16 %v445
        %v972 = vunpack.c.h.b16 %v445
        %v973 = vunpack.c.l.b16 %v446
        %v974 = vunpack.c.h.b16 %v446
        %v975 = vunpack.c.l.b16 %v447
        %v976 = vunpack.c.h.b16 %v447
        %v977 = vunpack.c.l.b16 %v448
        %v978 = vunpack.c.h.b16 %v448
        %v979 = vunpack.c.l.b16 %v449
        %v980 = vunpack.c.h.b16 %v449
        %v981 = vunpack.c.l.b16 %v450
        %v982 = vunpack.c.h.b16 %v450
        %v983 = vunpack.c.l.b16 %v451
        %v984 = vunpack.c.h.b16 %v451
        %v985 = vunpack.c.l.b16 %v452
        %v986 = vunpack.c.h.b16 %v452
        %v987 = vunpack.c.l.b16 %v453
        %v988 = vunpack.c.h.b16 %v453
        %v989 = vunpack.c.l.b16 %v454
        %v990 = vunpack.c.h.b16 %v454
        %v991 = vunpack.c.l.b16 %v455
        %v992 = vunpack.c.h.b16 %v455
        %v993 = vunpack.c.l.b16 %v456
        %v994 = vunpack.c.h.b16 %v456
        %v995 = vunpack.c.l.b16 %v457
        %v996 = vpack.c.b16 %v672, %v645
        %v997 = vpack.c.b16 %v673, %v646
        %v998 = vpack.c.b16 %v674, %v647
        %v999 = vpack.c.b16 %v675, %v648
        %v1000 = vpack.c.b16 %v676, %v649
        %v1001 = vpack.c.b16 %v677, %v650
        %v1002 = vpack.c.b16 %v678, %v651
        %v1003 = vpack.c.b16 %v679, %v652
        %v1004 = vpack.c.b16 %v680, %v653
        %v1005 = vpack.c.b16 %v681, %v654
        %v1006 = vpack.c.b16 %v682, %v655
        %v1007 = vpack.c.b16 %v683, %v656
        %v1008 = vpack.c.b16 %v684, %v657
        %v1009 = vpack.c.b16 %v685, %v658
        %v1010 = vpack.c.b16 %v686, %v659
        %v1011 = vpack.c.b16 %v687, %v660
        %v1012 = vpack.c.b16 %v688, %v661
        %v1013 = vpack.c.b16 %v689, %v662
        %v1014 = vpack.c.b16 %v690, %v663
        %v1015 = vpack.c.b16 %v691, %v664
        %v1016 = vpack.c.b16 %v692, %v665
        %v1017 = vpack.c.b16 %v693, %v666
        %v1018 = vpack.c.b16 %v694, %v667
        %v1019 = vpack.c.b16 %v695, %v668
        %v1020 = vpack.c.b16 %v696, %v669
        %v1021 = vpack.c.b16 %v697, %v670
        %v1022 = vpack.c.b16 %v698, %v671
        %v1023 = vpack.c.b16 %v726, %v699
        %v1024 = vpack.c.b16 %v727, %v700
        %v1025 = vpack.c.b16 %v728, %v701
        %v1026 = vpack.c.b16 %v729, %v702
        %v1027 = vpack.c.b16 %v730, %v703
        %v1028 = vpack.c.b16 %v731, %v704
        %v1029 = vpack.c.b16 %v732, %v705
        %v1030 = vpack.c.b16 %v733, %v706
        %v1031 = vpack.c.b16 %v734, %v707
        %v1032 = vpack.c.b16 %v735, %v708
        %v1033 = vpack.c.b16 %v736, %v709
        %v1034 = vpack.c.b16 %v737, %v710
        %v1035 = vpack.c.b16 %v738, %v711
        %v1036 = vpack.c.b16 %v739, %v712
        %v1037 = vpack.c.b16 %v740, %v713
        %v1038 = vpack.c.b16 %v741, %v714
        %v1039 = vpack.c.b16 %v742, %v715
        %v1040 = vpack.c.b16 %v743, %v716
        %v1041 = vpack.c.b16 %v744, %v717
        %v1042 = vpack.c.b16 %v745, %v718
        %v1043 = vpack.c.b16 %v746, %v719
        %v1044 = vpack.c.b16 %v747, %v720
        %v1045 = vpack.c.b16 %v748, %v721
        %v1046 = vpack.c.b16 %v749, %v722
        %v1047 = vpack.c.b16 %v750, %v723
        %v1048 = vpack.c.b16 %v751, %v724
        %v1049 = vpack.c.b16 %v752, %v725
        %v1050 = vpack.c.b16 %v780, %v753
        %v1051 = vpack.c.b16 %v781, %v754
        %v1052 = vpack.c.b16 %v782, %v755
        %v1053 = vpack.c.b16 %v783, %v756
        %v1054 = vpack.c.b16 %v784, %v757
        %v1055 = vpack.c.b16 %v785, %v758
        %v1056 = vpack.c.b16 %v786, %v759
        %v1057 = vpack.c.b16 %v787, %v760
        %v1058 = vpack.c.b16 %v788, %v761
        %v1059 = vpack.c.b16 %v789, %v762
        %v1060 = vpack.c.b16 %v790, %v763
        %v1061 = vpack.c.b16 %v791, %v764
        %v1062 = vpack.c.b16 %v792, %v765
        %v1063 = vpack.c.b16 %v793, %v766
        %v1064 = vpack.c.b16 %v794, %v767
        %v1065 = vpack.c.b16 %v795, %v768
        %v1066 = vpack.c.b16 %v796, %v769
        %v1067 = vpack.c.b16 %v797, %v770
        %v1068 = vpack.c.b16 %v798, %v771
        %v1069 = vpack.c.b16 %v799, %v772
        %v1070 = vpack.c.b16 %v800, %v773
        %v1071 = vpack.c.b16 %v801, %v774
        %v1072 = vpack.c.b16 %v802, %v775
        %v1073 = vpack.c.b16 %v803, %v776
        %v1074 = vpack.c.b16 %v804, %v777
        %v1075 = vpack.c.b16 %v805, %v778
        %v1076 = vpack.c.b16 %v806, %v779
        %v1077 = vpack.c.b16 %v834, %v807
        %v1078 = vpack.c.b16 %v835, %v808
        %v1079 = vpack.c.b16 %v836, %v809
        %v1080 = vpack.c.b16 %v837, %v810
        %v1081 = vpack.c.b16 %v838, %v811
        %v1082 = vpack.c.b16 %v839, %v812
        %v1083 = vpack.c.b16 %v840, %v813
        %v1084 = vpack.c.b16 %v841, %v814
        %v1085 = vpack.c.b16 %v842, %v815
        %v1086 = vpack.c.b16 %v843, %v816
        %v1087 = vpack.c.b16 %v844, %v817
        %v1088 = vpack.c.b16 %v845, %v818
        %v1089 = vpack.c.b16 %v846, %v819
        %v1090 = vpack.c.b16 %v847, %v820
        %v1091 = vpack.c.b16 %v848, %v821
        %v1092 = vpack.c.b16 %v849, %v822
        %v1093 = vpack.c.b16 %v850, %v823
        %v1094 = vpack.c.b16 %v851, %v824
        %v1095 = vpack.c.b16 %v852, %v825
        %v1096 = vpack.c.b16 %v853, %v826
        %v1097 = vpack.c.b16 %v854, %v827
        %v1098 = vpack.c.b16 %v855, %v828
        %v1099 = vpack.c.b16 %v856, %v829
        %v1100 = vpack.c.b16 %v857, %v830
        %v1101 = vpack.c.b16 %v858, %v831
        %v1102 = vpack.c.b16 %v859, %v832
        %v1103 = vpack.c.b16 %v860, %v833
        %v1104 = vpack.c.b16 %v888, %v861
        %v1105 = vpack.c.b16 %v889, %v862
        %v1106 = vpack.c.b16 %v890, %v863
        %v1107 = vpack.c.b16 %v891, %v864
        %v1108 = vpack.c.b16 %v892, %v865
        %v1109 = vpack.c.b16 %v893, %v866
        %v1110 = vpack.c.b16 %v894, %v867
        %v1111 = vpack.c.b16 %v895, %v868
        %v1112 = vpack.c.b16 %v896, %v869
        %v1113 = vpack.c.b16 %v897, %v870
        %v1114 = vpack.c.b16 %v898, %v871
        %v1115 = vpack.c.b16 %v899, %v872
        %v1116 = vpack.c.b16 %v900, %v873
        %v1117 = vpack.c.b16 %v901, %v874
        %v1118 = vpack.c.b16 %v902, %v875
        %v1119 = vpack.c.b16 %v903, %v876
        %v1120 = vpack.c.b16 %v904, %v877
        %v1121 = vpack.c.b16 %v905, %v878
        %v1122 = vpack.c.b16 %v906, %v879
        %v1123 = vpack.c.b16 %v907, %v880
        %v1124 = vpack.c.b16 %v908, %v881
        %v1125 = vpack.c.b16 %v909, %v882
        %v1126 = vpack.c.b16 %v910, %v883
        %v1127 = vpack.c.b16 %v911, %v884
        %v1128 = vpack.c.b16 %v912, %v885
        %v1129 = vpack.c.b16 %v913, %v886
        %v1130 = vpack.c.b16 %v914, %v887
        %v1131 = vpack.c.b16 %v942, %v915
        %v1132 = vpack.c.b16 %v943, %v916
        %v1133 = vpack.c.b16 %v944, %v917
        %v1134 = vpack.c.b16 %v945, %v918
        %v1135 = vpack.c.b16 %v946, %v919
        %v1136 = vpack.c.b16 %v947, %v920
        %v1137 = vpack.c.b16 %v948, %v921
        %v1138 = vpack.c.b16 %v949, %v922
        %v1139 = vpack.c.b16 %v950, %v923
        %v1140 = vpack.c.b16 %v951, %v924
        %v1141 = vpack.c.b16 %v952, %v925
        %v1142 = vpack.c.b16 %v953, %v926
        %v1143 = vpack.c.b16 %v954, %v927
        %v1144 = vpack.c.b16 %v955, %v928
        %v1145 = vpack.c.b16 %v956, %v929
        %v1146 = vpack.c.b16 %v957, %v930
        %v1147 = vpack.c.b16 %v958, %v931
        %v1148 = vpack.c.b16 %v959, %v932
        %v1149 = vpack.c.b16 %v960, %v933
        %v1150 = vpack.c.b16 %v961, %v934
        %v1151 = vpack.c.b16 %v962, %v935
        %v1152 = vpack.c.b16 %v963, %v936
        %v1153 = vpack.c.b16 %v964, %v937
        %v1154 = vpack.c.b16 %v965, %v938
        %v1155 = vpack.c.b16 %v966, %v939
        %v1156 = vpack.c.b16 %v967, %v940
        %v1157 = vpack.c.b16 %v968, %v941
        %v1158 = vpack.c.b16 %v969, %v969
        %v1159 = vpack.c.b16 %v970, %v970
        %v1160 = vpack.c.b16 %v971, %v971
        %v1161 = vpack.c.b16 %v972, %v972
        %v1162 = vpack.c.b16 %v973, %v973
        %v1163 = vpack.c.b16 %v974, %v974
        %v1164 = vpack.c.b16 %v975, %v975
        %v1165 = vpack.c.b16 %v976, %v976
        %v1166 = vpack.c.b16 %v977, %v977
        %v1167 = vpack.c.b16 %v978, %v978
        %v1168 = vpack.c.b16 %v979, %v979
        %v1169 = vpack.c.b16 %v980, %v980
        %v1170 = vpack.c.b16 %v981, %v981
        %v1171 = vpack.c.b16 %v982, %v982
        %v1172 = vpack.c.b16 %v983, %v983
        %v1173 = vpack.c.b16 %v984, %v984
        %v1174 = vpack.c.b16 %v985, %v985
        %v1175 = vpack.c.b16 %v986, %v986
        %v1176 = vpack.c.b16 %v987, %v987
        %v1177 = vpack.c.b16 %v988, %v988
        %v1178 = vpack.c.b16 %v989, %v989
        %v1179 = vpack.c.b16 %v990, %v990
        %v1180 = vpack.c.b16 %v991, %v991
        %v1181 = vpack.c.b16 %v992, %v992
        %v1182 = vpack.c.b16 %v993, %v993
        %v1183 = vpack.c.b16 %v994, %v994
        %v1184 = vpack.c.b16 %v995, %v995
        %vm1347 = vcmask 842752
        %v1349 = vsel %vm1347, %v462, 0
        %vm1351 = vcmask 1042432
        %vm1352 = vcmask 1043456
        %v1353 = vsel %vm1351, 4294967295, 65535
        %v1354 = vsel %vm1352, %v1353, 0
        %v1356 = vand.u32 %v1158, %v1354
        %v1359 = vand.u32 %v1159, %v1354
        %v1362 = vand.u32 %v1160, %v1354
        %v1365 = vand.u32 %v1161, %v1354
        %v1368 = vand.u32 %v1162, %v1354
        %v1371 = vand.u32 %v1163, %v1354
        %v1374 = vand.u32 %v1164, %v1354
        %v1377 = vand.u32 %v1165, %v1354
        %v1380 = vand.u32 %v1166, %v1354
        %v1383 = vand.u32 %v1167, %v1354
        %v1386 = vand.u32 %v1168, %v1354
        %v1389 = vand.u32 %v1169, %v1354
        %v1392 = vand.u32 %v1170, %v1354
        %v1395 = vand.u32 %v1171, %v1354
        %v1398 = vand.u32 %v1172, %v1354
        %v1401 = vand.u32 %v1173, %v1354
        %v1404 = vand.u32 %v1174, %v1354
        %v1407 = vand.u32 %v1175, %v1354
        %v1410 = vand.u32 %v1176, %v1354
        %v1413 = vand.u32 %v1177, %v1354
        %v1416 = vand.u32 %v1178, %v1354
        %v1419 = vand.u32 %v1179, %v1354
        %v1422 = vand.u32 %v1180, %v1354
        %v1425 = vand.u32 %v1181, %v1354
        %v1428 = vand.u32 %v1182, %v1354
        %v1431 = vand.u32 %v1183, %v1354
        %v1434 = vand.u32 %v1184, %v1354
        %1436 = vmatprep.subr.bf16.mxu0 %v997
        %1437 = vmatpush1.bf16.msra.mxu0 %v996
        %1438 = vmatprep.subr.bf16.mxu0 %v1024
        %1439 = vmatpush1.bf16.msra.mxu0 %v1023
        %1440 = vmatprep.subr.bf16.mxu0 %v1051
        %1441 = vmatpush1.bf16.msra.mxu0 %v1050
        %1442 = vmatprep.subr.bf16.mxu0 %v1078
        %1443 = vmatpush1.bf16.msra.mxu0 %v1077
        %1444 = vmatprep.subr.bf16.mxu0 %v1105
        %1445 = vmatpush1.bf16.msra.mxu0 %v1104
        %1446 = vmatprep.subr.bf16.mxu0 %v1132
        %1447 = vmatpush1.bf16.msra.mxu0 %v1131
        %1448 = vmatprep.subr.bf16.mxu0 %v1359
        %1449 = vmatpush1.bf16.msra.mxu0 %v1356
        %1450 = vmatprep.subr.bf16.mxu0 0
        %1451 = vmatpush1.bf16.msra.mxu0 0
        %1452 = vmatprep.subr.bf16.mxu0 0
        %1453 = vmatpush1.bf16.msra.mxu0 0
        %1454 = vmatprep.subr.bf16.mxu0 0
        %1455 = vmatpush1.bf16.msra.mxu0 0
        %1456 = vmatprep.subr.bf16.mxu0 0
        %1457 = vmatpush1.bf16.msra.mxu0 0
        %1458 = vmatprep.subr.bf16.mxu0 0
        %1459 = vmatpush1.bf16.msra.mxu0 0
        %1460 = vmatprep.subr.bf16.mxu0 0
        %1461 = vmatpush1.bf16.msra.mxu0 0
        %1462 = vmatprep.subr.bf16.mxu0 0
        %1463 = vmatpush1.bf16.msra.mxu0 0
        %1464 = vmatprep.subr.bf16.mxu0 0
        %1465 = vmatpush1.bf16.msra.mxu0 0
        %1466 = vmatprep.subr.bf16.mxu0 0
        %1467 = vmatpush1.bf16.msra.mxu0 0
        %1468 = vmatprep.mubr.bf16.mxu0 0
        %1469 = vmatmul.mubr.bf16.gmra.mrb[0].mxu0 %v1349
        %v1470 = vpop.f32.mrb[0].mxu0
        %v1471 = vadd.f32 0.0, %v1470
        %v1472 = vpop.f32.mrb[0].mxu0
        %v1473 = vadd.f32 0.0, %v1472
        %v1474 = vpop.f32.mrb[0].mxu0
        %v1475 = vadd.f32 0.0, %v1474
        %v1476 = vpop.f32.mrb[0].mxu0
        %v1477 = vadd.f32 0.0, %v1476
        %1478 = vdwg.mxu0
        %1479 = vmatprep.subr.bf16.mxu0 %v999
        %1480 = vmatpush1.bf16.msra.mxu0 %v998
        %1481 = vmatprep.subr.bf16.mxu0 %v1026
        %1482 = vmatpush1.bf16.msra.mxu0 %v1025
        %1483 = vmatprep.subr.bf16.mxu0 %v1053
        %1484 = vmatpush1.bf16.msra.mxu0 %v1052
        %1485 = vmatprep.subr.bf16.mxu0 %v1080
        %1486 = vmatpush1.bf16.msra.mxu0 %v1079
        %1487 = vmatprep.subr.bf16.mxu0 %v1107
        %1488 = vmatpush1.bf16.msra.mxu0 %v1106
        %1489 = vmatprep.subr.bf16.mxu0 %v1134
        %1490 = vmatpush1.bf16.msra.mxu0 %v1133
        %1491 = vmatprep.subr.bf16.mxu0 %v1365
        %1492 = vmatpush1.bf16.msra.mxu0 %v1362
        %1493 = vmatprep.subr.bf16.mxu0 0
        %1494 = vmatpush1.bf16.msra.mxu0 0
        %1495 = vmatprep.subr.bf16.mxu0 0
        %1496 = vmatpush1.bf16.msra.mxu0 0
        %1497 = vmatprep.subr.bf16.mxu0 0
        %1498 = vmatpush1.bf16.msra.mxu0 0
        %1499 = vmatprep.subr.bf16.mxu0 0
        %1500 = vmatpush1.bf16.msra.mxu0 0
        %1501 = vmatprep.subr.bf16.mxu0 0
        %1502 = vmatpush1.bf16.msra.mxu0 0
        %1503 = vmatprep.subr.bf16.mxu0 0
        %1504 = vmatpush1.bf16.msra.mxu0 0
        %1505 = vmatprep.subr.bf16.mxu0 0
        %1506 = vmatpush1.bf16.msra.mxu0 0
        %1507 = vmatprep.subr.bf16.mxu0 0
        %1508 = vmatpush1.bf16.msra.mxu0 0
        %1509 = vmatprep.subr.bf16.mxu0 0
        %1510 = vmatpush1.bf16.msra.mxu0 0
        %1511 = vmatprep.mubr.bf16.mxu0 0
        %1512 = vmatmul.mubr.bf16.gmra.mrb[0].mxu0 %v1349
        %v1513 = vpop.f32.mrb[0].mxu0
        %v1514 = vadd.f32 0.0, %v1513
        %v1515 = vpop.f32.mrb[0].mxu0
        %v1516 = vadd.f32 0.0, %v1515
        %v1517 = vpop.f32.mrb[0].mxu0
        %v1518 = vadd.f32 0.0, %v1517
        %v1519 = vpop.f32.mrb[0].mxu0
        %v1520 = vadd.f32 0.0, %v1519
        %1521 = vdwg.mxu0
        %1522 = vmatprep.subr.bf16.mxu0 %v1001
        %1523 = vmatpush1.bf16.msra.mxu0 %v1000
        %1524 = vmatprep.subr.bf16.mxu0 %v1028
        %1525 = vmatpush1.bf16.msra.mxu0 %v1027
        %1526 = vmatprep.subr.bf16.mxu0 %v1055
        %1527 = vmatpush1.bf16.msra.mxu0 %v1054
        %1528 = vmatprep.subr.bf16.mxu0 %v1082
        %1529 = vmatpush1.bf16.msra.mxu0 %v1081
        %1530 = vmatprep.subr.bf16.mxu0 %v1109
        %1531 = vmatpush1.bf16.msra.mxu0 %v1108
        %1532 = vmatprep.subr.bf16.mxu0 %v1136
        %1533 = vmatpush1.bf16.msra.mxu0 %v1135
        %1534 = vmatprep.subr.bf16.mxu0 %v1371
        %1535 = vmatpush1.bf16.msra.mxu0 %v1368
        %1536 = vmatprep.subr.bf16.mxu0 0
        %1537 = vmatpush1.bf16.msra.mxu0 0
        %1538 = vmatprep.subr.bf16.mxu0 0
        %1539 = vmatpush1.bf16.msra.mxu0 0
        %1540 = vmatprep.subr.bf16.mxu0 0
        %1541 = vmatpush1.bf16.msra.mxu0 0
        %1542 = vmatprep.subr.bf16.mxu0 0
        %1543 = vmatpush1.bf16.msra.mxu0 0
        %1544 = vmatprep.subr.bf16.mxu0 0
        %1545 = vmatpush1.bf16.msra.mxu0 0
        %1546 = vmatprep.subr.bf16.mxu0 0
        %1547 = vmatpush1.bf16.msra.mxu0 0
        %1548 = vmatprep.subr.bf16.mxu0 0
        %1549 = vmatpush1.bf16.msra.mxu0 0
        %1550 = vmatprep.subr.bf16.mxu0 0
        %1551 = vmatpush1.bf16.msra.mxu0 0
        %1552 = vmatprep.subr.bf16.mxu0 0
        %1553 = vmatpush1.bf16.msra.mxu0 0
        %1554 = vmatprep.mubr.bf16.mxu0 0
        %1555 = vmatmul.mubr.bf16.gmra.mrb[0].mxu0 %v1349
        %v1556 = vpop.f32.mrb[0].mxu0
        %v1557 = vadd.f32 0.0, %v1556
        %v1558 = vpop.f32.mrb[0].mxu0
        %v1559 = vadd.f32 0.0, %v1558
        %v1560 = vpop.f32.mrb[0].mxu0
        %v1561 = vadd.f32 0.0, %v1560
        %v1562 = vpop.f32.mrb[0].mxu0
        %v1563 = vadd.f32 0.0, %v1562
        %1564 = vdwg.mxu0
        %1565 = vmatprep.subr.bf16.mxu0 %v1003
        %1566 = vmatpush1.bf16.msra.mxu0 %v1002
        %1567 = vmatprep.subr.bf16.mxu0 %v1030
        %1568 = vmatpush1.bf16.msra.mxu0 %v1029
        %1569 = vmatprep.subr.bf16.mxu0 %v1057
        %1570 = vmatpush1.bf16.msra.mxu0 %v1056
        %1571 = vmatprep.subr.bf16.mxu0 %v1084
        %1572 = vmatpush1.bf16.msra.mxu0 %v1083
        %1573 = vmatprep.subr.bf16.mxu0 %v1111
        %1574 = vmatpush1.bf16.msra.mxu0 %v1110
        %1575 = vmatprep.subr.bf16.mxu0 %v1138
        %1576 = vmatpush1.bf16.msra.mxu0 %v1137
        %1577 = vmatprep.subr.bf16.mxu0 %v1377
        %1578 = vmatpush1.bf16.msra.mxu0 %v1374
        %1579 = vmatprep.subr.bf16.mxu0 0
        %1580 = vmatpush1.bf16.msra.mxu0 0
        %1581 = vmatprep.subr.bf16.mxu0 0
        %1582 = vmatpush1.bf16.msra.mxu0 0
        %1583 = vmatprep.subr.bf16.mxu0 0
        %1584 = vmatpush1.bf16.msra.mxu0 0
        %1585 = vmatprep.subr.bf16.mxu0 0
        %1586 = vmatpush1.bf16.msra.mxu0 0
        %1587 = vmatprep.subr.bf16.mxu0 0
        %1588 = vmatpush1.bf16.msra.mxu0 0
        %1589 = vmatprep.subr.bf16.mxu0 0
        %1590 = vmatpush1.bf16.msra.mxu0 0
        %1591 = vmatprep.subr.bf16.mxu0 0
        %1592 = vmatpush1.bf16.msra.mxu0 0
        %1593 = vmatprep.subr.bf16.mxu0 0
        %1594 = vmatpush1.bf16.msra.mxu0 0
        %1595 = vmatprep.subr.bf16.mxu0 0
        %1596 = vmatpush1.bf16.msra.mxu0 0
        %1597 = vmatprep.mubr.bf16.mxu0 0
        %1598 = vmatmul.mubr.bf16.gmra.mrb[0].mxu0 %v1349
        %v1599 = vpop.f32.mrb[0].mxu0
        %v1600 = vadd.f32 0.0, %v1599
        %v1601 = vpop.f32.mrb[0].mxu0
        %v1602 = vadd.f32 0.0, %v1601
        %v1603 = vpop.f32.mrb[0].mxu0
        %v1604 = vadd.f32 0.0, %v1603
        %v1605 = vpop.f32.mrb[0].mxu0
        %v1606 = vadd.f32 0.0, %v1605
        %1607 = vdwg.mxu0
        %1608 = vmatprep.subr.bf16.mxu0 %v1005
        %1609 = vmatpush1.bf16.msra.mxu0 %v1004
        %1610 = vmatprep.subr.bf16.mxu0 %v1032
        %1611 = vmatpush1.bf16.msra.mxu0 %v1031
        %1612 = vmatprep.subr.bf16.mxu0 %v1059
        %1613 = vmatpush1.bf16.msra.mxu0 %v1058
        %1614 = vmatprep.subr.bf16.mxu0 %v1086
        %1615 = vmatpush1.bf16.msra.mxu0 %v1085
        %1616 = vmatprep.subr.bf16.mxu0 %v1113
        %1617 = vmatpush1.bf16.msra.mxu0 %v1112
        %1618 = vmatprep.subr.bf16.mxu0 %v1140
        %1619 = vmatpush1.bf16.msra.mxu0 %v1139
        %1620 = vmatprep.subr.bf16.mxu0 %v1383
        %1621 = vmatpush1.bf16.msra.mxu0 %v1380
        %1622 = vmatprep.subr.bf16.mxu0 0
        %1623 = vmatpush1.bf16.msra.mxu0 0
        %1624 = vmatprep.subr.bf16.mxu0 0
        %1625 = vmatpush1.bf16.msra.mxu0 0
        %1626 = vmatprep.subr.bf16.mxu0 0
        %1627 = vmatpush1.bf16.msra.mxu0 0
        %1628 = vmatprep.subr.bf16.mxu0 0
        %1629 = vmatpush1.bf16.msra.mxu0 0
        %1630 = vmatprep.subr.bf16.mxu0 0
        %1631 = vmatpush1.bf16.msra.mxu0 0
        %1632 = vmatprep.subr.bf16.mxu0 0
        %1633 = vmatpush1.bf16.msra.mxu0 0
        %1634 = vmatprep.subr.bf16.mxu0 0
        %1635 = vmatpush1.bf16.msra.mxu0 0
        %1636 = vmatprep.subr.bf16.mxu0 0
        %1637 = vmatpush1.bf16.msra.mxu0 0
        %1638 = vmatprep.subr.bf16.mxu0 0
        %1639 = vmatpush1.bf16.msra.mxu0 0
        %1640 = vmatprep.mubr.bf16.mxu0 0
        %1641 = vmatmul.mubr.bf16.gmra.mrb[0].mxu0 %v1349
        %v1642 = vpop.f32.mrb[0].mxu0
        %v1643 = vadd.f32 0.0, %v1642
        %v1644 = vpop.f32.mrb[0].mxu0
        %v1645 = vadd.f32 0.0, %v1644
        %v1646 = vpop.f32.mrb[0].mxu0
        %v1647 = vadd.f32 0.0, %v1646
        %v1648 = vpop.f32.mrb[0].mxu0
        %v1649 = vadd.f32 0.0, %v1648
        %1650 = vdwg.mxu0
        %1651 = vmatprep.subr.bf16.mxu0 %v1007
        %1652 = vmatpush1.bf16.msra.mxu0 %v1006
        %1653 = vmatprep.subr.bf16.mxu0 %v1034
        %1654 = vmatpush1.bf16.msra.mxu0 %v1033
        %1655 = vmatprep.subr.bf16.mxu0 %v1061
        %1656 = vmatpush1.bf16.msra.mxu0 %v1060
        %1657 = vmatprep.subr.bf16.mxu0 %v1088
        %1658 = vmatpush1.bf16.msra.mxu0 %v1087
        %1659 = vmatprep.subr.bf16.mxu0 %v1115
        %1660 = vmatpush1.bf16.msra.mxu0 %v1114
        %1661 = vmatprep.subr.bf16.mxu0 %v1142
        %1662 = vmatpush1.bf16.msra.mxu0 %v1141
        %1663 = vmatprep.subr.bf16.mxu0 %v1389
        %1664 = vmatpush1.bf16.msra.mxu0 %v1386
        %1665 = vmatprep.subr.bf16.mxu0 0
        %1666 = vmatpush1.bf16.msra.mxu0 0
        %1667 = vmatprep.subr.bf16.mxu0 0
        %1668 = vmatpush1.bf16.msra.mxu0 0
        %1669 = vmatprep.subr.bf16.mxu0 0
        %1670 = vmatpush1.bf16.msra.mxu0 0
        %1671 = vmatprep.subr.bf16.mxu0 0
        %1672 = vmatpush1.bf16.msra.mxu0 0
        %1673 = vmatprep.subr.bf16.mxu0 0
        %1674 = vmatpush1.bf16.msra.mxu0 0
        %1675 = vmatprep.subr.bf16.mxu0 0
        %1676 = vmatpush1.bf16.msra.mxu0 0
        %1677 = vmatprep.subr.bf16.mxu0 0
        %1678 = vmatpush1.bf16.msra.mxu0 0
        %1679 = vmatprep.subr.bf16.mxu0 0
        %1680 = vmatpush1.bf16.msra.mxu0 0
        %1681 = vmatprep.subr.bf16.mxu0 0
        %1682 = vmatpush1.bf16.msra.mxu0 0
        %1683 = vmatprep.mubr.bf16.mxu0 0
        %1684 = vmatmul.mubr.bf16.gmra.mrb[0].mxu0 %v1349
        %v1685 = vpop.f32.mrb[0].mxu0
        %v1686 = vadd.f32 0.0, %v1685
        %v1687 = vpop.f32.mrb[0].mxu0
        %v1688 = vadd.f32 0.0, %v1687
        %v1689 = vpop.f32.mrb[0].mxu0
        %v1690 = vadd.f32 0.0, %v1689
        %v1691 = vpop.f32.mrb[0].mxu0
        %v1692 = vadd.f32 0.0, %v1691
        %1693 = vdwg.mxu0
        %1694 = vmatprep.subr.bf16.mxu0 %v1009
        %1695 = vmatpush1.bf16.msra.mxu0 %v1008
        %1696 = vmatprep.subr.bf16.mxu0 %v1036
        %1697 = vmatpush1.bf16.msra.mxu0 %v1035
        %1698 = vmatprep.subr.bf16.mxu0 %v1063
        %1699 = vmatpush1.bf16.msra.mxu0 %v1062
        %1700 = vmatprep.subr.bf16.mxu0 %v1090
        %1701 = vmatpush1.bf16.msra.mxu0 %v1089
        %1702 = vmatprep.subr.bf16.mxu0 %v1117
        %1703 = vmatpush1.bf16.msra.mxu0 %v1116
        %1704 = vmatprep.subr.bf16.mxu0 %v1144
        %1705 = vmatpush1.bf16.msra.mxu0 %v1143
        %1706 = vmatprep.subr.bf16.mxu0 %v1395
        %1707 = vmatpush1.bf16.msra.mxu0 %v1392
        %1708 = vmatprep.subr.bf16.mxu0 0
        %1709 = vmatpush1.bf16.msra.mxu0 0
        %1710 = vmatprep.subr.bf16.mxu0 0
        %1711 = vmatpush1.bf16.msra.mxu0 0
        %1712 = vmatprep.subr.bf16.mxu0 0
        %1713 = vmatpush1.bf16.msra.mxu0 0
        %1714 = vmatprep.subr.bf16.mxu0 0
        %1715 = vmatpush1.bf16.msra.mxu0 0
        %1716 = vmatprep.subr.bf16.mxu0 0
        %1717 = vmatpush1.bf16.msra.mxu0 0
        %1718 = vmatprep.subr.bf16.mxu0 0
        %1719 = vmatpush1.bf16.msra.mxu0 0
        %1720 = vmatprep.subr.bf16.mxu0 0
        %1721 = vmatpush1.bf16.msra.mxu0 0
        %1722 = vmatprep.subr.bf16.mxu0 0
        %1723 = vmatpush1.bf16.msra.mxu0 0
        %1724 = vmatprep.subr.bf16.mxu0 0
        %1725 = vmatpush1.bf16.msra.mxu0 0
        %1726 = vmatprep.mubr.bf16.mxu0 0
        %1727 = vmatmul.mubr.bf16.gmra.mrb[0].mxu0 %v1349
        %v1728 = vpop.f32.mrb[0].mxu0
        %v1729 = vadd.f32 0.0, %v1728
        %v1730 = vpop.f32.mrb[0].mxu0
        %v1731 = vadd.f32 0.0, %v1730
        %v1732 = vpop.f32.mrb[0].mxu0
        %v1733 = vadd.f32 0.0, %v1732
        %v1734 = vpop.f32.mrb[0].mxu0
        %v1735 = vadd.f32 0.0, %v1734
        %1736 = vdwg.mxu0
        %1737 = vmatprep.subr.bf16.mxu0 %v1011
        %1738 = vmatpush1.bf16.msra.mxu0 %v1010
        %1739 = vmatprep.subr.bf16.mxu0 %v1038
        %1740 = vmatpush1.bf16.msra.mxu0 %v1037
        %1741 = vmatprep.subr.bf16.mxu0 %v1065
        %1742 = vmatpush1.bf16.msra.mxu0 %v1064
        %1743 = vmatprep.subr.bf16.mxu0 %v1092
        %1744 = vmatpush1.bf16.msra.mxu0 %v1091
        %1745 = vmatprep.subr.bf16.mxu0 %v1119
        %1746 = vmatpush1.bf16.msra.mxu0 %v1118
        %1747 = vmatprep.subr.bf16.mxu0 %v1146
        %1748 = vmatpush1.bf16.msra.mxu0 %v1145
        %1749 = vmatprep.subr.bf16.mxu0 %v1401
        %1750 = vmatpush1.bf16.msra.mxu0 %v1398
        %1751 = vmatprep.subr.bf16.mxu0 0
        %1752 = vmatpush1.bf16.msra.mxu0 0
        %1753 = vmatprep.subr.bf16.mxu0 0
        %1754 = vmatpush1.bf16.msra.mxu0 0
        %1755 = vmatprep.subr.bf16.mxu0 0
        %1756 = vmatpush1.bf16.msra.mxu0 0
        %1757 = vmatprep.subr.bf16.mxu0 0
        %1758 = vmatpush1.bf16.msra.mxu0 0
        %1759 = vmatprep.subr.bf16.mxu0 0
        %1760 = vmatpush1.bf16.msra.mxu0 0
        %1761 = vmatprep.subr.bf16.mxu0 0
        %1762 = vmatpush1.bf16.msra.mxu0 0
        %1763 = vmatprep.subr.bf16.mxu0 0
        %1764 = vmatpush1.bf16.msra.mxu0 0
        %1765 = vmatprep.subr.bf16.mxu0 0
        %1766 = vmatpush1.bf16.msra.mxu0 0
        %1767 = vmatprep.subr.bf16.mxu0 0
        %1768 = vmatpush1.bf16.msra.mxu0 0
        %1769 = vmatprep.mubr.bf16.mxu0 0
        %1770 = vmatmul.mubr.bf16.gmra.mrb[0].mxu0 %v1349
        %v1771 = vpop.f32.mrb[0].mxu0
        %v1772 = vadd.f32 0.0, %v1771
        %v1773 = vpop.f32.mrb[0].mxu0
        %v1774 = vadd.f32 0.0, %v1773
        %v1775 = vpop.f32.mrb[0].mxu0
        %v1776 = vadd.f32 0.0, %v1775
        %v1777 = vpop.f32.mrb[0].mxu0
        %v1778 = vadd.f32 0.0, %v1777
        %1779 = vdwg.mxu0
        %1780 = vmatprep.subr.bf16.mxu0 %v1013
        %1781 = vmatpush1.bf16.msra.mxu0 %v1012
        %1782 = vmatprep.subr.bf16.mxu0 %v1040
        %1783 = vmatpush1.bf16.msra.mxu0 %v1039
        %1784 = vmatprep.subr.bf16.mxu0 %v1067
        %1785 = vmatpush1.bf16.msra.mxu0 %v1066
        %1786 = vmatprep.subr.bf16.mxu0 %v1094
        %1787 = vmatpush1.bf16.msra.mxu0 %v1093
        %1788 = vmatprep.subr.bf16.mxu0 %v1121
        %1789 = vmatpush1.bf16.msra.mxu0 %v1120
        %1790 = vmatprep.subr.bf16.mxu0 %v1148
        %1791 = vmatpush1.bf16.msra.mxu0 %v1147
        %1792 = vmatprep.subr.bf16.mxu0 %v1407
        %1793 = vmatpush1.bf16.msra.mxu0 %v1404
        %1794 = vmatprep.subr.bf16.mxu0 0
        %1795 = vmatpush1.bf16.msra.mxu0 0
        %1796 = vmatprep.subr.bf16.mxu0 0
        %1797 = vmatpush1.bf16.msra.mxu0 0
        %1798 = vmatprep.subr.bf16.mxu0 0
        %1799 = vmatpush1.bf16.msra.mxu0 0
        %1800 = vmatprep.subr.bf16.mxu0 0
        %1801 = vmatpush1.bf16.msra.mxu0 0
        %1802 = vmatprep.subr.bf16.mxu0 0
        %1803 = vmatpush1.bf16.msra.mxu0 0
        %1804 = vmatprep.subr.bf16.mxu0 0
        %1805 = vmatpush1.bf16.msra.mxu0 0
        %1806 = vmatprep.subr.bf16.mxu0 0
        %1807 = vmatpush1.bf16.msra.mxu0 0
        %1808 = vmatprep.subr.bf16.mxu0 0
        %1809 = vmatpush1.bf16.msra.mxu0 0
        %1810 = vmatprep.subr.bf16.mxu0 0
        %1811 = vmatpush1.bf16.msra.mxu0 0
        %1812 = vmatprep.mubr.bf16.mxu0 0
        %1813 = vmatmul.mubr.bf16.gmra.mrb[0].mxu0 %v1349
        %v1814 = vpop.f32.mrb[0].mxu0
        %v1815 = vadd.f32 0.0, %v1814
        %v1816 = vpop.f32.mrb[0].mxu0
        %v1817 = vadd.f32 0.0, %v1816
        %v1818 = vpop.f32.mrb[0].mxu0
        %v1819 = vadd.f32 0.0, %v1818
        %v1820 = vpop.f32.mrb[0].mxu0
        %v1821 = vadd.f32 0.0, %v1820
        %1822 = vdwg.mxu0
        %1823 = vmatprep.subr.bf16.mxu0 %v1015
        %1824 = vmatpush1.bf16.msra.mxu0 %v1014
        %1825 = vmatprep.subr.bf16.mxu0 %v1042
        %1826 = vmatpush1.bf16.msra.mxu0 %v1041
        %1827 = vmatprep.subr.bf16.mxu0 %v1069
        %1828 = vmatpush1.bf16.msra.mxu0 %v1068
        %1829 = vmatprep.subr.bf16.mxu0 %v1096
        %1830 = vmatpush1.bf16.msra.mxu0 %v1095
        %1831 = vmatprep.subr.bf16.mxu0 %v1123
        %1832 = vmatpush1.bf16.msra.mxu0 %v1122
        %1833 = vmatprep.subr.bf16.mxu0 %v1150
        %1834 = vmatpush1.bf16.msra.mxu0 %v1149
        %1835 = vmatprep.subr.bf16.mxu0 %v1413
        %1836 = vmatpush1.bf16.msra.mxu0 %v1410
        %1837 = vmatprep.subr.bf16.mxu0 0
        %1838 = vmatpush1.bf16.msra.mxu0 0
        %1839 = vmatprep.subr.bf16.mxu0 0
        %1840 = vmatpush1.bf16.msra.mxu0 0
        %1841 = vmatprep.subr.bf16.mxu0 0
        %1842 = vmatpush1.bf16.msra.mxu0 0
        %1843 = vmatprep.subr.bf16.mxu0 0
        %1844 = vmatpush1.bf16.msra.mxu0 0
        %1845 = vmatprep.subr.bf16.mxu0 0
        %1846 = vmatpush1.bf16.msra.mxu0 0
        %1847 = vmatprep.subr.bf16.mxu0 0
        %1848 = vmatpush1.bf16.msra.mxu0 0
        %1849 = vmatprep.subr.bf16.mxu0 0
        %1850 = vmatpush1.bf16.msra.mxu0 0
        %1851 = vmatprep.subr.bf16.mxu0 0
        %1852 = vmatpush1.bf16.msra.mxu0 0
        %1853 = vmatprep.subr.bf16.mxu0 0
        %1854 = vmatpush1.bf16.msra.mxu0 0
        %1855 = vmatprep.mubr.bf16.mxu0 0
        %1856 = vmatmul.mubr.bf16.gmra.mrb[0].mxu0 %v1349
        %v1857 = vpop.f32.mrb[0].mxu0
        %v1858 = vadd.f32 0.0, %v1857
        %v1859 = vpop.f32.mrb[0].mxu0
        %v1860 = vadd.f32 0.0, %v1859
        %v1861 = vpop.f32.mrb[0].mxu0
        %v1862 = vadd.f32 0.0, %v1861
        %v1863 = vpop.f32.mrb[0].mxu0
        %v1864 = vadd.f32 0.0, %v1863
        %1865 = vdwg.mxu0
        %1866 = vmatprep.subr.bf16.mxu0 %v1017
        %1867 = vmatpush1.bf16.msra.mxu0 %v1016
        %1868 = vmatprep.subr.bf16.mxu0 %v1044
        %1869 = vmatpush1.bf16.msra.mxu0 %v1043
        %1870 = vmatprep.subr.bf16.mxu0 %v1071
        %1871 = vmatpush1.bf16.msra.mxu0 %v1070
        %1872 = vmatprep.subr.bf16.mxu0 %v1098
        %1873 = vmatpush1.bf16.msra.mxu0 %v1097
        %1874 = vmatprep.subr.bf16.mxu0 %v1125
        %1875 = vmatpush1.bf16.msra.mxu0 %v1124
        %1876 = vmatprep.subr.bf16.mxu0 %v1152
        %1877 = vmatpush1.bf16.msra.mxu0 %v1151
        %1878 = vmatprep.subr.bf16.mxu0 %v1419
        %1879 = vmatpush1.bf16.msra.mxu0 %v1416
        %1880 = vmatprep.subr.bf16.mxu0 0
        %1881 = vmatpush1.bf16.msra.mxu0 0
        %1882 = vmatprep.subr.bf16.mxu0 0
        %1883 = vmatpush1.bf16.msra.mxu0 0
        %1884 = vmatprep.subr.bf16.mxu0 0
        %1885 = vmatpush1.bf16.msra.mxu0 0
        %1886 = vmatprep.subr.bf16.mxu0 0
        %1887 = vmatpush1.bf16.msra.mxu0 0
        %1888 = vmatprep.subr.bf16.mxu0 0
        %1889 = vmatpush1.bf16.msra.mxu0 0
        %1890 = vmatprep.subr.bf16.mxu0 0
        %1891 = vmatpush1.bf16.msra.mxu0 0
        %1892 = vmatprep.subr.bf16.mxu0 0
        %1893 = vmatpush1.bf16.msra.mxu0 0
        %1894 = vmatprep.subr.bf16.mxu0 0
        %1895 = vmatpush1.bf16.msra.mxu0 0
        %1896 = vmatprep.subr.bf16.mxu0 0
        %1897 = vmatpush1.bf16.msra.mxu0 0
        %1898 = vmatprep.mubr.bf16.mxu0 0
        %1899 = vmatmul.mubr.bf16.gmra.mrb[0].mxu0 %v1349
        %v1900 = vpop.f32.mrb[0].mxu0
        %v1901 = vadd.f32 0.0, %v1900
        %v1902 = vpop.f32.mrb[0].mxu0
        %v1903 = vadd.f32 0.0, %v1902
        %v1904 = vpop.f32.mrb[0].mxu0
        %v1905 = vadd.f32 0.0, %v1904
        %v1906 = vpop.f32.mrb[0].mxu0
        %v1907 = vadd.f32 0.0, %v1906
        %1908 = vdwg.mxu0
        %1909 = vmatprep.subr.bf16.mxu0 %v1019
        %1910 = vmatpush1.bf16.msra.mxu0 %v1018
        %1911 = vmatprep.subr.bf16.mxu0 %v1046
        %1912 = vmatpush1.bf16.msra.mxu0 %v1045
        %1913 = vmatprep.subr.bf16.mxu0 %v1073
        %1914 = vmatpush1.bf16.msra.mxu0 %v1072
        %1915 = vmatprep.subr.bf16.mxu0 %v1100
        %1916 = vmatpush1.bf16.msra.mxu0 %v1099
        %1917 = vmatprep.subr.bf16.mxu0 %v1127
        %1918 = vmatpush1.bf16.msra.mxu0 %v1126
        %1919 = vmatprep.subr.bf16.mxu0 %v1154
        %1920 = vmatpush1.bf16.msra.mxu0 %v1153
        %1921 = vmatprep.subr.bf16.mxu0 %v1425
        %1922 = vmatpush1.bf16.msra.mxu0 %v1422
        %1923 = vmatprep.subr.bf16.mxu0 0
        %1924 = vmatpush1.bf16.msra.mxu0 0
        %1925 = vmatprep.subr.bf16.mxu0 0
        %1926 = vmatpush1.bf16.msra.mxu0 0
        %1927 = vmatprep.subr.bf16.mxu0 0
        %1928 = vmatpush1.bf16.msra.mxu0 0
        %1929 = vmatprep.subr.bf16.mxu0 0
        %1930 = vmatpush1.bf16.msra.mxu0 0
        %1931 = vmatprep.subr.bf16.mxu0 0
        %1932 = vmatpush1.bf16.msra.mxu0 0
        %1933 = vmatprep.subr.bf16.mxu0 0
        %1934 = vmatpush1.bf16.msra.mxu0 0
        %1935 = vmatprep.subr.bf16.mxu0 0
        %1936 = vmatpush1.bf16.msra.mxu0 0
        %1937 = vmatprep.subr.bf16.mxu0 0
        %1938 = vmatpush1.bf16.msra.mxu0 0
        %1939 = vmatprep.subr.bf16.mxu0 0
        %1940 = vmatpush1.bf16.msra.mxu0 0
        %1941 = vmatprep.mubr.bf16.mxu0 0
        %1942 = vmatmul.mubr.bf16.gmra.mrb[0].mxu0 %v1349
        %v1943 = vpop.f32.mrb[0].mxu0
        %v1944 = vadd.f32 0.0, %v1943
        %v1945 = vpop.f32.mrb[0].mxu0
        %v1946 = vadd.f32 0.0, %v1945
        %v1947 = vpop.f32.mrb[0].mxu0
        %v1948 = vadd.f32 0.0, %v1947
        %v1949 = vpop.f32.mrb[0].mxu0
        %v1950 = vadd.f32 0.0, %v1949
        %1951 = vdwg.mxu0
        %1952 = vmatprep.subr.bf16.mxu0 %v1021
        %1953 = vmatpush1.bf16.msra.mxu0 %v1020
        %1954 = vmatprep.subr.bf16.mxu0 %v1048
        %1955 = vmatpush1.bf16.msra.mxu0 %v1047
        %1956 = vmatprep.subr.bf16.mxu0 %v1075
        %1957 = vmatpush1.bf16.msra.mxu0 %v1074
        %1958 = vmatprep.subr.bf16.mxu0 %v1102
        %1959 = vmatpush1.bf16.msra.mxu0 %v1101
        %1960 = vmatprep.subr.bf16.mxu0 %v1129
        %1961 = vmatpush1.bf16.msra.mxu0 %v1128
        %1962 = vmatprep.subr.bf16.mxu0 %v1156
        %1963 = vmatpush1.bf16.msra.mxu0 %v1155
        %1964 = vmatprep.subr.bf16.mxu0 %v1431
        %1965 = vmatpush1.bf16.msra.mxu0 %v1428
        %1966 = vmatprep.subr.bf16.mxu0 0
        %1967 = vmatpush1.bf16.msra.mxu0 0
        %1968 = vmatprep.subr.bf16.mxu0 0
        %1969 = vmatpush1.bf16.msra.mxu0 0
        %1970 = vmatprep.subr.bf16.mxu0 0
        %1971 = vmatpush1.bf16.msra.mxu0 0
        %1972 = vmatprep.subr.bf16.mxu0 0
        %1973 = vmatpush1.bf16.msra.mxu0 0
        %1974 = vmatprep.subr.bf16.mxu0 0
        %1975 = vmatpush1.bf16.msra.mxu0 0
        %1976 = vmatprep.subr.bf16.mxu0 0
        %1977 = vmatpush1.bf16.msra.mxu0 0
        %1978 = vmatprep.subr.bf16.mxu0 0
        %1979 = vmatpush1.bf16.msra.mxu0 0
        %1980 = vmatprep.subr.bf16.mxu0 0
        %1981 = vmatpush1.bf16.msra.mxu0 0
        %1982 = vmatprep.subr.bf16.mxu0 0
        %1983 = vmatpush1.bf16.msra.mxu0 0
        %1984 = vmatprep.mubr.bf16.mxu0 0
        %1985 = vmatmul.mubr.bf16.gmra.mrb[0].mxu0 %v1349
        %v1986 = vpop.f32.mrb[0].mxu0
        %v1987 = vadd.f32 0.0, %v1986
        %v1988 = vpop.f32.mrb[0].mxu0
        %v1989 = vadd.f32 0.0, %v1988
        %v1990 = vpop.f32.mrb[0].mxu0
        %v1991 = vadd.f32 0.0, %v1990
        %v1992 = vpop.f32.mrb[0].mxu0
        %v1993 = vadd.f32 0.0, %v1992
        %1994 = vdwg.mxu0
        %1995 = vmatprep.subr.bf16.mxu0 0
        %1996 = vmatpush1.bf16.msra.mxu0 %v1022
        %1997 = vmatprep.subr.bf16.mxu0 0
        %1998 = vmatpush1.bf16.msra.mxu0 %v1049
        %1999 = vmatprep.subr.bf16.mxu0 0
        %2000 = vmatpush1.bf16.msra.mxu0 %v1076
        %2001 = vmatprep.subr.bf16.mxu0 0
        %2002 = vmatpush1.bf16.msra.mxu0 %v1103
        %2003 = vmatprep.subr.bf16.mxu0 0
        %2004 = vmatpush1.bf16.msra.mxu0 %v1130
        %2005 = vmatprep.subr.bf16.mxu0 0
        %2006 = vmatpush1.bf16.msra.mxu0 %v1157
        %2007 = vmatprep.subr.bf16.mxu0 0
        %2008 = vmatpush1.bf16.msra.mxu0 %v1434
        %2009 = vmatprep.subr.bf16.mxu0 0
        %2010 = vmatpush1.bf16.msra.mxu0 0
        %2011 = vmatprep.subr.bf16.mxu0 0
        %2012 = vmatpush1.bf16.msra.mxu0 0
        %2013 = vmatprep.subr.bf16.mxu0 0
        %2014 = vmatpush1.bf16.msra.mxu0 0
        %2015 = vmatprep.subr.bf16.mxu0 0
        %2016 = vmatpush1.bf16.msra.mxu0 0
        %2017 = vmatprep.subr.bf16.mxu0 0
        %2018 = vmatpush1.bf16.msra.mxu0 0
        %2019 = vmatprep.subr.bf16.mxu0 0
        %2020 = vmatpush1.bf16.msra.mxu0 0
        %2021 = vmatprep.subr.bf16.mxu0 0
        %2022 = vmatpush1.bf16.msra.mxu0 0
        %2023 = vmatprep.subr.bf16.mxu0 0
        %2024 = vmatpush1.bf16.msra.mxu0 0
        %2025 = vmatprep.subr.bf16.mxu0 0
        %2026 = vmatpush1.bf16.msra.mxu0 0
        %2027 = vmatprep.mubr.bf16.mxu0 0
        %2028 = vmatmul.mubr.bf16.gmra.mrb[0].mxu0 %v1349
        %v2029 = vpop.f32.mrb[0].mxu0
        %v2030 = vadd.f32 0.0, %v2029
        %v2031 = vpop.f32.mrb[0].mxu0
        %v2032 = vpop.f32.mrb[0].mxu0
        %v2033 = vadd.f32 0.0, %v2032
        %v2034 = vpop.f32.mrb[0].mxu0
        %2035 = vdwg.mxu0
        %v2036 = vld [vmem:[%s224] sm:$0xff]
        %v2037 = vld [vmem:[%s224 + $0x8] sm:$0xff]
        %v2038 = vld [vmem:[%s224 + $0x10] sm:$0xff]
        %v2039 = vld [vmem:[%s224 + $0x18] sm:$0x7]
        %v2044 = vlaneseq
        %v2045 = vshrl.u32 %v2044, 7
        %v2046 = vsub.s32 0, %v2045
        %v2047 = vrot.slane %v2036, %v2046
        %v2048 = vlaneseq
        %v2049 = vshrl.u32 %v2048, 7
        %v2050 = vsub.s32 1, %v2049
        %v2051 = vrot.slane %v2036, %v2050
        %v2052 = vlaneseq
        %v2053 = vshrl.u32 %v2052, 7
        %v2054 = vsub.s32 2, %v2053
        %v2055 = vrot.slane %v2036, %v2054
        %v2056 = vlaneseq
        %v2057 = vshrl.u32 %v2056, 7
        %v2058 = vsub.s32 3, %v2057
        %v2059 = vrot.slane %v2036, %v2058
        %v2060 = vlaneseq
        %v2061 = vshrl.u32 %v2060, 7
        %v2062 = vsub.s32 4, %v2061
        %v2063 = vrot.slane %v2036, %v2062
        %v2064 = vlaneseq
        %v2065 = vshrl.u32 %v2064, 7
        %v2066 = vsub.s32 5, %v2065
        %v2067 = vrot.slane %v2036, %v2066
        %v2068 = vlaneseq
        %v2069 = vshrl.u32 %v2068, 7
        %v2070 = vsub.s32 6, %v2069
        %v2071 = vrot.slane %v2036, %v2070
        %v2072 = vlaneseq
        %v2073 = vshrl.u32 %v2072, 7
        %v2074 = vsub.s32 7, %v2073
        %v2075 = vrot.slane %v2036, %v2074
        %v2076 = vlaneseq
        %v2077 = vshrl.u32 %v2076, 7
        %v2078 = vsub.s32 0, %v2077
        %v2079 = vrot.slane %v2037, %v2078
        %v2080 = vlaneseq
        %v2081 = vshrl.u32 %v2080, 7
        %v2082 = vsub.s32 1, %v2081
        %v2083 = vrot.slane %v2037, %v2082
        %v2084 = vlaneseq
        %v2085 = vshrl.u32 %v2084, 7
        %v2086 = vsub.s32 2, %v2085
        %v2087 = vrot.slane %v2037, %v2086
        %v2088 = vlaneseq
        %v2089 = vshrl.u32 %v2088, 7
        %v2090 = vsub.s32 3, %v2089
        %v2091 = vrot.slane %v2037, %v2090
        %v2092 = vlaneseq
        %v2093 = vshrl.u32 %v2092, 7
        %v2094 = vsub.s32 4, %v2093
        %v2095 = vrot.slane %v2037, %v2094
        %v2096 = vlaneseq
        %v2097 = vshrl.u32 %v2096, 7
        %v2098 = vsub.s32 5, %v2097
        %v2099 = vrot.slane %v2037, %v2098
        %v2100 = vlaneseq
        %v2101 = vshrl.u32 %v2100, 7
        %v2102 = vsub.s32 6, %v2101
        %v2103 = vrot.slane %v2037, %v2102
        %v2104 = vlaneseq
        %v2105 = vshrl.u32 %v2104, 7
        %v2106 = vsub.s32 7, %v2105
        %v2107 = vrot.slane %v2037, %v2106
        %v2108 = vlaneseq
        %v2109 = vshrl.u32 %v2108, 7
        %v2110 = vsub.s32 0, %v2109
        %v2111 = vrot.slane %v2038, %v2110
        %v2112 = vlaneseq
        %v2113 = vshrl.u32 %v2112, 7
        %v2114 = vsub.s32 1, %v2113
        %v2115 = vrot.slane %v2038, %v2114
        %v2116 = vlaneseq
        %v2117 = vshrl.u32 %v2116, 7
        %v2118 = vsub.s32 2, %v2117
        %v2119 = vrot.slane %v2038, %v2118
        %v2120 = vlaneseq
        %v2121 = vshrl.u32 %v2120, 7
        %v2122 = vsub.s32 3, %v2121
        %v2123 = vrot.slane %v2038, %v2122
        %v2124 = vlaneseq
        %v2125 = vshrl.u32 %v2124, 7
        %v2126 = vsub.s32 4, %v2125
        %v2127 = vrot.slane %v2038, %v2126
        %v2128 = vlaneseq
        %v2129 = vshrl.u32 %v2128, 7
        %v2130 = vsub.s32 5, %v2129
        %v2131 = vrot.slane %v2038, %v2130
        %v2132 = vlaneseq
        %v2133 = vshrl.u32 %v2132, 7
        %v2134 = vsub.s32 6, %v2133
        %v2135 = vrot.slane %v2038, %v2134
        %v2136 = vlaneseq
        %v2137 = vshrl.u32 %v2136, 7
        %v2138 = vsub.s32 7, %v2137
        %v2139 = vrot.slane %v2038, %v2138
        %v2140 = vlaneseq
        %v2141 = vshrl.u32 %v2140, 7
        %v2142 = vsub.s32 0, %v2141
        %v2143 = vrot.slane %v2039, %v2142
        %v2144 = vlaneseq
        %v2145 = vshrl.u32 %v2144, 7
        %v2146 = vsub.s32 1, %v2145
        %v2147 = vrot.slane %v2039, %v2146
        %v2148 = vlaneseq
        %v2149 = vshrl.u32 %v2148, 7
        %v2150 = vsub.s32 2, %v2149
        %v2151 = vrot.slane %v2039, %v2150
        %v2179 = vadd.f32 %v1471, %v2047
        %v2180 = vadd.f32 %v1473, %v2051
        %v2181 = vadd.f32 %v1514, %v2055
        %v2182 = vadd.f32 %v1516, %v2059
        %v2183 = vadd.f32 %v1557, %v2063
        %v2184 = vadd.f32 %v1559, %v2067
        %v2185 = vadd.f32 %v1600, %v2071
        %v2186 = vadd.f32 %v1602, %v2075
        %v2187 = vadd.f32 %v1643, %v2079
        %v2188 = vadd.f32 %v1645, %v2083
        %v2189 = vadd.f32 %v1686, %v2087
        %v2190 = vadd.f32 %v1688, %v2091
        %v2191 = vadd.f32 %v1729, %v2095
        %v2192 = vadd.f32 %v1731, %v2099
        %v2193 = vadd.f32 %v1772, %v2103
        %v2194 = vadd.f32 %v1774, %v2107
        %v2195 = vadd.f32 %v1815, %v2111
        %v2196 = vadd.f32 %v1817, %v2115
        %v2197 = vadd.f32 %v1858, %v2119
        %v2198 = vadd.f32 %v1860, %v2123
        %v2199 = vadd.f32 %v1901, %v2127
        %v2200 = vadd.f32 %v1903, %v2131
        %v2201 = vadd.f32 %v1944, %v2135
        %v2202 = vadd.f32 %v1946, %v2139
        %v2203 = vadd.f32 %v1987, %v2143
        %v2204 = vadd.f32 %v1989, %v2147
        %v2205 = vadd.f32 %v2030, %v2151
        %v2233 = vcombine.low %v2179, %v2180
        %v2234 = vcombine.low %v2181, %v2182
        %v2236 = vunpack.c.l.s4 1983009808
        %v2237 = vunpack.c.0.s8 %v2236
        %v2238 = vlaneseq
        %v2239 = vshrl.u32 %v2238, 7
        %v2240 = vsub.s32 %v2237, %v2239
        %v2241 = vrot.slane %v2233, %v2240
        %v2243 = vunpack.c.l.s4 1983009808
        %v2244 = vunpack.c.0.s8 %v2243
        %v2245 = vlaneseq
        %v2246 = vshrl.u32 %v2245, 7
        %v2247 = vsub.s32 %v2244, %v2246
        %v2248 = vrot.slane %v2234, %v2247
        %v2249 = vcombine.low %v2241, %v2248
        %v2250 = vcombine.low %v2183, %v2184
        %v2251 = vcombine.low %v2185, %v2186
        %v2253 = vunpack.c.l.s4 1983009808
        %v2254 = vunpack.c.0.s8 %v2253
        %v2255 = vlaneseq
        %v2256 = vshrl.u32 %v2255, 7
        %v2257 = vsub.s32 %v2254, %v2256
        %v2258 = vrot.slane %v2250, %v2257
        %v2260 = vunpack.c.l.s4 1983009808
        %v2261 = vunpack.c.0.s8 %v2260
        %v2262 = vlaneseq
        %v2263 = vshrl.u32 %v2262, 7
        %v2264 = vsub.s32 %v2261, %v2263
        %v2265 = vrot.slane %v2251, %v2264
        %v2266 = vcombine.low %v2258, %v2265
        %v2267 = vcombine.low %v2187, %v2188
        %v2268 = vcombine.low %v2189, %v2190
        %v2270 = vunpack.c.l.s4 1983009808
        %v2271 = vunpack.c.0.s8 %v2270
        %v2272 = vlaneseq
        %v2273 = vshrl.u32 %v2272, 7
        %v2274 = vsub.s32 %v2271, %v2273
        %v2275 = vrot.slane %v2267, %v2274
        %v2277 = vunpack.c.l.s4 1983009808
        %v2278 = vunpack.c.0.s8 %v2277
        %v2279 = vlaneseq
        %v2280 = vshrl.u32 %v2279, 7
        %v2281 = vsub.s32 %v2278, %v2280
        %v2282 = vrot.slane %v2268, %v2281
        %v2283 = vcombine.low %v2275, %v2282
        %v2284 = vcombine.low %v2191, %v2192
        %v2285 = vcombine.low %v2193, %v2194
        %v2287 = vunpack.c.l.s4 1983009808
        %v2288 = vunpack.c.0.s8 %v2287
        %v2289 = vlaneseq
        %v2290 = vshrl.u32 %v2289, 7
        %v2291 = vsub.s32 %v2288, %v2290
        %v2292 = vrot.slane %v2284, %v2291
        %v2294 = vunpack.c.l.s4 1983009808
        %v2295 = vunpack.c.0.s8 %v2294
        %v2296 = vlaneseq
        %v2297 = vshrl.u32 %v2296, 7
        %v2298 = vsub.s32 %v2295, %v2297
        %v2299 = vrot.slane %v2285, %v2298
        %v2300 = vcombine.low %v2292, %v2299
        %v2301 = vcombine.low %v2195, %v2196
        %v2302 = vcombine.low %v2197, %v2198
        %v2304 = vunpack.c.l.s4 1983009808
        %v2305 = vunpack.c.0.s8 %v2304
        %v2306 = vlaneseq
        %v2307 = vshrl.u32 %v2306, 7
        %v2308 = vsub.s32 %v2305, %v2307
        %v2309 = vrot.slane %v2301, %v2308
        %v2311 = vunpack.c.l.s4 1983009808
        %v2312 = vunpack.c.0.s8 %v2311
        %v2313 = vlaneseq
        %v2314 = vshrl.u32 %v2313, 7
        %v2315 = vsub.s32 %v2312, %v2314
        %v2316 = vrot.slane %v2302, %v2315
        %v2317 = vcombine.low %v2309, %v2316
        %v2318 = vcombine.low %v2199, %v2200
        %v2319 = vcombine.low %v2201, %v2202
        %v2321 = vunpack.c.l.s4 1983009808
        %v2322 = vunpack.c.0.s8 %v2321
        %v2323 = vlaneseq
        %v2324 = vshrl.u32 %v2323, 7
        %v2325 = vsub.s32 %v2322, %v2324
        %v2326 = vrot.slane %v2318, %v2325
        %v2328 = vunpack.c.l.s4 1983009808
        %v2329 = vunpack.c.0.s8 %v2328
        %v2330 = vlaneseq
        %v2331 = vshrl.u32 %v2330, 7
        %v2332 = vsub.s32 %v2329, %v2331
        %v2333 = vrot.slane %v2319, %v2332
        %v2334 = vcombine.low %v2326, %v2333
        %v2335 = vcombine.low %v2203, %v2204
        %v2337 = vunpack.c.l.s4 1983009808
        %v2338 = vunpack.c.0.s8 %v2337
        %v2339 = vlaneseq
        %v2340 = vshrl.u32 %v2339, 7
        %v2341 = vsub.s32 %v2338, %v2340
        %v2342 = vrot.slane %v2335, %v2341
        %v2344 = vunpack.c.l.s4 1983009808
        %v2345 = vunpack.c.0.s8 %v2344
        %v2346 = vlaneseq
        %v2347 = vshrl.u32 %v2346, 7
        %v2348 = vsub.s32 %v2345, %v2347
        %v2349 = vrot.slane %v2205, %v2348
        %v2350 = vcombine.low %v2342, %v2349
        %2358 = vst [vmem:[%s265] sm:$0xff] %v2249
        %2359 = vst [vmem:[%s265 + $0x8] sm:$0xff] %v2266
        %2360 = vst [vmem:[%s265 + $0x10] sm:$0xff] %v2283
        %2361 = vst [vmem:[%s265 + $0x18] sm:$0xff] %v2300
        %2362 = vst [vmem:[%s265 + $0x20] sm:$0xff] %v2317
        %2363 = vst [vmem:[%s265 + $0x28] sm:$0xff] %v2334
        %2364 = vst [vmem:[%s265 + $0x30] sm:$0x3f] %v2350
        %v2365 = vadd.f32 %v1475, %v2047
        %v2366 = vadd.f32 %v1477, %v2051
        %v2367 = vadd.f32 %v1518, %v2055
        %v2368 = vadd.f32 %v1520, %v2059
        %v2369 = vadd.f32 %v1561, %v2063
        %v2370 = vadd.f32 %v1563, %v2067
        %v2371 = vadd.f32 %v1604, %v2071
        %v2372 = vadd.f32 %v1606, %v2075
        %v2373 = vadd.f32 %v1647, %v2079
        %v2374 = vadd.f32 %v1649, %v2083
        %v2375 = vadd.f32 %v1690, %v2087
        %v2376 = vadd.f32 %v1692, %v2091
        %v2377 = vadd.f32 %v1733, %v2095
        %v2378 = vadd.f32 %v1735, %v2099
        %v2379 = vadd.f32 %v1776, %v2103
        %v2380 = vadd.f32 %v1778, %v2107
        %v2381 = vadd.f32 %v1819, %v2111
        %v2382 = vadd.f32 %v1821, %v2115
        %v2383 = vadd.f32 %v1862, %v2119
        %v2384 = vadd.f32 %v1864, %v2123
        %v2385 = vadd.f32 %v1905, %v2127
        %v2386 = vadd.f32 %v1907, %v2131
        %v2387 = vadd.f32 %v1948, %v2135
        %v2388 = vadd.f32 %v1950, %v2139
        %v2389 = vadd.f32 %v1991, %v2143
        %v2390 = vadd.f32 %v1993, %v2147
        %v2391 = vadd.f32 %v2033, %v2151
        %v2419 = vcombine.low %v2365, %v2366
        %v2420 = vcombine.low %v2367, %v2368
        %v2422 = vunpack.c.l.s4 1983009808
        %v2423 = vunpack.c.0.s8 %v2422
        %v2424 = vlaneseq
        %v2425 = vshrl.u32 %v2424, 7
        %v2426 = vsub.s32 %v2423, %v2425
        %v2427 = vrot.slane %v2419, %v2426
        %v2429 = vunpack.c.l.s4 1983009808
        %v2430 = vunpack.c.0.s8 %v2429
        %v2431 = vlaneseq
        %v2432 = vshrl.u32 %v2431, 7
        %v2433 = vsub.s32 %v2430, %v2432
        %v2434 = vrot.slane %v2420, %v2433
        %v2435 = vcombine.low %v2427, %v2434
        %v2436 = vcombine.low %v2369, %v2370
        %v2437 = vcombine.low %v2371, %v2372
        %v2439 = vunpack.c.l.s4 1983009808
        %v2440 = vunpack.c.0.s8 %v2439
        %v2441 = vlaneseq
        %v2442 = vshrl.u32 %v2441, 7
        %v2443 = vsub.s32 %v2440, %v2442
        %v2444 = vrot.slane %v2436, %v2443
        %v2446 = vunpack.c.l.s4 1983009808
        %v2447 = vunpack.c.0.s8 %v2446
        %v2448 = vlaneseq
        %v2449 = vshrl.u32 %v2448, 7
        %v2450 = vsub.s32 %v2447, %v2449
        %v2451 = vrot.slane %v2437, %v2450
        %v2452 = vcombine.low %v2444, %v2451
        %v2453 = vcombine.low %v2373, %v2374
        %v2454 = vcombine.low %v2375, %v2376
        %v2456 = vunpack.c.l.s4 1983009808
        %v2457 = vunpack.c.0.s8 %v2456
        %v2458 = vlaneseq
        %v2459 = vshrl.u32 %v2458, 7
        %v2460 = vsub.s32 %v2457, %v2459
        %v2461 = vrot.slane %v2453, %v2460
        %v2463 = vunpack.c.l.s4 1983009808
        %v2464 = vunpack.c.0.s8 %v2463
        %v2465 = vlaneseq
        %v2466 = vshrl.u32 %v2465, 7
        %v2467 = vsub.s32 %v2464, %v2466
        %v2468 = vrot.slane %v2454, %v2467
        %v2469 = vcombine.low %v2461, %v2468
        %v2470 = vcombine.low %v2377, %v2378
        %v2471 = vcombine.low %v2379, %v2380
        %v2473 = vunpack.c.l.s4 1983009808
        %v2474 = vunpack.c.0.s8 %v2473
        %v2475 = vlaneseq
        %v2476 = vshrl.u32 %v2475, 7
        %v2477 = vsub.s32 %v2474, %v2476
        %v2478 = vrot.slane %v2470, %v2477
        %v2480 = vunpack.c.l.s4 1983009808
        %v2481 = vunpack.c.0.s8 %v2480
        %v2482 = vlaneseq
        %v2483 = vshrl.u32 %v2482, 7
        %v2484 = vsub.s32 %v2481, %v2483
        %v2485 = vrot.slane %v2471, %v2484
        %v2486 = vcombine.low %v2478, %v2485
        %v2487 = vcombine.low %v2381, %v2382
        %v2488 = vcombine.low %v2383, %v2384
        %v2490 = vunpack.c.l.s4 1983009808
        %v2491 = vunpack.c.0.s8 %v2490
        %v2492 = vlaneseq
        %v2493 = vshrl.u32 %v2492, 7
        %v2494 = vsub.s32 %v2491, %v2493
        %v2495 = vrot.slane %v2487, %v2494
        %v2497 = vunpack.c.l.s4 1983009808
        %v2498 = vunpack.c.0.s8 %v2497
        %v2499 = vlaneseq
        %v2500 = vshrl.u32 %v2499, 7
        %v2501 = vsub.s32 %v2498, %v2500
        %v2502 = vrot.slane %v2488, %v2501
        %v2503 = vcombine.low %v2495, %v2502
        %v2504 = vcombine.low %v2385, %v2386
        %v2505 = vcombine.low %v2387, %v2388
        %v2507 = vunpack.c.l.s4 1983009808
        %v2508 = vunpack.c.0.s8 %v2507
        %v2509 = vlaneseq
        %v2510 = vshrl.u32 %v2509, 7
        %v2511 = vsub.s32 %v2508, %v2510
        %v2512 = vrot.slane %v2504, %v2511
        %v2514 = vunpack.c.l.s4 1983009808
        %v2515 = vunpack.c.0.s8 %v2514
        %v2516 = vlaneseq
        %v2517 = vshrl.u32 %v2516, 7
        %v2518 = vsub.s32 %v2515, %v2517
        %v2519 = vrot.slane %v2505, %v2518
        %v2520 = vcombine.low %v2512, %v2519
        %v2521 = vcombine.low %v2389, %v2390
        %v2523 = vunpack.c.l.s4 1983009808
        %v2524 = vunpack.c.0.s8 %v2523
        %v2525 = vlaneseq
        %v2526 = vshrl.u32 %v2525, 7
        %v2527 = vsub.s32 %v2524, %v2526
        %v2528 = vrot.slane %v2521, %v2527
        %v2530 = vunpack.c.l.s4 1983009808
        %v2531 = vunpack.c.0.s8 %v2530
        %v2532 = vlaneseq
        %v2533 = vshrl.u32 %v2532, 7
        %v2534 = vsub.s32 %v2531, %v2533
        %v2535 = vrot.slane %v2391, %v2534
        %v2536 = vcombine.low %v2528, %v2535
        %2544 = vst [vmem:[%s271] sm:$0xff] %v2435
        %2545 = vst [vmem:[%s271 + $0x8] sm:$0xff] %v2452
        %2546 = vst [vmem:[%s271 + $0x10] sm:$0xff] %v2469
        %2547 = vst [vmem:[%s271 + $0x18] sm:$0xff] %v2486
        %2548 = vst [vmem:[%s271 + $0x20] sm:$0xff] %v2503
        %2549 = vst [vmem:[%s271 + $0x28] sm:$0xff] %v2520
        %2550 = vst [vmem:[%s271 + $0x30] sm:$0x3f] %v2536
        %s2551 = smul.u32 27, %s22
        %p2552 = scmp.lt.s32.totalorder %s2551, 161
        %s2553 = scalar_select %p2552, %s2551, 161
        %s2554 = smul.addr %s2553, 2
        %s2555 = scalar_lea.vmem %s3, %s2554
        %s2556 = smul.u32 27, %s22
        %p2557 = scmp.lt.s32.totalorder %s2556, 161
        %s2558 = scalar_select %p2557, %s2556, 161
        %s2559 = smul.addr %s2558, 2
        %s2560 = scalar_lea.vmem %s4, %s2559
        // Predicated region
        $region41: #{star_forward.2} parent=31 // pred_check
          %p2561 = pneg %p113
        $region42: #{star_forward.2} parent=31 // pred_check_branch
          %2563 = sbr.rel (%p2561) target = $region44
        $region43: #{star_forward.2} parent=31 // pred_region
          %s2564 = smul.u32 27, %s22
        $region44: #{star_forward.2} parent=31 // pred_fallthru
          _
        // Predicated region
        $region45: #{star_forward.2} parent=31 // pred_check
          %p2565 = pneg %p139
        $region46: #{star_forward.2} parent=31 // pred_check_branch
          %2567 = sbr.rel (%p2565) target = $region48
        $region47: #{star_forward.2} parent=31 // pred_region
          %s2568 = smul.u32 27, %s22
        $region48: #{star_forward.2} parent=31 // pred_fallthru
          _
      $region32: #{star_forward.2} parent=5 // pred_fallthru
        _
      %p2569 = scmp.le.s32.totalorder 2, %s17
      // Predicated region
      $region49: #{star_forward.2} parent=5 // pred_check
        %p2570 = pneg %p2569
      $region50: #{star_forward.2} parent=5 // pred_check_branch
        %2572 = sbr.rel (%p2570) target = $region52
      $region51: #{star_forward.2} parent=5 // pred_region
        %s2573 = ssub.s32 %s17, 2
        // Predicated region
        $region53: #{star_forward.2} parent=51 // pred_check
          %p2574 = pneg %p119
        $region54: #{star_forward.2} parent=51 // pred_check_branch
          %2576 = sbr.rel (%p2574) target = $region56
        $region55: #{star_forward.2} parent=51 // pred_region
          %s2577 = smul.u32 27, %s23
          %p2578 = scmp.lt.s32.totalorder %s2577, 161
          %s2579 = scalar_select %p2578, %s2577, 161
          %s2580 = smul.addr %s2579, 2
          %s2581 = scalar_lea.vmem %s3, %s2580
        $region56: #{star_forward.2} parent=51 // pred_fallthru
          _
        // Predicated region
        $region57: #{star_forward.2} parent=51 // pred_check
          %p2582 = pneg %p145
        $region58: #{star_forward.2} parent=51 // pred_check_branch
          %2584 = sbr.rel (%p2582) target = $region60
        $region59: #{star_forward.2} parent=51 // pred_region
          %s2585 = smul.u32 27, %s23
          %p2586 = scmp.lt.s32.totalorder %s2585, 161
          %s2587 = scalar_select %p2586, %s2585, 161
          %s2588 = smul.addr %s2587, 2
          %s2589 = scalar_lea.vmem %s4, %s2588
        $region60: #{star_forward.2} parent=51 // pred_fallthru
          _
      $region52: #{star_forward.2} parent=5 // pred_fallthru
        _
    $region6: #{star_forward.2} parent=1 // loop_footer
      %s21 = sadd.s32 1, %s17
    $region7: #{star_forward.2} parent=1 // loop_footer_branch
      %16 = sbr.rel target = $region3
    $region8: #{star_forward.2} parent=1 // loop_exit
      _
    %2590 = vsyncpa [#allocation3], 1
    %s2591 = scalar_lea.sflag [#allocation3], 1
    %2592 = vsyncpa %s2591, 1
    %2593 = vsyncpa [#allocation5], 1
    %s2594 = scalar_lea.sflag [#allocation5], 1
    %2595 = vsyncpa %s2594, 1

// kernel: star_forward.3
$region0: #{star_forward.3}
  #allocation0 [shape = 'u32[]', space=smem, size = 0x4, offset = 0x4, fixed_abs, tag = 'smem constant byte address 0x4 - core index']
  #allocation1 [shape = 'u32[144,128]{1,0:T(1,128)}', space=vmem, size = 0x12000, scoped, tag = 'internal scratch']
  %s0 = inlined_call_operand.vmem [shape: bf16[24,6912], index: 0, kind: input, shape index: {}]
  %s1 = inlined_call_operand.vmem [shape: bf16[32,24], index: 1, kind: input, shape index: {}]
  %s2 = inlined_call_operand.vmem [shape: f32[2,3,6912], index: 2, kind: input, shape index: {}]
  %s3 = inlined_call_operand.vmem [shape: f32[2,3,6912], index: 3, kind: output, shape index: {}]
  %s4 = sld [smem:[#allocation0]]
  $region119: #{star_forward.3} parent=0
    _
  %s6 = ssub.s32 1, %s4
  %s7 = scalar_select 0, %s6, %s4
  $region1: #{star_forward.3} parent=0
    #allocation2 [shape = 'u8[331776]{0}', space=vmem, size = 0x51000, scoped, tag = 'input window, operand 0']
    #allocation3 [shape = 'u8[221184]{0}', space=vmem, size = 0x36000, scoped, tag = 'input window, operand 2']
    #allocation4 [shape = 'u8[221184]{0}', space=vmem, size = 0x36000, scoped, tag = 'output window, operand 0']
    loop: start=0, step=1, limit=4
    $region2: #{star_forward.3} parent=1 // loop_pre_header
      _
    $region3: #{star_forward.3} parent=1 // loop_header
      %s9 = sphi 0, %s13
      %p10 = scmp.ge.s32.totalorder %s9, 4
      %s19 = sphi 0, %s21
      %s22 = sphi 0, %s19
      %s23 = sphi 0, %s22
      %s39 = sphi 0, %s23
      %s43 = sphi 0, %s43
      %s45 = sphi 0, %s43
      %s46 = sphi 0, %s45
      %s60 = sphi 0, %s46
      %s66 = sphi 0, %s68
      %s69 = sphi 0, %s66
      %s70 = sphi 0, %s69
      %s86 = sphi 0, %s70
      %s92 = sphi 0, %s94
      %s95 = sphi 0, %s92
      %s96 = sphi 0, %s95
      %s112 = sphi 0, %s96
    $region4: #{star_forward.3} parent=1 // loop_header_branch
      %12 = sbr.rel (%p10) target = $region8
    $region5: #{star_forward.3} parent=1 // loop_body
      %s14 = ssub.s32 %s9, 1
      %s15 = ssub.s32 %s9, 2
      %s16 = sadd.s32 %s9, 1
      %s17 = ssub.s32 %s9, %s16
      %p18 = scmp.eq.s32.totalorder %s17, 0
      %s20 = sadd.s32 %s19, 1
      %s21 = scalar_select %p18, %s19, %s20
      %p24 = pneg %p18
      %p25 = scmp.eq.s32.totalorder %s9, 1
      %p26 = por %p24, %p25
      %p27 = scmp.ne.s32.totalorder %s19, %s22
      %p28 = scmp.eq.s32.totalorder %s9, 0
      %p29 = por %p27, %p28
      %p30 = scmp.ne.s32.totalorder %s19, %s22
      %p31 = scmp.eq.s32.totalorder %s14, 1
      %p32 = por %p30, %p31
      %p33 = scmp.ne.s32.totalorder %s22, %s23
      %p34 = scmp.eq.s32.totalorder %s14, 0
      %p35 = por %p33, %p34
      %p36 = scmp.ne.s32.totalorder %s22, %s23
      %p37 = scmp.eq.s32.totalorder %s15, 1
      %p38 = por %p36, %p37
      %p40 = scmp.ne.s32.totalorder %s23, %s39
      %p41 = scmp.eq.s32.totalorder %s15, 0
      %p42 = por %p40, %p41
      %s44 = sadd.s32 %s43, 1
      %p47 = scmp.eq.s32.totalorder %s9, 1
      %p48 = scmp.ne.s32.totalorder %s43, %s45
      %p49 = scmp.eq.s32.totalorder %s9, 0
      %p50 = por %p48, %p49
      %p51 = scmp.ne.s32.totalorder %s43, %s45
      %p52 = scmp.eq.s32.totalorder %s14, 1
      %p53 = por %p51, %p52
      %p54 = scmp.ne.s32.totalorder %s45, %s46
      %p55 = scmp.eq.s32.totalorder %s14, 0
      %p56 = por %p54, %p55
      %p57 = scmp.ne.s32.totalorder %s45, %s46
      %p58 = scmp.eq.s32.totalorder %s15, 1
      %p59 = por %p57, %p58
      %p61 = scmp.ne.s32.totalorder %s46, %s60
      %p62 = scmp.eq.s32.totalorder %s15, 0
      %p63 = por %p61, %p62
      %s64 = ssub.s32 %s9, %s16
      %p65 = scmp.eq.s32.totalorder %s64, 0
      %s67 = sadd.s32 %s66, 1
      %s68 = scalar_select %p65, %s66, %s67
      %p71 = pneg %p65
      %p72 = scmp.eq.s32.totalorder %s9, 1
      %p73 = por %p71, %p72
      %p74 = scmp.ne.s32.totalorder %s66, %s69
      %p75 = scmp.eq.s32.totalorder %s9, 0
      %p76 = por %p74, %p75
      %p77 = scmp.ne.s32.totalorder %s66, %s69
      %p78 = scmp.eq.s32.totalorder %s14, 1
      %p79 = por %p77, %p78
      %p80 = scmp.ne.s32.totalorder %s69, %s70
      %p81 = scmp.eq.s32.totalorder %s14, 0
      %p82 = por %p80, %p81
      %p83 = scmp.ne.s32.totalorder %s69, %s70
      %p84 = scmp.eq.s32.totalorder %s15, 1
      %p85 = por %p83, %p84
      %p87 = scmp.ne.s32.totalorder %s70, %s86
      %p88 = scmp.eq.s32.totalorder %s15, 0
      %p89 = por %p87, %p88
      %s90 = ssub.s32 %s9, %s16
      %p91 = scmp.eq.s32.totalorder %s90, 0
      %s93 = sadd.s32 %s92, 1
      %s94 = scalar_select %p91, %s92, %s93
      %p97 = pneg %p91
      %p98 = scmp.eq.s32.totalorder %s9, 1
      %p99 = por %p97, %p98
      %p100 = scmp.ne.s32.totalorder %s92, %s95
      %p101 = scmp.eq.s32.totalorder %s9, 0
      %p102 = por %p100, %p101
      %p103 = scmp.ne.s32.totalorder %s92, %s95
      %p104 = scmp.eq.s32.totalorder %s14, 1
      %p105 = por %p103, %p104
      %p106 = scmp.ne.s32.totalorder %s95, %s96
      %p107 = scmp.eq.s32.totalorder %s14, 0
      %p108 = por %p106, %p107
      %p109 = scmp.ne.s32.totalorder %s95, %s96
      %p110 = scmp.eq.s32.totalorder %s15, 1
      %p111 = por %p109, %p110
      %p113 = scmp.ne.s32.totalorder %s96, %s112
      %p114 = scmp.eq.s32.totalorder %s15, 0
      %p115 = por %p113, %p114
      %p116 = scmp.le.s32.totalorder 1, %s9
      %p117 = scmp.lt.s32.totalorder %s9, 3
      %p118 = pnand %p116, %p117
      %p119 = pneg %p118
      // Predicated region
      $region9: #{star_forward.3} parent=5 // pred_check
        _
      $region10: #{star_forward.3} parent=5 // pred_check_branch
        %121 = sbr.rel (%p118) target = $region12
      $region11: #{star_forward.3} parent=5 // pred_region
        %s122 = ssub.s32 %s9, 1
        // Predicated region
        $region13: #{star_forward.3} parent=11 // pred_check
          %p123 = pneg %p56
        $region14: #{star_forward.3} parent=11 // pred_check_branch
          %125 = sbr.rel (%p123) target = $region16
        $region15: #{star_forward.3} parent=11 // pred_region
          _
        $region16: #{star_forward.3} parent=11 // pred_fallthru
          _
      $region12: #{star_forward.3} parent=5 // pred_fallthru
        _
      %p126 = scmp.lt.s32.totalorder %s9, 2
      // Predicated region
      $region17: #{star_forward.3} parent=5 // pred_check
        %p127 = pneg %p126
      $region18: #{star_forward.3} parent=5 // pred_check_branch
        %129 = sbr.rel (%p127) target = $region20
      $region19: #{star_forward.3} parent=5 // pred_region
        // Predicated region
        $region21: #{star_forward.3} parent=19 // pred_check
          %p130 = pneg %p29
        $region22: #{star_forward.3} parent=19 // pred_check_branch
          %132 = sbr.rel (%p130) target = $region24
        $region23: #{star_forward.3} parent=19 // pred_region
          %s133 = sand.u32 %s19, 1
          %s134 = sand.u32 %s19, 1
          %s135 = smul.addr %s134, 324
          %s136 = scalar_lea.vmem [#allocation2], %s135
          %s137 = smul.u32 27, %s9
          %s138 = smul.addr %s137, 4
          %s139 = scalar_lea.vmem %s0, %s138
          // Predicated region
          $region25: #{star_forward.3} parent=23 // pred_check
            _
          $region26: #{star_forward.3} parent=23 // pred_check_branch
            %141 = sbr.rel (0) target = $region28
          $region27: #{star_forward.3} parent=23 // pred_region
            // Predicated region
            $region29: #{star_forward.3} parent=27 // pred_check
              _
            $region30: #{star_forward.3} parent=27 // pred_check_branch
              %143 = sbr.rel (0) target = $region32
            $region31: #{star_forward.3} parent=27 // pred_region
              %s144 = scalar_lea.vmem %s139, 104
              %s145 = scalar_lea.vmem %s136, 104 [#allocation2]
              loop: start=0, step=1, limit=1
              $region33: #{star_forward.3} parent=31 // loop_pre_header
                _
              $region34: #{star_forward.3} parent=31 // loop_header
                %s147 = sphi 0, %s151
                %p148 = scmp.ge.s32.totalorder %s147, 1
                %s152 = sphi %s139, %s139
                %s153 = sphi %s136, %s136
              $region35: #{star_forward.3} parent=31 // loop_header_branch
                %150 = sbr.rel (%p148) target = $region39
              $region36: #{star_forward.3} parent=31 // loop_body
                %v154 = vld [vmem:[%s152] sm:$0xff]
                %155 = vst [vmem:[%s153] sm:$0xff] %v154
                %v156 = vld [vmem:[%s152 + $0x8] sm:$0xff]
                %157 = vst [vmem:[%s153 + $0x8] sm:$0xff] %v156
                %v158 = vld [vmem:[%s152 + $0x10] sm:$0xff]
                %159 = vst [vmem:[%s153 + $0x10] sm:$0xff] %v158
                %v160 = vld [vmem:[%s152 + $0x18] sm:$0xff]
                %161 = vst [vmem:[%s153 + $0x18] sm:$0xff] %v160
                %v162 = vld [vmem:[%s152 + $0x20] sm:$0xff]
                %163 = vst [vmem:[%s153 + $0x20] sm:$0xff] %v162
                %v164 = vld [vmem:[%s152 + $0x28] sm:$0xff]
                %165 = vst [vmem:[%s153 + $0x28] sm:$0xff] %v164
                %v166 = vld [vmem:[%s152 + $0x30] sm:$0xff]
                %167 = vst [vmem:[%s153 + $0x30] sm:$0xff] %v166
                %v168 = vld [vmem:[%s152 + $0x38] sm:$0xff]
                %169 = vst [vmem:[%s153 + $0x38] sm:$0xff] %v168
                %v170 = vld [vmem:[%s152 + $0x40] sm:$0xff]
                %171 = vst [vmem:[%s153 + $0x40] sm:$0xff] %v170
                %v172 = vld [vmem:[%s152 + $0x48] sm:$0xff]
                %173 = vst [vmem:[%s153 + $0x48] sm:$0xff] %v172
                %v174 = vld [vmem:[%s152 + $0x50] sm:$0xff]
                %175 = vst [vmem:[%s153 + $0x50] sm:$0xff] %v174
                %v176 = vld [vmem:[%s152 + $0x58] sm:$0xff]
                %177 = vst [vmem:[%s153 + $0x58] sm:$0xff] %v176
                %v178 = vld [vmem:[%s152 + $0x60] sm:$0xff]
                %179 = vst [vmem:[%s153 + $0x60] sm:$0xff] %v178
                %v180 = vld [vmem:[%s152 + $0xd8] sm:$0xff]
                %181 = vst [vmem:[%s153 + $0x6c] sm:$0xff] %v180
                %v182 = vld [vmem:[%s152 + $0xe0] sm:$0xff]
                %183 = vst [vmem:[%s153 + $0x74] sm:$0xff] %v182
                %v184 = vld [vmem:[%s152 + $0xe8] sm:$0xff]
                %185 = vst [vmem:[%s153 + $0x7c] sm:$0xff] %v184
                %v186 = vld [vmem:[%s152 + $0xf0] sm:$0xff]
                %187 = vst [vmem:[%s153 + $0x84] sm:$0xff] %v186
                %v188 = vld [vmem:[%s152 + $0xf8] sm:$0xff]
                %189 = vst [vmem:[%s153 + $0x8c] sm:$0xff] %v188
                %v190 = vld [vmem:[%s152 + $0x100] sm:$0xff]
                %191 = vst [vmem:[%s153 + $0x94] sm:$0xff] %v190
                %v192 = vld [vmem:[%s152 + $0x108] sm:$0xff]
                %193 = vst [vmem:[%s153 + $0x9c] sm:$0xff] %v192
                %v194 = vld [vmem:[%s152 + $0x110] sm:$0xff]
                %195 = vst [vmem:[%s153 + $0xa4] sm:$0xff] %v194
                %v196 = vld [vmem:[%s152 + $0x118] sm:$0xff]
                %197 = vst [vmem:[%s153 + $0xac] sm:$0xff] %v196
                %v198 = vld [vmem:[%s152 + $0x120] sm:$0xff]
                %199 = vst [vmem:[%s153 + $0xb4] sm:$0xff] %v198
                %v200 = vld [vmem:[%s152 + $0x128] sm:$0xff]
                %201 = vst [vmem:[%s153 + $0xbc] sm:$0xff] %v200
                %v202 = vld [vmem:[%s152 + $0x130] sm:$0xff]
                %203 = vst [vmem:[%s153 + $0xc4] sm:$0xff] %v202
                %v204 = vld [vmem:[%s152 + $0x138] sm:$0xff]
                %205 = vst [vmem:[%s153 + $0xcc] sm:$0xff] %v204
                %v206 = vld [vmem:[%s152 + $0x1b0] sm:$0xff]
                %207 = vst [vmem:[%s153 + $0xd8] sm:$0xff] %v206
                %v208 = vld [vmem:[%s152 + $0x1b8] sm:$0xff]
                %209 = vst [vmem:[%s153 + $0xe0] sm:$0xff] %v208
                %v210 = vld [vmem:[%s152 + $0x1c0] sm:$0xff]
                %211 = vst [vmem:[%s153 + $0xe8] sm:$0xff] %v210
                %v212 = vld [vmem:[%s152 + $0x1c8] sm:$0xff]
                %213 = vst [vmem:[%s153 + $0xf0] sm:$0xff] %v212
                %v214 = vld [vmem:[%s152 + $0x1d0] sm:$0xff]
                %215 = vst [vmem:[%s153 + $0xf8] sm:$0xff] %v214
                %v216 = vld [vmem:[%s152 + $0x1d8] sm:$0xff]
                %217 = vst [vmem:[%s153 + $0x100] sm:$0xff] %v216
                %v218 = vld [vmem:[%s152 + $0x1e0] sm:$0xff]
                %219 = vst [vmem:[%s153 + $0x108] sm:$0xff] %v218
                %v220 = vld [vmem:[%s152 + $0x1e8] sm:$0xff]
                %221 = vst [vmem:[%s153 + $0x110] sm:$0xff] %v220
                %v222 = vld [vmem:[%s152 + $0x1f0] sm:$0xff]
                %223 = vst [vmem:[%s153 + $0x118] sm:$0xff] %v222
                %v224 = vld [vmem:[%s152 + $0x1f8] sm:$0xff]
                %225 = vst [vmem:[%s153 + $0x120] sm:$0xff] %v224
                %v226 = vld [vmem:[%s152 + $0x200] sm:$0xff]
                %227 = vst [vmem:[%s153 + $0x128] sm:$0xff] %v226
                %v228 = vld [vmem:[%s152 + $0x208] sm:$0xff]
                %229 = vst [vmem:[%s153 + $0x130] sm:$0xff] %v228
                %v230 = vld [vmem:[%s152 + $0x210] sm:$0xff]
                %231 = vst [vmem:[%s153 + $0x138] sm:$0xff] %v230
              $region37: #{star_forward.3} parent=31 // loop_footer
                %s151 = sadd.s32 1, %s147
              $region38: #{star_forward.3} parent=31 // loop_footer_branch
                %146 = sbr.rel target = $region34
              $region39: #{star_forward.3} parent=31 // loop_exit
                _
              loop: start=0, step=1, limit=1
              $region40: #{star_forward.3} parent=31 // loop_pre_header
                _
              $region41: #{star_forward.3} parent=31 // loop_header
                %s234 = sphi 0, %s238
                %p235 = scmp.ge.s32.totalorder %s234, 1
                %s239 = sphi %s144, %s144
                %s240 = sphi %s145, %s145
              $region42: #{star_forward.3} parent=31 // loop_header_branch
                %237 = sbr.rel (%p235) target = $region46
              $region43: #{star_forward.3} parent=31 // loop_body
                %v241 = vld [vmem:[%s239] sm:$0xf]
                %242 = vst [vmem:[%s240] sm:$0xf] %v241
                %v243 = vld [vmem:[%s239 + $0xd8] sm:$0xf]
                %244 = vst [vmem:[%s240 + $0x6c] sm:$0xf] %v243
                %v245 = vld [vmem:[%s239 + $0x1b0] sm:$0xf]
                %246 = vst [vmem:[%s240 + $0xd8] sm:$0xf] %v245
              $region44: #{star_forward.3} parent=31 // loop_footer
                %s238 = sadd.s32 1, %s234
              $region45: #{star_forward.3} parent=31 // loop_footer_branch
                %233 = sbr.rel target = $region41
              $region46: #{star_forward.3} parent=31 // loop_exit
                _
            $region32: #{star_forward.3} parent=27 // pred_fallthru
              _
          $region28: #{star_forward.3} parent=23 // pred_fallthru
            _
          %247 = vnop
        $region24: #{star_forward.3} parent=19 // pred_fallthru
          _
        // Predicated region
        $region47: #{star_forward.3} parent=19 // pred_check
          %p248 = pneg %p76
        $region48: #{star_forward.3} parent=19 // pred_check_branch
          %250 = sbr.rel (%p248) target = $region50
        $region49: #{star_forward.3} parent=19 // pred_region
          %s251 = sand.u32 %s66, 1
          %s252 = sand.u32 %s66, 1
          %s253 = smul.addr %s252, 216
          %s254 = scalar_lea.vmem [#allocation3], %s253
          %s255 = smul.u32 27, %s9
          %s256 = smul.addr %s255, 4
          %s257 = scalar_lea.vmem %s2, %s256
          // Predicated region
          $region51: #{star_forward.3} parent=49 // pred_check
            _
          $region52: #{star_forward.3} parent=49 // pred_check_branch
            %259 = sbr.rel (0) target = $region54
          $region53: #{star_forward.3} parent=49 // pred_region
            // Predicated region
            $region55: #{star_forward.3} parent=53 // pred_check
              _
            $region56: #{star_forward.3} parent=53 // pred_check_branch
              %261 = sbr.rel (0) target = $region58
            $region57: #{star_forward.3} parent=53 // pred_region
              %s262 = scalar_lea.vmem %s257, 104
              %s263 = scalar_lea.vmem %s254, 104 [#allocation3]
              loop: start=0, step=1, limit=1
              $region59: #{star_forward.3} parent=57 // loop_pre_header
                _
              $region60: #{star_forward.3} parent=57 // loop_header
                %s265 = sphi 0, %s269
                %p266 = scmp.ge.s32.totalorder %s265, 1
                %s270 = sphi %s257, %s257
                %s271 = sphi %s254, %s254
              $region61: #{star_forward.3} parent=57 // loop_header_branch
                %268 = sbr.rel (%p266) target = $region65
              $region62: #{star_forward.3} parent=57 // loop_body
                %v272 = vld [vmem:[%s270] sm:$0xff]
                %273 = vst [vmem:[%s271] sm:$0xff] %v272
                %v274 = vld [vmem:[%s270 + $0x8] sm:$0xff]
                %275 = vst [vmem:[%s271 + $0x8] sm:$0xff] %v274
                %v276 = vld [vmem:[%s270 + $0x10] sm:$0xff]
                %277 = vst [vmem:[%s271 + $0x10] sm:$0xff] %v276
                %v278 = vld [vmem:[%s270 + $0x18] sm:$0xff]
                %279 = vst [vmem:[%s271 + $0x18] sm:$0xff] %v278
                %v280 = vld [vmem:[%s270 + $0x20] sm:$0xff]
                %281 = vst [vmem:[%s271 + $0x20] sm:$0xff] %v280
                %v282 = vld [vmem:[%s270 + $0x28] sm:$0xff]
                %283 = vst [vmem:[%s271 + $0x28] sm:$0xff] %v282
                %v284 = vld [vmem:[%s270 + $0x30] sm:$0xff]
                %285 = vst [vmem:[%s271 + $0x30] sm:$0xff] %v284
                %v286 = vld [vmem:[%s270 + $0x38] sm:$0xff]
                %287 = vst [vmem:[%s271 + $0x38] sm:$0xff] %v286
                %v288 = vld [vmem:[%s270 + $0x40] sm:$0xff]
                %289 = vst [vmem:[%s271 + $0x40] sm:$0xff] %v288
                %v290 = vld [vmem:[%s270 + $0x48] sm:$0xff]
                %291 = vst [vmem:[%s271 + $0x48] sm:$0xff] %v290
                %v292 = vld [vmem:[%s270 + $0x50] sm:$0xff]
                %293 = vst [vmem:[%s271 + $0x50] sm:$0xff] %v292
                %v294 = vld [vmem:[%s270 + $0x58] sm:$0xff]
                %295 = vst [vmem:[%s271 + $0x58] sm:$0xff] %v294
                %v296 = vld [vmem:[%s270 + $0x60] sm:$0xff]
                %297 = vst [vmem:[%s271 + $0x60] sm:$0xff] %v296
                %v298 = vld [vmem:[%s270 + $0xd8] sm:$0xff]
                %299 = vst [vmem:[%s271 + $0x6c] sm:$0xff] %v298
                %v300 = vld [vmem:[%s270 + $0xe0] sm:$0xff]
                %301 = vst [vmem:[%s271 + $0x74] sm:$0xff] %v300
                %v302 = vld [vmem:[%s270 + $0xe8] sm:$0xff]
                %303 = vst [vmem:[%s271 + $0x7c] sm:$0xff] %v302
                %v304 = vld [vmem:[%s270 + $0xf0] sm:$0xff]
                %305 = vst [vmem:[%s271 + $0x84] sm:$0xff] %v304
                %v306 = vld [vmem:[%s270 + $0xf8] sm:$0xff]
                %307 = vst [vmem:[%s271 + $0x8c] sm:$0xff] %v306
                %v308 = vld [vmem:[%s270 + $0x100] sm:$0xff]
                %309 = vst [vmem:[%s271 + $0x94] sm:$0xff] %v308
                %v310 = vld [vmem:[%s270 + $0x108] sm:$0xff]
                %311 = vst [vmem:[%s271 + $0x9c] sm:$0xff] %v310
                %v312 = vld [vmem:[%s270 + $0x110] sm:$0xff]
                %313 = vst [vmem:[%s271 + $0xa4] sm:$0xff] %v312
                %v314 = vld [vmem:[%s270 + $0x118] sm:$0xff]
                %315 = vst [vmem:[%s271 + $0xac] sm:$0xff] %v314
                %v316 = vld [vmem:[%s270 + $0x120] sm:$0xff]
                %317 = vst [vmem:[%s271 + $0xb4] sm:$0xff] %v316
                %v318 = vld [vmem:[%s270 + $0x128] sm:$0xff]
                %319 = vst [vmem:[%s271 + $0xbc] sm:$0xff] %v318
                %v320 = vld [vmem:[%s270 + $0x130] sm:$0xff]
                %321 = vst [vmem:[%s271 + $0xc4] sm:$0xff] %v320
                %v322 = vld [vmem:[%s270 + $0x138] sm:$0xff]
                %323 = vst [vmem:[%s271 + $0xcc] sm:$0xff] %v322
              $region63: #{star_forward.3} parent=57 // loop_footer
                %s269 = sadd.s32 1, %s265
              $region64: #{star_forward.3} parent=57 // loop_footer_branch
                %264 = sbr.rel target = $region60
              $region65: #{star_forward.3} parent=57 // loop_exit
                _
              loop: start=0, step=1, limit=1
              $region66: #{star_forward.3} parent=57 // loop_pre_header
                _
              $region67: #{star_forward.3} parent=57 // loop_header
                %s326 = sphi 0, %s330
                %p327 = scmp.ge.s32.totalorder %s326, 1
                %s331 = sphi %s262, %s262
                %s332 = sphi %s263, %s263
              $region68: #{star_forward.3} parent=57 // loop_header_branch
                %329 = sbr.rel (%p327) target = $region72
              $region69: #{star_forward.3} parent=57 // loop_body
                %v333 = vld [vmem:[%s331] sm:$0xf]
                %334 = vst [vmem:[%s332] sm:$0xf] %v333
                %v335 = vld [vmem:[%s331 + $0xd8] sm:$0xf]
                %336 = vst [vmem:[%s332 + $0x6c] sm:$0xf] %v335
              $region70: #{star_forward.3} parent=57 // loop_footer
                %s330 = sadd.s32 1, %s326
              $region71: #{star_forward.3} parent=57 // loop_footer_branch
                %325 = sbr.rel target = $region67
              $region72: #{star_forward.3} parent=57 // loop_exit
                _
            $region58: #{star_forward.3} parent=53 // pred_fallthru
              _
          $region54: #{star_forward.3} parent=49 // pred_fallthru
            _
          %337 = vnop
        $region50: #{star_forward.3} parent=19 // pred_fallthru
          _
      $region20: #{star_forward.3} parent=5 // pred_fallthru
        _
      %p338 = scmp.le.s32.totalorder 1, %s9
      %p339 = scmp.lt.s32.totalorder %s9, 3
      %p340 = pnand %p338, %p339
      %p341 = pneg %p340
      // Predicated region
      $region73: #{star_forward.3} parent=5 // pred_check
        _
      $region74: #{star_forward.3} parent=5 // pred_check_branch
        %343 = sbr.rel (%p340) target = $region76
      $region75: #{star_forward.3} parent=5 // pred_region
        %s344 = ssub.s32 %s9, 1
        %s345 = sand.u32 %s22, 1
        %s346 = sand.u32 %s22, 1
        %s347 = smul.addr %s346, 324
        %s348 = scalar_lea.vmem [#allocation2], %s347
        // Predicated region
        $region77: #{star_forward.3} parent=75 // pred_check
          %p349 = pneg %p35
        $region78: #{star_forward.3} parent=75 // pred_check_branch
          %351 = sbr.rel (%p349) target = $region80
        $region79: #{star_forward.3} parent=75 // pred_region
          _
        $region80: #{star_forward.3} parent=75 // pred_fallthru
          _
        %s352 = sand.u32 %s69, 1
        %s353 = sand.u32 %s69, 1
        %s354 = smul.addr %s353, 216
        %s355 = scalar_lea.vmem [#allocation3], %s354
        // Predicated region
        $region81: #{star_forward.3} parent=75 // pred_check
          %p356 = pneg %p82
        $region82: #{star_forward.3} parent=75 // pred_check_branch
          %358 = sbr.rel (%p356) target = $region84
        $region83: #{star_forward.3} parent=75 // pred_region
          _
        $region84: #{star_forward.3} parent=75 // pred_fallthru
          _
        %s359 = sand.u32 %s22, 1
        %s360 = sand.u32 %s22, 1
        %s361 = smul.addr %s360, 324
        %s362 = scalar_lea.vmem [#allocation2], %s361
        %p363 = pneg %p35
        %p364 = pneg %p32
        %p365 = pneg %p56
        %p366 = pneg %p53
        %s367 = sand.u32 %s69, 1
        %s368 = sand.u32 %s69, 1
        %s369 = smul.addr %s368, 216
        %s370 = scalar_lea.vmem [#allocation3], %s369
        %p371 = pneg %p82
        %p372 = pneg %p79
        %p373 = pneg %p108
        %p374 = pneg %p105
        %s375 = sand.u32 %s95, 1
        %s376 = sand.u32 %s95, 1
        %s377 = smul.addr %s376, 216
        %s378 = scalar_lea.vmem [#allocation4], %s377
        %s379 = smul.u32 27, %s14
        %s380 = smul.u32 27, %s14
        %s381 = smul.u32 27, %s14
        %v383 = vld [vmem:[%s1] sm:$0xf]
        %v384 = vld [vmem:[%s1 + $0x4] sm:$0xf]
        %v385 = vld [vmem:[%s1 + $0x8] sm:$0xf]
        %v386 = vld [vmem:[%s1 + $0xc] sm:$0xf]
        %v387 = vld [vmem:[%s348] sm:$0xff]
        %v388 = vld [vmem:[%s348 + $0x8] sm:$0xff]
        %v389 = vld [vmem:[%s348 + $0x10] sm:$0xff]
        %v390 = vld [vmem:[%s348 + $0x18] sm:$0xff]
        %v391 = vld [vmem:[%s348 + $0x20] sm:$0xff]
        %v392 = vld [vmem:[%s348 + $0x28] sm:$0xff]
        %v393 = vld [vmem:[%s348 + $0x30] sm:$0xff]
        %v394 = vld [vmem:[%s348 + $0x38] sm:$0xff]
        %v395 = vld [vmem:[%s348 + $0x40] sm:$0xff]
        %v396 = vld [vmem:[%s348 + $0x48] sm:$0xff]
        %v397 = vld [vmem:[%s348 + $0x50] sm:$0xff]
        %v398 = vld [vmem:[%s348 + $0x58] sm:$0xff]
        %v399 = vld [vmem:[%s348 + $0x60] sm:$0xff]
        %v400 = vld [vmem:[%s348 + $0x68] sm:$0xf]
        %v401 = vld [vmem:[%s348 + $0x6c] sm:$0xff]
        %v402 = vld [vmem:[%s348 + $0x74] sm:$0xff]
        %v403 = vld [vmem:[%s348 + $0x7c] sm:$0xff]
        %v404 = vld [vmem:[%s348 + $0x84] sm:$0xff]
        %v405 = vld [vmem:[%s348 + $0x8c] sm:$0xff]
        %v406 = vld [vmem:[%s348 + $0x94] sm:$0xff]
        %v407 = vld [vmem:[%s348 + $0x9c] sm:$0xff]
        %v408 = vld [vmem:[%s348 + $0xa4] sm:$0xff]
        %v409 = vld [vmem:[%s348 + $0xac] sm:$0xff]
        %v410 = vld [vmem:[%s348 + $0xb4] sm:$0xff]
        %v411 = vld [vmem:[%s348 + $0xbc] sm:$0xff]
        %v412 = vld [vmem:[%s348 + $0xc4] sm:$0xff]
        %v413 = vld [vmem:[%s348 + $0xcc] sm:$0xff]
        %v414 = vld [vmem:[%s348 + $0xd4] sm:$0xf]
        %v415 = vld [vmem:[%s348 + $0xd8] sm:$0xff]
        %v416 = vld [vmem:[%s348 + $0xe0] sm:$0xff]
        %v417 = vld [vmem:[%s348 + $0xe8] sm:$0xff]
        %v418 = vld [vmem:[%s348 + $0xf0] sm:$0xff]
        %v419 = vld [vmem:[%s348 + $0xf8] sm:$0xff]
        %v420 = vld [vmem:[%s348 + $0x100] sm:$0xff]
        %v421 = vld [vmem:[%s348 + $0x108] sm:$0xff]
        %v422 = vld [vmem:[%s348 + $0x110] sm:$0xff]
        %v423 = vld [vmem:[%s348 + $0x118] sm:$0xff]
        %v424 = vld [vmem:[%s348 + $0x120] sm:$0xff]
        %v425 = vld [vmem:[%s348 + $0x128] sm:$0xff]
        %v426 = vld [vmem:[%s348 + $0x130] sm:$0xff]
        %v427 = vld [vmem:[%s348 + $0x138] sm:$0xff]
        %v428 = vld [vmem:[%s348 + $0x140] sm:$0xf]
        %v433 = vunpack.c.l.b16 %v383
        %v434 = vunpack.c.l.b16 %v384
        %v435 = vunpack.c.l.b16 %v385
        %v436 = vunpack.c.l.b16 %v386
        %v437 = vpack.c.b16 %v434, %v433
        %v438 = vpack.c.b16 %v436, %v435
        %v481 = vunpack.c.l.b16 %v387
        %v482 = vunpack.c.h.b16 %v387
        %v483 = vunpack.c.l.b16 %v388
        %v484 = vunpack.c.h.b16 %v388
        %v485 = vunpack.c.l.b16 %v389
        %v486 = vunpack.c.h.b16 %v389
        %v487 = vunpack.c.l.b16 %v390
        %v488 = vunpack.c.h.b16 %v390
        %v489 = vunpack.c.l.b16 %v391
        %v490 = vunpack.c.h.b16 %v391
        %v491 = vunpack.c.l.b16 %v392
        %v492 = vunpack.c.h.b16 %v392
        %v493 = vunpack.c.l.b16 %v393
        %v494 = vunpack.c.h.b16 %v393
        %v495 = vunpack.c.l.b16 %v394
        %v496 = vunpack.c.h.b16 %v394
        %v497 = vunpack.c.l.b16 %v395
        %v498 = vunpack.c.h.b16 %v395
        %v499 = vunpack.c.l.b16 %v396
        %v500 = vunpack.c.h.b16 %v396
        %v501 = vunpack.c.l.b16 %v397
        %v502 = vunpack.c.h.b16 %v397
        %v503 = vunpack.c.l.b16 %v398
        %v504 = vunpack.c.h.b16 %v398
        %v505 = vunpack.c.l.b16 %v399
        %v506 = vunpack.c.h.b16 %v399
        %v507 = vunpack.c.l.b16 %v400
        %v508 = vunpack.c.l.b16 %v401
        %v509 = vunpack.c.h.b16 %v401
        %v510 = vunpack.c.l.b16 %v402
        %v511 = vunpack.c.h.b16 %v402
        %v512 = vunpack.c.l.b16 %v403
        %v513 = vunpack.c.h.b16 %v403
        %v514 = vunpack.c.l.b16 %v404
        %v515 = vunpack.c.h.b16 %v404
        %v516 = vunpack.c.l.b16 %v405
        %v517 = vunpack.c.h.b16 %v405
        %v518 = vunpack.c.l.b16 %v406
        %v519 = vunpack.c.h.b16 %v406
        %v520 = vunpack.c.l.b16 %v407
        %v521 = vunpack.c.h.b16 %v407
        %v522 = vunpack.c.l.b16 %v408
        %v523 = vunpack.c.h.b16 %v408
        %v524 = vunpack.c.l.b16 %v409
        %v525 = vunpack.c.h.b16 %v409
        %v526 = vunpack.c.l.b16 %v410
        %v527 = vunpack.c.h.b16 %v410
        %v528 = vunpack.c.l.b16 %v411
        %v529 = vunpack.c.h.b16 %v411
        %v530 = vunpack.c.l.b16 %v412
        %v531 = vunpack.c.h.b16 %v412
        %v532 = vunpack.c.l.b16 %v413
        %v533 = vunpack.c.h.b16 %v413
        %v534 = vunpack.c.l.b16 %v414
        %v535 = vunpack.c.l.b16 %v415
        %v536 = vunpack.c.h.b16 %v415
        %v537 = vunpack.c.l.b16 %v416
        %v538 = vunpack.c.h.b16 %v416
        %v539 = vunpack.c.l.b16 %v417
        %v540 = vunpack.c.h.b16 %v417
        %v541 = vunpack.c.l.b16 %v418
        %v542 = vunpack.c.h.b16 %v418
        %v543 = vunpack.c.l.b16 %v419
        %v544 = vunpack.c.h.b16 %v419
        %v545 = vunpack.c.l.b16 %v420
        %v546 = vunpack.c.h.b16 %v420
        %v547 = vunpack.c.l.b16 %v421
        %v548 = vunpack.c.h.b16 %v421
        %v549 = vunpack.c.l.b16 %v422
        %v550 = vunpack.c.h.b16 %v422
        %v551 = vunpack.c.l.b16 %v423
        %v552 = vunpack.c.h.b16 %v423
        %v553 = vunpack.c.l.b16 %v424
        %v554 = vunpack.c.h.b16 %v424
        %v555 = vunpack.c.l.b16 %v425
        %v556 = vunpack.c.h.b16 %v425
        %v557 = vunpack.c.l.b16 %v426
        %v558 = vunpack.c.h.b16 %v426
        %v559 = vunpack.c.l.b16 %v427
        %v560 = vunpack.c.h.b16 %v427
        %v561 = vunpack.c.l.b16 %v428
        %v562 = vpack.c.b16 %v508, %v481
        %v563 = vpack.c.b16 %v509, %v482
        %v564 = vpack.c.b16 %v510, %v483
        %v565 = vpack.c.b16 %v511, %v484
        %v566 = vpack.c.b16 %v512, %v485
        %v567 = vpack.c.b16 %v513, %v486
        %v568 = vpack.c.b16 %v514, %v487
        %v569 = vpack.c.b16 %v515, %v488
        %v570 = vpack.c.b16 %v516, %v489
        %v571 = vpack.c.b16 %v517, %v490
        %v572 = vpack.c.b16 %v518, %v491
        %v573 = vpack.c.b16 %v519, %v492
        %v574 = vpack.c.b16 %v520, %v493
        %v575 = vpack.c.b16 %v521, %v494
        %v576 = vpack.c.b16 %v522, %v495
        %v577 = vpack.c.b16 %v523, %v496
        %v578 = vpack.c.b16 %v524, %v497
        %v579 = vpack.c.b16 %v525, %v498
        %v580 = vpack.c.b16 %v526, %v499
        %v581 = vpack.c.b16 %v527, %v500
        %v582 = vpack.c.b16 %v528, %v501
        %v583 = vpack.c.b16 %v529, %v502
        %v584 = vpack.c.b16 %v530, %v503
        %v585 = vpack.c.b16 %v531, %v504
        %v586 = vpack.c.b16 %v532, %v505
        %v587 = vpack.c.b16 %v533, %v506
        %v588 = vpack.c.b16 %v534, %v507
        %v589 = vpack.c.b16 %v535, %v535
        %v590 = vpack.c.b16 %v536, %v536
        %v591 = vpack.c.b16 %v537, %v537
        %v592 = vpack.c.b16 %v538, %v538
        %v593 = vpack.c.b16 %v539, %v539
        %v594 = vpack.c.b16 %v540, %v540
        %v595 = vpack.c.b16 %v541, %v541
        %v596 = vpack.c.b16 %v542, %v542
        %v597 = vpack.c.b16 %v543, %v543
        %v598 = vpack.c.b16 %v544, %v544
        %v599 = vpack.c.b16 %v545, %v545
        %v600 = vpack.c.b16 %v546, %v546
        %v601 = vpack.c.b16 %v547, %v547
        %v602 = vpack.c.b16 %v548, %v548
        %v603 = vpack.c.b16 %v549, %v549
        %v604 = vpack.c.b16 %v550, %v550
        %v605 = vpack.c.b16 %v551, %v551
        %v606 = vpack.c.b16 %v552, %v552
        %v607 = vpack.c.b16 %v553, %v553
        %v608 = vpack.c.b16 %v554, %v554
        %v609 = vpack.c.b16 %v555, %v555
        %v610 = vpack.c.b16 %v556, %v556
        %v611 = vpack.c.b16 %v557, %v557
        %v612 = vpack.c.b16 %v558, %v558
        %v613 = vpack.c.b16 %v559, %v559
        %v614 = vpack.c.b16 %v560, %v560
        %v615 = vpack.c.b16 %v561, %v561
        %vm643 = vcmask 195584
        %v645 = vsel %vm643, %v437, 0
        %v648 = vsel %vm643, %v438, 0
        %vm650 = vcmask 1043456
        %v652 = vsel %vm650, %v589, 0
        %v655 = vsel %vm650, %v590, 0
        %v658 = vsel %vm650, %v591, 0
        %v661 = vsel %vm650, %v592, 0
        %v664 = vsel %vm650, %v593, 0
        %v667 = vsel %vm650, %v594, 0
        %v670 = vsel %vm650, %v595, 0
        %v673 = vsel %vm650, %v596, 0
        %v676 = vsel %vm650, %v597, 0
        %v679 = vsel %vm650, %v598, 0
        %v682 = vsel %vm650, %v599, 0
        %v685 = vsel %vm650, %v600, 0
        %v688 = vsel %vm650, %v601, 0
        %v691 = vsel %vm650, %v602, 0
        %v694 = vsel %vm650, %v603, 0
        %v697 = vsel %vm650, %v604, 0
        %v700 = vsel %vm650, %v605, 0
        %v703 = vsel %vm650, %v606, 0
        %v706 = vsel %vm650, %v607, 0
        %v709 = vsel %vm650, %v608, 0
        %v712 = vsel %vm650, %v609, 0
        %v715 = vsel %vm650, %v610, 0
        %v718 = vsel %vm650, %v611, 0
        %v721 = vsel %vm650, %v612, 0
        %v724 = vsel %vm650, %v613, 0
        %v727 = vsel %vm650, %v614, 0
        %v730 = vsel %vm650, %v615, 0
        %732 = vmatprep.subr.bf16.mxu0 %v563
        %733 = vmatpush1.bf16.msra.mxu0 %v562
        %734 = vmatprep.subr.bf16.mxu0 %v655
        %735 = vmatpush1.bf16.msra.mxu0 %v652
        %736 = vmatprep.subr.bf16.mxu0 0
        %737 = vmatpush1.bf16.msra.mxu0 0
        %738 = vmatprep.subr.bf16.mxu0 0
        %739 = vmatpush1.bf16.msra.mxu0 0
        %740 = vmatprep.subr.bf16.mxu0 0
        %741 = vmatpush1.bf16.msra.mxu0 0
        %742 = vmatprep.subr.bf16.mxu0 0
        %743 = vmatpush1.bf16.msra.mxu0 0
        %744 = vmatprep.subr.bf16.mxu0 0
        %745 = vmatpush1.bf16.msra.mxu0 0
        %746 = vmatprep.subr.bf16.mxu0 0
        %747 = vmatpush1.bf16.msra.mxu0 0
        %748 = vmatprep.subr.bf16.mxu0 0
        %749 = vmatpush1.bf16.msra.mxu0 0
        %750 = vmatprep.subr.bf16.mxu0 0
        %751 = vmatpush1.bf16.msra.mxu0 0
        %752 = vmatprep.subr.bf16.mxu0 0
        %753 = vmatpush1.bf16.msra.mxu0 0
        %754 = vmatprep.subr.bf16.mxu0 0
        %755 = vmatpush1.bf16.msra.mxu0 0
        %756 = vmatprep.subr.bf16.mxu0 0
        %757 = vmatpush1.bf16.msra.mxu0 0
        %758 = vmatprep.subr.bf16.mxu0 0
        %759 = vmatpush1.bf16.msra.mxu0 0
        %760 = vmatprep.subr.bf16.mxu0 0
        %761 = vmatpush1.bf16.msra.mxu0 0
        %762 = vmatprep.subr.bf16.mxu0 0
        %763 = vmatpush1.bf16.msra.mxu0 0
        %764 = vmatprep.mubr.bf16.mxu0 0
        %765 = vmatmul.mubr.bf16.gmra.mrb[0].mxu0 %v645
        %v766 = vpop.f32.mrb[0].mxu0
        %v767 = vadd.f32 0.0, %v766
        %v768 = vpop.f32.mrb[0].mxu0
        %v769 = vadd.f32 0.0, %v768
        %v770 = vpop.f32.mrb[0].mxu0
        %v771 = vadd.f32 0.0, %v770
        %v772 = vpop.f32.mrb[0].mxu0
        %v773 = vadd.f32 0.0, %v772
        %774 = vmatprep.mubr.bf16.mxu0 0
        %775 = vmatmul.mubr.bf16.gmra.mrb[0].mxu0 %v648
        %v776 = vpop.f32.mrb[0].mxu0
        %v777 = vadd.f32 0.0, %v776
        %v778 = vpop.f32.mrb[0].mxu0
        %v779 = vadd.f32 0.0, %v778
        %v780 = vpop.f32.mrb[0].mxu0
        %v781 = vadd.f32 0.0, %v780
        %v782 = vpop.f32.mrb[0].mxu0
        %v783 = vadd.f32 0.0, %v782
        %784 = vdwg.mxu0
        %785 = vmatprep.subr.bf16.mxu0 %v565
        %786 = vmatpush1.bf16.msra.mxu0 %v564
        %787 = vmatprep.subr.bf16.mxu0 %v661
        %788 = vmatpush1.bf16.msra.mxu0 %v658
        %789 = vmatprep.subr.bf16.mxu0 0
        %790 = vmatpush1.bf16.msra.mxu0 0
        %791 = vmatprep.subr.bf16.mxu0 0
        %792 = vmatpush1.bf16.msra.mxu0 0
        %793 = vmatprep.subr.bf16.mxu0 0
        %794 = vmatpush1.bf16.msra.mxu0 0
        %795 = vmatprep.subr.bf16.mxu0 0
        %796 = vmatpush1.bf16.msra.mxu0 0
        %797 = vmatprep.subr.bf16.mxu0 0
        %798 = vmatpush1.bf16.msra.mxu0 0
        %799 = vmatprep.subr.bf16.mxu0 0
        %800 = vmatpush1.bf16.msra.mxu0 0
        %801 = vmatprep.subr.bf16.mxu0 0
        %802 = vmatpush1.bf16.msra.mxu0 0
        %803 = vmatprep.subr.bf16.mxu0 0
        %804 = vmatpush1.bf16.msra.mxu0 0
        %805 = vmatprep.subr.bf16.mxu0 0
        %806 = vmatpush1.bf16.msra.mxu0 0
        %807 = vmatprep.subr.bf16.mxu0 0
        %808 = vmatpush1.bf16.msra.mxu0 0
        %809 = vmatprep.subr.bf16.mxu0 0
        %810 = vmatpush1.bf16.msra.mxu0 0
        %811 = vmatprep.subr.bf16.mxu0 0
        %812 = vmatpush1.bf16.msra.mxu0 0
        %813 = vmatprep.subr.bf16.mxu0 0
        %814 = vmatpush1.bf16.msra.mxu0 0
        %815 = vmatprep.subr.bf16.mxu0 0
        %816 = vmatpush1.bf16.msra.mxu0 0
        %817 = vmatprep.mubr.bf16.mxu0 0
        %818 = vmatmul.mubr.bf16.gmra.mrb[0].mxu0 %v645
        %v819 = vpop.f32.mrb[0].mxu0
        %v820 = vadd.f32 0.0, %v819
        %v821 = vpop.f32.mrb[0].mxu0
        %v822 = vadd.f32 0.0, %v821
        %v823 = vpop.f32.mrb[0].mxu0
        %v824 = vadd.f32 0.0, %v823
        %v825 = vpop.f32.mrb[0].mxu0
        %v826 = vadd.f32 0.0, %v825
        %827 = vmatprep.mubr.bf16.mxu0 0
        %828 = vmatmul.mubr.bf16.gmra.mrb[0].mxu0 %v648
        %v829 = vpop.f32.mrb[0].mxu0
        %v830 = vadd.f32 0.0, %v829
        %v831 = vpop.f32.mrb[0].mxu0
        %v832 = vadd.f32 0.0, %v831
        %v833 = vpop.f32.mrb[0].mxu0
        %v834 = vadd.f32 0.0, %v833
        %v835 = vpop.f32.mrb[0].mxu0
        %v836 = vadd.f32 0.0, %v835
        %837 = vdwg.mxu0
        %838 = vmatprep.subr.bf16.mxu0 %v567
        %839 = vmatpush1.bf16.msra.mxu0 %v566
        %840 = vmatprep.subr.bf16.mxu0 %v667
        %841 = vmatpush1.bf16.msra.mxu0 %v664
        %842 = vmatprep.subr.bf16.mxu0 0
        %843 = vmatpush1.bf16.msra.mxu0 0
        %844 = vmatprep.subr.bf16.mxu0 0
        %845 = vmatpush1.bf16.msra.mxu0 0
        %846 = vmatprep.subr.bf16.mxu0 0
        %847 = vmatpush1.bf16.msra.mxu0 0
        %848 = vmatprep.subr.bf16.mxu0 0
        %849 = vmatpush1.bf16.msra.mxu0 0
        %850 = vmatprep.subr.bf16.mxu0 0
        %851 = vmatpush1.bf16.msra.mxu0 0
        %852 = vmatprep.subr.bf16.mxu0 0
        %853 = vmatpush1.bf16.msra.mxu0 0
        %854 = vmatprep.subr.bf16.mxu0 0
        %855 = vmatpush1.bf16.msra.mxu0 0
        %856 = vmatprep.subr.bf16.mxu0 0
        %857 = vmatpush1.bf16.msra.mxu0 0
        %858 = vmatprep.subr.bf16.mxu0 0
        %859 = vmatpush1.bf16.msra.mxu0 0
        %860 = vmatprep.subr.bf16.mxu0 0
        %861 = vmatpush1.bf16.msra.mxu0 0
        %862 = vmatprep.subr.bf16.mxu0 0
        %863 = vmatpush1.bf16.msra.mxu0 0
        %864 = vmatprep.subr.bf16.mxu0 0
        %865 = vmatpush1.bf16.msra.mxu0 0
        %866 = vmatprep.subr.bf16.mxu0 0
        %867 = vmatpush1.bf16.msra.mxu0 0
        %868 = vmatprep.subr.bf16.mxu0 0
        %869 = vmatpush1.bf16.msra.mxu0 0
        %870 = vmatprep.mubr.bf16.mxu0 0
        %871 = vmatmul.mubr.bf16.gmra.mrb[0].mxu0 %v645
        %v872 = vpop.f32.mrb[0].mxu0
        %v873 = vadd.f32 0.0, %v872
        %v874 = vpop.f32.mrb[0].mxu0
        %v875 = vadd.f32 0.0, %v874
        %v876 = vpop.f32.mrb[0].mxu0
        %v877 = vadd.f32 0.0, %v876
        %v878 = vpop.f32.mrb[0].mxu0
        %v879 = vadd.f32 0.0, %v878
        %880 = vmatprep.mubr.bf16.mxu0 0
        %881 = vmatmul.mubr.bf16.gmra.mrb[0].mxu0 %v648
        %v882 = vpop.f32.mrb[0].mxu0
        %v883 = vadd.f32 0.0, %v882
        %v884 = vpop.f32.mrb[0].mxu0
        %v885 = vadd.f32 0.0, %v884
        %v886 = vpop.f32.mrb[0].mxu0
        %v887 = vadd.f32 0.0, %v886
        %v888 = vpop.f32.mrb[0].mxu0
        %v889 = vadd.f32 0.0, %v888
        %890 = vdwg.mxu0
        %891 = vmatprep.subr.bf16.mxu0 %v569
        %892 = vmatpush1.bf16.msra.mxu0 %v568
        %893 = vmatprep.subr.bf16.mxu0 %v673
        %894 = vmatpush1.bf16.msra.mxu0 %v670
        %895 = vmatprep.subr.bf16.mxu0 0
        %896 = vmatpush1.bf16.msra.mxu0 0
        %897 = vmatprep.subr.bf16.mxu0 0
        %898 = vmatpush1.bf16.msra.mxu0 0
        %899 = vmatprep.subr.bf16.mxu0 0
        %900 = vmatpush1.bf16.msra.mxu0 0
        %901 = vmatprep.subr.bf16.mxu0 0
        %902 = vmatpush1.bf16.msra.mxu0 0
        %903 = vmatprep.subr.bf16.mxu0 0
        %904 = vmatpush1.bf16.msra.mxu0 0
        %905 = vmatprep.subr.bf16.mxu0 0
        %906 = vmatpush1.bf16.msra.mxu0 0
        %907 = vmatprep.subr.bf16.mxu0 0
        %908 = vmatpush1.bf16.msra.mxu0 0
        %909 = vmatprep.subr.bf16.mxu0 0
        %910 = vmatpush1.bf16.msra.mxu0 0
        %911 = vmatprep.subr.bf16.mxu0 0
        %912 = vmatpush1.bf16.msra.mxu0 0
        %913 = vmatprep.subr.bf16.mxu0 0
        %914 = vmatpush1.bf16.msra.mxu0 0
        %915 = vmatprep.subr.bf16.mxu0 0
        %916 = vmatpush1.bf16.msra.mxu0 0
        %917 = vmatprep.subr.bf16.mxu0 0
        %918 = vmatpush1.bf16.msra.mxu0 0
        %919 = vmatprep.subr.bf16.mxu0 0
        %920 = vmatpush1.bf16.msra.mxu0 0
        %921 = vmatprep.subr.bf16.mxu0 0
        %922 = vmatpush1.bf16.msra.mxu0 0
        %923 = vmatprep.mubr.bf16.mxu0 0
        %924 = vmatmul.mubr.bf16.gmra.mrb[0].mxu0 %v645
        %v925 = vpop.f32.mrb[0].mxu0
        %v926 = vadd.f32 0.0, %v925
        %v927 = vpop.f32.mrb[0].mxu0
        %v928 = vadd.f32 0.0, %v927
        %v929 = vpop.f32.mrb[0].mxu0
        %v930 = vadd.f32 0.0, %v929
        %v931 = vpop.f32.mrb[0].mxu0
        %v932 = vadd.f32 0.0, %v931
        %933 = vmatprep.mubr.bf16.mxu0 0
        %934 = vmatmul.mubr.bf16.gmra.mrb[0].mxu0 %v648
        %v935 = vpop.f32.mrb[0].mxu0
        %v936 = vadd.f32 0.0, %v935
        %v937 = vpop.f32.mrb[0].mxu0
        %v938 = vadd.f32 0.0, %v937
        %v939 = vpop.f32.mrb[0].mxu0
        %v940 = vadd.f32 0.0, %v939
        %v941 = vpop.f32.mrb[0].mxu0
        %v942 = vadd.f32 0.0, %v941
        %943 = vdwg.mxu0
        %944 = vmatprep.subr.bf16.mxu0 %v571
        %945 = vmatpush1.bf16.msra.mxu0 %v570
        %946 = vmatprep.subr.bf16.mxu0 %v679
        %947 = vmatpush1.bf16.msra.mxu0 %v676
        %948 = vmatprep.subr.bf16.mxu0 0
        %949 = vmatpush1.bf16.msra.mxu0 0
        %950 = vmatprep.subr.bf16.mxu0 0
        %951 = vmatpush1.bf16.msra.mxu0 0
        %952 = vmatprep.subr.bf16.mxu0 0
        %953 = vmatpush1.bf16.msra.mxu0 0
        %954 = vmatprep.subr.bf16.mxu0 0
        %955 = vmatpush1.bf16.msra.mxu0 0
        %956 = vmatprep.subr.bf16.mxu0 0
        %957 = vmatpush1.bf16.msra.mxu0 0
        %958 = vmatprep.subr.bf16.mxu0 0
        %959 = vmatpush1.bf16.msra.mxu0 0
        %960 = vmatprep.subr.bf16.mxu0 0
        %961 = vmatpush1.bf16.msra.mxu0 0
        %962 = vmatprep.subr.bf16.mxu0 0
        %963 = vmatpush1.bf16.msra.mxu0 0
        %964 = vmatprep.subr.bf16.mxu0 0
        %965 = vmatpush1.bf16.msra.mxu0 0
        %966 = vmatprep.subr.bf16.mxu0 0
        %967 = vmatpush1.bf16.msra.mxu0 0
        %968 = vmatprep.subr.bf16.mxu0 0
        %969 = vmatpush1.bf16.msra.mxu0 0
        %970 = vmatprep.subr.bf16.mxu0 0
        %971 = vmatpush1.bf16.msra.mxu0 0
        %972 = vmatprep.subr.bf16.mxu0 0
        %973 = vmatpush1.bf16.msra.mxu0 0
        %974 = vmatprep.subr.bf16.mxu0 0
        %975 = vmatpush1.bf16.msra.mxu0 0
        %976 = vmatprep.mubr.bf16.mxu0 0
        %977 = vmatmul.mubr.bf16.gmra.mrb[0].mxu0 %v645
        %v978 = vpop.f32.mrb[0].mxu0
        %v979 = vadd.f32 0.0, %v978
        %v980 = vpop.f32.mrb[0].mxu0
        %v981 = vadd.f32 0.0, %v980
        %v982 = vpop.f32.mrb[0].mxu0
        %v983 = vadd.f32 0.0, %v982
        %v984 = vpop.f32.mrb[0].mxu0
        %v985 = vadd.f32 0.0, %v984
        %986 = vmatprep.mubr.bf16.mxu0 0
        %987 = vmatmul.mubr.bf16.gmra.mrb[0].mxu0 %v648
        %v988 = vpop.f32.mrb[0].mxu0
        %v989 = vadd.f32 0.0, %v988
        %v990 = vpop.f32.mrb[0].mxu0
        %v991 = vadd.f32 0.0, %v990
        %v992 = vpop.f32.mrb[0].mxu0
        %v993 = vadd.f32 0.0, %v992
        %v994 = vpop.f32.mrb[0].mxu0
        %v995 = vadd.f32 0.0, %v994
        %996 = vdwg.mxu0
        %997 = vmatprep.subr.bf16.mxu0 %v573
        %998 = vmatpush1.bf16.msra.mxu0 %v572
        %999 = vmatprep.subr.bf16.mxu0 %v685
        %1000 = vmatpush1.bf16.msra.mxu0 %v682
        %1001 = vmatprep.subr.bf16.mxu0 0
        %1002 = vmatpush1.bf16.msra.mxu0 0
        %1003 = vmatprep.subr.bf16.mxu0 0
        %1004 = vmatpush1.bf16.msra.mxu0 0
        %1005 = vmatprep.subr.bf16.mxu0 0
        %1006 = vmatpush1.bf16.msra.mxu0 0
        %1007 = vmatprep.subr.bf16.mxu0 0
        %1008 = vmatpush1.bf16.msra.mxu0 0
        %1009 = vmatprep.subr.bf16.mxu0 0
        %1010 = vmatpush1.bf16.msra.mxu0 0
        %1011 = vmatprep.subr.bf16.mxu0 0
        %1012 = vmatpush1.bf16.msra.mxu0 0
        %1013 = vmatprep.subr.bf16.mxu0 0
        %1014 = vmatpush1.bf16.msra.mxu0 0
        %1015 = vmatprep.subr.bf16.mxu0 0
        %1016 = vmatpush1.bf16.msra.mxu0 0
        %1017 = vmatprep.subr.bf16.mxu0 0
        %1018 = vmatpush1.bf16.msra.mxu0 0
        %1019 = vmatprep.subr.bf16.mxu0 0
        %1020 = vmatpush1.bf16.msra.mxu0 0
        %1021 = vmatprep.subr.bf16.mxu0 0
        %1022 = vmatpush1.bf16.msra.mxu0 0
        %1023 = vmatprep.subr.bf16.mxu0 0
        %1024 = vmatpush1.bf16.msra.mxu0 0
        %1025 = vmatprep.subr.bf16.mxu0 0
        %1026 = vmatpush1.bf16.msra.mxu0 0
        %1027 = vmatprep.subr.bf16.mxu0 0
        %1028 = vmatpush1.bf16.msra.mxu0 0
        %1029 = vmatprep.mubr.bf16.mxu0 0
        %1030 = vmatmul.mubr.bf16.gmra.mrb[0].mxu0 %v645
        %v1031 = vpop.f32.mrb[0].mxu0
        %v1032 = vadd.f32 0.0, %v1031
        %v1033 = vpop.f32.mrb[0].mxu0
        %v1034 = vadd.f32 0.0, %v1033
        %v1035 = vpop.f32.mrb[0].mxu0
        %v1036 = vadd.f32 0.0, %v1035
        %v1037 = vpop.f32.mrb[0].mxu0
        %v1038 = vadd.f32 0.0, %v1037
        %1039 = vmatprep.mubr.bf16.mxu0 0
        %1040 = vmatmul.mubr.bf16.gmra.mrb[0].mxu0 %v648
        %v1041 = vpop.f32.mrb[0].mxu0
        %v1042 = vadd.f32 0.0, %v1041
        %v1043 = vpop.f32.mrb[0].mxu0
        %v1044 = vadd.f32 0.0, %v1043
        %v1045 = vpop.f32.mrb[0].mxu0
        %v1046 = vadd.f32 0.0, %v1045
        %v1047 = vpop.f32.mrb[0].mxu0
        %v1048 = vadd.f32 0.0, %v1047
        %1049 = vdwg.mxu0
        %1050 = vmatprep.subr.bf16.mxu0 %v575
        %1051 = vmatpush1.bf16.msra.mxu0 %v574
        %1052 = vmatprep.subr.bf16.mxu0 %v691
        %1053 = vmatpush1.bf16.msra.mxu0 %v688
        %1054 = vmatprep.subr.bf16.mxu0 0
        %1055 = vmatpush1.bf16.msra.mxu0 0
        %1056 = vmatprep.subr.bf16.mxu0 0
        %1057 = vmatpush1.bf16.msra.mxu0 0
        %1058 = vmatprep.subr.bf16.mxu0 0
        %1059 = vmatpush1.bf16.msra.mxu0 0
        %1060 = vmatprep.subr.bf16.mxu0 0
        %1061 = vmatpush1.bf16.msra.mxu0 0
        %1062 = vmatprep.subr.bf16.mxu0 0
        %1063 = vmatpush1.bf16.msra.mxu0 0
        %1064 = vmatprep.subr.bf16.mxu0 0
        %1065 = vmatpush1.bf16.msra.mxu0 0
        %1066 = vmatprep.subr.bf16.mxu0 0
        %1067 = vmatpush1.bf16.msra.mxu0 0
        %1068 = vmatprep.subr.bf16.mxu0 0
        %1069 = vmatpush1.bf16.msra.mxu0 0
        %1070 = vmatprep.subr.bf16.mxu0 0
        %1071 = vmatpush1.bf16.msra.mxu0 0
        %1072 = vmatprep.subr.bf16.mxu0 0
        %1073 = vmatpush1.bf16.msra.mxu0 0
        %1074 = vmatprep.subr.bf16.mxu0 0
        %1075 = vmatpush1.bf16.msra.mxu0 0
        %1076 = vmatprep.subr.bf16.mxu0 0
        %1077 = vmatpush1.bf16.msra.mxu0 0
        %1078 = vmatprep.subr.bf16.mxu0 0
        %1079 = vmatpush1.bf16.msra.mxu0 0
        %1080 = vmatprep.subr.bf16.mxu0 0
        %1081 = vmatpush1.bf16.msra.mxu0 0
        %1082 = vmatprep.mubr.bf16.mxu0 0
        %1083 = vmatmul.mubr.bf16.gmra.mrb[0].mxu0 %v645
        %v1084 = vpop.f32.mrb[0].mxu0
        %v1085 = vadd.f32 0.0, %v1084
        %v1086 = vpop.f32.mrb[0].mxu0
        %v1087 = vadd.f32 0.0, %v1086
        %v1088 = vpop.f32.mrb[0].mxu0
        %v1089 = vadd.f32 0.0, %v1088
        %v1090 = vpop.f32.mrb[0].mxu0
        %v1091 = vadd.f32 0.0, %v1090
        %1092 = vmatprep.mubr.bf16.mxu0 0
        %1093 = vmatmul.mubr.bf16.gmra.mrb[0].mxu0 %v648
        %v1094 = vpop.f32.mrb[0].mxu0
        %v1095 = vadd.f32 0.0, %v1094
        %v1096 = vpop.f32.mrb[0].mxu0
        %v1097 = vadd.f32 0.0, %v1096
        %v1098 = vpop.f32.mrb[0].mxu0
        %v1099 = vadd.f32 0.0, %v1098
        %v1100 = vpop.f32.mrb[0].mxu0
        %v1101 = vadd.f32 0.0, %v1100
        %1102 = vdwg.mxu0
        %1103 = vmatprep.subr.bf16.mxu0 %v577
        %1104 = vmatpush1.bf16.msra.mxu0 %v576
        %1105 = vmatprep.subr.bf16.mxu0 %v697
        %1106 = vmatpush1.bf16.msra.mxu0 %v694
        %1107 = vmatprep.subr.bf16.mxu0 0
        %1108 = vmatpush1.bf16.msra.mxu0 0
        %1109 = vmatprep.subr.bf16.mxu0 0
        %1110 = vmatpush1.bf16.msra.mxu0 0
        %1111 = vmatprep.subr.bf16.mxu0 0
        %1112 = vmatpush1.bf16.msra.mxu0 0
        %1113 = vmatprep.subr.bf16.mxu0 0
        %1114 = vmatpush1.bf16.msra.mxu0 0
        %1115 = vmatprep.subr.bf16.mxu0 0
        %1116 = vmatpush1.bf16.msra.mxu0 0
        %1117 = vmatprep.subr.bf16.mxu0 0
        %1118 = vmatpush1.bf16.msra.mxu0 0
        %1119 = vmatprep.subr.bf16.mxu0 0
        %1120 = vmatpush1.bf16.msra.mxu0 0
        %1121 = vmatprep.subr.bf16.mxu0 0
        %1122 = vmatpush1.bf16.msra.mxu0 0
        %1123 = vmatprep.subr.bf16.mxu0 0
        %1124 = vmatpush1.bf16.msra.mxu0 0
        %1125 = vmatprep.subr.bf16.mxu0 0
        %1126 = vmatpush1.bf16.msra.mxu0 0
        %1127 = vmatprep.subr.bf16.mxu0 0
        %1128 = vmatpush1.bf16.msra.mxu0 0
        %1129 = vmatprep.subr.bf16.mxu0 0
        %1130 = vmatpush1.bf16.msra.mxu0 0
        %1131 = vmatprep.subr.bf16.mxu0 0
        %1132 = vmatpush1.bf16.msra.mxu0 0
        %1133 = vmatprep.subr.bf16.mxu0 0
        %1134 = vmatpush1.bf16.msra.mxu0 0
        %1135 = vmatprep.mubr.bf16.mxu0 0
        %1136 = vmatmul.mubr.bf16.gmra.mrb[0].mxu0 %v645
        %v1137 = vpop.f32.mrb[0].mxu0
        %v1138 = vadd.f32 0.0, %v1137
        %v1139 = vpop.f32.mrb[0].mxu0
        %v1140 = vadd.f32 0.0, %v1139
        %v1141 = vpop.f32.mrb[0].mxu0
        %v1142 = vadd.f32 0.0, %v1141
        %v1143 = vpop.f32.mrb[0].mxu0
        %v1144 = vadd.f32 0.0, %v1143
        %1145 = vmatprep.mubr.bf16.mxu0 0
        %1146 = vmatmul.mubr.bf16.gmra.mrb[0].mxu0 %v648
        %v1147 = vpop.f32.mrb[0].mxu0
        %v1148 = vadd.f32 0.0, %v1147
        %v1149 = vpop.f32.mrb[0].mxu0
        %v1150 = vadd.f32 0.0, %v1149
        %v1151 = vpop.f32.mrb[0].mxu0
        %v1152 = vadd.f32 0.0, %v1151
        %v1153 = vpop.f32.mrb[0].mxu0
        %v1154 = vadd.f32 0.0, %v1153
        %1155 = vdwg.mxu0
        %1156 = vmatprep.subr.bf16.mxu0 %v579
        %1157 = vmatpush1.bf16.msra.mxu0 %v578
        %1158 = vmatprep.subr.bf16.mxu0 %v703
        %1159 = vmatpush1.bf16.msra.mxu0 %v700
        %1160 = vmatprep.subr.bf16.mxu0 0
        %1161 = vmatpush1.bf16.msra.mxu0 0
        %1162 = vmatprep.subr.bf16.mxu0 0
        %1163 = vmatpush1.bf16.msra.mxu0 0
        %1164 = vmatprep.subr.bf16.mxu0 0
        %1165 = vmatpush1.bf16.msra.mxu0 0
        %1166 = vmatprep.subr.bf16.mxu0 0
        %1167 = vmatpush1.bf16.msra.mxu0 0
        %1168 = vmatprep.subr.bf16.mxu0 0
        %1169 = vmatpush1.bf16.msra.mxu0 0
        %1170 = vmatprep.subr.bf16.mxu0 0
        %1171 = vmatpush1.bf16.msra.mxu0 0
        %1172 = vmatprep.subr.bf16.mxu0 0
        %1173 = vmatpush1.bf16.msra.mxu0 0
        %1174 = vmatprep.subr.bf16.mxu0 0
        %1175 = vmatpush1.bf16.msra.mxu0 0
        %1176 = vmatprep.subr.bf16.mxu0 0
        %1177 = vmatpush1.bf16.msra.mxu0 0
        %1178 = vmatprep.subr.bf16.mxu0 0
        %1179 = vmatpush1.bf16.msra.mxu0 0
        %1180 = vmatprep.subr.bf16.mxu0 0
        %1181 = vmatpush1.bf16.msra.mxu0 0
        %1182 = vmatprep.subr.bf16.mxu0 0
        %1183 = vmatpush1.bf16.msra.mxu0 0
        %1184 = vmatprep.subr.bf16.mxu0 0
        %1185 = vmatpush1.bf16.msra.mxu0 0
        %1186 = vmatprep.subr.bf16.mxu0 0
        %1187 = vmatpush1.bf16.msra.mxu0 0
        %1188 = vmatprep.mubr.bf16.mxu0 0
        %1189 = vmatmul.mubr.bf16.gmra.mrb[0].mxu0 %v645
        %v1190 = vpop.f32.mrb[0].mxu0
        %v1191 = vadd.f32 0.0, %v1190
        %v1192 = vpop.f32.mrb[0].mxu0
        %v1193 = vadd.f32 0.0, %v1192
        %v1194 = vpop.f32.mrb[0].mxu0
        %v1195 = vadd.f32 0.0, %v1194
        %v1196 = vpop.f32.mrb[0].mxu0
        %v1197 = vadd.f32 0.0, %v1196
        %1198 = vmatprep.mubr.bf16.mxu0 0
        %1199 = vmatmul.mubr.bf16.gmra.mrb[0].mxu0 %v648
        %v1200 = vpop.f32.mrb[0].mxu0
        %v1201 = vadd.f32 0.0, %v1200
        %v1202 = vpop.f32.mrb[0].mxu0
        %v1203 = vadd.f32 0.0, %v1202
        %v1204 = vpop.f32.mrb[0].mxu0
        %v1205 = vadd.f32 0.0, %v1204
        %v1206 = vpop.f32.mrb[0].mxu0
        %v1207 = vadd.f32 0.0, %v1206
        %1208 = vdwg.mxu0
        %1209 = vmatprep.subr.bf16.mxu0 %v581
        %1210 = vmatpush1.bf16.msra.mxu0 %v580
        %1211 = vmatprep.subr.bf16.mxu0 %v709
        %1212 = vmatpush1.bf16.msra.mxu0 %v706
        %1213 = vmatprep.subr.bf16.mxu0 0
        %1214 = vmatpush1.bf16.msra.mxu0 0
        %1215 = vmatprep.subr.bf16.mxu0 0
        %1216 = vmatpush1.bf16.msra.mxu0 0
        %1217 = vmatprep.subr.bf16.mxu0 0
        %1218 = vmatpush1.bf16.msra.mxu0 0
        %1219 = vmatprep.subr.bf16.mxu0 0
        %1220 = vmatpush1.bf16.msra.mxu0 0
        %1221 = vmatprep.subr.bf16.mxu0 0
        %1222 = vmatpush1.bf16.msra.mxu0 0
        %1223 = vmatprep.subr.bf16.mxu0 0
        %1224 = vmatpush1.bf16.msra.mxu0 0
        %1225 = vmatprep.subr.bf16.mxu0 0
        %1226 = vmatpush1.bf16.msra.mxu0 0
        %1227 = vmatprep.subr.bf16.mxu0 0
        %1228 = vmatpush1.bf16.msra.mxu0 0
        %1229 = vmatprep.subr.bf16.mxu0 0
        %1230 = vmatpush1.bf16.msra.mxu0 0
        %1231 = vmatprep.subr.bf16.mxu0 0
        %1232 = vmatpush1.bf16.msra.mxu0 0
        %1233 = vmatprep.subr.bf16.mxu0 0
        %1234 = vmatpush1.bf16.msra.mxu0 0
        %1235 = vmatprep.subr.bf16.mxu0 0
        %1236 = vmatpush1.bf16.msra.mxu0 0
        %1237 = vmatprep.subr.bf16.mxu0 0
        %1238 = vmatpush1.bf16.msra.mxu0 0
        %1239 = vmatprep.subr.bf16.mxu0 0
        %1240 = vmatpush1.bf16.msra.mxu0 0
        %1241 = vmatprep.mubr.bf16.mxu0 0
        %1242 = vmatmul.mubr.bf16.gmra.mrb[0].mxu0 %v645
        %v1243 = vpop.f32.mrb[0].mxu0
        %v1244 = vadd.f32 0.0, %v1243
        %v1245 = vpop.f32.mrb[0].mxu0
        %v1246 = vadd.f32 0.0, %v1245
        %v1247 = vpop.f32.mrb[0].mxu0
        %v1248 = vadd.f32 0.0, %v1247
        %v1249 = vpop.f32.mrb[0].mxu0
        %v1250 = vadd.f32 0.0, %v1249
        %1251 = vmatprep.mubr.bf16.mxu0 0
        %1252 = vmatmul.mubr.bf16.gmra.mrb[0].mxu0 %v648
        %v1253 = vpop.f32.mrb[0].mxu0
        %v1254 = vadd.f32 0.0, %v1253
        %v1255 = vpop.f32.mrb[0].mxu0
        %v1256 = vadd.f32 0.0, %v1255
        %v1257 = vpop.f32.mrb[0].mxu0
        %v1258 = vadd.f32 0.0, %v1257
        %v1259 = vpop.f32.mrb[0].mxu0
        %v1260 = vadd.f32 0.0, %v1259
        %1261 = vdwg.mxu0
        %1262 = vmatprep.subr.bf16.mxu0 %v583
        %1263 = vmatpush1.bf16.msra.mxu0 %v582
        %1264 = vmatprep.subr.bf16.mxu0 %v715
        %1265 = vmatpush1.bf16.msra.mxu0 %v712
        %1266 = vmatprep.subr.bf16.mxu0 0
        %1267 = vmatpush1.bf16.msra.mxu0 0
        %1268 = vmatprep.subr.bf16.mxu0 0
        %1269 = vmatpush1.bf16.msra.mxu0 0
        %1270 = vmatprep.subr.bf16.mxu0 0
        %1271 = vmatpush1.bf16.msra.mxu0 0
        %1272 = vmatprep.subr.bf16.mxu0 0
        %1273 = vmatpush1.bf16.msra.mxu0 0
        %1274 = vmatprep.subr.bf16.mxu0 0
        %1275 = vmatpush1.bf16.msra.mxu0 0
        %1276 = vmatprep.subr.bf16.mxu0 0
        %1277 = vmatpush1.bf16.msra.mxu0 0
        %1278 = vmatprep.subr.bf16.mxu0 0
        %1279 = vmatpush1.bf16.msra.mxu0 0
        %1280 = vmatprep.subr.bf16.mxu0 0
        %1281 = vmatpush1.bf16.msra.mxu0 0
        %1282 = vmatprep.subr.bf16.mxu0 0
        %1283 = vmatpush1.bf16.msra.mxu0 0
        %1284 = vmatprep.subr.bf16.mxu0 0
        %1285 = vmatpush1.bf16.msra.mxu0 0
        %1286 = vmatprep.subr.bf16.mxu0 0
        %1287 = vmatpush1.bf16.msra.mxu0 0
        %1288 = vmatprep.subr.bf16.mxu0 0
        %1289 = vmatpush1.bf16.msra.mxu0 0
        %1290 = vmatprep.subr.bf16.mxu0 0
        %1291 = vmatpush1.bf16.msra.mxu0 0
        %1292 = vmatprep.subr.bf16.mxu0 0
        %1293 = vmatpush1.bf16.msra.mxu0 0
        %1294 = vmatprep.mubr.bf16.mxu0 0
        %1295 = vmatmul.mubr.bf16.gmra.mrb[0].mxu0 %v645
        %v1296 = vpop.f32.mrb[0].mxu0
        %v1297 = vadd.f32 0.0, %v1296
        %v1298 = vpop.f32.mrb[0].mxu0
        %v1299 = vadd.f32 0.0, %v1298
        %v1300 = vpop.f32.mrb[0].mxu0
        %v1301 = vadd.f32 0.0, %v1300
        %v1302 = vpop.f32.mrb[0].mxu0
        %v1303 = vadd.f32 0.0, %v1302
        %1304 = vmatprep.mubr.bf16.mxu0 0
        %1305 = vmatmul.mubr.bf16.gmra.mrb[0].mxu0 %v648
        %v1306 = vpop.f32.mrb[0].mxu0
        %v1307 = vadd.f32 0.0, %v1306
        %v1308 = vpop.f32.mrb[0].mxu0
        %v1309 = vadd.f32 0.0, %v1308
        %v1310 = vpop.f32.mrb[0].mxu0
        %v1311 = vadd.f32 0.0, %v1310
        %v1312 = vpop.f32.mrb[0].mxu0
        %v1313 = vadd.f32 0.0, %v1312
        %1314 = vdwg.mxu0
        %1315 = vmatprep.subr.bf16.mxu0 %v585
        %1316 = vmatpush1.bf16.msra.mxu0 %v584
        %1317 = vmatprep.subr.bf16.mxu0 %v721
        %1318 = vmatpush1.bf16.msra.mxu0 %v718
        %1319 = vmatprep.subr.bf16.mxu0 0
        %1320 = vmatpush1.bf16.msra.mxu0 0
        %1321 = vmatprep.subr.bf16.mxu0 0
        %1322 = vmatpush1.bf16.msra.mxu0 0
        %1323 = vmatprep.subr.bf16.mxu0 0
        %1324 = vmatpush1.bf16.msra.mxu0 0
        %1325 = vmatprep.subr.bf16.mxu0 0
        %1326 = vmatpush1.bf16.msra.mxu0 0
        %1327 = vmatprep.subr.bf16.mxu0 0
        %1328 = vmatpush1.bf16.msra.mxu0 0
        %1329 = vmatprep.subr.bf16.mxu0 0
        %1330 = vmatpush1.bf16.msra.mxu0 0
        %1331 = vmatprep.subr.bf16.mxu0 0
        %1332 = vmatpush1.bf16.msra.mxu0 0
        %1333 = vmatprep.subr.bf16.mxu0 0
        %1334 = vmatpush1.bf16.msra.mxu0 0
        %1335 = vmatprep.subr.bf16.mxu0 0
        %1336 = vmatpush1.bf16.msra.mxu0 0
        %1337 = vmatprep.subr.bf16.mxu0 0
        %1338 = vmatpush1.bf16.msra.mxu0 0
        %1339 = vmatprep.subr.bf16.mxu0 0
        %1340 = vmatpush1.bf16.msra.mxu0 0
        %1341 = vmatprep.subr.bf16.mxu0 0
        %1342 = vmatpush1.bf16.msra.mxu0 0
        %1343 = vmatprep.subr.bf16.mxu0 0
        %1344 = vmatpush1.bf16.msra.mxu0 0
        %1345 = vmatprep.subr.bf16.mxu0 0
        %1346 = vmatpush1.bf16.msra.mxu0 0
        %1347 = vmatprep.mubr.bf16.mxu0 0
        %1348 = vmatmul.mubr.bf16.gmra.mrb[0].mxu0 %v645
        %v1349 = vpop.f32.mrb[0].mxu0
        %v1350 = vadd.f32 0.0, %v1349
        %v1351 = vpop.f32.mrb[0].mxu0
        %v1352 = vadd.f32 0.0, %v1351
        %v1353 = vpop.f32.mrb[0].mxu0
        %v1354 = vadd.f32 0.0, %v1353
        %v1355 = vpop.f32.mrb[0].mxu0
        %v1356 = vadd.f32 0.0, %v1355
        %1357 = vmatprep.mubr.bf16.mxu0 0
        %1358 = vmatmul.mubr.bf16.gmra.mrb[0].mxu0 %v648
        %v1359 = vpop.f32.mrb[0].mxu0
        %v1360 = vadd.f32 0.0, %v1359
        %v1361 = vpop.f32.mrb[0].mxu0
        %v1362 = vadd.f32 0.0, %v1361
        %v1363 = vpop.f32.mrb[0].mxu0
        %v1364 = vadd.f32 0.0, %v1363
        %v1365 = vpop.f32.mrb[0].mxu0
        %v1366 = vadd.f32 0.0, %v1365
        %1367 = vdwg.mxu0
        %1368 = vmatprep.subr.bf16.mxu0 %v587
        %1369 = vmatpush1.bf16.msra.mxu0 %v586
        %1370 = vmatprep.subr.bf16.mxu0 %v727
        %1371 = vmatpush1.bf16.msra.mxu0 %v724
        %1372 = vmatprep.subr.bf16.mxu0 0
        %1373 = vmatpush1.bf16.msra.mxu0 0
        %1374 = vmatprep.subr.bf16.mxu0 0
        %1375 = vmatpush1.bf16.msra.mxu0 0
        %1376 = vmatprep.subr.bf16.mxu0 0
        %1377 = vmatpush1.bf16.msra.mxu0 0
        %1378 = vmatprep.subr.bf16.mxu0 0
        %1379 = vmatpush1.bf16.msra.mxu0 0
        %1380 = vmatprep.subr.bf16.mxu0 0
        %1381 = vmatpush1.bf16.msra.mxu0 0
        %1382 = vmatprep.subr.bf16.mxu0 0
        %1383 = vmatpush1.bf16.msra.mxu0 0
        %1384 = vmatprep.subr.bf16.mxu0 0
        %1385 = vmatpush1.bf16.msra.mxu0 0
        %1386 = vmatprep.subr.bf16.mxu0 0
        %1387 = vmatpush1.bf16.msra.mxu0 0
        %1388 = vmatprep.subr.bf16.mxu0 0
        %1389 = vmatpush1.bf16.msra.mxu0 0
        %1390 = vmatprep.subr.bf16.mxu0 0
        %1391 = vmatpush1.bf16.msra.mxu0 0
        %1392 = vmatprep.subr.bf16.mxu0 0
        %1393 = vmatpush1.bf16.msra.mxu0 0
        %1394 = vmatprep.subr.bf16.mxu0 0
        %1395 = vmatpush1.bf16.msra.mxu0 0
        %1396 = vmatprep.subr.bf16.mxu0 0
        %1397 = vmatpush1.bf16.msra.mxu0 0
        %1398 = vmatprep.subr.bf16.mxu0 0
        %1399 = vmatpush1.bf16.msra.mxu0 0
        %1400 = vmatprep.mubr.bf16.mxu0 0
        %1401 = vmatmul.mubr.bf16.gmra.mrb[0].mxu0 %v645
        %v1402 = vpop.f32.mrb[0].mxu0
        %v1403 = vadd.f32 0.0, %v1402
        %v1404 = vpop.f32.mrb[0].mxu0
        %v1405 = vadd.f32 0.0, %v1404
        %v1406 = vpop.f32.mrb[0].mxu0
        %v1407 = vadd.f32 0.0, %v1406
        %v1408 = vpop.f32.mrb[0].mxu0
        %v1409 = vadd.f32 0.0, %v1408
        %1410 = vmatprep.mubr.bf16.mxu0 0
        %1411 = vmatmul.mubr.bf16.gmra.mrb[0].mxu0 %v648
        %v1412 = vpop.f32.mrb[0].mxu0
        %v1413 = vadd.f32 0.0, %v1412
        %v1414 = vpop.f32.mrb[0].mxu0
        %v1415 = vadd.f32 0.0, %v1414
        %v1416 = vpop.f32.mrb[0].mxu0
        %v1417 = vadd.f32 0.0, %v1416
        %v1418 = vpop.f32.mrb[0].mxu0
        %v1419 = vadd.f32 0.0, %v1418
        %1420 = vdwg.mxu0
        %1421 = vmatprep.subr.bf16.mxu0 0
        %1422 = vmatpush1.bf16.msra.mxu0 %v588
        %1423 = vmatprep.subr.bf16.mxu0 0
        %1424 = vmatpush1.bf16.msra.mxu0 %v730
        %1425 = vmatprep.subr.bf16.mxu0 0
        %1426 = vmatpush1.bf16.msra.mxu0 0
        %1427 = vmatprep.subr.bf16.mxu0 0
        %1428 = vmatpush1.bf16.msra.mxu0 0
        %1429 = vmatprep.subr.bf16.mxu0 0
        %1430 = vmatpush1.bf16.msra.mxu0 0
        %1431 = vmatprep.subr.bf16.mxu0 0
        %1432 = vmatpush1.bf16.msra.mxu0 0
        %1433 = vmatprep.subr.bf16.mxu0 0
        %1434 = vmatpush1.bf16.msra.mxu0 0
        %1435 = vmatprep.subr.bf16.mxu0 0
        %1436 = vmatpush1.bf16.msra.mxu0 0
        %1437 = vmatprep.subr.bf16.mxu0 0
        %1438 = vmatpush1.bf16.msra.mxu0 0
        %1439 = vmatprep.subr.bf16.mxu0 0
        %1440 = vmatpush1.bf16.msra.mxu0 0
        %1441 = vmatprep.subr.bf16.mxu0 0
        %1442 = vmatpush1.bf16.msra.mxu0 0
        %1443 = vmatprep.subr.bf16.mxu0 0
        %1444 = vmatpush1.bf16.msra.mxu0 0
        %1445 = vmatprep.subr.bf16.mxu0 0
        %1446 = vmatpush1.bf16.msra.mxu0 0
        %1447 = vmatprep.subr.bf16.mxu0 0
        %1448 = vmatpush1.bf16.msra.mxu0 0
        %1449 = vmatprep.subr.bf16.mxu0 0
        %1450 = vmatpush1.bf16.msra.mxu0 0
        %1451 = vmatprep.subr.bf16.mxu0 0
        %1452 = vmatpush1.bf16.msra.mxu0 0
        %1453 = vmatprep.mubr.bf16.mxu0 0
        %1454 = vmatmul.mubr.bf16.gmra.mrb[0].mxu0 %v645
        %v1455 = vpop.f32.mrb[0].mxu0
        %v1456 = vadd.f32 0.0, %v1455
        %v1457 = vpop.f32.mrb[0].mxu0
        %v1458 = vpop.f32.mrb[0].mxu0
        %v1459 = vadd.f32 0.0, %v1458
        %v1460 = vpop.f32.mrb[0].mxu0
        %1461 = vmatprep.mubr.bf16.mxu0 0
        %1462 = vmatmul.mubr.bf16.gmra.mrb[0].mxu0 %v648
        %v1463 = vpop.f32.mrb[0].mxu0
        %v1464 = vadd.f32 0.0, %v1463
        %v1465 = vpop.f32.mrb[0].mxu0
        %v1466 = vpop.f32.mrb[0].mxu0
        %v1467 = vadd.f32 0.0, %v1466
        %v1468 = vpop.f32.mrb[0].mxu0
        %1469 = vdwg.mxu0
        %v1470 = vld [vmem:[%s355] sm:$0x77]
        %v1471 = vld [vmem:[%s355 + $0x8] sm:$0x77]
        %v1472 = vld [vmem:[%s355 + $0x10] sm:$0x77]
        %v1473 = vld [vmem:[%s355 + $0x18] sm:$0x77]
        %v1474 = vld [vmem:[%s355 + $0x20] sm:$0x77]
        %v1475 = vld [vmem:[%s355 + $0x28] sm:$0x77]
        %v1476 = vld [vmem:[%s355 + $0x30] sm:$0x77]
        %v1477 = vld [vmem:[%s355 + $0x38] sm:$0x77]
        %v1478 = vld [vmem:[%s355 + $0x40] sm:$0x77]
        %v1479 = vld [vmem:[%s355 + $0x48] sm:$0x77]
        %v1480 = vld [vmem:[%s355 + $0x50] sm:$0x77]
        %v1481 = vld [vmem:[%s355 + $0x58] sm:$0x77]
        %v1482 = vld [vmem:[%s355 + $0x60] sm:$0x77]
        %v1483 = vld [vmem:[%s355 + $0x68] sm:$0x7]
        %v1484 = vld [vmem:[%s355 + $0x6c] sm:$0x77]
        %v1485 = vld [vmem:[%s355 + $0x74] sm:$0x77]
        %v1486 = vld [vmem:[%s355 + $0x7c] sm:$0x77]
        %v1487 = vld [vmem:[%s355 + $0x84] sm:$0x77]
        %v1488 = vld [vmem:[%s355 + $0x8c] sm:$0x77]
        %v1489 = vld [vmem:[%s355 + $0x94] sm:$0x77]
        %v1490 = vld [vmem:[%s355 + $0x9c] sm:$0x77]
        %v1491 = vld [vmem:[%s355 + $0xa4] sm:$0x77]
        %v1492 = vld [vmem:[%s355 + $0xac] sm:$0x77]
        %v1493 = vld [vmem:[%s355 + $0xb4] sm:$0x77]
        %v1494 = vld [vmem:[%s355 + $0xbc] sm:$0x77]
        %v1495 = vld [vmem:[%s355 + $0xc4] sm:$0x77]
        %v1496 = vld [vmem:[%s355 + $0xcc] sm:$0x77]
        %v1497 = vld [vmem:[%s355 + $0xd4] sm:$0x7]
        %v1525 = vcombine.low %v767, %v769
        %v1526 = vcombine.high %v767, %v769
        %v1527 = vcombine.low %v820, %v822
        %v1528 = vcombine.high %v820, %v822
        %v1529 = vcombine.low %v873, %v875
        %v1530 = vcombine.high %v873, %v875
        %v1531 = vcombine.low %v926, %v928
        %v1532 = vcombine.high %v926, %v928
        %v1534 = vunpack.c.l.s4 1966171168
        %v1535 = vunpack.c.0.s8 %v1534
        %v1536 = vlaneseq
        %v1537 = vshrl.u32 %v1536, 7
        %v1538 = vsub.s32 %v1535, %v1537
        %v1539 = vrot.slane %v1525, %v1538
        %v1541 = vunpack.c.l.s4 1966171168
        %v1542 = vunpack.c.0.s8 %v1541
        %v1543 = vlaneseq
        %v1544 = vshrl.u32 %v1543, 7
        %v1545 = vsub.s32 %v1542, %v1544
        %v1546 = vrot.slane %v1526, %v1545
        %v1548 = vunpack.c.l.s4 1966171168
        %v1549 = vunpack.c.0.s8 %v1548
        %v1550 = vlaneseq
        %v1551 = vshrl.u32 %v1550, 7
        %v1552 = vsub.s32 %v1549, %v1551
        %v1553 = vrot.slane %v1527, %v1552
        %v1555 = vunpack.c.l.s4 1966171168
        %v1556 = vunpack.c.0.s8 %v1555
        %v1557 = vlaneseq
        %v1558 = vshrl.u32 %v1557, 7
        %v1559 = vsub.s32 %v1556, %v1558
        %v1560 = vrot.slane %v1528, %v1559
        %v1562 = vunpack.c.l.s4 1966171168
        %v1563 = vunpack.c.0.s8 %v1562
        %v1564 = vlaneseq
        %v1565 = vshrl.u32 %v1564, 7
        %v1566 = vsub.s32 %v1563, %v1565
        %v1567 = vrot.slane %v1529, %v1566
        %v1569 = vunpack.c.l.s4 1966171168
        %v1570 = vunpack.c.0.s8 %v1569
        %v1571 = vlaneseq
        %v1572 = vshrl.u32 %v1571, 7
        %v1573 = vsub.s32 %v1570, %v1572
        %v1574 = vrot.slane %v1530, %v1573
        %v1576 = vunpack.c.l.s4 1966171168
        %v1577 = vunpack.c.0.s8 %v1576
        %v1578 = vlaneseq
        %v1579 = vshrl.u32 %v1578, 7
        %v1580 = vsub.s32 %v1577, %v1579
        %v1581 = vrot.slane %v1531, %v1580
        %v1583 = vunpack.c.l.s4 1966171168
        %v1584 = vunpack.c.0.s8 %v1583
        %v1585 = vlaneseq
        %v1586 = vshrl.u32 %v1585, 7
        %v1587 = vsub.s32 %v1584, %v1586
        %v1588 = vrot.slane %v1532, %v1587
        %v1589 = vcombine.low %v1539, %v1553
        %v1590 = vcombine.high %v1539, %v1553
        %v1591 = vcombine.low %v1546, %v1560
        %v1592 = vcombine.high %v1546, %v1560
        %v1593 = vcombine.low %v1567, %v1581
        %v1594 = vcombine.high %v1567, %v1581
        %v1595 = vcombine.low %v1574, %v1588
        %v1596 = vcombine.high %v1574, %v1588
        %v1598 = vunpack.c.l.s4 1966171168
        %v1599 = vunpack.c.0.s8 %v1598
        %v1600 = vlaneseq
        %v1601 = vshrl.u32 %v1600, 7
        %v1602 = vsub.s32 %v1599, %v1601
        %v1603 = vrot.slane %v1589, %v1602
        %v1605 = vunpack.c.l.s4 1966171168
        %v1606 = vunpack.c.0.s8 %v1605
        %v1607 = vlaneseq
        %v1608 = vshrl.u32 %v1607, 7
        %v1609 = vsub.s32 %v1606, %v1608
        %v1610 = vrot.slane %v1591, %v1609
        %v1612 = vunpack.c.l.s4 1966171168
        %v1613 = vunpack.c.0.s8 %v1612
        %v1614 = vlaneseq
        %v1615 = vshrl.u32 %v1614, 7
        %v1616 = vsub.s32 %v1613, %v1615
        %v1617 = vrot.slane %v1590, %v1616
        %v1619 = vunpack.c.l.s4 1966171168
        %v1620 = vunpack.c.0.s8 %v1619
        %v1621 = vlaneseq
        %v1622 = vshrl.u32 %v1621, 7
        %v1623 = vsub.s32 %v1620, %v1622
        %v1624 = vrot.slane %v1592, %v1623
        %v1626 = vunpack.c.l.s4 1966171168
        %v1627 = vunpack.c.0.s8 %v1626
        %v1628 = vlaneseq
        %v1629 = vshrl.u32 %v1628, 7
        %v1630 = vsub.s32 %v1627, %v1629
        %v1631 = vrot.slane %v1593, %v1630
        %v1633 = vunpack.c.l.s4 1966171168
        %v1634 = vunpack.c.0.s8 %v1633
        %v1635 = vlaneseq
        %v1636 = vshrl.u32 %v1635, 7
        %v1637 = vsub.s32 %v1634, %v1636
        %v1638 = vrot.slane %v1595, %v1637
        %v1640 = vunpack.c.l.s4 1966171168
        %v1641 = vunpack.c.0.s8 %v1640
        %v1642 = vlaneseq
        %v1643 = vshrl.u32 %v1642, 7
        %v1644 = vsub.s32 %v1641, %v1643
        %v1645 = vrot.slane %v1594, %v1644
        %v1647 = vunpack.c.l.s4 1966171168
        %v1648 = vunpack.c.0.s8 %v1647
        %v1649 = vlaneseq
        %v1650 = vshrl.u32 %v1649, 7
        %v1651 = vsub.s32 %v1648, %v1650
        %v1652 = vrot.slane %v1596, %v1651
        %v1653 = vcombine.low %v1603, %v1631
        %v1654 = vcombine.high %v1603, %v1631
        %v1655 = vcombine.low %v1610, %v1638
        %v1656 = vcombine.low %v1617, %v1645
        %v1657 = vcombine.high %v1617, %v1645
        %v1658 = vcombine.low %v1624, %v1652
        %v1659 = vcombine.low %v979, %v981
        %v1660 = vcombine.high %v979, %v981
        %v1661 = vcombine.low %v1032, %v1034
        %v1662 = vcombine.high %v1032, %v1034
        %v1663 = vcombine.low %v1085, %v1087
        %v1664 = vcombine.high %v1085, %v1087
        %v1665 = vcombine.low %v1138, %v1140
        %v1666 = vcombine.high %v1138, %v1140
        %v1668 = vunpack.c.l.s4 1966171168
        %v1669 = vunpack.c.0.s8 %v1668
        %v1670 = vlaneseq
        %v1671 = vshrl.u32 %v1670, 7
        %v1672 = vsub.s32 %v1669, %v1671
        %v1673 = vrot.slane %v1659, %v1672
        %v1675 = vunpack.c.l.s4 1966171168
        %v1676 = vunpack.c.0.s8 %v1675
        %v1677 = vlaneseq
        %v1678 = vshrl.u32 %v1677, 7
        %v1679 = vsub.s32 %v1676, %v1678
        %v1680 = vrot.slane %v1660, %v1679
        %v1682 = vunpack.c.l.s4 1966171168
        %v1683 = vunpack.c.0.s8 %v1682
        %v1684 = vlaneseq
        %v1685 = vshrl.u32 %v1684, 7
        %v1686 = vsub.s32 %v1683, %v1685
        %v1687 = vrot.slane %v1661, %v1686
        %v1689 = vunpack.c.l.s4 1966171168
        %v1690 = vunpack.c.0.s8 %v1689
        %v1691 = vlaneseq
        %v1692 = vshrl.u32 %v1691, 7
        %v1693 = vsub.s32 %v1690, %v1692
        %v1694 = vrot.slane %v1662, %v1693
        %v1696 = vunpack.c.l.s4 1966171168
        %v1697 = vunpack.c.0.s8 %v1696
        %v1698 = vlaneseq
        %v1699 = vshrl.u32 %v1698, 7
        %v1700 = vsub.s32 %v1697, %v1699
        %v1701 = vrot.slane %v1663, %v1700
        %v1703 = vunpack.c.l.s4 1966171168
        %v1704 = vunpack.c.0.s8 %v1703
        %v1705 = vlaneseq
        %v1706 = vshrl.u32 %v1705, 7
        %v1707 = vsub.s32 %v1704, %v1706
        %v1708 = vrot.slane %v1664, %v1707
        %v1710 = vunpack.c.l.s4 1966171168
        %v1711 = vunpack.c.0.s8 %v1710
        %v1712 = vlaneseq
        %v1713 = vshrl.u32 %v1712, 7
        %v1714 = vsub.s32 %v1711, %v1713
        %v1715 = vrot.slane %v1665, %v1714
        %v1717 = vunpack.c.l.s4 1966171168
        %v1718 = vunpack.c.0.s8 %v1717
        %v1719 = vlaneseq
        %v1720 = vshrl.u32 %v1719, 7
        %v1721 = vsub.s32 %v1718, %v1720
        %v1722 = vrot.slane %v1666, %v1721
        %v1723 = vcombine.low %v1673, %v1687
        %v1724 = vcombine.high %v1673, %v1687
        %v1725 = vcombine.low %v1680, %v1694
        %v1726 = vcombine.high %v1680, %v1694
        %v1727 = vcombine.low %v1701, %v1715
        %v1728 = vcombine.high %v1701, %v1715
        %v1729 = vcombine.low %v1708, %v1722
        %v1730 = vcombine.high %v1708, %v1722
        %v1732 = vunpack.c.l.s4 1966171168
        %v1733 = vunpack.c.0.s8 %v1732
        %v1734 = vlaneseq
        %v1735 = vshrl.u32 %v1734, 7
        %v1736 = vsub.s32 %v1733, %v1735
        %v1737 = vrot.slane %v1723, %v1736
        %v1739 = vunpack.c.l.s4 1966171168
        %v1740 = vunpack.c.0.s8 %v1739
        %v1741 = vlaneseq
        %v1742 = vshrl.u32 %v1741, 7
        %v1743 = vsub.s32 %v1740, %v1742
        %v1744 = vrot.slane %v1725, %v1743
        %v1746 = vunpack.c.l.s4 1966171168
        %v1747 = vunpack.c.0.s8 %v1746
        %v1748 = vlaneseq
        %v1749 = vshrl.u32 %v1748, 7
        %v1750 = vsub.s32 %v1747, %v1749
        %v1751 = vrot.slane %v1724, %v1750
        %v1753 = vunpack.c.l.s4 1966171168
        %v1754 = vunpack.c.0.s8 %v1753
        %v1755 = vlaneseq
        %v1756 = vshrl.u32 %v1755, 7
        %v1757 = vsub.s32 %v1754, %v1756
        %v1758 = vrot.slane %v1726, %v1757
        %v1760 = vunpack.c.l.s4 1966171168
        %v1761 = vunpack.c.0.s8 %v1760
        %v1762 = vlaneseq
        %v1763 = vshrl.u32 %v1762, 7
        %v1764 = vsub.s32 %v1761, %v1763
        %v1765 = vrot.slane %v1727, %v1764
        %v1767 = vunpack.c.l.s4 1966171168
        %v1768 = vunpack.c.0.s8 %v1767
        %v1769 = vlaneseq
        %v1770 = vshrl.u32 %v1769, 7
        %v1771 = vsub.s32 %v1768, %v1770
        %v1772 = vrot.slane %v1729, %v1771
        %v1774 = vunpack.c.l.s4 1966171168
        %v1775 = vunpack.c.0.s8 %v1774
        %v1776 = vlaneseq
        %v1777 = vshrl.u32 %v1776, 7
        %v1778 = vsub.s32 %v1775, %v1777
        %v1779 = vrot.slane %v1728, %v1778
        %v1781 = vunpack.c.l.s4 1966171168
        %v1782 = vunpack.c.0.s8 %v1781
        %v1783 = vlaneseq
        %v1784 = vshrl.u32 %v1783, 7
        %v1785 = vsub.s32 %v1782, %v1784
        %v1786 = vrot.slane %v1730, %v1785
        %v1787 = vcombine.low %v1737, %v1765
        %v1788 = vcombine.high %v1737, %v1765
        %v1789 = vcombine.low %v1744, %v1772
        %v1790 = vcombine.low %v1751, %v1779
        %v1791 = vcombine.high %v1751, %v1779
        %v1792 = vcombine.low %v1758, %v1786
        %v1793 = vcombine.low %v1191, %v1193
        %v1794 = vcombine.high %v1191, %v1193
        %v1795 = vcombine.low %v1244, %v1246
        %v1796 = vcombine.high %v1244, %v1246
        %v1797 = vcombine.low %v1297, %v1299
        %v1798 = vcombine.high %v1297, %v1299
        %v1799 = vcombine.low %v1350, %v1352
        %v1800 = vcombine.high %v1350, %v1352
        %v1802 = vunpack.c.l.s4 1966171168
        %v1803 = vunpack.c.0.s8 %v1802
        %v1804 = vlaneseq
        %v1805 = vshrl.u32 %v1804, 7
        %v1806 = vsub.s32 %v1803, %v1805
        %v1807 = vrot.slane %v1793, %v1806
        %v1809 = vunpack.c.l.s4 1966171168
        %v1810 = vunpack.c.0.s8 %v1809
        %v1811 = vlaneseq
        %v1812 = vshrl.u32 %v1811, 7
        %v1813 = vsub.s32 %v1810, %v1812
        %v1814 = vrot.slane %v1794, %v1813
        %v1816 = vunpack.c.l.s4 1966171168
        %v1817 = vunpack.c.0.s8 %v1816
        %v1818 = vlaneseq
        %v1819 = vshrl.u32 %v1818, 7
        %v1820 = vsub.s32 %v1817, %v1819
        %v1821 = vrot.slane %v1795, %v1820
        %v1823 = vunpack.c.l.s4 1966171168
        %v1824 = vunpack.c.0.s8 %v1823
        %v1825 = vlaneseq
        %v1826 = vshrl.u32 %v1825, 7
        %v1827 = vsub.s32 %v1824, %v1826
        %v1828 = vrot.slane %v1796, %v1827
        %v1830 = vunpack.c.l.s4 1966171168
        %v1831 = vunpack.c.0.s8 %v1830
        %v1832 = vlaneseq
        %v1833 = vshrl.u32 %v1832, 7
        %v1834 = vsub.s32 %v1831, %v1833
        %v1835 = vrot.slane %v1797, %v1834
        %v1837 = vunpack.c.l.s4 1966171168
        %v1838 = vunpack.c.0.s8 %v1837
        %v1839 = vlaneseq
        %v1840 = vshrl.u32 %v1839, 7
        %v1841 = vsub.s32 %v1838, %v1840
        %v1842 = vrot.slane %v1798, %v1841
        %v1844 = vunpack.c.l.s4 1966171168
        %v1845 = vunpack.c.0.s8 %v1844
        %v1846 = vlaneseq
        %v1847 = vshrl.u32 %v1846, 7
        %v1848 = vsub.s32 %v1845, %v1847
        %v1849 = vrot.slane %v1799, %v1848
        %v1851 = vunpack.c.l.s4 1966171168
        %v1852 = vunpack.c.0.s8 %v1851
        %v1853 = vlaneseq
        %v1854 = vshrl.u32 %v1853, 7
        %v1855 = vsub.s32 %v1852, %v1854
        %v1856 = vrot.slane %v1800, %v1855
        %v1857 = vcombine.low %v1807, %v1821
        %v1858 = vcombine.high %v1807, %v1821
        %v1859 = vcombine.low %v1814, %v1828
        %v1860 = vcombine.high %v1814, %v1828
        %v1861 = vcombine.low %v1835, %v1849
        %v1862 = vcombine.high %v1835, %v1849
        %v1863 = vcombine.low %v1842, %v1856
        %v1864 = vcombine.high %v1842, %v1856
        %v1866 = vunpack.c.l.s4 1966171168
        %v1867 = vunpack.c.0.s8 %v1866
        %v1868 = vlaneseq
        %v1869 = vshrl.u32 %v1868, 7
        %v1870 = vsub.s32 %v1867, %v1869
        %v1871 = vrot.slane %v1857, %v1870
        %v1873 = vunpack.c.l.s4 1966171168
        %v1874 = vunpack.c.0.s8 %v1873
        %v1875 = vlaneseq
        %v1876 = vshrl.u32 %v1875, 7
        %v1877 = vsub.s32 %v1874, %v1876
        %v1878 = vrot.slane %v1859, %v1877
        %v1880 = vunpack.c.l.s4 1966171168
        %v1881 = vunpack.c.0.s8 %v1880
        %v1882 = vlaneseq
        %v1883 = vshrl.u32 %v1882, 7
        %v1884 = vsub.s32 %v1881, %v1883
        %v1885 = vrot.slane %v1858, %v1884
        %v1887 = vunpack.c.l.s4 1966171168
        %v1888 = vunpack.c.0.s8 %v1887
        %v1889 = vlaneseq
        %v1890 = vshrl.u32 %v1889, 7
        %v1891 = vsub.s32 %v1888, %v1890
        %v1892 = vrot.slane %v1860, %v1891
        %v1894 = vunpack.c.l.s4 1966171168
        %v1895 = vunpack.c.0.s8 %v1894
        %v1896 = vlaneseq
        %v1897 = vshrl.u32 %v1896, 7
        %v1898 = vsub.s32 %v1895, %v1897
        %v1899 = vrot.slane %v1861, %v1898
        %v1901 = vunpack.c.l.s4 1966171168
        %v1902 = vunpack.c.0.s8 %v1901
        %v1903 = vlaneseq
        %v1904 = vshrl.u32 %v1903, 7
        %v1905 = vsub.s32 %v1902, %v1904
        %v1906 = vrot.slane %v1863, %v1905
        %v1908 = vunpack.c.l.s4 1966171168
        %v1909 = vunpack.c.0.s8 %v1908
        %v1910 = vlaneseq
        %v1911 = vshrl.u32 %v1910, 7
        %v1912 = vsub.s32 %v1909, %v1911
        %v1913 = vrot.slane %v1862, %v1912
        %v1915 = vunpack.c.l.s4 1966171168
        %v1916 = vunpack.c.0.s8 %v1915
        %v1917 = vlaneseq
        %v1918 = vshrl.u32 %v1917, 7
        %v1919 = vsub.s32 %v1916, %v1918
        %v1920 = vrot.slane %v1864, %v1919
        %v1921 = vcombine.low %v1871, %v1899
        %v1922 = vcombine.high %v1871, %v1899
        %v1923 = vcombine.low %v1878, %v1906
        %v1924 = vcombine.low %v1885, %v1913
        %v1925 = vcombine.high %v1885, %v1913
        %v1926 = vcombine.low %v1892, %v1920
        %v1927 = vcombine.low %v1403, %v1405
        %v1928 = vcombine.high %v1403, %v1405
        %v1929 = vcombine.high %v1456, %v1456
        %v1931 = vunpack.c.l.s4 1966171168
        %v1932 = vunpack.c.0.s8 %v1931
        %v1933 = vlaneseq
        %v1934 = vshrl.u32 %v1933, 7
        %v1935 = vsub.s32 %v1932, %v1934
        %v1936 = vrot.slane %v1927, %v1935
        %v1938 = vunpack.c.l.s4 1966171168
        %v1939 = vunpack.c.0.s8 %v1938
        %v1940 = vlaneseq
        %v1941 = vshrl.u32 %v1940, 7
        %v1942 = vsub.s32 %v1939, %v1941
        %v1943 = vrot.slane %v1928, %v1942
        %v1945 = vunpack.c.l.s4 1966171168
        %v1946 = vunpack.c.0.s8 %v1945
        %v1947 = vlaneseq
        %v1948 = vshrl.u32 %v1947, 7
        %v1949 = vsub.s32 %v1946, %v1948
        %v1950 = vrot.slane %v1456, %v1949
        %v1952 = vunpack.c.l.s4 1966171168
        %v1953 = vunpack.c.0.s8 %v1952
        %v1954 = vlaneseq
        %v1955 = vshrl.u32 %v1954, 7
        %v1956 = vsub.s32 %v1953, %v1955
        %v1957 = vrot.slane %v1929, %v1956
        %v1958 = vcombine.low %v1936, %v1950
        %v1959 = vcombine.high %v1936, %v1950
        %v1960 = vcombine.low %v1943, %v1957
        %v1961 = vcombine.high %v1943, %v1957
        %v1963 = vunpack.c.l.s4 1966171168
        %v1964 = vunpack.c.0.s8 %v1963
        %v1965 = vlaneseq
        %v1966 = vshrl.u32 %v1965, 7
        %v1967 = vsub.s32 %v1964, %v1966
        %v1968 = vrot.slane %v1958, %v1967
        %v1970 = vunpack.c.l.s4 1966171168
        %v1971 = vunpack.c.0.s8 %v1970
        %v1972 = vlaneseq
        %v1973 = vshrl.u32 %v1972, 7
        %v1974 = vsub.s32 %v1971, %v1973
        %v1975 = vrot.slane %v1960, %v1974
        %v1977 = vunpack.c.l.s4 1966171168
        %v1978 = vunpack.c.0.s8 %v1977
        %v1979 = vlaneseq
        %v1980 = vshrl.u32 %v1979, 7
        %v1981 = vsub.s32 %v1978, %v1980
        %v1982 = vrot.slane %v1959, %v1981
        %v1984 = vunpack.c.l.s4 1966171168
        %v1985 = vunpack.c.0.s8 %v1984
        %v1986 = vlaneseq
        %v1987 = vshrl.u32 %v1986, 7
        %v1988 = vsub.s32 %v1985, %v1987
        %v1989 = vrot.slane %v1961, %v1988
        %v1990 = vcombine.high %v1968, %v1968
        %v1991 = vcombine.high %v1982, %v1982
        %v2043 = vcombine.low %v771, %v773
        %v2044 = vcombine.high %v771, %v773
        %v2045 = vcombine.low %v824, %v826
        %v2046 = vcombine.high %v824, %v826
        %v2047 = vcombine.low %v877, %v879
        %v2048 = vcombine.high %v877, %v879
        %v2049 = vcombine.low %v930, %v932
        %v2050 = vcombine.high %v930, %v932
        %v2052 = vunpack.c.l.s4 1966171168
        %v2053 = vunpack.c.0.s8 %v2052
        %v2054 = vlaneseq
        %v2055 = vshrl.u32 %v2054, 7
        %v2056 = vsub.s32 %v2053, %v2055
        %v2057 = vrot.slane %v2043, %v2056
        %v2059 = vunpack.c.l.s4 1966171168
        %v2060 = vunpack.c.0.s8 %v2059
        %v2061 = vlaneseq
        %v2062 = vshrl.u32 %v2061, 7
        %v2063 = vsub.s32 %v2060, %v2062
        %v2064 = vrot.slane %v2044, %v2063
        %v2066 = vunpack.c.l.s4 1966171168
        %v2067 = vunpack.c.0.s8 %v2066
        %v2068 = vlaneseq
        %v2069 = vshrl.u32 %v2068, 7
        %v2070 = vsub.s32 %v2067, %v2069
        %v2071 = vrot.slane %v2045, %v2070
        %v2073 = vunpack.c.l.s4 1966171168
        %v2074 = vunpack.c.0.s8 %v2073
        %v2075 = vlaneseq
        %v2076 = vshrl.u32 %v2075, 7
        %v2077 = vsub.s32 %v2074, %v2076
        %v2078 = vrot.slane %v2046, %v2077
        %v2080 = vunpack.c.l.s4 1966171168
        %v2081 = vunpack.c.0.s8 %v2080
        %v2082 = vlaneseq
        %v2083 = vshrl.u32 %v2082, 7
        %v2084 = vsub.s32 %v2081, %v2083
        %v2085 = vrot.slane %v2047, %v2084
        %v2087 = vunpack.c.l.s4 1966171168
        %v2088 = vunpack.c.0.s8 %v2087
        %v2089 = vlaneseq
        %v2090 = vshrl.u32 %v2089, 7
        %v2091 = vsub.s32 %v2088, %v2090
        %v2092 = vrot.slane %v2048, %v2091
        %v2094 = vunpack.c.l.s4 1966171168
        %v2095 = vunpack.c.0.s8 %v2094
        %v2096 = vlaneseq
        %v2097 = vshrl.u32 %v2096, 7
        %v2098 = vsub.s32 %v2095, %v2097
        %v2099 = vrot.slane %v2049, %v2098
        %v2101 = vunpack.c.l.s4 1966171168
        %v2102 = vunpack.c.0.s8 %v2101
        %v2103 = vlaneseq
        %v2104 = vshrl.u32 %v2103, 7
        %v2105 = vsub.s32 %v2102, %v2104
        %v2106 = vrot.slane %v2050, %v2105
        %v2107 = vcombine.low %v2057, %v2071
        %v2108 = vcombine.high %v2057, %v2071
        %v2109 = vcombine.low %v2064, %v2078
        %v2110 = vcombine.high %v2064, %v2078
        %v2111 = vcombine.low %v2085, %v2099
        %v2112 = vcombine.high %v2085, %v2099
        %v2113 = vcombine.low %v2092, %v2106
        %v2114 = vcombine.high %v2092, %v2106
        %v2116 = vunpack.c.l.s4 1966171168
        %v2117 = vunpack.c.0.s8 %v2116
        %v2118 = vlaneseq
        %v2119 = vshrl.u32 %v2118, 7
        %v2120 = vsub.s32 %v2117, %v2119
        %v2121 = vrot.slane %v2107, %v2120
        %v2123 = vunpack.c.l.s4 1966171168
        %v2124 = vunpack.c.0.s8 %v2123
        %v2125 = vlaneseq
        %v2126 = vshrl.u32 %v2125, 7
        %v2127 = vsub.s32 %v2124, %v2126
        %v2128 = vrot.slane %v2109, %v2127
        %v2130 = vunpack.c.l.s4 1966171168
        %v2131 = vunpack.c.0.s8 %v2130
        %v2132 = vlaneseq
        %v2133 = vshrl.u32 %v2132, 7
        %v2134 = vsub.s32 %v2131, %v2133
        %v2135 = vrot.slane %v2108, %v2134
        %v2137 = vunpack.c.l.s4 1966171168
        %v2138 = vunpack.c.0.s8 %v2137
        %v2139 = vlaneseq
        %v2140 = vshrl.u32 %v2139, 7
        %v2141 = vsub.s32 %v2138, %v2140
        %v2142 = vrot.slane %v2110, %v2141
        %v2144 = vunpack.c.l.s4 1966171168
        %v2145 = vunpack.c.0.s8 %v2144
        %v2146 = vlaneseq
        %v2147 = vshrl.u32 %v2146, 7
        %v2148 = vsub.s32 %v2145, %v2147
        %v2149 = vrot.slane %v2111, %v2148
        %v2151 = vunpack.c.l.s4 1966171168
        %v2152 = vunpack.c.0.s8 %v2151
        %v2153 = vlaneseq
        %v2154 = vshrl.u32 %v2153, 7
        %v2155 = vsub.s32 %v2152, %v2154
        %v2156 = vrot.slane %v2113, %v2155
        %v2158 = vunpack.c.l.s4 1966171168
        %v2159 = vunpack.c.0.s8 %v2158
        %v2160 = vlaneseq
        %v2161 = vshrl.u32 %v2160, 7
        %v2162 = vsub.s32 %v2159, %v2161
        %v2163 = vrot.slane %v2112, %v2162
        %v2165 = vunpack.c.l.s4 1966171168
        %v2166 = vunpack.c.0.s8 %v2165
        %v2167 = vlaneseq
        %v2168 = vshrl.u32 %v2167, 7
        %v2169 = vsub.s32 %v2166, %v2168
        %v2170 = vrot.slane %v2114, %v2169
        %v2171 = vcombine.low %v2121, %v2149
        %v2172 = vcombine.high %v2121, %v2149
        %v2173 = vcombine.low %v2128, %v2156
        %v2174 = vcombine.low %v2135, %v2163
        %v2175 = vcombine.high %v2135, %v2163
        %v2176 = vcombine.low %v2142, %v2170
        %v2177 = vcombine.low %v983, %v985
        %v2178 = vcombine.high %v983, %v985
        %v2179 = vcombine.low %v1036, %v1038
        %v2180 = vcombine.high %v1036, %v1038
        %v2181 = vcombine.low %v1089, %v1091
        %v2182 = vcombine.high %v1089, %v1091
        %v2183 = vcombine.low %v1142, %v1144
        %v2184 = vcombine.high %v1142, %v1144
        %v2186 = vunpack.c.l.s4 1966171168
        %v2187 = vunpack.c.0.s8 %v2186
        %v2188 = vlaneseq
        %v2189 = vshrl.u32 %v2188, 7
        %v2190 = vsub.s32 %v2187, %v2189
        %v2191 = vrot.slane %v2177, %v2190
        %v2193 = vunpack.c.l.s4 1966171168
        %v2194 = vunpack.c.0.s8 %v2193
        %v2195 = vlaneseq
        %v2196 = vshrl.u32 %v2195, 7
        %v2197 = vsub.s32 %v2194, %v2196
        %v2198 = vrot.slane %v2178, %v2197
        %v2200 = vunpack.c.l.s4 1966171168
        %v2201 = vunpack.c.0.s8 %v2200
        %v2202 = vlaneseq
        %v2203 = vshrl.u32 %v2202, 7
        %v2204 = vsub.s32 %v2201, %v2203
        %v2205 = vrot.slane %v2179, %v2204
        %v2207 = vunpack.c.l.s4 1966171168
        %v2208 = vunpack.c.0.s8 %v2207
        %v2209 = vlaneseq
        %v2210 = vshrl.u32 %v2209, 7
        %v2211 = vsub.s32 %v2208, %v2210
        %v2212 = vrot.slane %v2180, %v2211
        %v2214 = vunpack.c.l.s4 1966171168
        %v2215 = vunpack.c.0.s8 %v2214
        %v2216 = vlaneseq
        %v2217 = vshrl.u32 %v2216, 7
        %v2218 = vsub.s32 %v2215, %v2217
        %v2219 = vrot.slane %v2181, %v2218
        %v2221 = vunpack.c.l.s4 1966171168
        %v2222 = vunpack.c.0.s8 %v2221
        %v2223 = vlaneseq
        %v2224 = vshrl.u32 %v2223, 7
        %v2225 = vsub.s32 %v2222, %v2224
        %v2226 = vrot.slane %v2182, %v2225
        %v2228 = vunpack.c.l.s4 1966171168
        %v2229 = vunpack.c.0.s8 %v2228
        %v2230 = vlaneseq
        %v2231 = vshrl.u32 %v2230, 7
        %v2232 = vsub.s32 %v2229, %v2231
        %v2233 = vrot.slane %v2183, %v2232
        %v2235 = vunpack.c.l.s4 1966171168
        %v2236 = vunpack.c.0.s8 %v2235
        %v2237 = vlaneseq
        %v2238 = vshrl.u32 %v2237, 7
        %v2239 = vsub.s32 %v2236, %v2238
        %v2240 = vrot.slane %v2184, %v2239
        %v2241 = vcombine.low %v2191, %v2205
        %v2242 = vcombine.high %v2191, %v2205
        %v2243 = vcombine.low %v2198, %v2212
        %v2244 = vcombine.high %v2198, %v2212
        %v2245 = vcombine.low %v2219, %v2233
        %v2246 = vcombine.high %v2219, %v2233
        %v2247 = vcombine.low %v2226, %v2240
        %v2248 = vcombine.high %v2226, %v2240
        %v2250 = vunpack.c.l.s4 1966171168
        %v2251 = vunpack.c.0.s8 %v2250
        %v2252 = vlaneseq
        %v2253 = vshrl.u32 %v2252, 7
        %v2254 = vsub.s32 %v2251, %v2253
        %v2255 = vrot.slane %v2241, %v2254
        %v2257 = vunpack.c.l.s4 1966171168
        %v2258 = vunpack.c.0.s8 %v2257
        %v2259 = vlaneseq
        %v2260 = vshrl.u32 %v2259, 7
        %v2261 = vsub.s32 %v2258, %v2260
        %v2262 = vrot.slane %v2243, %v2261
        %v2264 = vunpack.c.l.s4 1966171168
        %v2265 = vunpack.c.0.s8 %v2264
        %v2266 = vlaneseq
        %v2267 = vshrl.u32 %v2266, 7
        %v2268 = vsub.s32 %v2265, %v2267
        %v2269 = vrot.slane %v2242, %v2268
        %v2271 = vunpack.c.l.s4 1966171168
        %v2272 = vunpack.c.0.s8 %v2271
        %v2273 = vlaneseq
        %v2274 = vshrl.u32 %v2273, 7
        %v2275 = vsub.s32 %v2272, %v2274
        %v2276 = vrot.slane %v2244, %v2275
        %v2278 = vunpack.c.l.s4 1966171168
        %v2279 = vunpack.c.0.s8 %v2278
        %v2280 = vlaneseq
        %v2281 = vshrl.u32 %v2280, 7
        %v2282 = vsub.s32 %v2279, %v2281
        %v2283 = vrot.slane %v2245, %v2282
        %v2285 = vunpack.c.l.s4 1966171168
        %v2286 = vunpack.c.0.s8 %v2285
        %v2287 = vlaneseq
        %v2288 = vshrl.u32 %v2287, 7
        %v2289 = vsub.s32 %v2286, %v2288
        %v2290 = vrot.slane %v2247, %v2289
        %v2292 = vunpack.c.l.s4 1966171168
        %v2293 = vunpack.c.0.s8 %v2292
        %v2294 = vlaneseq
        %v2295 = vshrl.u32 %v2294, 7
        %v2296 = vsub.s32 %v2293, %v2295
        %v2297 = vrot.slane %v2246, %v2296
        %v2299 = vunpack.c.l.s4 1966171168
        %v2300 = vunpack.c.0.s8 %v2299
        %v2301 = vlaneseq
        %v2302 = vshrl.u32 %v2301, 7
        %v2303 = vsub.s32 %v2300, %v2302
        %v2304 = vrot.slane %v2248, %v2303
        %v2305 = vcombine.low %v2255, %v2283
        %v2306 = vcombine.high %v2255, %v2283
        %v2307 = vcombine.low %v2262, %v2290
        %v2308 = vcombine.low %v2269, %v2297
        %v2309 = vcombine.high %v2269, %v2297
        %v2310 = vcombine.low %v2276, %v2304
        %v2311 = vcombine.low %v1195, %v1197
        %v2312 = vcombine.high %v1195, %v1197
        %v2313 = vcombine.low %v1248, %v1250
        %v2314 = vcombine.high %v1248, %v1250
        %v2315 = vcombine.low %v1301, %v1303
        %v2316 = vcombine.high %v1301, %v1303
        %v2317 = vcombine.low %v1354, %v1356
        %v2318 = vcombine.high %v1354, %v1356
        %v2320 = vunpack.c.l.s4 1966171168
        %v2321 = vunpack.c.0.s8 %v2320
        %v2322 = vlaneseq
        %v2323 = vshrl.u32 %v2322, 7
        %v2324 = vsub.s32 %v2321, %v2323
        %v2325 = vrot.slane %v2311, %v2324
        %v2327 = vunpack.c.l.s4 1966171168
        %v2328 = vunpack.c.0.s8 %v2327
        %v2329 = vlaneseq
        %v2330 = vshrl.u32 %v2329, 7
        %v2331 = vsub.s32 %v2328, %v2330
        %v2332 = vrot.slane %v2312, %v2331
        %v2334 = vunpack.c.l.s4 1966171168
        %v2335 = vunpack.c.0.s8 %v2334
        %v2336 = vlaneseq
        %v2337 = vshrl.u32 %v2336, 7
        %v2338 = vsub.s32 %v2335, %v2337
        %v2339 = vrot.slane %v2313, %v2338
        %v2341 = vunpack.c.l.s4 1966171168
        %v2342 = vunpack.c.0.s8 %v2341
        %v2343 = vlaneseq
        %v2344 = vshrl.u32 %v2343, 7
        %v2345 = vsub.s32 %v2342, %v2344
        %v2346 = vrot.slane %v2314, %v2345
        %v2348 = vunpack.c.l.s4 1966171168
        %v2349 = vunpack.c.0.s8 %v2348
        %v2350 = vlaneseq
        %v2351 = vshrl.u32 %v2350, 7
        %v2352 = vsub.s32 %v2349, %v2351
        %v2353 = vrot.slane %v2315, %v2352
        %v2355 = vunpack.c.l.s4 1966171168
        %v2356 = vunpack.c.0.s8 %v2355
        %v2357 = vlaneseq
        %v2358 = vshrl.u32 %v2357, 7
        %v2359 = vsub.s32 %v2356, %v2358
        %v2360 = vrot.slane %v2316, %v2359
        %v2362 = vunpack.c.l.s4 1966171168
        %v2363 = vunpack.c.0.s8 %v2362
        %v2364 = vlaneseq
        %v2365 = vshrl.u32 %v2364, 7
        %v2366 = vsub.s32 %v2363, %v2365
        %v2367 = vrot.slane %v2317, %v2366
        %v2369 = vunpack.c.l.s4 1966171168
        %v2370 = vunpack.c.0.s8 %v2369
        %v2371 = vlaneseq
        %v2372 = vshrl.u32 %v2371, 7
        %v2373 = vsub.s32 %v2370, %v2372
        %v2374 = vrot.slane %v2318, %v2373
        %v2375 = vcombine.low %v2325, %v2339
        %v2376 = vcombine.high %v2325, %v2339
        %v2377 = vcombine.low %v2332, %v2346
        %v2378 = vcombine.high %v2332, %v2346
        %v2379 = vcombine.low %v2353, %v2367
        %v2380 = vcombine.high %v2353, %v2367
        %v2381 = vcombine.low %v2360, %v2374
        %v2382 = vcombine.high %v2360, %v2374
        %v2384 = vunpack.c.l.s4 1966171168
        %v2385 = vunpack.c.0.s8 %v2384
        %v2386 = vlaneseq
        %v2387 = vshrl.u32 %v2386, 7
        %v2388 = vsub.s32 %v2385, %v2387
        %v2389 = vrot.slane %v2375, %v2388
        %v2391 = vunpack.c.l.s4 1966171168
        %v2392 = vunpack.c.0.s8 %v2391
        %v2393 = vlaneseq
        %v2394 = vshrl.u32 %v2393, 7
        %v2395 = vsub.s32 %v2392, %v2394
        %v2396 = vrot.slane %v2377, %v2395
        %v2398 = vunpack.c.l.s4 1966171168
        %v2399 = vunpack.c.0.s8 %v2398
        %v2400 = vlaneseq
        %v2401 = vshrl.u32 %v2400, 7
        %v2402 = vsub.s32 %v2399, %v2401
        %v2403 = vrot.slane %v2376, %v2402
        %v2405 = vunpack.c.l.s4 1966171168
        %v2406 = vunpack.c.0.s8 %v2405
        %v2407 = vlaneseq
        %v2408 = vshrl.u32 %v2407, 7
        %v2409 = vsub.s32 %v2406, %v2408
        %v2410 = vrot.slane %v2378, %v2409
        %v2412 = vunpack.c.l.s4 1966171168
        %v2413 = vunpack.c.0.s8 %v2412
        %v2414 = vlaneseq
        %v2415 = vshrl.u32 %v2414, 7
        %v2416 = vsub.s32 %v2413, %v2415
        %v2417 = vrot.slane %v2379, %v2416
        %v2419 = vunpack.c.l.s4 1966171168
        %v2420 = vunpack.c.0.s8 %v2419
        %v2421 = vlaneseq
        %v2422 = vshrl.u32 %v2421, 7
        %v2423 = vsub.s32 %v2420, %v2422
        %v2424 = vrot.slane %v2381, %v2423
        %v2426 = vunpack.c.l.s4 1966171168
        %v2427 = vunpack.c.0.s8 %v2426
        %v2428 = vlaneseq
        %v2429 = vshrl.u32 %v2428, 7
        %v2430 = vsub.s32 %v2427, %v2429
        %v2431 = vrot.slane %v2380, %v2430
        %v2433 = vunpack.c.l.s4 1966171168
        %v2434 = vunpack.c.0.s8 %v2433
        %v2435 = vlaneseq
        %v2436 = vshrl.u32 %v2435, 7
        %v2437 = vsub.s32 %v2434, %v2436
        %v2438 = vrot.slane %v2382, %v2437
        %v2439 = vcombine.low %v2389, %v2417
        %v2440 = vcombine.high %v2389, %v2417
        %v2441 = vcombine.low %v2396, %v2424
        %v2442 = vcombine.low %v2403, %v2431
        %v2443 = vcombine.high %v2403, %v2431
        %v2444 = vcombine.low %v2410, %v2438
        %v2445 = vcombine.low %v1407, %v1409
        %v2446 = vcombine.high %v1407, %v1409
        %v2447 = vcombine.high %v1459, %v1459
        %v2449 = vunpack.c.l.s4 1966171168
        %v2450 = vunpack.c.0.s8 %v2449
        %v2451 = vlaneseq
        %v2452 = vshrl.u32 %v2451, 7
        %v2453 = vsub.s32 %v2450, %v2452
        %v2454 = vrot.slane %v2445, %v2453
        %v2456 = vunpack.c.l.s4 1966171168
        %v2457 = vunpack.c.0.s8 %v2456
        %v2458 = vlaneseq
        %v2459 = vshrl.u32 %v2458, 7
        %v2460 = vsub.s32 %v2457, %v2459
        %v2461 = vrot.slane %v2446, %v2460
        %v2463 = vunpack.c.l.s4 1966171168
        %v2464 = vunpack.c.0.s8 %v2463
        %v2465 = vlaneseq
        %v2466 = vshrl.u32 %v2465, 7
        %v2467 = vsub.s32 %v2464, %v2466
        %v2468 = vrot.slane %v1459, %v2467
        %v2470 = vunpack.c.l.s4 1966171168
        %v2471 = vunpack.c.0.s8 %v2470
        %v2472 = vlaneseq
        %v2473 = vshrl.u32 %v2472, 7
        %v2474 = vsub.s32 %v2471, %v2473
        %v2475 = vrot.slane %v2447, %v2474
        %v2476 = vcombine.low %v2454, %v2468
        %v2477 = vcombine.high %v2454, %v2468
        %v2478 = vcombine.low %v2461, %v2475
        %v2479 = vcombine.high %v2461, %v2475
        %v2481 = vunpack.c.l.s4 1966171168
        %v2482 = vunpack.c.0.s8 %v2481
        %v2483 = vlaneseq
        %v2484 = vshrl.u32 %v2483, 7
        %v2485 = vsub.s32 %v2482, %v2484
        %v2486 = vrot.slane %v2476, %v2485
        %v2488 = vunpack.c.l.s4 1966171168
        %v2489 = vunpack.c.0.s8 %v2488
        %v2490 = vlaneseq
        %v2491 = vshrl.u32 %v2490, 7
        %v2492 = vsub.s32 %v2489, %v2491
        %v2493 = vrot.slane %v2478, %v2492
        %v2495 = vunpack.c.l.s4 1966171168
        %v2496 = vunpack.c.0.s8 %v2495
        %v2497 = vlaneseq
        %v2498 = vshrl.u32 %v2497, 7
        %v2499 = vsub.s32 %v2496, %v2498
        %v2500 = vrot.slane %v2477, %v2499
        %v2502 = vunpack.c.l.s4 1966171168
        %v2503 = vunpack.c.0.s8 %v2502
        %v2504 = vlaneseq
        %v2505 = vshrl.u32 %v2504, 7
        %v2506 = vsub.s32 %v2503, %v2505
        %v2507 = vrot.slane %v2479, %v2506
        %v2508 = vcombine.high %v2486, %v2486
        %v2509 = vcombine.high %v2500, %v2500
        %v2561 = vcombine.low %v777, %v779
        %v2562 = vcombine.high %v777, %v779
        %v2563 = vcombine.low %v830, %v832
        %v2564 = vcombine.high %v830, %v832
        %v2565 = vcombine.low %v883, %v885
        %v2566 = vcombine.high %v883, %v885
        %v2567 = vcombine.low %v936, %v938
        %v2568 = vcombine.high %v936, %v938
        %v2570 = vunpack.c.l.s4 1966171168
        %v2571 = vunpack.c.0.s8 %v2570
        %v2572 = vlaneseq
        %v2573 = vshrl.u32 %v2572, 7
        %v2574 = vsub.s32 %v2571, %v2573
        %v2575 = vrot.slane %v2561, %v2574
        %v2577 = vunpack.c.l.s4 1966171168
        %v2578 = vunpack.c.0.s8 %v2577
        %v2579 = vlaneseq
        %v2580 = vshrl.u32 %v2579, 7
        %v2581 = vsub.s32 %v2578, %v2580
        %v2582 = vrot.slane %v2562, %v2581
        %v2584 = vunpack.c.l.s4 1966171168
        %v2585 = vunpack.c.0.s8 %v2584
        %v2586 = vlaneseq
        %v2587 = vshrl.u32 %v2586, 7
        %v2588 = vsub.s32 %v2585, %v2587
        %v2589 = vrot.slane %v2563, %v2588
        %v2591 = vunpack.c.l.s4 1966171168
        %v2592 = vunpack.c.0.s8 %v2591
        %v2593 = vlaneseq
        %v2594 = vshrl.u32 %v2593, 7
        %v2595 = vsub.s32 %v2592, %v2594
        %v2596 = vrot.slane %v2564, %v2595
        %v2598 = vunpack.c.l.s4 1966171168
        %v2599 = vunpack.c.0.s8 %v2598
        %v2600 = vlaneseq
        %v2601 = vshrl.u32 %v2600, 7
        %v2602 = vsub.s32 %v2599, %v2601
        %v2603 = vrot.slane %v2565, %v2602
        %v2605 = vunpack.c.l.s4 1966171168
        %v2606 = vunpack.c.0.s8 %v2605
        %v2607 = vlaneseq
        %v2608 = vshrl.u32 %v2607, 7
        %v2609 = vsub.s32 %v2606, %v2608
        %v2610 = vrot.slane %v2566, %v2609
        %v2612 = vunpack.c.l.s4 1966171168
        %v2613 = vunpack.c.0.s8 %v2612
        %v2614 = vlaneseq
        %v2615 = vshrl.u32 %v2614, 7
        %v2616 = vsub.s32 %v2613, %v2615
        %v2617 = vrot.slane %v2567, %v2616
        %v2619 = vunpack.c.l.s4 1966171168
        %v2620 = vunpack.c.0.s8 %v2619
        %v2621 = vlaneseq
        %v2622 = vshrl.u32 %v2621, 7
        %v2623 = vsub.s32 %v2620, %v2622
        %v2624 = vrot.slane %v2568, %v2623
        %v2625 = vcombine.low %v2575, %v2589
        %v2626 = vcombine.high %v2575, %v2589
        %v2627 = vcombine.low %v2582, %v2596
        %v2628 = vcombine.high %v2582, %v2596
        %v2629 = vcombine.low %v2603, %v2617
        %v2630 = vcombine.high %v2603, %v2617
        %v2631 = vcombine.low %v2610, %v2624
        %v2632 = vcombine.high %v2610, %v2624
        %v2634 = vunpack.c.l.s4 1966171168
        %v2635 = vunpack.c.0.s8 %v2634
        %v2636 = vlaneseq
        %v2637 = vshrl.u32 %v2636, 7
        %v2638 = vsub.s32 %v2635, %v2637
        %v2639 = vrot.slane %v2625, %v2638
        %v2641 = vunpack.c.l.s4 1966171168
        %v2642 = vunpack.c.0.s8 %v2641
        %v2643 = vlaneseq
        %v2644 = vshrl.u32 %v2643, 7
        %v2645 = vsub.s32 %v2642, %v2644
        %v2646 = vrot.slane %v2627, %v2645
        %v2648 = vunpack.c.l.s4 1966171168
        %v2649 = vunpack.c.0.s8 %v2648
        %v2650 = vlaneseq
        %v2651 = vshrl.u32 %v2650, 7
        %v2652 = vsub.s32 %v2649, %v2651
        %v2653 = vrot.slane %v2626, %v2652
        %v2655 = vunpack.c.l.s4 1966171168
        %v2656 = vunpack.c.0.s8 %v2655
        %v2657 = vlaneseq
        %v2658 = vshrl.u32 %v2657, 7
        %v2659 = vsub.s32 %v2656, %v2658
        %v2660 = vrot.slane %v2628, %v2659
        %v2662 = vunpack.c.l.s4 1966171168
        %v2663 = vunpack.c.0.s8 %v2662
        %v2664 = vlaneseq
        %v2665 = vshrl.u32 %v2664, 7
        %v2666 = vsub.s32 %v2663, %v2665
        %v2667 = vrot.slane %v2629, %v2666
        %v2669 = vunpack.c.l.s4 1966171168
        %v2670 = vunpack.c.0.s8 %v2669
        %v2671 = vlaneseq
        %v2672 = vshrl.u32 %v2671, 7
        %v2673 = vsub.s32 %v2670, %v2672
        %v2674 = vrot.slane %v2631, %v2673
        %v2676 = vunpack.c.l.s4 1966171168
        %v2677 = vunpack.c.0.s8 %v2676
        %v2678 = vlaneseq
        %v2679 = vshrl.u32 %v2678, 7
        %v2680 = vsub.s32 %v2677, %v2679
        %v2681 = vrot.slane %v2630, %v2680
        %v2683 = vunpack.c.l.s4 1966171168
        %v2684 = vunpack.c.0.s8 %v2683
        %v2685 = vlaneseq
        %v2686 = vshrl.u32 %v2685, 7
        %v2687 = vsub.s32 %v2684, %v2686
        %v2688 = vrot.slane %v2632, %v2687
        %v2689 = vcombine.low %v2639, %v2667
        %v2690 = vcombine.high %v2639, %v2667
        %v2691 = vcombine.low %v2646, %v2674
        %v2692 = vcombine.low %v2653, %v2681
        %v2693 = vcombine.high %v2653, %v2681
        %v2694 = vcombine.low %v2660, %v2688
        %v2695 = vcombine.low %v989, %v991
        %v2696 = vcombine.high %v989, %v991
        %v2697 = vcombine.low %v1042, %v1044
        %v2698 = vcombine.high %v1042, %v1044
        %v2699 = vcombine.low %v1095, %v1097
        %v2700 = vcombine.high %v1095, %v1097
        %v2701 = vcombine.low %v1148, %v1150
        %v2702 = vcombine.high %v1148, %v1150
        %v2704 = vunpack.c.l.s4 1966171168
        %v2705 = vunpack.c.0.s8 %v2704
        %v2706 = vlaneseq
        %v2707 = vshrl.u32 %v2706, 7
        %v2708 = vsub.s32 %v2705, %v2707
        %v2709 = vrot.slane %v2695, %v2708
        %v2711 = vunpack.c.l.s4 1966171168
        %v2712 = vunpack.c.0.s8 %v2711
        %v2713 = vlaneseq
        %v2714 = vshrl.u32 %v2713, 7
        %v2715 = vsub.s32 %v2712, %v2714
        %v2716 = vrot.slane %v2696, %v2715
        %v2718 = vunpack.c.l.s4 1966171168
        %v2719 = vunpack.c.0.s8 %v2718
        %v2720 = vlaneseq
        %v2721 = vshrl.u32 %v2720, 7
        %v2722 = vsub.s32 %v2719, %v2721
        %v2723 = vrot.slane %v2697, %v2722
        %v2725 = vunpack.c.l.s4 1966171168
        %v2726 = vunpack.c.0.s8 %v2725
        %v2727 = vlaneseq
        %v2728 = vshrl.u32 %v2727, 7
        %v2729 = vsub.s32 %v2726, %v2728
        %v2730 = vrot.slane %v2698, %v2729
        %v2732 = vunpack.c.l.s4 1966171168
        %v2733 = vunpack.c.0.s8 %v2732
        %v2734 = vlaneseq
        %v2735 = vshrl.u32 %v2734, 7
        %v2736 = vsub.s32 %v2733, %v2735
        %v2737 = vrot.slane %v2699, %v2736
        %v2739 = vunpack.c.l.s4 1966171168
        %v2740 = vunpack.c.0.s8 %v2739
        %v2741 = vlaneseq
        %v2742 = vshrl.u32 %v2741, 7
        %v2743 = vsub.s32 %v2740, %v2742
        %v2744 = vrot.slane %v2700, %v2743
        %v2746 = vunpack.c.l.s4 1966171168
        %v2747 = vunpack.c.0.s8 %v2746
        %v2748 = vlaneseq
        %v2749 = vshrl.u32 %v2748, 7
        %v2750 = vsub.s32 %v2747, %v2749
        %v2751 = vrot.slane %v2701, %v2750
        %v2753 = vunpack.c.l.s4 1966171168
        %v2754 = vunpack.c.0.s8 %v2753
        %v2755 = vlaneseq
        %v2756 = vshrl.u32 %v2755, 7
        %v2757 = vsub.s32 %v2754, %v2756
        %v2758 = vrot.slane %v2702, %v2757
        %v2759 = vcombine.low %v2709, %v2723
        %v2760 = vcombine.high %v2709, %v2723
        %v2761 = vcombine.low %v2716, %v2730
        %v2762 = vcombine.high %v2716, %v2730
        %v2763 = vcombine.low %v2737, %v2751
        %v2764 = vcombine.high %v2737, %v2751
        %v2765 = vcombine.low %v2744, %v2758
        %v2766 = vcombine.high %v2744, %v2758
        %v2768 = vunpack.c.l.s4 1966171168
        %v2769 = vunpack.c.0.s8 %v2768
        %v2770 = vlaneseq
        %v2771 = vshrl.u32 %v2770, 7
        %v2772 = vsub.s32 %v2769, %v2771
        %v2773 = vrot.slane %v2759, %v2772
        %v2775 = vunpack.c.l.s4 1966171168
        %v2776 = vunpack.c.0.s8 %v2775
        %v2777 = vlaneseq
        %v2778 = vshrl.u32 %v2777, 7
        %v2779 = vsub.s32 %v2776, %v2778
        %v2780 = vrot.slane %v2761, %v2779
        %v2782 = vunpack.c.l.s4 1966171168
        %v2783 = vunpack.c.0.s8 %v2782
        %v2784 = vlaneseq
        %v2785 = vshrl.u32 %v2784, 7
        %v2786 = vsub.s32 %v2783, %v2785
        %v2787 = vrot.slane %v2760, %v2786
        %v2789 = vunpack.c.l.s4 1966171168
        %v2790 = vunpack.c.0.s8 %v2789
        %v2791 = vlaneseq
        %v2792 = vshrl.u32 %v2791, 7
        %v2793 = vsub.s32 %v2790, %v2792
        %v2794 = vrot.slane %v2762, %v2793
        %v2796 = vunpack.c.l.s4 1966171168
        %v2797 = vunpack.c.0.s8 %v2796
        %v2798 = vlaneseq
        %v2799 = vshrl.u32 %v2798, 7
        %v2800 = vsub.s32 %v2797, %v2799
        %v2801 = vrot.slane %v2763, %v2800
        %v2803 = vunpack.c.l.s4 1966171168
        %v2804 = vunpack.c.0.s8 %v2803
        %v2805 = vlaneseq
        %v2806 = vshrl.u32 %v2805, 7
        %v2807 = vsub.s32 %v2804, %v2806
        %v2808 = vrot.slane %v2765, %v2807
        %v2810 = vunpack.c.l.s4 1966171168
        %v2811 = vunpack.c.0.s8 %v2810
        %v2812 = vlaneseq
        %v2813 = vshrl.u32 %v2812, 7
        %v2814 = vsub.s32 %v2811, %v2813
        %v2815 = vrot.slane %v2764, %v2814
        %v2817 = vunpack.c.l.s4 1966171168
        %v2818 = vunpack.c.0.s8 %v2817
        %v2819 = vlaneseq
        %v2820 = vshrl.u32 %v2819, 7
        %v2821 = vsub.s32 %v2818, %v2820
        %v2822 = vrot.slane %v2766, %v2821
        %v2823 = vcombine.low %v2773, %v2801
        %v2824 = vcombine.high %v2773, %v2801
        %v2825 = vcombine.low %v2780, %v2808
        %v2826 = vcombine.low %v2787, %v2815
        %v2827 = vcombine.high %v2787, %v2815
        %v2828 = vcombine.low %v2794, %v2822
        %v2829 = vcombine.low %v1201, %v1203
        %v2830 = vcombine.high %v1201, %v1203
        %v2831 = vcombine.low %v1254, %v1256
        %v2832 = vcombine.high %v1254, %v1256
        %v2833 = vcombine.low %v1307, %v1309
        %v2834 = vcombine.high %v1307, %v1309
        %v2835 = vcombine.low %v1360, %v1362
        %v2836 = vcombine.high %v1360, %v1362
        %v2838 = vunpack.c.l.s4 1966171168
        %v2839 = vunpack.c.0.s8 %v2838
        %v2840 = vlaneseq
        %v2841 = vshrl.u32 %v2840, 7
        %v2842 = vsub.s32 %v2839, %v2841
        %v2843 = vrot.slane %v2829, %v2842
        %v2845 = vunpack.c.l.s4 1966171168
        %v2846 = vunpack.c.0.s8 %v2845
        %v2847 = vlaneseq
        %v2848 = vshrl.u32 %v2847, 7
        %v2849 = vsub.s32 %v2846, %v2848
        %v2850 = vrot.slane %v2830, %v2849
        %v2852 = vunpack.c.l.s4 1966171168
        %v2853 = vunpack.c.0.s8 %v2852
        %v2854 = vlaneseq
        %v2855 = vshrl.u32 %v2854, 7
        %v2856 = vsub.s32 %v2853, %v2855
        %v2857 = vrot.slane %v2831, %v2856
        %v2859 = vunpack.c.l.s4 1966171168
        %v2860 = vunpack.c.0.s8 %v2859
        %v2861 = vlaneseq
        %v2862 = vshrl.u32 %v2861, 7
        %v2863 = vsub.s32 %v2860, %v2862
        %v2864 = vrot.slane %v2832, %v2863
        %v2866 = vunpack.c.l.s4 1966171168
        %v2867 = vunpack.c.0.s8 %v2866
        %v2868 = vlaneseq
        %v2869 = vshrl.u32 %v2868, 7
        %v2870 = vsub.s32 %v2867, %v2869
        %v2871 = vrot.slane %v2833, %v2870
        %v2873 = vunpack.c.l.s4 1966171168
        %v2874 = vunpack.c.0.s8 %v2873
        %v2875 = vlaneseq
        %v2876 = vshrl.u32 %v2875, 7
        %v2877 = vsub.s32 %v2874, %v2876
        %v2878 = vrot.slane %v2834, %v2877
        %v2880 = vunpack.c.l.s4 1966171168
        %v2881 = vunpack.c.0.s8 %v2880
        %v2882 = vlaneseq
        %v2883 = vshrl.u32 %v2882, 7
        %v2884 = vsub.s32 %v2881, %v2883
        %v2885 = vrot.slane %v2835, %v2884
        %v2887 = vunpack.c.l.s4 1966171168
        %v2888 = vunpack.c.0.s8 %v2887
        %v2889 = vlaneseq
        %v2890 = vshrl.u32 %v2889, 7
        %v2891 = vsub.s32 %v2888, %v2890
        %v2892 = vrot.slane %v2836, %v2891
        %v2893 = vcombine.low %v2843, %v2857
        %v2894 = vcombine.high %v2843, %v2857
        %v2895 = vcombine.low %v2850, %v2864
        %v2896 = vcombine.high %v2850, %v2864
        %v2897 = vcombine.low %v2871, %v2885
        %v2898 = vcombine.high %v2871, %v2885
        %v2899 = vcombine.low %v2878, %v2892
        %v2900 = vcombine.high %v2878, %v2892
        %v2902 = vunpack.c.l.s4 1966171168
        %v2903 = vunpack.c.0.s8 %v2902
        %v2904 = vlaneseq
        %v2905 = vshrl.u32 %v2904, 7
        %v2906 = vsub.s32 %v2903, %v2905
        %v2907 = vrot.slane %v2893, %v2906
        %v2909 = vunpack.c.l.s4 1966171168
        %v2910 = vunpack.c.0.s8 %v2909
        %v2911 = vlaneseq
        %v2912 = vshrl.u32 %v2911, 7
        %v2913 = vsub.s32 %v2910, %v2912
        %v2914 = vrot.slane %v2895, %v2913
        %v2916 = vunpack.c.l.s4 1966171168
        %v2917 = vunpack.c.0.s8 %v2916
        %v2918 = vlaneseq
        %v2919 = vshrl.u32 %v2918, 7
        %v2920 = vsub.s32 %v2917, %v2919
        %v2921 = vrot.slane %v2894, %v2920
        %v2923 = vunpack.c.l.s4 1966171168
        %v2924 = vunpack.c.0.s8 %v2923
        %v2925 = vlaneseq
        %v2926 = vshrl.u32 %v2925, 7
        %v2927 = vsub.s32 %v2924, %v2926
        %v2928 = vrot.slane %v2896, %v2927
        %v2930 = vunpack.c.l.s4 1966171168
        %v2931 = vunpack.c.0.s8 %v2930
        %v2932 = vlaneseq
        %v2933 = vshrl.u32 %v2932, 7
        %v2934 = vsub.s32 %v2931, %v2933
        %v2935 = vrot.slane %v2897, %v2934
        %v2937 = vunpack.c.l.s4 1966171168
        %v2938 = vunpack.c.0.s8 %v2937
        %v2939 = vlaneseq
        %v2940 = vshrl.u32 %v2939, 7
        %v2941 = vsub.s32 %v2938, %v2940
        %v2942 = vrot.slane %v2899, %v2941
        %v2944 = vunpack.c.l.s4 1966171168
        %v2945 = vunpack.c.0.s8 %v2944
        %v2946 = vlaneseq
        %v2947 = vshrl.u32 %v2946, 7
        %v2948 = vsub.s32 %v2945, %v2947
        %v2949 = vrot.slane %v2898, %v2948
        %v2951 = vunpack.c.l.s4 1966171168
        %v2952 = vunpack.c.0.s8 %v2951
        %v2953 = vlaneseq
        %v2954 = vshrl.u32 %v2953, 7
        %v2955 = vsub.s32 %v2952, %v2954
        %v2956 = vrot.slane %v2900, %v2955
        %v2957 = vcombine.low %v2907, %v2935
        %v2958 = vcombine.high %v2907, %v2935
        %v2959 = vcombine.low %v2914, %v2942
        %v2960 = vcombine.low %v2921, %v2949
        %v2961 = vcombine.high %v2921, %v2949
        %v2962 = vcombine.low %v2928, %v2956
        %v2963 = vcombine.low %v1413, %v1415
        %v2964 = vcombine.high %v1413, %v1415
        %v2965 = vcombine.high %v1464, %v1464
        %v2967 = vunpack.c.l.s4 1966171168
        %v2968 = vunpack.c.0.s8 %v2967
        %v2969 = vlaneseq
        %v2970 = vshrl.u32 %v2969, 7
        %v2971 = vsub.s32 %v2968, %v2970
        %v2972 = vrot.slane %v2963, %v2971
        %v2974 = vunpack.c.l.s4 1966171168
        %v2975 = vunpack.c.0.s8 %v2974
        %v2976 = vlaneseq
        %v2977 = vshrl.u32 %v2976, 7
        %v2978 = vsub.s32 %v2975, %v2977
        %v2979 = vrot.slane %v2964, %v2978
        %v2981 = vunpack.c.l.s4 1966171168
        %v2982 = vunpack.c.0.s8 %v2981
        %v2983 = vlaneseq
        %v2984 = vshrl.u32 %v2983, 7
        %v2985 = vsub.s32 %v2982, %v2984
        %v2986 = vrot.slane %v1464, %v2985
        %v2988 = vunpack.c.l.s4 1966171168
        %v2989 = vunpack.c.0.s8 %v2988
        %v2990 = vlaneseq
        %v2991 = vshrl.u32 %v2990, 7
        %v2992 = vsub.s32 %v2989, %v2991
        %v2993 = vrot.slane %v2965, %v2992
        %v2994 = vcombine.low %v2972, %v2986
        %v2995 = vcombine.high %v2972, %v2986
        %v2996 = vcombine.low %v2979, %v2993
        %v2997 = vcombine.high %v2979, %v2993
        %v2999 = vunpack.c.l.s4 1966171168
        %v3000 = vunpack.c.0.s8 %v2999
        %v3001 = vlaneseq
        %v3002 = vshrl.u32 %v3001, 7
        %v3003 = vsub.s32 %v3000, %v3002
        %v3004 = vrot.slane %v2994, %v3003
        %v3006 = vunpack.c.l.s4 1966171168
        %v3007 = vunpack.c.0.s8 %v3006
        %v3008 = vlaneseq
        %v3009 = vshrl.u32 %v3008, 7
        %v3010 = vsub.s32 %v3007, %v3009
        %v3011 = vrot.slane %v2996, %v3010
        %v3013 = vunpack.c.l.s4 1966171168
        %v3014 = vunpack.c.0.s8 %v3013
        %v3015 = vlaneseq
        %v3016 = vshrl.u32 %v3015, 7
        %v3017 = vsub.s32 %v3014, %v3016
        %v3018 = vrot.slane %v2995, %v3017
        %v3020 = vunpack.c.l.s4 1966171168
        %v3021 = vunpack.c.0.s8 %v3020
        %v3022 = vlaneseq
        %v3023 = vshrl.u32 %v3022, 7
        %v3024 = vsub.s32 %v3021, %v3023
        %v3025 = vrot.slane %v2997, %v3024
        %v3026 = vcombine.high %v3004, %v3004
        %v3027 = vcombine.high %v3018, %v3018
        %v3079 = vcombine.low %v781, %v783
        %v3080 = vcombine.high %v781, %v783
        %v3081 = vcombine.low %v834, %v836
        %v3082 = vcombine.high %v834, %v836
        %v3083 = vcombine.low %v887, %v889
        %v3084 = vcombine.high %v887, %v889
        %v3085 = vcombine.low %v940, %v942
        %v3086 = vcombine.high %v940, %v942
        %v3088 = vunpack.c.l.s4 1966171168
        %v3089 = vunpack.c.0.s8 %v3088
        %v3090 = vlaneseq
        %v3091 = vshrl.u32 %v3090, 7
        %v3092 = vsub.s32 %v3089, %v3091
        %v3093 = vrot.slane %v3079, %v3092
        %v3095 = vunpack.c.l.s4 1966171168
        %v3096 = vunpack.c.0.s8 %v3095
        %v3097 = vlaneseq
        %v3098 = vshrl.u32 %v3097, 7
        %v3099 = vsub.s32 %v3096, %v3098
        %v3100 = vrot.slane %v3080, %v3099
        %v3102 = vunpack.c.l.s4 1966171168
        %v3103 = vunpack.c.0.s8 %v3102
        %v3104 = vlaneseq
        %v3105 = vshrl.u32 %v3104, 7
        %v3106 = vsub.s32 %v3103, %v3105
        %v3107 = vrot.slane %v3081, %v3106
        %v3109 = vunpack.c.l.s4 1966171168
        %v3110 = vunpack.c.0.s8 %v3109
        %v3111 = vlaneseq
        %v3112 = vshrl.u32 %v3111, 7
        %v3113 = vsub.s32 %v3110, %v3112
        %v3114 = vrot.slane %v3082, %v3113
        %v3116 = vunpack.c.l.s4 1966171168
        %v3117 = vunpack.c.0.s8 %v3116
        %v3118 = vlaneseq
        %v3119 = vshrl.u32 %v3118, 7
        %v3120 = vsub.s32 %v3117, %v3119
        %v3121 = vrot.slane %v3083, %v3120
        %v3123 = vunpack.c.l.s4 1966171168
        %v3124 = vunpack.c.0.s8 %v3123
        %v3125 = vlaneseq
        %v3126 = vshrl.u32 %v3125, 7
        %v3127 = vsub.s32 %v3124, %v3126
        %v3128 = vrot.slane %v3084, %v3127
        %v3130 = vunpack.c.l.s4 1966171168
        %v3131 = vunpack.c.0.s8 %v3130
        %v3132 = vlaneseq
        %v3133 = vshrl.u32 %v3132, 7
        %v3134 = vsub.s32 %v3131, %v3133
        %v3135 = vrot.slane %v3085, %v3134
        %v3137 = vunpack.c.l.s4 1966171168
        %v3138 = vunpack.c.0.s8 %v3137
        %v3139 = vlaneseq
        %v3140 = vshrl.u32 %v3139, 7
        %v3141 = vsub.s32 %v3138, %v3140
        %v3142 = vrot.slane %v3086, %v3141
        %v3143 = vcombine.low %v3093, %v3107
        %v3144 = vcombine.high %v3093, %v3107
        %v3145 = vcombine.low %v3100, %v3114
        %v3146 = vcombine.high %v3100, %v3114
        %v3147 = vcombine.low %v3121, %v3135
        %v3148 = vcombine.high %v3121, %v3135
        %v3149 = vcombine.low %v3128, %v3142
        %v3150 = vcombine.high %v3128, %v3142
        %v3152 = vunpack.c.l.s4 1966171168
        %v3153 = vunpack.c.0.s8 %v3152
        %v3154 = vlaneseq
        %v3155 = vshrl.u32 %v3154, 7
        %v3156 = vsub.s32 %v3153, %v3155
        %v3157 = vrot.slane %v3143, %v3156
        %v3159 = vunpack.c.l.s4 1966171168
        %v3160 = vunpack.c.0.s8 %v3159
        %v3161 = vlaneseq
        %v3162 = vshrl.u32 %v3161, 7
        %v3163 = vsub.s32 %v3160, %v3162
        %v3164 = vrot.slane %v3145, %v3163
        %v3166 = vunpack.c.l.s4 1966171168
        %v3167 = vunpack.c.0.s8 %v3166
        %v3168 = vlaneseq
        %v3169 = vshrl.u32 %v3168, 7
        %v3170 = vsub.s32 %v3167, %v3169
        %v3171 = vrot.slane %v3144, %v3170
        %v3173 = vunpack.c.l.s4 1966171168
        %v3174 = vunpack.c.0.s8 %v3173
        %v3175 = vlaneseq
        %v3176 = vshrl.u32 %v3175, 7
        %v3177 = vsub.s32 %v3174, %v3176
        %v3178 = vrot.slane %v3146, %v3177
        %v3180 = vunpack.c.l.s4 1966171168
        %v3181 = vunpack.c.0.s8 %v3180
        %v3182 = vlaneseq
        %v3183 = vshrl.u32 %v3182, 7
        %v3184 = vsub.s32 %v3181, %v3183
        %v3185 = vrot.slane %v3147, %v3184
        %v3187 = vunpack.c.l.s4 1966171168
        %v3188 = vunpack.c.0.s8 %v3187
        %v3189 = vlaneseq
        %v3190 = vshrl.u32 %v3189, 7
        %v3191 = vsub.s32 %v3188, %v3190
        %v3192 = vrot.slane %v3149, %v3191
        %v3194 = vunpack.c.l.s4 1966171168
        %v3195 = vunpack.c.0.s8 %v3194
        %v3196 = vlaneseq
        %v3197 = vshrl.u32 %v3196, 7
        %v3198 = vsub.s32 %v3195, %v3197
        %v3199 = vrot.slane %v3148, %v3198
        %v3201 = vunpack.c.l.s4 1966171168
        %v3202 = vunpack.c.0.s8 %v3201
        %v3203 = vlaneseq
        %v3204 = vshrl.u32 %v3203, 7
        %v3205 = vsub.s32 %v3202, %v3204
        %v3206 = vrot.slane %v3150, %v3205
        %v3207 = vcombine.low %v3157, %v3185
        %v3208 = vcombine.high %v3157, %v3185
        %v3209 = vcombine.low %v3164, %v3192
        %v3210 = vcombine.low %v3171, %v3199
        %v3211 = vcombine.high %v3171, %v3199
        %v3212 = vcombine.low %v3178, %v3206
        %v3213 = vcombine.low %v993, %v995
        %v3214 = vcombine.high %v993, %v995
        %v3215 = vcombine.low %v1046, %v1048
        %v3216 = vcombine.high %v1046, %v1048
        %v3217 = vcombine.low %v1099, %v1101
        %v3218 = vcombine.high %v1099, %v1101
        %v3219 = vcombine.low %v1152, %v1154
        %v3220 = vcombine.high %v1152, %v1154
        %v3222 = vunpack.c.l.s4 1966171168
        %v3223 = vunpack.c.0.s8 %v3222
        %v3224 = vlaneseq
        %v3225 = vshrl.u32 %v3224, 7
        %v3226 = vsub.s32 %v3223, %v3225
        %v3227 = vrot.slane %v3213, %v3226
        %v3229 = vunpack.c.l.s4 1966171168
        %v3230 = vunpack.c.0.s8 %v3229
        %v3231 = vlaneseq
        %v3232 = vshrl.u32 %v3231, 7
        %v3233 = vsub.s32 %v3230, %v3232
        %v3234 = vrot.slane %v3214, %v3233
        %v3236 = vunpack.c.l.s4 1966171168
        %v3237 = vunpack.c.0.s8 %v3236
        %v3238 = vlaneseq
        %v3239 = vshrl.u32 %v3238, 7
        %v3240 = vsub.s32 %v3237, %v3239
        %v3241 = vrot.slane %v3215, %v3240
        %v3243 = vunpack.c.l.s4 1966171168
        %v3244 = vunpack.c.0.s8 %v3243
        %v3245 = vlaneseq
        %v3246 = vshrl.u32 %v3245, 7
        %v3247 = vsub.s32 %v3244, %v3246
        %v3248 = vrot.slane %v3216, %v3247
        %v3250 = vunpack.c.l.s4 1966171168
        %v3251 = vunpack.c.0.s8 %v3250
        %v3252 = vlaneseq
        %v3253 = vshrl.u32 %v3252, 7
        %v3254 = vsub.s32 %v3251, %v3253
        %v3255 = vrot.slane %v3217, %v3254
        %v3257 = vunpack.c.l.s4 1966171168
        %v3258 = vunpack.c.0.s8 %v3257
        %v3259 = vlaneseq
        %v3260 = vshrl.u32 %v3259, 7
        %v3261 = vsub.s32 %v3258, %v3260
        %v3262 = vrot.slane %v3218, %v3261
        %v3264 = vunpack.c.l.s4 1966171168
        %v3265 = vunpack.c.0.s8 %v3264
        %v3266 = vlaneseq
        %v3267 = vshrl.u32 %v3266, 7
        %v3268 = vsub.s32 %v3265, %v3267
        %v3269 = vrot.slane %v3219, %v3268
        %v3271 = vunpack.c.l.s4 1966171168
        %v3272 = vunpack.c.0.s8 %v3271
        %v3273 = vlaneseq
        %v3274 = vshrl.u32 %v3273, 7
        %v3275 = vsub.s32 %v3272, %v3274
        %v3276 = vrot.slane %v3220, %v3275
        %v3277 = vcombine.low %v3227, %v3241
        %v3278 = vcombine.high %v3227, %v3241
        %v3279 = vcombine.low %v3234, %v3248
        %v3280 = vcombine.high %v3234, %v3248
        %v3281 = vcombine.low %v3255, %v3269
        %v3282 = vcombine.high %v3255, %v3269
        %v3283 = vcombine.low %v3262, %v3276
        %v3284 = vcombine.high %v3262, %v3276
        %v3286 = vunpack.c.l.s4 1966171168
        %v3287 = vunpack.c.0.s8 %v3286
        %v3288 = vlaneseq
        %v3289 = vshrl.u32 %v3288, 7
        %v3290 = vsub.s32 %v3287, %v3289
        %v3291 = vrot.slane %v3277, %v3290
        %v3293 = vunpack.c.l.s4 1966171168
        %v3294 = vunpack.c.0.s8 %v3293
        %v3295 = vlaneseq
        %v3296 = vshrl.u32 %v3295, 7
        %v3297 = vsub.s32 %v3294, %v3296
        %v3298 = vrot.slane %v3279, %v3297
        %v3300 = vunpack.c.l.s4 1966171168
        %v3301 = vunpack.c.0.s8 %v3300
        %v3302 = vlaneseq
        %v3303 = vshrl.u32 %v3302, 7
        %v3304 = vsub.s32 %v3301, %v3303
        %v3305 = vrot.slane %v3278, %v3304
        %v3307 = vunpack.c.l.s4 1966171168
        %v3308 = vunpack.c.0.s8 %v3307
        %v3309 = vlaneseq
        %v3310 = vshrl.u32 %v3309, 7
        %v3311 = vsub.s32 %v3308, %v3310
        %v3312 = vrot.slane %v3280, %v3311
        %v3314 = vunpack.c.l.s4 1966171168
        %v3315 = vunpack.c.0.s8 %v3314
        %v3316 = vlaneseq
        %v3317 = vshrl.u32 %v3316, 7
        %v3318 = vsub.s32 %v3315, %v3317
        %v3319 = vrot.slane %v3281, %v3318
        %v3321 = vunpack.c.l.s4 1966171168
        %v3322 = vunpack.c.0.s8 %v3321
        %v3323 = vlaneseq
        %v3324 = vshrl.u32 %v3323, 7
        %v3325 = vsub.s32 %v3322, %v3324
        %v3326 = vrot.slane %v3283, %v3325
        %v3328 = vunpack.c.l.s4 1966171168
        %v3329 = vunpack.c.0.s8 %v3328
        %v3330 = vlaneseq
        %v3331 = vshrl.u32 %v3330, 7
        %v3332 = vsub.s32 %v3329, %v3331
        %v3333 = vrot.slane %v3282, %v3332
        %v3335 = vunpack.c.l.s4 1966171168
        %v3336 = vunpack.c.0.s8 %v3335
        %v3337 = vlaneseq
        %v3338 = vshrl.u32 %v3337, 7
        %v3339 = vsub.s32 %v3336, %v3338
        %v3340 = vrot.slane %v3284, %v3339
        %v3341 = vcombine.low %v3291, %v3319
        %v3342 = vcombine.high %v3291, %v3319
        %v3343 = vcombine.low %v3298, %v3326
        %v3344 = vcombine.low %v3305, %v3333
        %v3345 = vcombine.high %v3305, %v3333
        %v3346 = vcombine.low %v3312, %v3340
        %v3347 = vcombine.low %v1205, %v1207
        %v3348 = vcombine.high %v1205, %v1207
        %v3349 = vcombine.low %v1258, %v1260
        %v3350 = vcombine.high %v1258, %v1260
        %v3351 = vcombine.low %v1311, %v1313
        %v3352 = vcombine.high %v1311, %v1313
        %v3353 = vcombine.low %v1364, %v1366
        %v3354 = vcombine.high %v1364, %v1366
        %v3356 = vunpack.c.l.s4 1966171168
        %v3357 = vunpack.c.0.s8 %v3356
        %v3358 = vlaneseq
        %v3359 = vshrl.u32 %v3358, 7
        %v3360 = vsub.s32 %v3357, %v3359
        %v3361 = vrot.slane %v3347, %v3360
        %v3363 = vunpack.c.l.s4 1966171168
        %v3364 = vunpack.c.0.s8 %v3363
        %v3365 = vlaneseq
        %v3366 = vshrl.u32 %v3365, 7
        %v3367 = vsub.s32 %v3364, %v3366
        %v3368 = vrot.slane %v3348, %v3367
        %v3370 = vunpack.c.l.s4 1966171168
        %v3371 = vunpack.c.0.s8 %v3370
        %v3372 = vlaneseq
        %v3373 = vshrl.u32 %v3372, 7
        %v3374 = vsub.s32 %v3371, %v3373
        %v3375 = vrot.slane %v3349, %v3374
        %v3377 = vunpack.c.l.s4 1966171168
        %v3378 = vunpack.c.0.s8 %v3377
        %v3379 = vlaneseq
        %v3380 = vshrl.u32 %v3379, 7
        %v3381 = vsub.s32 %v3378, %v3380
        %v3382 = vrot.slane %v3350, %v3381
        %v3384 = vunpack.c.l.s4 1966171168
        %v3385 = vunpack.c.0.s8 %v3384
        %v3386 = vlaneseq
        %v3387 = vshrl.u32 %v3386, 7
        %v3388 = vsub.s32 %v3385, %v3387
        %v3389 = vrot.slane %v3351, %v3388
        %v3391 = vunpack.c.l.s4 1966171168
        %v3392 = vunpack.c.0.s8 %v3391
        %v3393 = vlaneseq
        %v3394 = vshrl.u32 %v3393, 7
        %v3395 = vsub.s32 %v3392, %v3394
        %v3396 = vrot.slane %v3352, %v3395
        %v3398 = vunpack.c.l.s4 1966171168
        %v3399 = vunpack.c.0.s8 %v3398
        %v3400 = vlaneseq
        %v3401 = vshrl.u32 %v3400, 7
        %v3402 = vsub.s32 %v3399, %v3401
        %v3403 = vrot.slane %v3353, %v3402
        %v3405 = vunpack.c.l.s4 1966171168
        %v3406 = vunpack.c.0.s8 %v3405
        %v3407 = vlaneseq
        %v3408 = vshrl.u32 %v3407, 7
        %v3409 = vsub.s32 %v3406, %v3408
        %v3410 = vrot.slane %v3354, %v3409
        %v3411 = vcombine.low %v3361, %v3375
        %v3412 = vcombine.high %v3361, %v3375
        %v3413 = vcombine.low %v3368, %v3382
        %v3414 = vcombine.high %v3368, %v3382
        %v3415 = vcombine.low %v3389, %v3403
        %v3416 = vcombine.high %v3389, %v3403
        %v3417 = vcombine.low %v3396, %v3410
        %v3418 = vcombine.high %v3396, %v3410
        %v3420 = vunpack.c.l.s4 1966171168
        %v3421 = vunpack.c.0.s8 %v3420
        %v3422 = vlaneseq
        %v3423 = vshrl.u32 %v3422, 7
        %v3424 = vsub.s32 %v3421, %v3423
        %v3425 = vrot.slane %v3411, %v3424
        %v3427 = vunpack.c.l.s4 1966171168
        %v3428 = vunpack.c.0.s8 %v3427
        %v3429 = vlaneseq
        %v3430 = vshrl.u32 %v3429, 7
        %v3431 = vsub.s32 %v3428, %v3430
        %v3432 = vrot.slane %v3413, %v3431
        %v3434 = vunpack.c.l.s4 1966171168
        %v3435 = vunpack.c.0.s8 %v3434
        %v3436 = vlaneseq
        %v3437 = vshrl.u32 %v3436, 7
        %v3438 = vsub.s32 %v3435, %v3437
        %v3439 = vrot.slane %v3412, %v3438
        %v3441 = vunpack.c.l.s4 1966171168
        %v3442 = vunpack.c.0.s8 %v3441
        %v3443 = vlaneseq
        %v3444 = vshrl.u32 %v3443, 7
        %v3445 = vsub.s32 %v3442, %v3444
        %v3446 = vrot.slane %v3414, %v3445
        %v3448 = vunpack.c.l.s4 1966171168
        %v3449 = vunpack.c.0.s8 %v3448
        %v3450 = vlaneseq
        %v3451 = vshrl.u32 %v3450, 7
        %v3452 = vsub.s32 %v3449, %v3451
        %v3453 = vrot.slane %v3415, %v3452
        %v3455 = vunpack.c.l.s4 1966171168
        %v3456 = vunpack.c.0.s8 %v3455
        %v3457 = vlaneseq
        %v3458 = vshrl.u32 %v3457, 7
        %v3459 = vsub.s32 %v3456, %v3458
        %v3460 = vrot.slane %v3417, %v3459
        %v3462 = vunpack.c.l.s4 1966171168
        %v3463 = vunpack.c.0.s8 %v3462
        %v3464 = vlaneseq
        %v3465 = vshrl.u32 %v3464, 7
        %v3466 = vsub.s32 %v3463, %v3465
        %v3467 = vrot.slane %v3416, %v3466
        %v3469 = vunpack.c.l.s4 1966171168
        %v3470 = vunpack.c.0.s8 %v3469
        %v3471 = vlaneseq
        %v3472 = vshrl.u32 %v3471, 7
        %v3473 = vsub.s32 %v3470, %v3472
        %v3474 = vrot.slane %v3418, %v3473
        %v3475 = vcombine.low %v3425, %v3453
        %v3476 = vcombine.high %v3425, %v3453
        %v3477 = vcombine.low %v3432, %v3460
        %v3478 = vcombine.low %v3439, %v3467
        %v3479 = vcombine.high %v3439, %v3467
        %v3480 = vcombine.low %v3446, %v3474
        %v3481 = vcombine.low %v1417, %v1419
        %v3482 = vcombine.high %v1417, %v1419
        %v3483 = vcombine.high %v1467, %v1467
        %v3485 = vunpack.c.l.s4 1966171168
        %v3486 = vunpack.c.0.s8 %v3485
        %v3487 = vlaneseq
        %v3488 = vshrl.u32 %v3487, 7
        %v3489 = vsub.s32 %v3486, %v3488
        %v3490 = vrot.slane %v3481, %v3489
        %v3492 = vunpack.c.l.s4 1966171168
        %v3493 = vunpack.c.0.s8 %v3492
        %v3494 = vlaneseq
        %v3495 = vshrl.u32 %v3494, 7
        %v3496 = vsub.s32 %v3493, %v3495
        %v3497 = vrot.slane %v3482, %v3496
        %v3499 = vunpack.c.l.s4 1966171168
        %v3500 = vunpack.c.0.s8 %v3499
        %v3501 = vlaneseq
        %v3502 = vshrl.u32 %v3501, 7
        %v3503 = vsub.s32 %v3500, %v3502
        %v3504 = vrot.slane %v1467, %v3503
        %v3506 = vunpack.c.l.s4 1966171168
        %v3507 = vunpack.c.0.s8 %v3506
        %v3508 = vlaneseq
        %v3509 = vshrl.u32 %v3508, 7
        %v3510 = vsub.s32 %v3507, %v3509
        %v3511 = vrot.slane %v3483, %v3510
        %v3512 = vcombine.low %v3490, %v3504
        %v3513 = vcombine.high %v3490, %v3504
        %v3514 = vcombine.low %v3497, %v3511
        %v3515 = vcombine.high %v3497, %v3511
        %v3517 = vunpack.c.l.s4 1966171168
        %v3518 = vunpack.c.0.s8 %v3517
        %v3519 = vlaneseq
        %v3520 = vshrl.u32 %v3519, 7
        %v3521 = vsub.s32 %v3518, %v3520
        %v3522 = vrot.slane %v3512, %v3521
        %v3524 = vunpack.c.l.s4 1966171168
        %v3525 = vunpack.c.0.s8 %v3524
        %v3526 = vlaneseq
        %v3527 = vshrl.u32 %v3526, 7
        %v3528 = vsub.s32 %v3525, %v3527
        %v3529 = vrot.slane %v3514, %v3528
        %v3531 = vunpack.c.l.s4 1966171168
        %v3532 = vunpack.c.0.s8 %v3531
        %v3533 = vlaneseq
        %v3534 = vshrl.u32 %v3533, 7
        %v3535 = vsub.s32 %v3532, %v3534
        %v3536 = vrot.slane %v3513, %v3535
        %v3538 = vunpack.c.l.s4 1966171168
        %v3539 = vunpack.c.0.s8 %v3538
        %v3540 = vlaneseq
        %v3541 = vshrl.u32 %v3540, 7
        %v3542 = vsub.s32 %v3539, %v3541
        %v3543 = vrot.slane %v3515, %v3542
        %v3544 = vcombine.high %v3522, %v3522
        %v3545 = vcombine.high %v3536, %v3536
        %v3598 = vlaneseq
        %v3599 = vshrl.u32 %v3598, 7
        %v3600 = vsub.s32 0, %v3599
        %v3601 = vrot.slane %v1470, %v3600
        %v3602 = vlaneseq
        %v3603 = vshrl.u32 %v3602, 7
        %v3604 = vsub.s32 4, %v3603
        %v3605 = vrot.slane %v1470, %v3604
        %v3606 = vlaneseq
        %v3607 = vshrl.u32 %v3606, 7
        %v3608 = vsub.s32 0, %v3607
        %v3609 = vrot.slane %v1471, %v3608
        %v3610 = vlaneseq
        %v3611 = vshrl.u32 %v3610, 7
        %v3612 = vsub.s32 4, %v3611
        %v3613 = vrot.slane %v1471, %v3612
        %v3614 = vlaneseq
        %v3615 = vshrl.u32 %v3614, 7
        %v3616 = vsub.s32 0, %v3615
        %v3617 = vrot.slane %v1472, %v3616
        %v3618 = vlaneseq
        %v3619 = vshrl.u32 %v3618, 7
        %v3620 = vsub.s32 4, %v3619
        %v3621 = vrot.slane %v1472, %v3620
        %v3622 = vlaneseq
        %v3623 = vshrl.u32 %v3622, 7
        %v3624 = vsub.s32 0, %v3623
        %v3625 = vrot.slane %v1473, %v3624
        %v3626 = vlaneseq
        %v3627 = vshrl.u32 %v3626, 7
        %v3628 = vsub.s32 4, %v3627
        %v3629 = vrot.slane %v1473, %v3628
        %v3630 = vlaneseq
        %v3631 = vshrl.u32 %v3630, 7
        %v3632 = vsub.s32 0, %v3631
        %v3633 = vrot.slane %v1474, %v3632
        %v3634 = vlaneseq
        %v3635 = vshrl.u32 %v3634, 7
        %v3636 = vsub.s32 4, %v3635
        %v3637 = vrot.slane %v1474, %v3636
        %v3638 = vlaneseq
        %v3639 = vshrl.u32 %v3638, 7
        %v3640 = vsub.s32 0, %v3639
        %v3641 = vrot.slane %v1475, %v3640
        %v3642 = vlaneseq
        %v3643 = vshrl.u32 %v3642, 7
        %v3644 = vsub.s32 4, %v3643
        %v3645 = vrot.slane %v1475, %v3644
        %v3646 = vlaneseq
        %v3647 = vshrl.u32 %v3646, 7
        %v3648 = vsub.s32 0, %v3647
        %v3649 = vrot.slane %v1476, %v3648
        %v3650 = vlaneseq
        %v3651 = vshrl.u32 %v3650, 7
        %v3652 = vsub.s32 4, %v3651
        %v3653 = vrot.slane %v1476, %v3652
        %v3654 = vlaneseq
        %v3655 = vshrl.u32 %v3654, 7
        %v3656 = vsub.s32 0, %v3655
        %v3657 = vrot.slane %v1477, %v3656
        %v3658 = vlaneseq
        %v3659 = vshrl.u32 %v3658, 7
        %v3660 = vsub.s32 4, %v3659
        %v3661 = vrot.slane %v1477, %v3660
        %v3662 = vlaneseq
        %v3663 = vshrl.u32 %v3662, 7
        %v3664 = vsub.s32 0, %v3663
        %v3665 = vrot.slane %v1478, %v3664
        %v3666 = vlaneseq
        %v3667 = vshrl.u32 %v3666, 7
        %v3668 = vsub.s32 4, %v3667
        %v3669 = vrot.slane %v1478, %v3668
        %v3670 = vlaneseq
        %v3671 = vshrl.u32 %v3670, 7
        %v3672 = vsub.s32 0, %v3671
        %v3673 = vrot.slane %v1479, %v3672
        %v3674 = vlaneseq
        %v3675 = vshrl.u32 %v3674, 7
        %v3676 = vsub.s32 4, %v3675
        %v3677 = vrot.slane %v1479, %v3676
        %v3678 = vlaneseq
        %v3679 = vshrl.u32 %v3678, 7
        %v3680 = vsub.s32 0, %v3679
        %v3681 = vrot.slane %v1480, %v3680
        %v3682 = vlaneseq
        %v3683 = vshrl.u32 %v3682, 7
        %v3684 = vsub.s32 4, %v3683
        %v3685 = vrot.slane %v1480, %v3684
        %v3686 = vlaneseq
        %v3687 = vshrl.u32 %v3686, 7
        %v3688 = vsub.s32 0, %v3687
        %v3689 = vrot.slane %v1481, %v3688
        %v3690 = vlaneseq
        %v3691 = vshrl.u32 %v3690, 7
        %v3692 = vsub.s32 4, %v3691
        %v3693 = vrot.slane %v1481, %v3692
        %v3694 = vlaneseq
        %v3695 = vshrl.u32 %v3694, 7
        %v3696 = vsub.s32 0, %v3695
        %v3697 = vrot.slane %v1482, %v3696
        %v3698 = vlaneseq
        %v3699 = vshrl.u32 %v3698, 7
        %v3700 = vsub.s32 4, %v3699
        %v3701 = vrot.slane %v1482, %v3700
        %v3702 = vlaneseq
        %v3703 = vshrl.u32 %v3702, 7
        %v3704 = vsub.s32 0, %v3703
        %v3705 = vrot.slane %v1483, %v3704
        %v3706 = vlaneseq
        %v3707 = vshrl.u32 %v3706, 7
        %v3708 = vsub.s32 0, %v3707
        %v3709 = vrot.slane %v1484, %v3708
        %v3710 = vlaneseq
        %v3711 = vshrl.u32 %v3710, 7
        %v3712 = vsub.s32 4, %v3711
        %v3713 = vrot.slane %v1484, %v3712
        %v3714 = vlaneseq
        %v3715 = vshrl.u32 %v3714, 7
        %v3716 = vsub.s32 0, %v3715
        %v3717 = vrot.slane %v1485, %v3716
        %v3718 = vlaneseq
        %v3719 = vshrl.u32 %v3718, 7
        %v3720 = vsub.s32 4, %v3719
        %v3721 = vrot.slane %v1485, %v3720
        %v3722 = vlaneseq
        %v3723 = vshrl.u32 %v3722, 7
        %v3724 = vsub.s32 0, %v3723
        %v3725 = vrot.slane %v1486, %v3724
        %v3726 = vlaneseq
        %v3727 = vshrl.u32 %v3726, 7
        %v3728 = vsub.s32 4, %v3727
        %v3729 = vrot.slane %v1486, %v3728
        %v3730 = vlaneseq
        %v3731 = vshrl.u32 %v3730, 7
        %v3732 = vsub.s32 0, %v3731
        %v3733 = vrot.slane %v1487, %v3732
        %v3734 = vlaneseq
        %v3735 = vshrl.u32 %v3734, 7
        %v3736 = vsub.s32 4, %v3735
        %v3737 = vrot.slane %v1487, %v3736
        %v3738 = vlaneseq
        %v3739 = vshrl.u32 %v3738, 7
        %v3740 = vsub.s32 0, %v3739
        %v3741 = vrot.slane %v1488, %v3740
        %v3742 = vlaneseq
        %v3743 = vshrl.u32 %v3742, 7
        %v3744 = vsub.s32 4, %v3743
        %v3745 = vrot.slane %v1488, %v3744
        %v3746 = vlaneseq
        %v3747 = vshrl.u32 %v3746, 7
        %v3748 = vsub.s32 0, %v3747
        %v3749 = vrot.slane %v1489, %v3748
        %v3750 = vlaneseq
        %v3751 = vshrl.u32 %v3750, 7
        %v3752 = vsub.s32 4, %v3751
        %v3753 = vrot.slane %v1489, %v3752
        %v3754 = vlaneseq
        %v3755 = vshrl.u32 %v3754, 7
        %v3756 = vsub.s32 0, %v3755
        %v3757 = vrot.slane %v1490, %v3756
        %v3758 = vlaneseq
        %v3759 = vshrl.u32 %v3758, 7
        %v3760 = vsub.s32 4, %v3759
        %v3761 = vrot.slane %v1490, %v3760
        %v3762 = vlaneseq
        %v3763 = vshrl.u32 %v3762, 7
        %v3764 = vsub.s32 0, %v3763
        %v3765 = vrot.slane %v1491, %v3764
        %v3766 = vlaneseq
        %v3767 = vshrl.u32 %v3766, 7
        %v3768 = vsub.s32 4, %v3767
        %v3769 = vrot.slane %v1491, %v3768
        %v3770 = vlaneseq
        %v3771 = vshrl.u32 %v3770, 7
        %v3772 = vsub.s32 0, %v3771
        %v3773 = vrot.slane %v1492, %v3772
        %v3774 = vlaneseq
        %v3775 = vshrl.u32 %v3774, 7
        %v3776 = vsub.s32 4, %v3775
        %v3777 = vrot.slane %v1492, %v3776
        %v3778 = vlaneseq
        %v3779 = vshrl.u32 %v3778, 7
        %v3780 = vsub.s32 0, %v3779
        %v3781 = vrot.slane %v1493, %v3780
        %v3782 = vlaneseq
        %v3783 = vshrl.u32 %v3782, 7
        %v3784 = vsub.s32 4, %v3783
        %v3785 = vrot.slane %v1493, %v3784
        %v3786 = vlaneseq
        %v3787 = vshrl.u32 %v3786, 7
        %v3788 = vsub.s32 0, %v3787
        %v3789 = vrot.slane %v1494, %v3788
        %v3790 = vlaneseq
        %v3791 = vshrl.u32 %v3790, 7
        %v3792 = vsub.s32 4, %v3791
        %v3793 = vrot.slane %v1494, %v3792
        %v3794 = vlaneseq
        %v3795 = vshrl.u32 %v3794, 7
        %v3796 = vsub.s32 0, %v3795
        %v3797 = vrot.slane %v1495, %v3796
        %v3798 = vlaneseq
        %v3799 = vshrl.u32 %v3798, 7
        %v3800 = vsub.s32 4, %v3799
        %v3801 = vrot.slane %v1495, %v3800
        %v3802 = vlaneseq
        %v3803 = vshrl.u32 %v3802, 7
        %v3804 = vsub.s32 0, %v3803
        %v3805 = vrot.slane %v1496, %v3804
        %v3806 = vlaneseq
        %v3807 = vshrl.u32 %v3806, 7
        %v3808 = vsub.s32 4, %v3807
        %v3809 = vrot.slane %v1496, %v3808
        %v3810 = vlaneseq
        %v3811 = vshrl.u32 %v3810, 7
        %v3812 = vsub.s32 0, %v3811
        %v3813 = vrot.slane %v1497, %v3812
        %v3868 = vlaneseq
        %v3869 = vshrl.u32 %v3868, 7
        %v3870 = vsub.s32 0, %v3869
        %v3871 = vrot.slane %v3601, %v3870
        %v3872 = vlaneseq
        %v3873 = vshrl.u32 %v3872, 7
        %v3874 = vsub.s32 0, %v3873
        %v3875 = vrot.slane %v3605, %v3874
        %v3876 = vlaneseq
        %v3877 = vshrl.u32 %v3876, 7
        %v3878 = vsub.s32 0, %v3877
        %v3879 = vrot.slane %v3609, %v3878
        %v3880 = vlaneseq
        %v3881 = vshrl.u32 %v3880, 7
        %v3882 = vsub.s32 0, %v3881
        %v3883 = vrot.slane %v3613, %v3882
        %v3884 = vlaneseq
        %v3885 = vshrl.u32 %v3884, 7
        %v3886 = vsub.s32 0, %v3885
        %v3887 = vrot.slane %v3617, %v3886
        %v3888 = vlaneseq
        %v3889 = vshrl.u32 %v3888, 7
        %v3890 = vsub.s32 0, %v3889
        %v3891 = vrot.slane %v3621, %v3890
        %v3892 = vlaneseq
        %v3893 = vshrl.u32 %v3892, 7
        %v3894 = vsub.s32 0, %v3893
        %v3895 = vrot.slane %v3625, %v3894
        %v3896 = vlaneseq
        %v3897 = vshrl.u32 %v3896, 7
        %v3898 = vsub.s32 0, %v3897
        %v3899 = vrot.slane %v3629, %v3898
        %v3900 = vlaneseq
        %v3901 = vshrl.u32 %v3900, 7
        %v3902 = vsub.s32 0, %v3901
        %v3903 = vrot.slane %v3633, %v3902
        %v3904 = vlaneseq
        %v3905 = vshrl.u32 %v3904, 7
        %v3906 = vsub.s32 0, %v3905
        %v3907 = vrot.slane %v3637, %v3906
        %v3908 = vlaneseq
        %v3909 = vshrl.u32 %v3908, 7
        %v3910 = vsub.s32 0, %v3909
        %v3911 = vrot.slane %v3641, %v3910
        %v3912 = vlaneseq
        %v3913 = vshrl.u32 %v3912, 7
        %v3914 = vsub.s32 0, %v3913
        %v3915 = vrot.slane %v3645, %v3914
        %v3916 = vlaneseq
        %v3917 = vshrl.u32 %v3916, 7
        %v3918 = vsub.s32 0, %v3917
        %v3919 = vrot.slane %v3649, %v3918
        %v3920 = vlaneseq
        %v3921 = vshrl.u32 %v3920, 7
        %v3922 = vsub.s32 0, %v3921
        %v3923 = vrot.slane %v3653, %v3922
        %v3924 = vlaneseq
        %v3925 = vshrl.u32 %v3924, 7
        %v3926 = vsub.s32 0, %v3925
        %v3927 = vrot.slane %v3657, %v3926
        %v3928 = vlaneseq
        %v3929 = vshrl.u32 %v3928, 7
        %v3930 = vsub.s32 0, %v3929
        %v3931 = vrot.slane %v3661, %v3930
        %v3932 = vlaneseq
        %v3933 = vshrl.u32 %v3932, 7
        %v3934 = vsub.s32 0, %v3933
        %v3935 = vrot.slane %v3665, %v3934
        %v3936 = vlaneseq
        %v3937 = vshrl.u32 %v3936, 7
        %v3938 = vsub.s32 0, %v3937
        %v3939 = vrot.slane %v3669, %v3938
        %v3940 = vlaneseq
        %v3941 = vshrl.u32 %v3940, 7
        %v3942 = vsub.s32 0, %v3941
        %v3943 = vrot.slane %v3673, %v3942
        %v3944 = vlaneseq
        %v3945 = vshrl.u32 %v3944, 7
        %v3946 = vsub.s32 0, %v3945
        %v3947 = vrot.slane %v3677, %v3946
        %v3948 = vlaneseq
        %v3949 = vshrl.u32 %v3948, 7
        %v3950 = vsub.s32 0, %v3949
        %v3951 = vrot.slane %v3681, %v3950
        %v3952 = vlaneseq
        %v3953 = vshrl.u32 %v3952, 7
        %v3954 = vsub.s32 0, %v3953
        %v3955 = vrot.slane %v3685, %v3954
        %v3956 = vlaneseq
        %v3957 = vshrl.u32 %v3956, 7
        %v3958 = vsub.s32 0, %v3957
        %v3959 = vrot.slane %v3689, %v3958
        %v3960 = vlaneseq
        %v3961 = vshrl.u32 %v3960, 7
        %v3962 = vsub.s32 0, %v3961
        %v3963 = vrot.slane %v3693, %v3962
        %v3964 = vlaneseq
        %v3965 = vshrl.u32 %v3964, 7
        %v3966 = vsub.s32 0, %v3965
        %v3967 = vrot.slane %v3697, %v3966
        %v3968 = vlaneseq
        %v3969 = vshrl.u32 %v3968, 7
        %v3970 = vsub.s32 0, %v3969
        %v3971 = vrot.slane %v3701, %v3970
        %v3972 = vlaneseq
        %v3973 = vshrl.u32 %v3972, 7
        %v3974 = vsub.s32 0, %v3973
        %v3975 = vrot.slane %v3705, %v3974
        %v3976 = vlaneseq
        %v3977 = vshrl.u32 %v3976, 7
        %v3978 = vsub.s32 0, %v3977
        %v3979 = vrot.slane %v3709, %v3978
        %v3980 = vlaneseq
        %v3981 = vshrl.u32 %v3980, 7
        %v3982 = vsub.s32 0, %v3981
        %v3983 = vrot.slane %v3713, %v3982
        %v3984 = vlaneseq
        %v3985 = vshrl.u32 %v3984, 7
        %v3986 = vsub.s32 0, %v3985
        %v3987 = vrot.slane %v3717, %v3986
        %v3988 = vlaneseq
        %v3989 = vshrl.u32 %v3988, 7
        %v3990 = vsub.s32 0, %v3989
        %v3991 = vrot.slane %v3721, %v3990
        %v3992 = vlaneseq
        %v3993 = vshrl.u32 %v3992, 7
        %v3994 = vsub.s32 0, %v3993
        %v3995 = vrot.slane %v3725, %v3994
        %v3996 = vlaneseq
        %v3997 = vshrl.u32 %v3996, 7
        %v3998 = vsub.s32 0, %v3997
        %v3999 = vrot.slane %v3729, %v3998
        %v4000 = vlaneseq
        %v4001 = vshrl.u32 %v4000, 7
        %v4002 = vsub.s32 0, %v4001
        %v4003 = vrot.slane %v3733, %v4002
        %v4004 = vlaneseq
        %v4005 = vshrl.u32 %v4004, 7
        %v4006 = vsub.s32 0, %v4005
        %v4007 = vrot.slane %v3737, %v4006
        %v4008 = vlaneseq
        %v4009 = vshrl.u32 %v4008, 7
        %v4010 = vsub.s32 0, %v4009
        %v4011 = vrot.slane %v3741, %v4010
        %v4012 = vlaneseq
        %v4013 = vshrl.u32 %v4012, 7
        %v4014 = vsub.s32 0, %v4013
        %v4015 = vrot.slane %v3745, %v4014
        %v4016 = vlaneseq
        %v4017 = vshrl.u32 %v4016, 7
        %v4018 = vsub.s32 0, %v4017
        %v4019 = vrot.slane %v3749, %v4018
        %v4020 = vlaneseq
        %v4021 = vshrl.u32 %v4020, 7
        %v4022 = vsub.s32 0, %v4021
        %v4023 = vrot.slane %v3753, %v4022
        %v4024 = vlaneseq
        %v4025 = vshrl.u32 %v4024, 7
        %v4026 = vsub.s32 0, %v4025
        %v4027 = vrot.slane %v3757, %v4026
        %v4028 = vlaneseq
        %v4029 = vshrl.u32 %v4028, 7
        %v4030 = vsub.s32 0, %v4029
        %v4031 = vrot.slane %v3761, %v4030
        %v4032 = vlaneseq
        %v4033 = vshrl.u32 %v4032, 7
        %v4034 = vsub.s32 0, %v4033
        %v4035 = vrot.slane %v3765, %v4034
        %v4036 = vlaneseq
        %v4037 = vshrl.u32 %v4036, 7
        %v4038 = vsub.s32 0, %v4037
        %v4039 = vrot.slane %v3769, %v4038
        %v4040 = vlaneseq
        %v4041 = vshrl.u32 %v4040, 7
        %v4042 = vsub.s32 0, %v4041
        %v4043 = vrot.slane %v3773, %v4042
        %v4044 = vlaneseq
        %v4045 = vshrl.u32 %v4044, 7
        %v4046 = vsub.s32 0, %v4045
        %v4047 = vrot.slane %v3777, %v4046
        %v4048 = vlaneseq
        %v4049 = vshrl.u32 %v4048, 7
        %v4050 = vsub.s32 0, %v4049
        %v4051 = vrot.slane %v3781, %v4050
        %v4052 = vlaneseq
        %v4053 = vshrl.u32 %v4052, 7
        %v4054 = vsub.s32 0, %v4053
        %v4055 = vrot.slane %v3785, %v4054
        %v4056 = vlaneseq
        %v4057 = vshrl.u32 %v4056, 7
        %v4058 = vsub.s32 0, %v4057
        %v4059 = vrot.slane %v3789, %v4058
        %v4060 = vlaneseq
        %v4061 = vshrl.u32 %v4060, 7
        %v4062 = vsub.s32 0, %v4061
        %v4063 = vrot.slane %v3793, %v4062
        %v4064 = vlaneseq
        %v4065 = vshrl.u32 %v4064, 7
        %v4066 = vsub.s32 0, %v4065
        %v4067 = vrot.slane %v3797, %v4066
        %v4068 = vlaneseq
        %v4069 = vshrl.u32 %v4068, 7
        %v4070 = vsub.s32 0, %v4069
        %v4071 = vrot.slane %v3801, %v4070
        %v4072 = vlaneseq
        %v4073 = vshrl.u32 %v4072, 7
        %v4074 = vsub.s32 0, %v4073
        %v4075 = vrot.slane %v3805, %v4074
        %v4076 = vlaneseq
        %v4077 = vshrl.u32 %v4076, 7
        %v4078 = vsub.s32 0, %v4077
        %v4079 = vrot.slane %v3809, %v4078
        %v4080 = vlaneseq
        %v4081 = vshrl.u32 %v4080, 7
        %v4082 = vsub.s32 0, %v4081
        %v4083 = vrot.slane %v3813, %v4082
        %v4138 = vcombine.low %v3871, %v3875
        %v4139 = vcombine.low %v3879, %v3883
        %v4140 = vcombine.low %v3887, %v3891
        %v4141 = vcombine.low %v3895, %v3899
        %v4143 = vunpack.c.l.s4 1966171168
        %v4144 = vunpack.c.0.s8 %v4143
        %v4145 = vlaneseq
        %v4146 = vshrl.u32 %v4145, 7
        %v4147 = vsub.s32 %v4144, %v4146
        %v4148 = vrot.slane %v4138, %v4147
        %v4150 = vunpack.c.l.s4 1966171168
        %v4151 = vunpack.c.0.s8 %v4150
        %v4152 = vlaneseq
        %v4153 = vshrl.u32 %v4152, 7
        %v4154 = vsub.s32 %v4151, %v4153
        %v4155 = vrot.slane %v4139, %v4154
        %v4157 = vunpack.c.l.s4 1966171168
        %v4158 = vunpack.c.0.s8 %v4157
        %v4159 = vlaneseq
        %v4160 = vshrl.u32 %v4159, 7
        %v4161 = vsub.s32 %v4158, %v4160
        %v4162 = vrot.slane %v4140, %v4161
        %v4164 = vunpack.c.l.s4 1966171168
        %v4165 = vunpack.c.0.s8 %v4164
        %v4166 = vlaneseq
        %v4167 = vshrl.u32 %v4166, 7
        %v4168 = vsub.s32 %v4165, %v4167
        %v4169 = vrot.slane %v4141, %v4168
        %v4170 = vcombine.low %v4148, %v4155
        %v4171 = vcombine.high %v4148, %v4155
        %v4172 = vcombine.low %v4162, %v4169
        %v4173 = vcombine.high %v4162, %v4169
        %v4175 = vunpack.c.l.s4 1966171168
        %v4176 = vunpack.c.0.s8 %v4175
        %v4177 = vlaneseq
        %v4178 = vshrl.u32 %v4177, 7
        %v4179 = vsub.s32 %v4176, %v4178
        %v4180 = vrot.slane %v4170, %v4179
        %v4182 = vunpack.c.l.s4 1966171168
        %v4183 = vunpack.c.0.s8 %v4182
        %v4184 = vlaneseq
        %v4185 = vshrl.u32 %v4184, 7
        %v4186 = vsub.s32 %v4183, %v4185
        %v4187 = vrot.slane %v4171, %v4186
        %v4189 = vunpack.c.l.s4 1966171168
        %v4190 = vunpack.c.0.s8 %v4189
        %v4191 = vlaneseq
        %v4192 = vshrl.u32 %v4191, 7
        %v4193 = vsub.s32 %v4190, %v4192
        %v4194 = vrot.slane %v4172, %v4193
        %v4196 = vunpack.c.l.s4 1966171168
        %v4197 = vunpack.c.0.s8 %v4196
        %v4198 = vlaneseq
        %v4199 = vshrl.u32 %v4198, 7
        %v4200 = vsub.s32 %v4197, %v4199
        %v4201 = vrot.slane %v4173, %v4200
        %v4202 = vcombine.low %v4180, %v4194
        %v4203 = vcombine.high %v4180, %v4194
        %v4204 = vcombine.low %v4187, %v4201
        %v4205 = vcombine.low %v3903, %v3907
        %v4206 = vcombine.low %v3911, %v3915
        %v4207 = vcombine.low %v3919, %v3923
        %v4208 = vcombine.low %v3927, %v3931
        %v4210 = vunpack.c.l.s4 1966171168
        %v4211 = vunpack.c.0.s8 %v4210
        %v4212 = vlaneseq
        %v4213 = vshrl.u32 %v4212, 7
        %v4214 = vsub.s32 %v4211, %v4213
        %v4215 = vrot.slane %v4205, %v4214
        %v4217 = vunpack.c.l.s4 1966171168
        %v4218 = vunpack.c.0.s8 %v4217
        %v4219 = vlaneseq
        %v4220 = vshrl.u32 %v4219, 7
        %v4221 = vsub.s32 %v4218, %v4220
        %v4222 = vrot.slane %v4206, %v4221
        %v4224 = vunpack.c.l.s4 1966171168
        %v4225 = vunpack.c.0.s8 %v4224
        %v4226 = vlaneseq
        %v4227 = vshrl.u32 %v4226, 7
        %v4228 = vsub.s32 %v4225, %v4227
        %v4229 = vrot.slane %v4207, %v4228
        %v4231 = vunpack.c.l.s4 1966171168
        %v4232 = vunpack.c.0.s8 %v4231
        %v4233 = vlaneseq
        %v4234 = vshrl.u32 %v4233, 7
        %v4235 = vsub.s32 %v4232, %v4234
        %v4236 = vrot.slane %v4208, %v4235
        %v4237 = vcombine.low %v4215, %v4222
        %v4238 = vcombine.high %v4215, %v4222
        %v4239 = vcombine.low %v4229, %v4236
        %v4240 = vcombine.high %v4229, %v4236
        %v4242 = vunpack.c.l.s4 1966171168
        %v4243 = vunpack.c.0.s8 %v4242
        %v4244 = vlaneseq
        %v4245 = vshrl.u32 %v4244, 7
        %v4246 = vsub.s32 %v4243, %v4245
        %v4247 = vrot.slane %v4237, %v4246
        %v4249 = vunpack.c.l.s4 1966171168
        %v4250 = vunpack.c.0.s8 %v4249
        %v4251 = vlaneseq
        %v4252 = vshrl.u32 %v4251, 7
        %v4253 = vsub.s32 %v4250, %v4252
        %v4254 = vrot.slane %v4238, %v4253
        %v4256 = vunpack.c.l.s4 1966171168
        %v4257 = vunpack.c.0.s8 %v4256
        %v4258 = vlaneseq
        %v4259 = vshrl.u32 %v4258, 7
        %v4260 = vsub.s32 %v4257, %v4259
        %v4261 = vrot.slane %v4239, %v4260
        %v4263 = vunpack.c.l.s4 1966171168
        %v4264 = vunpack.c.0.s8 %v4263
        %v4265 = vlaneseq
        %v4266 = vshrl.u32 %v4265, 7
        %v4267 = vsub.s32 %v4264, %v4266
        %v4268 = vrot.slane %v4240, %v4267
        %v4269 = vcombine.low %v4247, %v4261
        %v4270 = vcombine.high %v4247, %v4261
        %v4271 = vcombine.low %v4254, %v4268
        %v4272 = vcombine.low %v3935, %v3939
        %v4273 = vcombine.low %v3943, %v3947
        %v4274 = vcombine.low %v3951, %v3955
        %v4275 = vcombine.low %v3959, %v3963
        %v4277 = vunpack.c.l.s4 1966171168
        %v4278 = vunpack.c.0.s8 %v4277
        %v4279 = vlaneseq
        %v4280 = vshrl.u32 %v4279, 7
        %v4281 = vsub.s32 %v4278, %v4280
        %v4282 = vrot.slane %v4272, %v4281
        %v4284 = vunpack.c.l.s4 1966171168
        %v4285 = vunpack.c.0.s8 %v4284
        %v4286 = vlaneseq
        %v4287 = vshrl.u32 %v4286, 7
        %v4288 = vsub.s32 %v4285, %v4287
        %v4289 = vrot.slane %v4273, %v4288
        %v4291 = vunpack.c.l.s4 1966171168
        %v4292 = vunpack.c.0.s8 %v4291
        %v4293 = vlaneseq
        %v4294 = vshrl.u32 %v4293, 7
        %v4295 = vsub.s32 %v4292, %v4294
        %v4296 = vrot.slane %v4274, %v4295
        %v4298 = vunpack.c.l.s4 1966171168
        %v4299 = vunpack.c.0.s8 %v4298
        %v4300 = vlaneseq
        %v4301 = vshrl.u32 %v4300, 7
        %v4302 = vsub.s32 %v4299, %v4301
        %v4303 = vrot.slane %v4275, %v4302
        %v4304 = vcombine.low %v4282, %v4289
        %v4305 = vcombine.high %v4282, %v4289
        %v4306 = vcombine.low %v4296, %v4303
        %v4307 = vcombine.high %v4296, %v4303
        %v4309 = vunpack.c.l.s4 1966171168
        %v4310 = vunpack.c.0.s8 %v4309
        %v4311 = vlaneseq
        %v4312 = vshrl.u32 %v4311, 7
        %v4313 = vsub.s32 %v4310, %v4312
        %v4314 = vrot.slane %v4304, %v4313
        %v4316 = vunpack.c.l.s4 1966171168
        %v4317 = vunpack.c.0.s8 %v4316
        %v4318 = vlaneseq
        %v4319 = vshrl.u32 %v4318, 7
        %v4320 = vsub.s32 %v4317, %v4319
        %v4321 = vrot.slane %v4305, %v4320
        %v4323 = vunpack.c.l.s4 1966171168
        %v4324 = vunpack.c.0.s8 %v4323
        %v4325 = vlaneseq
        %v4326 = vshrl.u32 %v4325, 7
        %v4327 = vsub.s32 %v4324, %v4326
        %v4328 = vrot.slane %v4306, %v4327
        %v4330 = vunpack.c.l.s4 1966171168
        %v4331 = vunpack.c.0.s8 %v4330
        %v4332 = vlaneseq
        %v4333 = vshrl.u32 %v4332, 7
        %v4334 = vsub.s32 %v4331, %v4333
        %v4335 = vrot.slane %v4307, %v4334
        %v4336 = vcombine.low %v4314, %v4328
        %v4337 = vcombine.high %v4314, %v4328
        %v4338 = vcombine.low %v4321, %v4335
        %v4339 = vcombine.low %v3967, %v3971
        %v4341 = vunpack.c.l.s4 1966171168
        %v4342 = vunpack.c.0.s8 %v4341
        %v4343 = vlaneseq
        %v4344 = vshrl.u32 %v4343, 7
        %v4345 = vsub.s32 %v4342, %v4344
        %v4346 = vrot.slane %v4339, %v4345
        %v4348 = vunpack.c.l.s4 1966171168
        %v4349 = vunpack.c.0.s8 %v4348
        %v4350 = vlaneseq
        %v4351 = vshrl.u32 %v4350, 7
        %v4352 = vsub.s32 %v4349, %v4351
        %v4353 = vrot.slane %v3975, %v4352
        %v4354 = vcombine.low %v4346, %v4353
        %v4355 = vcombine.high %v4346, %v4353
        %v4357 = vunpack.c.l.s4 1966171168
        %v4358 = vunpack.c.0.s8 %v4357
        %v4359 = vlaneseq
        %v4360 = vshrl.u32 %v4359, 7
        %v4361 = vsub.s32 %v4358, %v4360
        %v4362 = vrot.slane %v4354, %v4361
        %v4364 = vunpack.c.l.s4 1966171168
        %v4365 = vunpack.c.0.s8 %v4364
        %v4366 = vlaneseq
        %v4367 = vshrl.u32 %v4366, 7
        %v4368 = vsub.s32 %v4365, %v4367
        %v4369 = vrot.slane %v4355, %v4368
        %v4370 = vcombine.high %v4362, %v4362
        %v4371 = vcombine.low %v3979, %v3983
        %v4372 = vcombine.low %v3987, %v3991
        %v4373 = vcombine.low %v3995, %v3999
        %v4374 = vcombine.low %v4003, %v4007
        %v4376 = vunpack.c.l.s4 1966171168
        %v4377 = vunpack.c.0.s8 %v4376
        %v4378 = vlaneseq
        %v4379 = vshrl.u32 %v4378, 7
        %v4380 = vsub.s32 %v4377, %v4379
        %v4381 = vrot.slane %v4371, %v4380
        %v4383 = vunpack.c.l.s4 1966171168
        %v4384 = vunpack.c.0.s8 %v4383
        %v4385 = vlaneseq
        %v4386 = vshrl.u32 %v4385, 7
        %v4387 = vsub.s32 %v4384, %v4386
        %v4388 = vrot.slane %v4372, %v4387
        %v4390 = vunpack.c.l.s4 1966171168
        %v4391 = vunpack.c.0.s8 %v4390
        %v4392 = vlaneseq
        %v4393 = vshrl.u32 %v4392, 7
        %v4394 = vsub.s32 %v4391, %v4393
        %v4395 = vrot.slane %v4373, %v4394
        %v4397 = vunpack.c.l.s4 1966171168
        %v4398 = vunpack.c.0.s8 %v4397
        %v4399 = vlaneseq
        %v4400 = vshrl.u32 %v4399, 7
        %v4401 = vsub.s32 %v4398, %v4400
        %v4402 = vrot.slane %v4374, %v4401
        %v4403 = vcombine.low %v4381, %v4388
        %v4404 = vcombine.high %v4381, %v4388
        %v4405 = vcombine.low %v4395, %v4402
        %v4406 = vcombine.high %v4395, %v4402
        %v4408 = vunpack.c.l.s4 1966171168
        %v4409 = vunpack.c.0.s8 %v4408
        %v4410 = vlaneseq
        %v4411 = vshrl.u32 %v4410, 7
        %v4412 = vsub.s32 %v4409, %v4411
        %v4413 = vrot.slane %v4403, %v4412
        %v4415 = vunpack.c.l.s4 1966171168
        %v4416 = vunpack.c.0.s8 %v4415
        %v4417 = vlaneseq
        %v4418 = vshrl.u32 %v4417, 7
        %v4419 = vsub.s32 %v4416, %v4418
        %v4420 = vrot.slane %v4404, %v4419
        %v4422 = vunpack.c.l.s4 1966171168
        %v4423 = vunpack.c.0.s8 %v4422
        %v4424 = vlaneseq
        %v4425 = vshrl.u32 %v4424, 7
        %v4426 = vsub.s32 %v4423, %v4425
        %v4427 = vrot.slane %v4405, %v4426
        %v4429 = vunpack.c.l.s4 1966171168
        %v4430 = vunpack.c.0.s8 %v4429
        %v4431 = vlaneseq
        %v4432 = vshrl.u32 %v4431, 7
        %v4433 = vsub.s32 %v4430, %v4432
        %v4434 = vrot.slane %v4406, %v4433
        %v4435 = vcombine.low %v4413, %v4427
        %v4436 = vcombine.high %v4413, %v4427
        %v4437 = vcombine.low %v4420, %v4434
        %v4438 = vcombine.low %v4011, %v4015
        %v4439 = vcombine.low %v4019, %v4023
        %v4440 = vcombine.low %v4027, %v4031
        %v4441 = vcombine.low %v4035, %v4039
        %v4443 = vunpack.c.l.s4 1966171168
        %v4444 = vunpack.c.0.s8 %v4443
        %v4445 = vlaneseq
        %v4446 = vshrl.u32 %v4445, 7
        %v4447 = vsub.s32 %v4444, %v4446
        %v4448 = vrot.slane %v4438, %v4447
        %v4450 = vunpack.c.l.s4 1966171168
        %v4451 = vunpack.c.0.s8 %v4450
        %v4452 = vlaneseq
        %v4453 = vshrl.u32 %v4452, 7
        %v4454 = vsub.s32 %v4451, %v4453
        %v4455 = vrot.slane %v4439, %v4454
        %v4457 = vunpack.c.l.s4 1966171168
        %v4458 = vunpack.c.0.s8 %v4457
        %v4459 = vlaneseq
        %v4460 = vshrl.u32 %v4459, 7
        %v4461 = vsub.s32 %v4458, %v4460
        %v4462 = vrot.slane %v4440, %v4461
        %v4464 = vunpack.c.l.s4 1966171168
        %v4465 = vunpack.c.0.s8 %v4464
        %v4466 = vlaneseq
        %v4467 = vshrl.u32 %v4466, 7
        %v4468 = vsub.s32 %v4465, %v4467
        %v4469 = vrot.slane %v4441, %v4468
        %v4470 = vcombine.low %v4448, %v4455
        %v4471 = vcombine.high %v4448, %v4455
        %v4472 = vcombine.low %v4462, %v4469
        %v4473 = vcombine.high %v4462, %v4469
        %v4475 = vunpack.c.l.s4 1966171168
        %v4476 = vunpack.c.0.s8 %v4475
        %v4477 = vlaneseq
        %v4478 = vshrl.u32 %v4477, 7
        %v4479 = vsub.s32 %v4476, %v4478
        %v4480 = vrot.slane %v4470, %v4479
        %v4482 = vunpack.c.l.s4 1966171168
        %v4483 = vunpack.c.0.s8 %v4482
        %v4484 = vlaneseq
        %v4485 = vshrl.u32 %v4484, 7
        %v4486 = vsub.s32 %v4483, %v4485
        %v4487 = vrot.slane %v4471, %v4486
        %v4489 = vunpack.c.l.s4 1966171168
        %v4490 = vunpack.c.0.s8 %v4489
        %v4491 = vlaneseq
        %v4492 = vshrl.u32 %v4491, 7
        %v4493 = vsub.s32 %v4490, %v4492
        %v4494 = vrot.slane %v4472, %v4493
        %v4496 = vunpack.c.l.s4 1966171168
        %v4497 = vunpack.c.0.s8 %v4496
        %v4498 = vlaneseq
        %v4499 = vshrl.u32 %v4498, 7
        %v4500 = vsub.s32 %v4497, %v4499
        %v4501 = vrot.slane %v4473, %v4500
        %v4502 = vcombine.low %v4480, %v4494
        %v4503 = vcombine.high %v4480, %v4494
        %v4504 = vcombine.low %v4487, %v4501
        %v4505 = vcombine.low %v4043, %v4047
        %v4506 = vcombine.low %v4051, %v4055
        %v4507 = vcombine.low %v4059, %v4063
        %v4508 = vcombine.low %v4067, %v4071
        %v4510 = vunpack.c.l.s4 1966171168
        %v4511 = vunpack.c.0.s8 %v4510
        %v4512 = vlaneseq
        %v4513 = vshrl.u32 %v4512, 7
        %v4514 = vsub.s32 %v4511, %v4513
        %v4515 = vrot.slane %v4505, %v4514
        %v4517 = vunpack.c.l.s4 1966171168
        %v4518 = vunpack.c.0.s8 %v4517
        %v4519 = vlaneseq
        %v4520 = vshrl.u32 %v4519, 7
        %v4521 = vsub.s32 %v4518, %v4520
        %v4522 = vrot.slane %v4506, %v4521
        %v4524 = vunpack.c.l.s4 1966171168
        %v4525 = vunpack.c.0.s8 %v4524
        %v4526 = vlaneseq
        %v4527 = vshrl.u32 %v4526, 7
        %v4528 = vsub.s32 %v4525, %v4527
        %v4529 = vrot.slane %v4507, %v4528
        %v4531 = vunpack.c.l.s4 1966171168
        %v4532 = vunpack.c.0.s8 %v4531
        %v4533 = vlaneseq
        %v4534 = vshrl.u32 %v4533, 7
        %v4535 = vsub.s32 %v4532, %v4534
        %v4536 = vrot.slane %v4508, %v4535
        %v4537 = vcombine.low %v4515, %v4522
        %v4538 = vcombine.high %v4515, %v4522
        %v4539 = vcombine.low %v4529, %v4536
        %v4540 = vcombine.high %v4529, %v4536
        %v4542 = vunpack.c.l.s4 1966171168
        %v4543 = vunpack.c.0.s8 %v4542
        %v4544 = vlaneseq
        %v4545 = vshrl.u32 %v4544, 7
        %v4546 = vsub.s32 %v4543, %v4545
        %v4547 = vrot.slane %v4537, %v4546
        %v4549 = vunpack.c.l.s4 1966171168
        %v4550 = vunpack.c.0.s8 %v4549
        %v4551 = vlaneseq
        %v4552 = vshrl.u32 %v4551, 7
        %v4553 = vsub.s32 %v4550, %v4552
        %v4554 = vrot.slane %v4538, %v4553
        %v4556 = vunpack.c.l.s4 1966171168
        %v4557 = vunpack.c.0.s8 %v4556
        %v4558 = vlaneseq
        %v4559 = vshrl.u32 %v4558, 7
        %v4560 = vsub.s32 %v4557, %v4559
        %v4561 = vrot.slane %v4539, %v4560
        %v4563 = vunpack.c.l.s4 1966171168
        %v4564 = vunpack.c.0.s8 %v4563
        %v4565 = vlaneseq
        %v4566 = vshrl.u32 %v4565, 7
        %v4567 = vsub.s32 %v4564, %v4566
        %v4568 = vrot.slane %v4540, %v4567
        %v4569 = vcombine.low %v4547, %v4561
        %v4570 = vcombine.high %v4547, %v4561
        %v4571 = vcombine.low %v4554, %v4568
        %v4572 = vcombine.low %v4075, %v4079
        %v4574 = vunpack.c.l.s4 1966171168
        %v4575 = vunpack.c.0.s8 %v4574
        %v4576 = vlaneseq
        %v4577 = vshrl.u32 %v4576, 7
        %v4578 = vsub.s32 %v4575, %v4577
        %v4579 = vrot.slane %v4572, %v4578
        %v4581 = vunpack.c.l.s4 1966171168
        %v4582 = vunpack.c.0.s8 %v4581
        %v4583 = vlaneseq
        %v4584 = vshrl.u32 %v4583, 7
        %v4585 = vsub.s32 %v4582, %v4584
        %v4586 = vrot.slane %v4083, %v4585
        %v4587 = vcombine.low %v4579, %v4586
        %v4588 = vcombine.high %v4579, %v4586
        %v4590 = vunpack.c.l.s4 1966171168
        %v4591 = vunpack.c.0.s8 %v4590
        %v4592 = vlaneseq
        %v4593 = vshrl.u32 %v4592, 7
        %v4594 = vsub.s32 %v4591, %v4593
        %v4595 = vrot.slane %v4587, %v4594
        %v4597 = vunpack.c.l.s4 1966171168
        %v4598 = vunpack.c.0.s8 %v4597
        %v4599 = vlaneseq
        %v4600 = vshrl.u32 %v4599, 7
        %v4601 = vsub.s32 %v4598, %v4600
        %v4602 = vrot.slane %v4588, %v4601
        %v4603 = vcombine.high %v4595, %v4595
        %v4628 = vmul.f32 %v1653, %v4202
        %v4629 = vmul.f32 %v1787, %v4269
        %v4630 = vmul.f32 %v1921, %v4336
        %v4631 = vmul.f32 %v1968, %v4362
        %v4632 = vmul.f32 %v1656, %v4204
        %v4633 = vmul.f32 %v1790, %v4271
        %v4634 = vmul.f32 %v1924, %v4338
        %v4635 = vmul.f32 %v1982, %v4369
        %v4636 = vmul.f32 %v1654, %v4203
        %v4637 = vmul.f32 %v1788, %v4270
        %v4638 = vmul.f32 %v1922, %v4337
        %v4639 = vmul.f32 %v1990, %v4370
        %v4640 = vmul.f32 %v1657, %v4435
        %v4641 = vmul.f32 %v1791, %v4502
        %v4642 = vmul.f32 %v1925, %v4569
        %v4643 = vmul.f32 %v1991, %v4595
        %v4644 = vmul.f32 %v1655, %v4437
        %v4645 = vmul.f32 %v1789, %v4504
        %v4646 = vmul.f32 %v1923, %v4571
        %v4647 = vmul.f32 %v1975, %v4602
        %v4648 = vmul.f32 %v1658, %v4436
        %v4649 = vmul.f32 %v1792, %v4503
        %v4650 = vmul.f32 %v1926, %v4570
        %v4651 = vmul.f32 %v1989, %v4603
        %v4652 = vlaneseq
        %v4653 = vshrl.u32 %v4652, 7
        %v4654 = vsub.s32 1, %v4653
        %v4655 = vrot.slane %v1470, %v4654
        %v4656 = vlaneseq
        %v4657 = vshrl.u32 %v4656, 7
        %v4658 = vsub.s32 5, %v4657
        %v4659 = vrot.slane %v1470, %v4658
        %v4660 = vlaneseq
        %v4661 = vshrl.u32 %v4660, 7
        %v4662 = vsub.s32 1, %v4661
        %v4663 = vrot.slane %v1471, %v4662
        %v4664 = vlaneseq
        %v4665 = vshrl.u32 %v4664, 7
        %v4666 = vsub.s32 5, %v4665
        %v4667 = vrot.slane %v1471, %v4666
        %v4668 = vlaneseq
        %v4669 = vshrl.u32 %v4668, 7
        %v4670 = vsub.s32 1, %v4669
        %v4671 = vrot.slane %v1472, %v4670
        %v4672 = vlaneseq
        %v4673 = vshrl.u32 %v4672, 7
        %v4674 = vsub.s32 5, %v4673
        %v4675 = vrot.slane %v1472, %v4674
        %v4676 = vlaneseq
        %v4677 = vshrl.u32 %v4676, 7
        %v4678 = vsub.s32 1, %v4677
        %v4679 = vrot.slane %v1473, %v4678
        %v4680 = vlaneseq
        %v4681 = vshrl.u32 %v4680, 7
        %v4682 = vsub.s32 5, %v4681
        %v4683 = vrot.slane %v1473, %v4682
        %v4684 = vlaneseq
        %v4685 = vshrl.u32 %v4684, 7
        %v4686 = vsub.s32 1, %v4685
        %v4687 = vrot.slane %v1474, %v4686
        %v4688 = vlaneseq
        %v4689 = vshrl.u32 %v4688, 7
        %v4690 = vsub.s32 5, %v4689
        %v4691 = vrot.slane %v1474, %v4690
        %v4692 = vlaneseq
        %v4693 = vshrl.u32 %v4692, 7
        %v4694 = vsub.s32 1, %v4693
        %v4695 = vrot.slane %v1475, %v4694
        %v4696 = vlaneseq
        %v4697 = vshrl.u32 %v4696, 7
        %v4698 = vsub.s32 5, %v4697
        %v4699 = vrot.slane %v1475, %v4698
        %v4700 = vlaneseq
        %v4701 = vshrl.u32 %v4700, 7
        %v4702 = vsub.s32 1, %v4701
        %v4703 = vrot.slane %v1476, %v4702
        %v4704 = vlaneseq
        %v4705 = vshrl.u32 %v4704, 7
        %v4706 = vsub.s32 5, %v4705
        %v4707 = vrot.slane %v1476, %v4706
        %v4708 = vlaneseq
        %v4709 = vshrl.u32 %v4708, 7
        %v4710 = vsub.s32 1, %v4709
        %v4711 = vrot.slane %v1477, %v4710
        %v4712 = vlaneseq
        %v4713 = vshrl.u32 %v4712, 7
        %v4714 = vsub.s32 5, %v4713
        %v4715 = vrot.slane %v1477, %v4714
        %v4716 = vlaneseq
        %v4717 = vshrl.u32 %v4716, 7
        %v4718 = vsub.s32 1, %v4717
        %v4719 = vrot.slane %v1478, %v4718
        %v4720 = vlaneseq
        %v4721 = vshrl.u32 %v4720, 7
        %v4722 = vsub.s32 5, %v4721
        %v4723 = vrot.slane %v1478, %v4722
        %v4724 = vlaneseq
        %v4725 = vshrl.u32 %v4724, 7
        %v4726 = vsub.s32 1, %v4725
        %v4727 = vrot.slane %v1479, %v4726
        %v4728 = vlaneseq
        %v4729 = vshrl.u32 %v4728, 7
        %v4730 = vsub.s32 5, %v4729
        %v4731 = vrot.slane %v1479, %v4730
        %v4732 = vlaneseq
        %v4733 = vshrl.u32 %v4732, 7
        %v4734 = vsub.s32 1, %v4733
        %v4735 = vrot.slane %v1480, %v4734
        %v4736 = vlaneseq
        %v4737 = vshrl.u32 %v4736, 7
        %v4738 = vsub.s32 5, %v4737
        %v4739 = vrot.slane %v1480, %v4738
        %v4740 = vlaneseq
        %v4741 = vshrl.u32 %v4740, 7
        %v4742 = vsub.s32 1, %v4741
        %v4743 = vrot.slane %v1481, %v4742
        %v4744 = vlaneseq
        %v4745 = vshrl.u32 %v4744, 7
        %v4746 = vsub.s32 5, %v4745
        %v4747 = vrot.slane %v1481, %v4746
        %v4748 = vlaneseq
        %v4749 = vshrl.u32 %v4748, 7
        %v4750 = vsub.s32 1, %v4749
        %v4751 = vrot.slane %v1482, %v4750
        %v4752 = vlaneseq
        %v4753 = vshrl.u32 %v4752, 7
        %v4754 = vsub.s32 5, %v4753
        %v4755 = vrot.slane %v1482, %v4754
        %v4756 = vlaneseq
        %v4757 = vshrl.u32 %v4756, 7
        %v4758 = vsub.s32 1, %v4757
        %v4759 = vrot.slane %v1483, %v4758
        %v4760 = vlaneseq
        %v4761 = vshrl.u32 %v4760, 7
        %v4762 = vsub.s32 1, %v4761
        %v4763 = vrot.slane %v1484, %v4762
        %v4764 = vlaneseq
        %v4765 = vshrl.u32 %v4764, 7
        %v4766 = vsub.s32 5, %v4765
        %v4767 = vrot.slane %v1484, %v4766
        %v4768 = vlaneseq
        %v4769 = vshrl.u32 %v4768, 7
        %v4770 = vsub.s32 1, %v4769
        %v4771 = vrot.slane %v1485, %v4770
        %v4772 = vlaneseq
        %v4773 = vshrl.u32 %v4772, 7
        %v4774 = vsub.s32 5, %v4773
        %v4775 = vrot.slane %v1485, %v4774
        %v4776 = vlaneseq
        %v4777 = vshrl.u32 %v4776, 7
        %v4778 = vsub.s32 1, %v4777
        %v4779 = vrot.slane %v1486, %v4778
        %v4780 = vlaneseq
        %v4781 = vshrl.u32 %v4780, 7
        %v4782 = vsub.s32 5, %v4781
        %v4783 = vrot.slane %v1486, %v4782
        %v4784 = vlaneseq
        %v4785 = vshrl.u32 %v4784, 7
        %v4786 = vsub.s32 1, %v4785
        %v4787 = vrot.slane %v1487, %v4786
        %v4788 = vlaneseq
        %v4789 = vshrl.u32 %v4788, 7
        %v4790 = vsub.s32 5, %v4789
        %v4791 = vrot.slane %v1487, %v4790
        %v4792 = vlaneseq
        %v4793 = vshrl.u32 %v4792, 7
        %v4794 = vsub.s32 1, %v4793
        %v4795 = vrot.slane %v1488, %v4794
        %v4796 = vlaneseq
        %v4797 = vshrl.u32 %v4796, 7
        %v4798 = vsub.s32 5, %v4797
        %v4799 = vrot.slane %v1488, %v4798
        %v4800 = vlaneseq
        %v4801 = vshrl.u32 %v4800, 7
        %v4802 = vsub.s32 1, %v4801
        %v4803 = vrot.slane %v1489, %v4802
        %v4804 = vlaneseq
        %v4805 = vshrl.u32 %v4804, 7
        %v4806 = vsub.s32 5, %v4805
        %v4807 = vrot.slane %v1489, %v4806
        %v4808 = vlaneseq
        %v4809 = vshrl.u32 %v4808, 7
        %v4810 = vsub.s32 1, %v4809
        %v4811 = vrot.slane %v1490, %v4810
        %v4812 = vlaneseq
        %v4813 = vshrl.u32 %v4812, 7
        %v4814 = vsub.s32 5, %v4813
        %v4815 = vrot.slane %v1490, %v4814
        %v4816 = vlaneseq
        %v4817 = vshrl.u32 %v4816, 7
        %v4818 = vsub.s32 1, %v4817
        %v4819 = vrot.slane %v1491, %v4818
        %v4820 = vlaneseq
        %v4821 = vshrl.u32 %v4820, 7
        %v4822 = vsub.s32 5, %v4821
        %v4823 = vrot.slane %v1491, %v4822
        %v4824 = vlaneseq
        %v4825 = vshrl.u32 %v4824, 7
        %v4826 = vsub.s32 1, %v4825
        %v4827 = vrot.slane %v1492, %v4826
        %v4828 = vlaneseq
        %v4829 = vshrl.u32 %v4828, 7
        %v4830 = vsub.s32 5, %v4829
        %v4831 = vrot.slane %v1492, %v4830
        %v4832 = vlaneseq
        %v4833 = vshrl.u32 %v4832, 7
        %v4834 = vsub.s32 1, %v4833
        %v4835 = vrot.slane %v1493, %v4834
        %v4836 = vlaneseq
        %v4837 = vshrl.u32 %v4836, 7
        %v4838 = vsub.s32 5, %v4837
        %v4839 = vrot.slane %v1493, %v4838
        %v4840 = vlaneseq
        %v4841 = vshrl.u32 %v4840, 7
        %v4842 = vsub.s32 1, %v4841
        %v4843 = vrot.slane %v1494, %v4842
        %v4844 = vlaneseq
        %v4845 = vshrl.u32 %v4844, 7
        %v4846 = vsub.s32 5, %v4845
        %v4847 = vrot.slane %v1494, %v4846
        %v4848 = vlaneseq
        %v4849 = vshrl.u32 %v4848, 7
        %v4850 = vsub.s32 1, %v4849
        %v4851 = vrot.slane %v1495, %v4850
        %v4852 = vlaneseq
        %v4853 = vshrl.u32 %v4852, 7
        %v4854 = vsub.s32 5, %v4853
        %v4855 = vrot.slane %v1495, %v4854
        %v4856 = vlaneseq
        %v4857 = vshrl.u32 %v4856, 7
        %v4858 = vsub.s32 1, %v4857
        %v4859 = vrot.slane %v1496, %v4858
        %v4860 = vlaneseq
        %v4861 = vshrl.u32 %v4860, 7
        %v4862 = vsub.s32 5, %v4861
        %v4863 = vrot.slane %v1496, %v4862
        %v4864 = vlaneseq
        %v4865 = vshrl.u32 %v4864, 7
        %v4866 = vsub.s32 1, %v4865
        %v4867 = vrot.slane %v1497, %v4866
        %v4922 = vlaneseq
        %v4923 = vshrl.u32 %v4922, 7
        %v4924 = vsub.s32 1, %v4923
        %v4925 = vrot.slane %v4655, %v4924
        %v4926 = vlaneseq
        %v4927 = vshrl.u32 %v4926, 7
        %v4928 = vsub.s32 1, %v4927
        %v4929 = vrot.slane %v4659, %v4928
        %v4930 = vlaneseq
        %v4931 = vshrl.u32 %v4930, 7
        %v4932 = vsub.s32 1, %v4931
        %v4933 = vrot.slane %v4663, %v4932
        %v4934 = vlaneseq
        %v4935 = vshrl.u32 %v4934, 7
        %v4936 = vsub.s32 1, %v4935
        %v4937 = vrot.slane %v4667, %v4936
        %v4938 = vlaneseq
        %v4939 = vshrl.u32 %v4938, 7
        %v4940 = vsub.s32 1, %v4939
        %v4941 = vrot.slane %v4671, %v4940
        %v4942 = vlaneseq
        %v4943 = vshrl.u32 %v4942, 7
        %v4944 = vsub.s32 1, %v4943
        %v4945 = vrot.slane %v4675, %v4944
        %v4946 = vlaneseq
        %v4947 = vshrl.u32 %v4946, 7
        %v4948 = vsub.s32 1, %v4947
        %v4949 = vrot.slane %v4679, %v4948
        %v4950 = vlaneseq
        %v4951 = vshrl.u32 %v4950, 7
        %v4952 = vsub.s32 1, %v4951
        %v4953 = vrot.slane %v4683, %v4952
        %v4954 = vlaneseq
        %v4955 = vshrl.u32 %v4954, 7
        %v4956 = vsub.s32 1, %v4955
        %v4957 = vrot.slane %v4687, %v4956
        %v4958 = vlaneseq
        %v4959 = vshrl.u32 %v4958, 7
        %v4960 = vsub.s32 1, %v4959
        %v4961 = vrot.slane %v4691, %v4960
        %v4962 = vlaneseq
        %v4963 = vshrl.u32 %v4962, 7
        %v4964 = vsub.s32 1, %v4963
        %v4965 = vrot.slane %v4695, %v4964
        %v4966 = vlaneseq
        %v4967 = vshrl.u32 %v4966, 7
        %v4968 = vsub.s32 1, %v4967
        %v4969 = vrot.slane %v4699, %v4968
        %v4970 = vlaneseq
        %v4971 = vshrl.u32 %v4970, 7
        %v4972 = vsub.s32 1, %v4971
        %v4973 = vrot.slane %v4703, %v4972
        %v4974 = vlaneseq
        %v4975 = vshrl.u32 %v4974, 7
        %v4976 = vsub.s32 1, %v4975
        %v4977 = vrot.slane %v4707, %v4976
        %v4978 = vlaneseq
        %v4979 = vshrl.u32 %v4978, 7
        %v4980 = vsub.s32 1, %v4979
        %v4981 = vrot.slane %v4711, %v4980
        %v4982 = vlaneseq
        %v4983 = vshrl.u32 %v4982, 7
        %v4984 = vsub.s32 1, %v4983
        %v4985 = vrot.slane %v4715, %v4984
        %v4986 = vlaneseq
        %v4987 = vshrl.u32 %v4986, 7
        %v4988 = vsub.s32 1, %v4987
        %v4989 = vrot.slane %v4719, %v4988
        %v4990 = vlaneseq
        %v4991 = vshrl.u32 %v4990, 7
        %v4992 = vsub.s32 1, %v4991
        %v4993 = vrot.slane %v4723, %v4992
        %v4994 = vlaneseq
        %v4995 = vshrl.u32 %v4994, 7
        %v4996 = vsub.s32 1, %v4995
        %v4997 = vrot.slane %v4727, %v4996
        %v4998 = vlaneseq
        %v4999 = vshrl.u32 %v4998, 7
        %v5000 = vsub.s32 1, %v4999
        %v5001 = vrot.slane %v4731, %v5000
        %v5002 = vlaneseq
        %v5003 = vshrl.u32 %v5002, 7
        %v5004 = vsub.s32 1, %v5003
        %v5005 = vrot.slane %v4735, %v5004
        %v5006 = vlaneseq
        %v5007 = vshrl.u32 %v5006, 7
        %v5008 = vsub.s32 1, %v5007
        %v5009 = vrot.slane %v4739, %v5008
        %v5010 = vlaneseq
        %v5011 = vshrl.u32 %v5010, 7
        %v5012 = vsub.s32 1, %v5011
        %v5013 = vrot.slane %v4743, %v5012
        %v5014 = vlaneseq
        %v5015 = vshrl.u32 %v5014, 7
        %v5016 = vsub.s32 1, %v5015
        %v5017 = vrot.slane %v4747, %v5016
        %v5018 = vlaneseq
        %v5019 = vshrl.u32 %v5018, 7
        %v5020 = vsub.s32 1, %v5019
        %v5021 = vrot.slane %v4751, %v5020
        %v5022 = vlaneseq
        %v5023 = vshrl.u32 %v5022, 7
        %v5024 = vsub.s32 1, %v5023
        %v5025 = vrot.slane %v4755, %v5024
        %v5026 = vlaneseq
        %v5027 = vshrl.u32 %v5026, 7
        %v5028 = vsub.s32 1, %v5027
        %v5029 = vrot.slane %v4759, %v5028
        %v5030 = vlaneseq
        %v5031 = vshrl.u32 %v5030, 7
        %v5032 = vsub.s32 1, %v5031
        %v5033 = vrot.slane %v4763, %v5032
        %v5034 = vlaneseq
        %v5035 = vshrl.u32 %v5034, 7
        %v5036 = vsub.s32 1, %v5035
        %v5037 = vrot.slane %v4767, %v5036
        %v5038 = vlaneseq
        %v5039 = vshrl.u32 %v5038, 7
        %v5040 = vsub.s32 1, %v5039
        %v5041 = vrot.slane %v4771, %v5040
        %v5042 = vlaneseq
        %v5043 = vshrl.u32 %v5042, 7
        %v5044 = vsub.s32 1, %v5043
        %v5045 = vrot.slane %v4775, %v5044
        %v5046 = vlaneseq
        %v5047 = vshrl.u32 %v5046, 7
        %v5048 = vsub.s32 1, %v5047
        %v5049 = vrot.slane %v4779, %v5048
        %v5050 = vlaneseq
        %v5051 = vshrl.u32 %v5050, 7
        %v5052 = vsub.s32 1, %v5051
        %v5053 = vrot.slane %v4783, %v5052
        %v5054 = vlaneseq
        %v5055 = vshrl.u32 %v5054, 7
        %v5056 = vsub.s32 1, %v5055
        %v5057 = vrot.slane %v4787, %v5056
        %v5058 = vlaneseq
        %v5059 = vshrl.u32 %v5058, 7
        %v5060 = vsub.s32 1, %v5059
        %v5061 = vrot.slane %v4791, %v5060
        %v5062 = vlaneseq
        %v5063 = vshrl.u32 %v5062, 7
        %v5064 = vsub.s32 1, %v5063
        %v5065 = vrot.slane %v4795, %v5064
        %v5066 = vlaneseq
        %v5067 = vshrl.u32 %v5066, 7
        %v5068 = vsub.s32 1, %v5067
        %v5069 = vrot.slane %v4799, %v5068
        %v5070 = vlaneseq
        %v5071 = vshrl.u32 %v5070, 7
        %v5072 = vsub.s32 1, %v5071
        %v5073 = vrot.slane %v4803, %v5072
        %v5074 = vlaneseq
        %v5075 = vshrl.u32 %v5074, 7
        %v5076 = vsub.s32 1, %v5075
        %v5077 = vrot.slane %v4807, %v5076
        %v5078 = vlaneseq
        %v5079 = vshrl.u32 %v5078, 7
        %v5080 = vsub.s32 1, %v5079
        %v5081 = vrot.slane %v4811, %v5080
        %v5082 = vlaneseq
        %v5083 = vshrl.u32 %v5082, 7
        %v5084 = vsub.s32 1, %v5083
        %v5085 = vrot.slane %v4815, %v5084
        %v5086 = vlaneseq
        %v5087 = vshrl.u32 %v5086, 7
        %v5088 = vsub.s32 1, %v5087
        %v5089 = vrot.slane %v4819, %v5088
        %v5090 = vlaneseq
        %v5091 = vshrl.u32 %v5090, 7
        %v5092 = vsub.s32 1, %v5091
        %v5093 = vrot.slane %v4823, %v5092
        %v5094 = vlaneseq
        %v5095 = vshrl.u32 %v5094, 7
        %v5096 = vsub.s32 1, %v5095
        %v5097 = vrot.slane %v4827, %v5096
        %v5098 = vlaneseq
        %v5099 = vshrl.u32 %v5098, 7
        %v5100 = vsub.s32 1, %v5099
        %v5101 = vrot.slane %v4831, %v5100
        %v5102 = vlaneseq
        %v5103 = vshrl.u32 %v5102, 7
        %v5104 = vsub.s32 1, %v5103
        %v5105 = vrot.slane %v4835, %v5104
        %v5106 = vlaneseq
        %v5107 = vshrl.u32 %v5106, 7
        %v5108 = vsub.s32 1, %v5107
        %v5109 = vrot.slane %v4839, %v5108
        %v5110 = vlaneseq
        %v5111 = vshrl.u32 %v5110, 7
        %v5112 = vsub.s32 1, %v5111
        %v5113 = vrot.slane %v4843, %v5112
        %v5114 = vlaneseq
        %v5115 = vshrl.u32 %v5114, 7
        %v5116 = vsub.s32 1, %v5115
        %v5117 = vrot.slane %v4847, %v5116
        %v5118 = vlaneseq
        %v5119 = vshrl.u32 %v5118, 7
        %v5120 = vsub.s32 1, %v5119
        %v5121 = vrot.slane %v4851, %v5120
        %v5122 = vlaneseq
        %v5123 = vshrl.u32 %v5122, 7
        %v5124 = vsub.s32 1, %v5123
        %v5125 = vrot.slane %v4855, %v5124
        %v5126 = vlaneseq
        %v5127 = vshrl.u32 %v5126, 7
        %v5128 = vsub.s32 1, %v5127
        %v5129 = vrot.slane %v4859, %v5128
        %v5130 = vlaneseq
        %v5131 = vshrl.u32 %v5130, 7
        %v5132 = vsub.s32 1, %v5131
        %v5133 = vrot.slane %v4863, %v5132
        %v5134 = vlaneseq
        %v5135 = vshrl.u32 %v5134, 7
        %v5136 = vsub.s32 1, %v5135
        %v5137 = vrot.slane %v4867, %v5136
        %v5192 = vcombine.low %v4925, %v4929
        %v5193 = vcombine.low %v4933, %v4937
        %v5194 = vcombine.low %v4941, %v4945
        %v5195 = vcombine.low %v4949, %v4953
        %v5197 = vunpack.c.l.s4 1966171168
        %v5198 = vunpack.c.0.s8 %v5197
        %v5199 = vlaneseq
        %v5200 = vshrl.u32 %v5199, 7
        %v5201 = vsub.s32 %v5198, %v5200
        %v5202 = vrot.slane %v5192, %v5201
        %v5204 = vunpack.c.l.s4 1966171168
        %v5205 = vunpack.c.0.s8 %v5204
        %v5206 = vlaneseq
        %v5207 = vshrl.u32 %v5206, 7
        %v5208 = vsub.s32 %v5205, %v5207
        %v5209 = vrot.slane %v5193, %v5208
        %v5211 = vunpack.c.l.s4 1966171168
        %v5212 = vunpack.c.0.s8 %v5211
        %v5213 = vlaneseq
        %v5214 = vshrl.u32 %v5213, 7
        %v5215 = vsub.s32 %v5212, %v5214
        %v5216 = vrot.slane %v5194, %v5215
        %v5218 = vunpack.c.l.s4 1966171168
        %v5219 = vunpack.c.0.s8 %v5218
        %v5220 = vlaneseq
        %v5221 = vshrl.u32 %v5220, 7
        %v5222 = vsub.s32 %v5219, %v5221
        %v5223 = vrot.slane %v5195, %v5222
        %v5224 = vcombine.low %v5202, %v5209
        %v5225 = vcombine.high %v5202, %v5209
        %v5226 = vcombine.low %v5216, %v5223
        %v5227 = vcombine.high %v5216, %v5223
        %v5229 = vunpack.c.l.s4 1966171168
        %v5230 = vunpack.c.0.s8 %v5229
        %v5231 = vlaneseq
        %v5232 = vshrl.u32 %v5231, 7
        %v5233 = vsub.s32 %v5230, %v5232
        %v5234 = vrot.slane %v5224, %v5233
        %v5236 = vunpack.c.l.s4 1966171168
        %v5237 = vunpack.c.0.s8 %v5236
        %v5238 = vlaneseq
        %v5239 = vshrl.u32 %v5238, 7
        %v5240 = vsub.s32 %v5237, %v5239
        %v5241 = vrot.slane %v5225, %v5240
        %v5243 = vunpack.c.l.s4 1966171168
        %v5244 = vunpack.c.0.s8 %v5243
        %v5245 = vlaneseq
        %v5246 = vshrl.u32 %v5245, 7
        %v5247 = vsub.s32 %v5244, %v5246
        %v5248 = vrot.slane %v5226, %v5247
        %v5250 = vunpack.c.l.s4 1966171168
        %v5251 = vunpack.c.0.s8 %v5250
        %v5252 = vlaneseq
        %v5253 = vshrl.u32 %v5252, 7
        %v5254 = vsub.s32 %v5251, %v5253
        %v5255 = vrot.slane %v5227, %v5254
        %v5256 = vcombine.low %v5234, %v5248
        %v5257 = vcombine.high %v5234, %v5248
        %v5258 = vcombine.low %v5241, %v5255
        %v5259 = vcombine.low %v4957, %v4961
        %v5260 = vcombine.low %v4965, %v4969
        %v5261 = vcombine.low %v4973, %v4977
        %v5262 = vcombine.low %v4981, %v4985
        %v5264 = vunpack.c.l.s4 1966171168
        %v5265 = vunpack.c.0.s8 %v5264
        %v5266 = vlaneseq
        %v5267 = vshrl.u32 %v5266, 7
        %v5268 = vsub.s32 %v5265, %v5267
        %v5269 = vrot.slane %v5259, %v5268
        %v5271 = vunpack.c.l.s4 1966171168
        %v5272 = vunpack.c.0.s8 %v5271
        %v5273 = vlaneseq
        %v5274 = vshrl.u32 %v5273, 7
        %v5275 = vsub.s32 %v5272, %v5274
        %v5276 = vrot.slane %v5260, %v5275
        %v5278 = vunpack.c.l.s4 1966171168
        %v5279 = vunpack.c.0.s8 %v5278
        %v5280 = vlaneseq
        %v5281 = vshrl.u32 %v5280, 7
        %v5282 = vsub.s32 %v5279, %v5281
        %v5283 = vrot.slane %v5261, %v5282
        %v5285 = vunpack.c.l.s4 1966171168
        %v5286 = vunpack.c.0.s8 %v5285
        %v5287 = vlaneseq
        %v5288 = vshrl.u32 %v5287, 7
        %v5289 = vsub.s32 %v5286, %v5288
        %v5290 = vrot.slane %v5262, %v5289
        %v5291 = vcombine.low %v5269, %v5276
        %v5292 = vcombine.high %v5269, %v5276
        %v5293 = vcombine.low %v5283, %v5290
        %v5294 = vcombine.high %v5283, %v5290
        %v5296 = vunpack.c.l.s4 1966171168
        %v5297 = vunpack.c.0.s8 %v5296
        %v5298 = vlaneseq
        %v5299 = vshrl.u32 %v5298, 7
        %v5300 = vsub.s32 %v5297, %v5299
        %v5301 = vrot.slane %v5291, %v5300
        %v5303 = vunpack.c.l.s4 1966171168
        %v5304 = vunpack.c.0.s8 %v5303
        %v5305 = vlaneseq
        %v5306 = vshrl.u32 %v5305, 7
        %v5307 = vsub.s32 %v5304, %v5306
        %v5308 = vrot.slane %v5292, %v5307
        %v5310 = vunpack.c.l.s4 1966171168
        %v5311 = vunpack.c.0.s8 %v5310
        %v5312 = vlaneseq
        %v5313 = vshrl.u32 %v5312, 7
        %v5314 = vsub.s32 %v5311, %v5313
        %v5315 = vrot.slane %v5293, %v5314
        %v5317 = vunpack.c.l.s4 1966171168
        %v5318 = vunpack.c.0.s8 %v5317
        %v5319 = vlaneseq
        %v5320 = vshrl.u32 %v5319, 7
        %v5321 = vsub.s32 %v5318, %v5320
        %v5322 = vrot.slane %v5294, %v5321
        %v5323 = vcombine.low %v5301, %v5315
        %v5324 = vcombine.high %v5301, %v5315
        %v5325 = vcombine.low %v5308, %v5322
        %v5326 = vcombine.low %v4989, %v4993
        %v5327 = vcombine.low %v4997, %v5001
        %v5328 = vcombine.low %v5005, %v5009
        %v5329 = vcombine.low %v5013, %v5017
        %v5331 = vunpack.c.l.s4 1966171168
        %v5332 = vunpack.c.0.s8 %v5331
        %v5333 = vlaneseq
        %v5334 = vshrl.u32 %v5333, 7
        %v5335 = vsub.s32 %v5332, %v5334
        %v5336 = vrot.slane %v5326, %v5335
        %v5338 = vunpack.c.l.s4 1966171168
        %v5339 = vunpack.c.0.s8 %v5338
        %v5340 = vlaneseq
        %v5341 = vshrl.u32 %v5340, 7
        %v5342 = vsub.s32 %v5339, %v5341
        %v5343 = vrot.slane %v5327, %v5342
        %v5345 = vunpack.c.l.s4 1966171168
        %v5346 = vunpack.c.0.s8 %v5345
        %v5347 = vlaneseq
        %v5348 = vshrl.u32 %v5347, 7
        %v5349 = vsub.s32 %v5346, %v5348
        %v5350 = vrot.slane %v5328, %v5349
        %v5352 = vunpack.c.l.s4 1966171168
        %v5353 = vunpack.c.0.s8 %v5352
        %v5354 = vlaneseq
        %v5355 = vshrl.u32 %v5354, 7
        %v5356 = vsub.s32 %v5353, %v5355
        %v5357 = vrot.slane %v5329, %v5356
        %v5358 = vcombine.low %v5336, %v5343
        %v5359 = vcombine.high %v5336, %v5343
        %v5360 = vcombine.low %v5350, %v5357
        %v5361 = vcombine.high %v5350, %v5357
        %v5363 = vunpack.c.l.s4 1966171168
        %v5364 = vunpack.c.0.s8 %v5363
        %v5365 = vlaneseq
        %v5366 = vshrl.u32 %v5365, 7
        %v5367 = vsub.s32 %v5364, %v5366
        %v5368 = vrot.slane %v5358, %v5367
        %v5370 = vunpack.c.l.s4 1966171168
        %v5371 = vunpack.c.0.s8 %v5370
        %v5372 = vlaneseq
        %v5373 = vshrl.u32 %v5372, 7
        %v5374 = vsub.s32 %v5371, %v5373
        %v5375 = vrot.slane %v5359, %v5374
        %v5377 = vunpack.c.l.s4 1966171168
        %v5378 = vunpack.c.0.s8 %v5377
        %v5379 = vlaneseq
        %v5380 = vshrl.u32 %v5379, 7
        %v5381 = vsub.s32 %v5378, %v5380
        %v5382 = vrot.slane %v5360, %v5381
        %v5384 = vunpack.c.l.s4 1966171168
        %v5385 = vunpack.c.0.s8 %v5384
        %v5386 = vlaneseq
        %v5387 = vshrl.u32 %v5386, 7
        %v5388 = vsub.s32 %v5385, %v5387
        %v5389 = vrot.slane %v5361, %v5388
        %v5390 = vcombine.low %v5368, %v5382
        %v5391 = vcombine.high %v5368, %v5382
        %v5392 = vcombine.low %v5375, %v5389
        %v5393 = vcombine.low %v5021, %v5025
        %v5395 = vunpack.c.l.s4 1966171168
        %v5396 = vunpack.c.0.s8 %v5395
        %v5397 = vlaneseq
        %v5398 = vshrl.u32 %v5397, 7
        %v5399 = vsub.s32 %v5396, %v5398
        %v5400 = vrot.slane %v5393, %v5399
        %v5402 = vunpack.c.l.s4 1966171168
        %v5403 = vunpack.c.0.s8 %v5402
        %v5404 = vlaneseq
        %v5405 = vshrl.u32 %v5404, 7
        %v5406 = vsub.s32 %v5403, %v5405
        %v5407 = vrot.slane %v5029, %v5406
        %v5408 = vcombine.low %v5400, %v5407
        %v5409 = vcombine.high %v5400, %v5407
        %v5411 = vunpack.c.l.s4 1966171168
        %v5412 = vunpack.c.0.s8 %v5411
        %v5413 = vlaneseq
        %v5414 = vshrl.u32 %v5413, 7
        %v5415 = vsub.s32 %v5412, %v5414
        %v5416 = vrot.slane %v5408, %v5415
        %v5418 = vunpack.c.l.s4 1966171168
        %v5419 = vunpack.c.0.s8 %v5418
        %v5420 = vlaneseq
        %v5421 = vshrl.u32 %v5420, 7
        %v5422 = vsub.s32 %v5419, %v5421
        %v5423 = vrot.slane %v5409, %v5422
        %v5424 = vcombine.high %v5416, %v5416
        %v5425 = vcombine.low %v5033, %v5037
        %v5426 = vcombine.low %v5041, %v5045
        %v5427 = vcombine.low %v5049, %v5053
        %v5428 = vcombine.low %v5057, %v5061
        %v5430 = vunpack.c.l.s4 1966171168
        %v5431 = vunpack.c.0.s8 %v5430
        %v5432 = vlaneseq
        %v5433 = vshrl.u32 %v5432, 7
        %v5434 = vsub.s32 %v5431, %v5433
        %v5435 = vrot.slane %v5425, %v5434
        %v5437 = vunpack.c.l.s4 1966171168
        %v5438 = vunpack.c.0.s8 %v5437
        %v5439 = vlaneseq
        %v5440 = vshrl.u32 %v5439, 7
        %v5441 = vsub.s32 %v5438, %v5440
        %v5442 = vrot.slane %v5426, %v5441
        %v5444 = vunpack.c.l.s4 1966171168
        %v5445 = vunpack.c.0.s8 %v5444
        %v5446 = vlaneseq
        %v5447 = vshrl.u32 %v5446, 7
        %v5448 = vsub.s32 %v5445, %v5447
        %v5449 = vrot.slane %v5427, %v5448
        %v5451 = vunpack.c.l.s4 1966171168
        %v5452 = vunpack.c.0.s8 %v5451
        %v5453 = vlaneseq
        %v5454 = vshrl.u32 %v5453, 7
        %v5455 = vsub.s32 %v5452, %v5454
        %v5456 = vrot.slane %v5428, %v5455
        %v5457 = vcombine.low %v5435, %v5442
        %v5458 = vcombine.high %v5435, %v5442
        %v5459 = vcombine.low %v5449, %v5456
        %v5460 = vcombine.high %v5449, %v5456
        %v5462 = vunpack.c.l.s4 1966171168
        %v5463 = vunpack.c.0.s8 %v5462
        %v5464 = vlaneseq
        %v5465 = vshrl.u32 %v5464, 7
        %v5466 = vsub.s32 %v5463, %v5465
        %v5467 = vrot.slane %v5457, %v5466
        %v5469 = vunpack.c.l.s4 1966171168
        %v5470 = vunpack.c.0.s8 %v5469
        %v5471 = vlaneseq
        %v5472 = vshrl.u32 %v5471, 7
        %v5473 = vsub.s32 %v5470, %v5472
        %v5474 = vrot.slane %v5458, %v5473
        %v5476 = vunpack.c.l.s4 1966171168
        %v5477 = vunpack.c.0.s8 %v5476
        %v5478 = vlaneseq
        %v5479 = vshrl.u32 %v5478, 7
        %v5480 = vsub.s32 %v5477, %v5479
        %v5481 = vrot.slane %v5459, %v5480
        %v5483 = vunpack.c.l.s4 1966171168
        %v5484 = vunpack.c.0.s8 %v5483
        %v5485 = vlaneseq
        %v5486 = vshrl.u32 %v5485, 7
        %v5487 = vsub.s32 %v5484, %v5486
        %v5488 = vrot.slane %v5460, %v5487
        %v5489 = vcombine.low %v5467, %v5481
        %v5490 = vcombine.high %v5467, %v5481
        %v5491 = vcombine.low %v5474, %v5488
        %v5492 = vcombine.low %v5065, %v5069
        %v5493 = vcombine.low %v5073, %v5077
        %v5494 = vcombine.low %v5081, %v5085
        %v5495 = vcombine.low %v5089, %v5093
        %v5497 = vunpack.c.l.s4 1966171168
        %v5498 = vunpack.c.0.s8 %v5497
        %v5499 = vlaneseq
        %v5500 = vshrl.u32 %v5499, 7
        %v5501 = vsub.s32 %v5498, %v5500
        %v5502 = vrot.slane %v5492, %v5501
        %v5504 = vunpack.c.l.s4 1966171168
        %v5505 = vunpack.c.0.s8 %v5504
        %v5506 = vlaneseq
        %v5507 = vshrl.u32 %v5506, 7
        %v5508 = vsub.s32 %v5505, %v5507
        %v5509 = vrot.slane %v5493, %v5508
        %v5511 = vunpack.c.l.s4 1966171168
        %v5512 = vunpack.c.0.s8 %v5511
        %v5513 = vlaneseq
        %v5514 = vshrl.u32 %v5513, 7
        %v5515 = vsub.s32 %v5512, %v5514
        %v5516 = vrot.slane %v5494, %v5515
        %v5518 = vunpack.c.l.s4 1966171168
        %v5519 = vunpack.c.0.s8 %v5518
        %v5520 = vlaneseq
        %v5521 = vshrl.u32 %v5520, 7
        %v5522 = vsub.s32 %v5519, %v5521
        %v5523 = vrot.slane %v5495, %v5522
        %v5524 = vcombine.low %v5502, %v5509
        %v5525 = vcombine.high %v5502, %v5509
        %v5526 = vcombine.low %v5516, %v5523
        %v5527 = vcombine.high %v5516, %v5523
        %v5529 = vunpack.c.l.s4 1966171168
        %v5530 = vunpack.c.0.s8 %v5529
        %v5531 = vlaneseq
        %v5532 = vshrl.u32 %v5531, 7
        %v5533 = vsub.s32 %v5530, %v5532
        %v5534 = vrot.slane %v5524, %v5533
        %v5536 = vunpack.c.l.s4 1966171168
        %v5537 = vunpack.c.0.s8 %v5536
        %v5538 = vlaneseq
        %v5539 = vshrl.u32 %v5538, 7
        %v5540 = vsub.s32 %v5537, %v5539
        %v5541 = vrot.slane %v5525, %v5540
        %v5543 = vunpack.c.l.s4 1966171168
        %v5544 = vunpack.c.0.s8 %v5543
        %v5545 = vlaneseq
        %v5546 = vshrl.u32 %v5545, 7
        %v5547 = vsub.s32 %v5544, %v5546
        %v5548 = vrot.slane %v5526, %v5547
        %v5550 = vunpack.c.l.s4 1966171168
        %v5551 = vunpack.c.0.s8 %v5550
        %v5552 = vlaneseq
        %v5553 = vshrl.u32 %v5552, 7
        %v5554 = vsub.s32 %v5551, %v5553
        %v5555 = vrot.slane %v5527, %v5554
        %v5556 = vcombine.low %v5534, %v5548
        %v5557 = vcombine.high %v5534, %v5548
        %v5558 = vcombine.low %v5541, %v5555
        %v5559 = vcombine.low %v5097, %v5101
        %v5560 = vcombine.low %v5105, %v5109
        %v5561 = vcombine.low %v5113, %v5117
        %v5562 = vcombine.low %v5121, %v5125
        %v5564 = vunpack.c.l.s4 1966171168
        %v5565 = vunpack.c.0.s8 %v5564
        %v5566 = vlaneseq
        %v5567 = vshrl.u32 %v5566, 7
        %v5568 = vsub.s32 %v5565, %v5567
        %v5569 = vrot.slane %v5559, %v5568
        %v5571 = vunpack.c.l.s4 1966171168
        %v5572 = vunpack.c.0.s8 %v5571
        %v5573 = vlaneseq
        %v5574 = vshrl.u32 %v5573, 7
        %v5575 = vsub.s32 %v5572, %v5574
        %v5576 = vrot.slane %v5560, %v5575
        %v5578 = vunpack.c.l.s4 1966171168
        %v5579 = vunpack.c.0.s8 %v5578
        %v5580 = vlaneseq
        %v5581 = vshrl.u32 %v5580, 7
        %v5582 = vsub.s32 %v5579, %v5581
        %v5583 = vrot.slane %v5561, %v5582
        %v5585 = vunpack.c.l.s4 1966171168
        %v5586 = vunpack.c.0.s8 %v5585
        %v5587 = vlaneseq
        %v5588 = vshrl.u32 %v5587, 7
        %v5589 = vsub.s32 %v5586, %v5588
        %v5590 = vrot.slane %v5562, %v5589
        %v5591 = vcombine.low %v5569, %v5576
        %v5592 = vcombine.high %v5569, %v5576
        %v5593 = vcombine.low %v5583, %v5590
        %v5594 = vcombine.high %v5583, %v5590
        %v5596 = vunpack.c.l.s4 1966171168
        %v5597 = vunpack.c.0.s8 %v5596
        %v5598 = vlaneseq
        %v5599 = vshrl.u32 %v5598, 7
        %v5600 = vsub.s32 %v5597, %v5599
        %v5601 = vrot.slane %v5591, %v5600
        %v5603 = vunpack.c.l.s4 1966171168
        %v5604 = vunpack.c.0.s8 %v5603
        %v5605 = vlaneseq
        %v5606 = vshrl.u32 %v5605, 7
        %v5607 = vsub.s32 %v5604, %v5606
        %v5608 = vrot.slane %v5592, %v5607
        %v5610 = vunpack.c.l.s4 1966171168
        %v5611 = vunpack.c.0.s8 %v5610
        %v5612 = vlaneseq
        %v5613 = vshrl.u32 %v5612, 7
        %v5614 = vsub.s32 %v5611, %v5613
        %v5615 = vrot.slane %v5593, %v5614
        %v5617 = vunpack.c.l.s4 1966171168
        %v5618 = vunpack.c.0.s8 %v5617
        %v5619 = vlaneseq
        %v5620 = vshrl.u32 %v5619, 7
        %v5621 = vsub.s32 %v5618, %v5620
        %v5622 = vrot.slane %v5594, %v5621
        %v5623 = vcombine.low %v5601, %v5615
        %v5624 = vcombine.high %v5601, %v5615
        %v5625 = vcombine.low %v5608, %v5622
        %v5626 = vcombine.low %v5129, %v5133
        %v5628 = vunpack.c.l.s4 1966171168
        %v5629 = vunpack.c.0.s8 %v5628
        %v5630 = vlaneseq
        %v5631 = vshrl.u32 %v5630, 7
        %v5632 = vsub.s32 %v5629, %v5631
        %v5633 = vrot.slane %v5626, %v5632
        %v5635 = vunpack.c.l.s4 1966171168
        %v5636 = vunpack.c.0.s8 %v5635
        %v5637 = vlaneseq
        %v5638 = vshrl.u32 %v5637, 7
        %v5639 = vsub.s32 %v5636, %v5638
        %v5640 = vrot.slane %v5137, %v5639
        %v5641 = vcombine.low %v5633, %v5640
        %v5642 = vcombine.high %v5633, %v5640
        %v5644 = vunpack.c.l.s4 1966171168
        %v5645 = vunpack.c.0.s8 %v5644
        %v5646 = vlaneseq
        %v5647 = vshrl.u32 %v5646, 7
        %v5648 = vsub.s32 %v5645, %v5647
        %v5649 = vrot.slane %v5641, %v5648
        %v5651 = vunpack.c.l.s4 1966171168
        %v5652 = vunpack.c.0.s8 %v5651
        %v5653 = vlaneseq
        %v5654 = vshrl.u32 %v5653, 7
        %v5655 = vsub.s32 %v5652, %v5654
        %v5656 = vrot.slane %v5642, %v5655
        %v5657 = vcombine.high %v5649, %v5649
        %v5682 = vmul.f32 %v2171, %v5256
        %v5683 = vmul.f32 %v2305, %v5323
        %v5684 = vmul.f32 %v2439, %v5390
        %v5685 = vmul.f32 %v2486, %v5416
        %v5686 = vmul.f32 %v2174, %v5258
        %v5687 = vmul.f32 %v2308, %v5325
        %v5688 = vmul.f32 %v2442, %v5392
        %v5689 = vmul.f32 %v2500, %v5423
        %v5690 = vmul.f32 %v2172, %v5257
        %v5691 = vmul.f32 %v2306, %v5324
        %v5692 = vmul.f32 %v2440, %v5391
        %v5693 = vmul.f32 %v2508, %v5424
        %v5694 = vmul.f32 %v2175, %v5489
        %v5695 = vmul.f32 %v2309, %v5556
        %v5696 = vmul.f32 %v2443, %v5623
        %v5697 = vmul.f32 %v2509, %v5649
        %v5698 = vmul.f32 %v2173, %v5491
        %v5699 = vmul.f32 %v2307, %v5558
        %v5700 = vmul.f32 %v2441, %v5625
        %v5701 = vmul.f32 %v2493, %v5656
        %v5702 = vmul.f32 %v2176, %v5490
        %v5703 = vmul.f32 %v2310, %v5557
        %v5704 = vmul.f32 %v2444, %v5624
        %v5705 = vmul.f32 %v2507, %v5657
        %v5706 = vadd.f32 %v4628, %v5682
        %v5707 = vadd.f32 %v4629, %v5683
        %v5708 = vadd.f32 %v4630, %v5684
        %v5709 = vadd.f32 %v4631, %v5685
        %v5710 = vadd.f32 %v4632, %v5686
        %v5711 = vadd.f32 %v4633, %v5687
        %v5712 = vadd.f32 %v4634, %v5688
        %v5713 = vadd.f32 %v4635, %v5689
        %v5714 = vadd.f32 %v4636, %v5690
        %v5715 = vadd.f32 %v4637, %v5691
        %v5716 = vadd.f32 %v4638, %v5692
        %v5717 = vadd.f32 %v4639, %v5693
        %v5718 = vadd.f32 %v4640, %v5694
        %v5719 = vadd.f32 %v4641, %v5695
        %v5720 = vadd.f32 %v4642, %v5696
        %v5721 = vadd.f32 %v4643, %v5697
        %v5722 = vadd.f32 %v4644, %v5698
        %v5723 = vadd.f32 %v4645, %v5699
        %v5724 = vadd.f32 %v4646, %v5700
        %v5725 = vadd.f32 %v4647, %v5701
        %v5726 = vadd.f32 %v4648, %v5702
        %v5727 = vadd.f32 %v4649, %v5703
        %v5728 = vadd.f32 %v4650, %v5704
        %v5729 = vadd.f32 %v4651, %v5705
        %v5730 = vlaneseq
        %v5731 = vshrl.u32 %v5730, 7
        %v5732 = vsub.s32 2, %v5731
        %v5733 = vrot.slane %v1470, %v5732
        %v5734 = vlaneseq
        %v5735 = vshrl.u32 %v5734, 7
        %v5736 = vsub.s32 6, %v5735
        %v5737 = vrot.slane %v1470, %v5736
        %v5738 = vlaneseq
        %v5739 = vshrl.u32 %v5738, 7
        %v5740 = vsub.s32 2, %v5739
        %v5741 = vrot.slane %v1471, %v5740
        %v5742 = vlaneseq
        %v5743 = vshrl.u32 %v5742, 7
        %v5744 = vsub.s32 6, %v5743
        %v5745 = vrot.slane %v1471, %v5744
        %v5746 = vlaneseq
        %v5747 = vshrl.u32 %v5746, 7
        %v5748 = vsub.s32 2, %v5747
        %v5749 = vrot.slane %v1472, %v5748
        %v5750 = vlaneseq
        %v5751 = vshrl.u32 %v5750, 7
        %v5752 = vsub.s32 6, %v5751
        %v5753 = vrot.slane %v1472, %v5752
        %v5754 = vlaneseq
        %v5755 = vshrl.u32 %v5754, 7
        %v5756 = vsub.s32 2, %v5755
        %v5757 = vrot.slane %v1473, %v5756
        %v5758 = vlaneseq
        %v5759 = vshrl.u32 %v5758, 7
        %v5760 = vsub.s32 6, %v5759
        %v5761 = vrot.slane %v1473, %v5760
        %v5762 = vlaneseq
        %v5763 = vshrl.u32 %v5762, 7
        %v5764 = vsub.s32 2, %v5763
        %v5765 = vrot.slane %v1474, %v5764
        %v5766 = vlaneseq
        %v5767 = vshrl.u32 %v5766, 7
        %v5768 = vsub.s32 6, %v5767
        %v5769 = vrot.slane %v1474, %v5768
        %v5770 = vlaneseq
        %v5771 = vshrl.u32 %v5770, 7
        %v5772 = vsub.s32 2, %v5771
        %v5773 = vrot.slane %v1475, %v5772
        %v5774 = vlaneseq
        %v5775 = vshrl.u32 %v5774, 7
        %v5776 = vsub.s32 6, %v5775
        %v5777 = vrot.slane %v1475, %v5776
        %v5778 = vlaneseq
        %v5779 = vshrl.u32 %v5778, 7
        %v5780 = vsub.s32 2, %v5779
        %v5781 = vrot.slane %v1476, %v5780
        %v5782 = vlaneseq
        %v5783 = vshrl.u32 %v5782, 7
        %v5784 = vsub.s32 6, %v5783
        %v5785 = vrot.slane %v1476, %v5784
        %v5786 = vlaneseq
        %v5787 = vshrl.u32 %v5786, 7
        %v5788 = vsub.s32 2, %v5787
        %v5789 = vrot.slane %v1477, %v5788
        %v5790 = vlaneseq
        %v5791 = vshrl.u32 %v5790, 7
        %v5792 = vsub.s32 6, %v5791
        %v5793 = vrot.slane %v1477, %v5792
        %v5794 = vlaneseq
        %v5795 = vshrl.u32 %v5794, 7
        %v5796 = vsub.s32 2, %v5795
        %v5797 = vrot.slane %v1478, %v5796
        %v5798 = vlaneseq
        %v5799 = vshrl.u32 %v5798, 7
        %v5800 = vsub.s32 6, %v5799
        %v5801 = vrot.slane %v1478, %v5800
        %v5802 = vlaneseq
        %v5803 = vshrl.u32 %v5802, 7
        %v5804 = vsub.s32 2, %v5803
        %v5805 = vrot.slane %v1479, %v5804
        %v5806 = vlaneseq
        %v5807 = vshrl.u32 %v5806, 7
        %v5808 = vsub.s32 6, %v5807
        %v5809 = vrot.slane %v1479, %v5808
        %v5810 = vlaneseq
        %v5811 = vshrl.u32 %v5810, 7
        %v5812 = vsub.s32 2, %v5811
        %v5813 = vrot.slane %v1480, %v5812
        %v5814 = vlaneseq
        %v5815 = vshrl.u32 %v5814, 7
        %v5816 = vsub.s32 6, %v5815
        %v5817 = vrot.slane %v1480, %v5816
        %v5818 = vlaneseq
        %v5819 = vshrl.u32 %v5818, 7
        %v5820 = vsub.s32 2, %v5819
        %v5821 = vrot.slane %v1481, %v5820
        %v5822 = vlaneseq
        %v5823 = vshrl.u32 %v5822, 7
        %v5824 = vsub.s32 6, %v5823
        %v5825 = vrot.slane %v1481, %v5824
        %v5826 = vlaneseq
        %v5827 = vshrl.u32 %v5826, 7
        %v5828 = vsub.s32 2, %v5827
        %v5829 = vrot.slane %v1482, %v5828
        %v5830 = vlaneseq
        %v5831 = vshrl.u32 %v5830, 7
        %v5832 = vsub.s32 6, %v5831
        %v5833 = vrot.slane %v1482, %v5832
        %v5834 = vlaneseq
        %v5835 = vshrl.u32 %v5834, 7
        %v5836 = vsub.s32 2, %v5835
        %v5837 = vrot.slane %v1483, %v5836
        %v5838 = vlaneseq
        %v5839 = vshrl.u32 %v5838, 7
        %v5840 = vsub.s32 2, %v5839
        %v5841 = vrot.slane %v1484, %v5840
        %v5842 = vlaneseq
        %v5843 = vshrl.u32 %v5842, 7
        %v5844 = vsub.s32 6, %v5843
        %v5845 = vrot.slane %v1484, %v5844
        %v5846 = vlaneseq
        %v5847 = vshrl.u32 %v5846, 7
        %v5848 = vsub.s32 2, %v5847
        %v5849 = vrot.slane %v1485, %v5848
        %v5850 = vlaneseq
        %v5851 = vshrl.u32 %v5850, 7
        %v5852 = vsub.s32 6, %v5851
        %v5853 = vrot.slane %v1485, %v5852
        %v5854 = vlaneseq
        %v5855 = vshrl.u32 %v5854, 7
        %v5856 = vsub.s32 2, %v5855
        %v5857 = vrot.slane %v1486, %v5856
        %v5858 = vlaneseq
        %v5859 = vshrl.u32 %v5858, 7
        %v5860 = vsub.s32 6, %v5859
        %v5861 = vrot.slane %v1486, %v5860
        %v5862 = vlaneseq
        %v5863 = vshrl.u32 %v5862, 7
        %v5864 = vsub.s32 2, %v5863
        %v5865 = vrot.slane %v1487, %v5864
        %v5866 = vlaneseq
        %v5867 = vshrl.u32 %v5866, 7
        %v5868 = vsub.s32 6, %v5867
        %v5869 = vrot.slane %v1487, %v5868
        %v5870 = vlaneseq
        %v5871 = vshrl.u32 %v5870, 7
        %v5872 = vsub.s32 2, %v5871
        %v5873 = vrot.slane %v1488, %v5872
        %v5874 = vlaneseq
        %v5875 = vshrl.u32 %v5874, 7
        %v5876 = vsub.s32 6, %v5875
        %v5877 = vrot.slane %v1488, %v5876
        %v5878 = vlaneseq
        %v5879 = vshrl.u32 %v5878, 7
        %v5880 = vsub.s32 2, %v5879
        %v5881 = vrot.slane %v1489, %v5880
        %v5882 = vlaneseq
        %v5883 = vshrl.u32 %v5882, 7
        %v5884 = vsub.s32 6, %v5883
        %v5885 = vrot.slane %v1489, %v5884
        %v5886 = vlaneseq
        %v5887 = vshrl.u32 %v5886, 7
        %v5888 = vsub.s32 2, %v5887
        %v5889 = vrot.slane %v1490, %v5888
        %v5890 = vlaneseq
        %v5891 = vshrl.u32 %v5890, 7
        %v5892 = vsub.s32 6, %v5891
        %v5893 = vrot.slane %v1490, %v5892
        %v5894 = vlaneseq
        %v5895 = vshrl.u32 %v5894, 7
        %v5896 = vsub.s32 2, %v5895
        %v5897 = vrot.slane %v1491, %v5896
        %v5898 = vlaneseq
        %v5899 = vshrl.u32 %v5898, 7
        %v5900 = vsub.s32 6, %v5899
        %v5901 = vrot.slane %v1491, %v5900
        %v5902 = vlaneseq
        %v5903 = vshrl.u32 %v5902, 7
        %v5904 = vsub.s32 2, %v5903
        %v5905 = vrot.slane %v1492, %v5904
        %v5906 = vlaneseq
        %v5907 = vshrl.u32 %v5906, 7
        %v5908 = vsub.s32 6, %v5907
        %v5909 = vrot.slane %v1492, %v5908
        %v5910 = vlaneseq
        %v5911 = vshrl.u32 %v5910, 7
        %v5912 = vsub.s32 2, %v5911
        %v5913 = vrot.slane %v1493, %v5912
        %v5914 = vlaneseq
        %v5915 = vshrl.u32 %v5914, 7
        %v5916 = vsub.s32 6, %v5915
        %v5917 = vrot.slane %v1493, %v5916
        %v5918 = vlaneseq
        %v5919 = vshrl.u32 %v5918, 7
        %v5920 = vsub.s32 2, %v5919
        %v5921 = vrot.slane %v1494, %v5920
        %v5922 = vlaneseq
        %v5923 = vshrl.u32 %v5922, 7
        %v5924 = vsub.s32 6, %v5923
        %v5925 = vrot.slane %v1494, %v5924
        %v5926 = vlaneseq
        %v5927 = vshrl.u32 %v5926, 7
        %v5928 = vsub.s32 2, %v5927
        %v5929 = vrot.slane %v1495, %v5928
        %v5930 = vlaneseq
        %v5931 = vshrl.u32 %v5930, 7
        %v5932 = vsub.s32 6, %v5931
        %v5933 = vrot.slane %v1495, %v5932
        %v5934 = vlaneseq
        %v5935 = vshrl.u32 %v5934, 7
        %v5936 = vsub.s32 2, %v5935
        %v5937 = vrot.slane %v1496, %v5936
        %v5938 = vlaneseq
        %v5939 = vshrl.u32 %v5938, 7
        %v5940 = vsub.s32 6, %v5939
        %v5941 = vrot.slane %v1496, %v5940
        %v5942 = vlaneseq
        %v5943 = vshrl.u32 %v5942, 7
        %v5944 = vsub.s32 2, %v5943
        %v5945 = vrot.slane %v1497, %v5944
        %v6000 = vlaneseq
        %v6001 = vshrl.u32 %v6000, 7
        %v6002 = vsub.s32 2, %v6001
        %v6003 = vrot.slane %v5733, %v6002
        %v6004 = vlaneseq
        %v6005 = vshrl.u32 %v6004, 7
        %v6006 = vsub.s32 2, %v6005
        %v6007 = vrot.slane %v5737, %v6006
        %v6008 = vlaneseq
        %v6009 = vshrl.u32 %v6008, 7
        %v6010 = vsub.s32 2, %v6009
        %v6011 = vrot.slane %v5741, %v6010
        %v6012 = vlaneseq
        %v6013 = vshrl.u32 %v6012, 7
        %v6014 = vsub.s32 2, %v6013
        %v6015 = vrot.slane %v5745, %v6014
        %v6016 = vlaneseq
        %v6017 = vshrl.u32 %v6016, 7
        %v6018 = vsub.s32 2, %v6017
        %v6019 = vrot.slane %v5749, %v6018
        %v6020 = vlaneseq
        %v6021 = vshrl.u32 %v6020, 7
        %v6022 = vsub.s32 2, %v6021
        %v6023 = vrot.slane %v5753, %v6022
        %v6024 = vlaneseq
        %v6025 = vshrl.u32 %v6024, 7
        %v6026 = vsub.s32 2, %v6025
        %v6027 = vrot.slane %v5757, %v6026
        %v6028 = vlaneseq
        %v6029 = vshrl.u32 %v6028, 7
        %v6030 = vsub.s32 2, %v6029
        %v6031 = vrot.slane %v5761, %v6030
        %v6032 = vlaneseq
        %v6033 = vshrl.u32 %v6032, 7
        %v6034 = vsub.s32 2, %v6033
        %v6035 = vrot.slane %v5765, %v6034
        %v6036 = vlaneseq
        %v6037 = vshrl.u32 %v6036, 7
        %v6038 = vsub.s32 2, %v6037
        %v6039 = vrot.slane %v5769, %v6038
        %v6040 = vlaneseq
        %v6041 = vshrl.u32 %v6040, 7
        %v6042 = vsub.s32 2, %v6041
        %v6043 = vrot.slane %v5773, %v6042
        %v6044 = vlaneseq
        %v6045 = vshrl.u32 %v6044, 7
        %v6046 = vsub.s32 2, %v6045
        %v6047 = vrot.slane %v5777, %v6046
        %v6048 = vlaneseq
        %v6049 = vshrl.u32 %v6048, 7
        %v6050 = vsub.s32 2, %v6049
        %v6051 = vrot.slane %v5781, %v6050
        %v6052 = vlaneseq
        %v6053 = vshrl.u32 %v6052, 7
        %v6054 = vsub.s32 2, %v6053
        %v6055 = vrot.slane %v5785, %v6054
        %v6056 = vlaneseq
        %v6057 = vshrl.u32 %v6056, 7
        %v6058 = vsub.s32 2, %v6057
        %v6059 = vrot.slane %v5789, %v6058
        %v6060 = vlaneseq
        %v6061 = vshrl.u32 %v6060, 7
        %v6062 = vsub.s32 2, %v6061
        %v6063 = vrot.slane %v5793, %v6062
        %v6064 = vlaneseq
        %v6065 = vshrl.u32 %v6064, 7
        %v6066 = vsub.s32 2, %v6065
        %v6067 = vrot.slane %v5797, %v6066
        %v6068 = vlaneseq
        %v6069 = vshrl.u32 %v6068, 7
        %v6070 = vsub.s32 2, %v6069
        %v6071 = vrot.slane %v5801, %v6070
        %v6072 = vlaneseq
        %v6073 = vshrl.u32 %v6072, 7
        %v6074 = vsub.s32 2, %v6073
        %v6075 = vrot.slane %v5805, %v6074
        %v6076 = vlaneseq
        %v6077 = vshrl.u32 %v6076, 7
        %v6078 = vsub.s32 2, %v6077
        %v6079 = vrot.slane %v5809, %v6078
        %v6080 = vlaneseq
        %v6081 = vshrl.u32 %v6080, 7
        %v6082 = vsub.s32 2, %v6081
        %v6083 = vrot.slane %v5813, %v6082
        %v6084 = vlaneseq
        %v6085 = vshrl.u32 %v6084, 7
        %v6086 = vsub.s32 2, %v6085
        %v6087 = vrot.slane %v5817, %v6086
        %v6088 = vlaneseq
        %v6089 = vshrl.u32 %v6088, 7
        %v6090 = vsub.s32 2, %v6089
        %v6091 = vrot.slane %v5821, %v6090
        %v6092 = vlaneseq
        %v6093 = vshrl.u32 %v6092, 7
        %v6094 = vsub.s32 2, %v6093
        %v6095 = vrot.slane %v5825, %v6094
        %v6096 = vlaneseq
        %v6097 = vshrl.u32 %v6096, 7
        %v6098 = vsub.s32 2, %v6097
        %v6099 = vrot.slane %v5829, %v6098
        %v6100 = vlaneseq
        %v6101 = vshrl.u32 %v6100, 7
        %v6102 = vsub.s32 2, %v6101
        %v6103 = vrot.slane %v5833, %v6102
        %v6104 = vlaneseq
        %v6105 = vshrl.u32 %v6104, 7
        %v6106 = vsub.s32 2, %v6105
        %v6107 = vrot.slane %v5837, %v6106
        %v6108 = vlaneseq
        %v6109 = vshrl.u32 %v6108, 7
        %v6110 = vsub.s32 2, %v6109
        %v6111 = vrot.slane %v5841, %v6110
        %v6112 = vlaneseq
        %v6113 = vshrl.u32 %v6112, 7
        %v6114 = vsub.s32 2, %v6113
        %v6115 = vrot.slane %v5845, %v6114
        %v6116 = vlaneseq
        %v6117 = vshrl.u32 %v6116, 7
        %v6118 = vsub.s32 2, %v6117
        %v6119 = vrot.slane %v5849, %v6118
        %v6120 = vlaneseq
        %v6121 = vshrl.u32 %v6120, 7
        %v6122 = vsub.s32 2, %v6121
        %v6123 = vrot.slane %v5853, %v6122
        %v6124 = vlaneseq
        %v6125 = vshrl.u32 %v6124, 7
        %v6126 = vsub.s32 2, %v6125
        %v6127 = vrot.slane %v5857, %v6126
        %v6128 = vlaneseq
        %v6129 = vshrl.u32 %v6128, 7
        %v6130 = vsub.s32 2, %v6129
        %v6131 = vrot.slane %v5861, %v6130
        %v6132 = vlaneseq
        %v6133 = vshrl.u32 %v6132, 7
        %v6134 = vsub.s32 2, %v6133
        %v6135 = vrot.slane %v5865, %v6134
        %v6136 = vlaneseq
        %v6137 = vshrl.u32 %v6136, 7
        %v6138 = vsub.s32 2, %v6137
        %v6139 = vrot.slane %v5869, %v6138
        %v6140 = vlaneseq
        %v6141 = vshrl.u32 %v6140, 7
        %v6142 = vsub.s32 2, %v6141
        %v6143 = vrot.slane %v5873, %v6142
        %v6144 = vlaneseq
        %v6145 = vshrl.u32 %v6144, 7
        %v6146 = vsub.s32 2, %v6145
        %v6147 = vrot.slane %v5877, %v6146
        %v6148 = vlaneseq
        %v6149 = vshrl.u32 %v6148, 7
        %v6150 = vsub.s32 2, %v6149
        %v6151 = vrot.slane %v5881, %v6150
        %v6152 = vlaneseq
        %v6153 = vshrl.u32 %v6152, 7
        %v6154 = vsub.s32 2, %v6153
        %v6155 = vrot.slane %v5885, %v6154
        %v6156 = vlaneseq
        %v6157 = vshrl.u32 %v6156, 7
        %v6158 = vsub.s32 2, %v6157
        %v6159 = vrot.slane %v5889, %v6158
        %v6160 = vlaneseq
        %v6161 = vshrl.u32 %v6160, 7
        %v6162 = vsub.s32 2, %v6161
        %v6163 = vrot.slane %v5893, %v6162
        %v6164 = vlaneseq
        %v6165 = vshrl.u32 %v6164, 7
        %v6166 = vsub.s32 2, %v6165
        %v6167 = vrot.slane %v5897, %v6166
        %v6168 = vlaneseq
        %v6169 = vshrl.u32 %v6168, 7
        %v6170 = vsub.s32 2, %v6169
        %v6171 = vrot.slane %v5901, %v6170
        %v6172 = vlaneseq
        %v6173 = vshrl.u32 %v6172, 7
        %v6174 = vsub.s32 2, %v6173
        %v6175 = vrot.slane %v5905, %v6174
        %v6176 = vlaneseq
        %v6177 = vshrl.u32 %v6176, 7
        %v6178 = vsub.s32 2, %v6177
        %v6179 = vrot.slane %v5909, %v6178
        %v6180 = vlaneseq
        %v6181 = vshrl.u32 %v6180, 7
        %v6182 = vsub.s32 2, %v6181
        %v6183 = vrot.slane %v5913, %v6182
        %v6184 = vlaneseq
        %v6185 = vshrl.u32 %v6184, 7
        %v6186 = vsub.s32 2, %v6185
        %v6187 = vrot.slane %v5917, %v6186
        %v6188 = vlaneseq
        %v6189 = vshrl.u32 %v6188, 7
        %v6190 = vsub.s32 2, %v6189
        %v6191 = vrot.slane %v5921, %v6190
        %v6192 = vlaneseq
        %v6193 = vshrl.u32 %v6192, 7
        %v6194 = vsub.s32 2, %v6193
        %v6195 = vrot.slane %v5925, %v6194
        %v6196 = vlaneseq
        %v6197 = vshrl.u32 %v6196, 7
        %v6198 = vsub.s32 2, %v6197
        %v6199 = vrot.slane %v5929, %v6198
        %v6200 = vlaneseq
        %v6201 = vshrl.u32 %v6200, 7
        %v6202 = vsub.s32 2, %v6201
        %v6203 = vrot.slane %v5933, %v6202
        %v6204 = vlaneseq
        %v6205 = vshrl.u32 %v6204, 7
        %v6206 = vsub.s32 2, %v6205
        %v6207 = vrot.slane %v5937, %v6206
        %v6208 = vlaneseq
        %v6209 = vshrl.u32 %v6208, 7
        %v6210 = vsub.s32 2, %v6209
        %v6211 = vrot.slane %v5941, %v6210
        %v6212 = vlaneseq
        %v6213 = vshrl.u32 %v6212, 7
        %v6214 = vsub.s32 2, %v6213
        %v6215 = vrot.slane %v5945, %v6214
        %v6270 = vcombine.low %v6003, %v6007
        %v6271 = vcombine.low %v6011, %v6015
        %v6272 = vcombine.low %v6019, %v6023
        %v6273 = vcombine.low %v6027, %v6031
        %v6275 = vunpack.c.l.s4 1966171168
        %v6276 = vunpack.c.0.s8 %v6275
        %v6277 = vlaneseq
        %v6278 = vshrl.u32 %v6277, 7
        %v6279 = vsub.s32 %v6276, %v6278
        %v6280 = vrot.slane %v6270, %v6279
        %v6282 = vunpack.c.l.s4 1966171168
        %v6283 = vunpack.c.0.s8 %v6282
        %v6284 = vlaneseq
        %v6285 = vshrl.u32 %v6284, 7
        %v6286 = vsub.s32 %v6283, %v6285
        %v6287 = vrot.slane %v6271, %v6286
        %v6289 = vunpack.c.l.s4 1966171168
        %v6290 = vunpack.c.0.s8 %v6289
        %v6291 = vlaneseq
        %v6292 = vshrl.u32 %v6291, 7
        %v6293 = vsub.s32 %v6290, %v6292
        %v6294 = vrot.slane %v6272, %v6293
        %v6296 = vunpack.c.l.s4 1966171168
        %v6297 = vunpack.c.0.s8 %v6296
        %v6298 = vlaneseq
        %v6299 = vshrl.u32 %v6298, 7
        %v6300 = vsub.s32 %v6297, %v6299
        %v6301 = vrot.slane %v6273, %v6300
        %v6302 = vcombine.low %v6280, %v6287
        %v6303 = vcombine.high %v6280, %v6287
        %v6304 = vcombine.low %v6294, %v6301
        %v6305 = vcombine.high %v6294, %v6301
        %v6307 = vunpack.c.l.s4 1966171168
        %v6308 = vunpack.c.0.s8 %v6307
        %v6309 = vlaneseq
        %v6310 = vshrl.u32 %v6309, 7
        %v6311 = vsub.s32 %v6308, %v6310
        %v6312 = vrot.slane %v6302, %v6311
        %v6314 = vunpack.c.l.s4 1966171168
        %v6315 = vunpack.c.0.s8 %v6314
        %v6316 = vlaneseq
        %v6317 = vshrl.u32 %v6316, 7
        %v6318 = vsub.s32 %v6315, %v6317
        %v6319 = vrot.slane %v6303, %v6318
        %v6321 = vunpack.c.l.s4 1966171168
        %v6322 = vunpack.c.0.s8 %v6321
        %v6323 = vlaneseq
        %v6324 = vshrl.u32 %v6323, 7
        %v6325 = vsub.s32 %v6322, %v6324
        %v6326 = vrot.slane %v6304, %v6325
        %v6328 = vunpack.c.l.s4 1966171168
        %v6329 = vunpack.c.0.s8 %v6328
        %v6330 = vlaneseq
        %v6331 = vshrl.u32 %v6330, 7
        %v6332 = vsub.s32 %v6329, %v6331
        %v6333 = vrot.slane %v6305, %v6332
        %v6334 = vcombine.low %v6312, %v6326
        %v6335 = vcombine.high %v6312, %v6326
        %v6336 = vcombine.low %v6319, %v6333
        %v6337 = vcombine.low %v6035, %v6039
        %v6338 = vcombine.low %v6043, %v6047
        %v6339 = vcombine.low %v6051, %v6055
        %v6340 = vcombine.low %v6059, %v6063
        %v6342 = vunpack.c.l.s4 1966171168
        %v6343 = vunpack.c.0.s8 %v6342
        %v6344 = vlaneseq
        %v6345 = vshrl.u32 %v6344, 7
        %v6346 = vsub.s32 %v6343, %v6345
        %v6347 = vrot.slane %v6337, %v6346
        %v6349 = vunpack.c.l.s4 1966171168
        %v6350 = vunpack.c.0.s8 %v6349
        %v6351 = vlaneseq
        %v6352 = vshrl.u32 %v6351, 7
        %v6353 = vsub.s32 %v6350, %v6352
        %v6354 = vrot.slane %v6338, %v6353
        %v6356 = vunpack.c.l.s4 1966171168
        %v6357 = vunpack.c.0.s8 %v6356
        %v6358 = vlaneseq
        %v6359 = vshrl.u32 %v6358, 7
        %v6360 = vsub.s32 %v6357, %v6359
        %v6361 = vrot.slane %v6339, %v6360
        %v6363 = vunpack.c.l.s4 1966171168
        %v6364 = vunpack.c.0.s8 %v6363
        %v6365 = vlaneseq
        %v6366 = vshrl.u32 %v6365, 7
        %v6367 = vsub.s32 %v6364, %v6366
        %v6368 = vrot.slane %v6340, %v6367
        %v6369 = vcombine.low %v6347, %v6354
        %v6370 = vcombine.high %v6347, %v6354
        %v6371 = vcombine.low %v6361, %v6368
        %v6372 = vcombine.high %v6361, %v6368
        %v6374 = vunpack.c.l.s4 1966171168
        %v6375 = vunpack.c.0.s8 %v6374
        %v6376 = vlaneseq
        %v6377 = vshrl.u32 %v6376, 7
        %v6378 = vsub.s32 %v6375, %v6377
        %v6379 = vrot.slane %v6369, %v6378
        %v6381 = vunpack.c.l.s4 1966171168
        %v6382 = vunpack.c.0.s8 %v6381
        %v6383 = vlaneseq
        %v6384 = vshrl.u32 %v6383, 7
        %v6385 = vsub.s32 %v6382, %v6384
        %v6386 = vrot.slane %v6370, %v6385
        %v6388 = vunpack.c.l.s4 1966171168
        %v6389 = vunpack.c.0.s8 %v6388
        %v6390 = vlaneseq
        %v6391 = vshrl.u32 %v6390, 7
        %v6392 = vsub.s32 %v6389, %v6391
        %v6393 = vrot.slane %v6371, %v6392
        %v6395 = vunpack.c.l.s4 1966171168
        %v6396 = vunpack.c.0.s8 %v6395
        %v6397 = vlaneseq
        %v6398 = vshrl.u32 %v6397, 7
        %v6399 = vsub.s32 %v6396, %v6398
        %v6400 = vrot.slane %v6372, %v6399
        %v6401 = vcombine.low %v6379, %v6393
        %v6402 = vcombine.high %v6379, %v6393
        %v6403 = vcombine.low %v6386, %v6400
        %v6404 = vcombine.low %v6067, %v6071
        %v6405 = vcombine.low %v6075, %v6079
        %v6406 = vcombine.low %v6083, %v6087
        %v6407 = vcombine.low %v6091, %v6095
        %v6409 = vunpack.c.l.s4 1966171168
        %v6410 = vunpack.c.0.s8 %v6409
        %v6411 = vlaneseq
        %v6412 = vshrl.u32 %v6411, 7
        %v6413 = vsub.s32 %v6410, %v6412
        %v6414 = vrot.slane %v6404, %v6413
        %v6416 = vunpack.c.l.s4 1966171168
        %v6417 = vunpack.c.0.s8 %v6416
        %v6418 = vlaneseq
        %v6419 = vshrl.u32 %v6418, 7
        %v6420 = vsub.s32 %v6417, %v6419
        %v6421 = vrot.slane %v6405, %v6420
        %v6423 = vunpack.c.l.s4 1966171168
        %v6424 = vunpack.c.0.s8 %v6423
        %v6425 = vlaneseq
        %v6426 = vshrl.u32 %v6425, 7
        %v6427 = vsub.s32 %v6424, %v6426
        %v6428 = vrot.slane %v6406, %v6427
        %v6430 = vunpack.c.l.s4 1966171168
        %v6431 = vunpack.c.0.s8 %v6430
        %v6432 = vlaneseq
        %v6433 = vshrl.u32 %v6432, 7
        %v6434 = vsub.s32 %v6431, %v6433
        %v6435 = vrot.slane %v6407, %v6434
        %v6436 = vcombine.low %v6414, %v6421
        %v6437 = vcombine.high %v6414, %v6421
        %v6438 = vcombine.low %v6428, %v6435
        %v6439 = vcombine.high %v6428, %v6435
        %v6441 = vunpack.c.l.s4 1966171168
        %v6442 = vunpack.c.0.s8 %v6441
        %v6443 = vlaneseq
        %v6444 = vshrl.u32 %v6443, 7
        %v6445 = vsub.s32 %v6442, %v6444
        %v6446 = vrot.slane %v6436, %v6445
        %v6448 = vunpack.c.l.s4 1966171168
        %v6449 = vunpack.c.0.s8 %v6448
        %v6450 = vlaneseq
        %v6451 = vshrl.u32 %v6450, 7
        %v6452 = vsub.s32 %v6449, %v6451
        %v6453 = vrot.slane %v6437, %v6452
        %v6455 = vunpack.c.l.s4 1966171168
        %v6456 = vunpack.c.0.s8 %v6455
        %v6457 = vlaneseq
        %v6458 = vshrl.u32 %v6457, 7
        %v6459 = vsub.s32 %v6456, %v6458
        %v6460 = vrot.slane %v6438, %v6459
        %v6462 = vunpack.c.l.s4 1966171168
        %v6463 = vunpack.c.0.s8 %v6462
        %v6464 = vlaneseq
        %v6465 = vshrl.u32 %v6464, 7
        %v6466 = vsub.s32 %v6463, %v6465
        %v6467 = vrot.slane %v6439, %v6466
        %v6468 = vcombine.low %v6446, %v6460
        %v6469 = vcombine.high %v6446, %v6460
        %v6470 = vcombine.low %v6453, %v6467
        %v6471 = vcombine.low %v6099, %v6103
        %v6473 = vunpack.c.l.s4 1966171168
        %v6474 = vunpack.c.0.s8 %v6473
        %v6475 = vlaneseq
        %v6476 = vshrl.u32 %v6475, 7
        %v6477 = vsub.s32 %v6474, %v6476
        %v6478 = vrot.slane %v6471, %v6477
        %v6480 = vunpack.c.l.s4 1966171168
        %v6481 = vunpack.c.0.s8 %v6480
        %v6482 = vlaneseq
        %v6483 = vshrl.u32 %v6482, 7
        %v6484 = vsub.s32 %v6481, %v6483
        %v6485 = vrot.slane %v6107, %v6484
        %v6486 = vcombine.low %v6478, %v6485
        %v6487 = vcombine.high %v6478, %v6485
        %v6489 = vunpack.c.l.s4 1966171168
        %v6490 = vunpack.c.0.s8 %v6489
        %v6491 = vlaneseq
        %v6492 = vshrl.u32 %v6491, 7
        %v6493 = vsub.s32 %v6490, %v6492
        %v6494 = vrot.slane %v6486, %v6493
        %v6496 = vunpack.c.l.s4 1966171168
        %v6497 = vunpack.c.0.s8 %v6496
        %v6498 = vlaneseq
        %v6499 = vshrl.u32 %v6498, 7
        %v6500 = vsub.s32 %v6497, %v6499
        %v6501 = vrot.slane %v6487, %v6500
        %v6502 = vcombine.high %v6494, %v6494
        %v6503 = vcombine.low %v6111, %v6115
        %v6504 = vcombine.low %v6119, %v6123
        %v6505 = vcombine.low %v6127, %v6131
        %v6506 = vcombine.low %v6135, %v6139
        %v6508 = vunpack.c.l.s4 1966171168
        %v6509 = vunpack.c.0.s8 %v6508
        %v6510 = vlaneseq
        %v6511 = vshrl.u32 %v6510, 7
        %v6512 = vsub.s32 %v6509, %v6511
        %v6513 = vrot.slane %v6503, %v6512
        %v6515 = vunpack.c.l.s4 1966171168
        %v6516 = vunpack.c.0.s8 %v6515
        %v6517 = vlaneseq
        %v6518 = vshrl.u32 %v6517, 7
        %v6519 = vsub.s32 %v6516, %v6518
        %v6520 = vrot.slane %v6504, %v6519
        %v6522 = vunpack.c.l.s4 1966171168
        %v6523 = vunpack.c.0.s8 %v6522
        %v6524 = vlaneseq
        %v6525 = vshrl.u32 %v6524, 7
        %v6526 = vsub.s32 %v6523, %v6525
        %v6527 = vrot.slane %v6505, %v6526
        %v6529 = vunpack.c.l.s4 1966171168
        %v6530 = vunpack.c.0.s8 %v6529
        %v6531 = vlaneseq
        %v6532 = vshrl.u32 %v6531, 7
        %v6533 = vsub.s32 %v6530, %v6532
        %v6534 = vrot.slane %v6506, %v6533
        %v6535 = vcombine.low %v6513, %v6520
        %v6536 = vcombine.high %v6513, %v6520
        %v6537 = vcombine.low %v6527, %v6534
        %v6538 = vcombine.high %v6527, %v6534
        %v6540 = vunpack.c.l.s4 1966171168
        %v6541 = vunpack.c.0.s8 %v6540
        %v6542 = vlaneseq
        %v6543 = vshrl.u32 %v6542, 7
        %v6544 = vsub.s32 %v6541, %v6543
        %v6545 = vrot.slane %v6535, %v6544
        %v6547 = vunpack.c.l.s4 1966171168
        %v6548 = vunpack.c.0.s8 %v6547
        %v6549 = vlaneseq
        %v6550 = vshrl.u32 %v6549, 7
        %v6551 = vsub.s32 %v6548, %v6550
        %v6552 = vrot.slane %v6536, %v6551
        %v6554 = vunpack.c.l.s4 1966171168
        %v6555 = vunpack.c.0.s8 %v6554
        %v6556 = vlaneseq
        %v6557 = vshrl.u32 %v6556, 7
        %v6558 = vsub.s32 %v6555, %v6557
        %v6559 = vrot.slane %v6537, %v6558
        %v6561 = vunpack.c.l.s4 1966171168
        %v6562 = vunpack.c.0.s8 %v6561
        %v6563 = vlaneseq
        %v6564 = vshrl.u32 %v6563, 7
        %v6565 = vsub.s32 %v6562, %v6564
        %v6566 = vrot.slane %v6538, %v6565
        %v6567 = vcombine.low %v6545, %v6559
        %v6568 = vcombine.high %v6545, %v6559
        %v6569 = vcombine.low %v6552, %v6566
        %v6570 = vcombine.low %v6143, %v6147
        %v6571 = vcombine.low %v6151, %v6155
        %v6572 = vcombine.low %v6159, %v6163
        %v6573 = vcombine.low %v6167, %v6171
        %v6575 = vunpack.c.l.s4 1966171168
        %v6576 = vunpack.c.0.s8 %v6575
        %v6577 = vlaneseq
        %v6578 = vshrl.u32 %v6577, 7
        %v6579 = vsub.s32 %v6576, %v6578
        %v6580 = vrot.slane %v6570, %v6579
        %v6582 = vunpack.c.l.s4 1966171168
        %v6583 = vunpack.c.0.s8 %v6582
        %v6584 = vlaneseq
        %v6585 = vshrl.u32 %v6584, 7
        %v6586 = vsub.s32 %v6583, %v6585
        %v6587 = vrot.slane %v6571, %v6586
        %v6589 = vunpack.c.l.s4 1966171168
        %v6590 = vunpack.c.0.s8 %v6589
        %v6591 = vlaneseq
        %v6592 = vshrl.u32 %v6591, 7
        %v6593 = vsub.s32 %v6590, %v6592
        %v6594 = vrot.slane %v6572, %v6593
        %v6596 = vunpack.c.l.s4 1966171168
        %v6597 = vunpack.c.0.s8 %v6596
        %v6598 = vlaneseq
        %v6599 = vshrl.u32 %v6598, 7
        %v6600 = vsub.s32 %v6597, %v6599
        %v6601 = vrot.slane %v6573, %v6600
        %v6602 = vcombine.low %v6580, %v6587
        %v6603 = vcombine.high %v6580, %v6587
        %v6604 = vcombine.low %v6594, %v6601
        %v6605 = vcombine.high %v6594, %v6601
        %v6607 = vunpack.c.l.s4 1966171168
        %v6608 = vunpack.c.0.s8 %v6607
        %v6609 = vlaneseq
        %v6610 = vshrl.u32 %v6609, 7
        %v6611 = vsub.s32 %v6608, %v6610
        %v6612 = vrot.slane %v6602, %v6611
        %v6614 = vunpack.c.l.s4 1966171168
        %v6615 = vunpack.c.0.s8 %v6614
        %v6616 = vlaneseq
        %v6617 = vshrl.u32 %v6616, 7
        %v6618 = vsub.s32 %v6615, %v6617
        %v6619 = vrot.slane %v6603, %v6618
        %v6621 = vunpack.c.l.s4 1966171168
        %v6622 = vunpack.c.0.s8 %v6621
        %v6623 = vlaneseq
        %v6624 = vshrl.u32 %v6623, 7
        %v6625 = vsub.s32 %v6622, %v6624
        %v6626 = vrot.slane %v6604, %v6625
        %v6628 = vunpack.c.l.s4 1966171168
        %v6629 = vunpack.c.0.s8 %v6628
        %v6630 = vlaneseq
        %v6631 = vshrl.u32 %v6630, 7
        %v6632 = vsub.s32 %v6629, %v6631
        %v6633 = vrot.slane %v6605, %v6632
        %v6634 = vcombine.low %v6612, %v6626
        %v6635 = vcombine.high %v6612, %v6626
        %v6636 = vcombine.low %v6619, %v6633
        %v6637 = vcombine.low %v6175, %v6179
        %v6638 = vcombine.low %v6183, %v6187
        %v6639 = vcombine.low %v6191, %v6195
        %v6640 = vcombine.low %v6199, %v6203
        %v6642 = vunpack.c.l.s4 1966171168
        %v6643 = vunpack.c.0.s8 %v6642
        %v6644 = vlaneseq
        %v6645 = vshrl.u32 %v6644, 7
        %v6646 = vsub.s32 %v6643, %v6645
        %v6647 = vrot.slane %v6637, %v6646
        %v6649 = vunpack.c.l.s4 1966171168
        %v6650 = vunpack.c.0.s8 %v6649
        %v6651 = vlaneseq
        %v6652 = vshrl.u32 %v6651, 7
        %v6653 = vsub.s32 %v6650, %v6652
        %v6654 = vrot.slane %v6638, %v6653
        %v6656 = vunpack.c.l.s4 1966171168
        %v6657 = vunpack.c.0.s8 %v6656
        %v6658 = vlaneseq
        %v6659 = vshrl.u32 %v6658, 7
        %v6660 = vsub.s32 %v6657, %v6659
        %v6661 = vrot.slane %v6639, %v6660
        %v6663 = vunpack.c.l.s4 1966171168
        %v6664 = vunpack.c.0.s8 %v6663
        %v6665 = vlaneseq
        %v6666 = vshrl.u32 %v6665, 7
        %v6667 = vsub.s32 %v6664, %v6666
        %v6668 = vrot.slane %v6640, %v6667
        %v6669 = vcombine.low %v6647, %v6654
        %v6670 = vcombine.high %v6647, %v6654
        %v6671 = vcombine.low %v6661, %v6668
        %v6672 = vcombine.high %v6661, %v6668
        %v6674 = vunpack.c.l.s4 1966171168
        %v6675 = vunpack.c.0.s8 %v6674
        %v6676 = vlaneseq
        %v6677 = vshrl.u32 %v6676, 7
        %v6678 = vsub.s32 %v6675, %v6677
        %v6679 = vrot.slane %v6669, %v6678
        %v6681 = vunpack.c.l.s4 1966171168
        %v6682 = vunpack.c.0.s8 %v6681
        %v6683 = vlaneseq
        %v6684 = vshrl.u32 %v6683, 7
        %v6685 = vsub.s32 %v6682, %v6684
        %v6686 = vrot.slane %v6670, %v6685
        %v6688 = vunpack.c.l.s4 1966171168
        %v6689 = vunpack.c.0.s8 %v6688
        %v6690 = vlaneseq
        %v6691 = vshrl.u32 %v6690, 7
        %v6692 = vsub.s32 %v6689, %v6691
        %v6693 = vrot.slane %v6671, %v6692
        %v6695 = vunpack.c.l.s4 1966171168
        %v6696 = vunpack.c.0.s8 %v6695
        %v6697 = vlaneseq
        %v6698 = vshrl.u32 %v6697, 7
        %v6699 = vsub.s32 %v6696, %v6698
        %v6700 = vrot.slane %v6672, %v6699
        %v6701 = vcombine.low %v6679, %v6693
        %v6702 = vcombine.high %v6679, %v6693
        %v6703 = vcombine.low %v6686, %v6700
        %v6704 = vcombine.low %v6207, %v6211
        %v6706 = vunpack.c.l.s4 1966171168
        %v6707 = vunpack.c.0.s8 %v6706
        %v6708 = vlaneseq
        %v6709 = vshrl.u32 %v6708, 7
        %v6710 = vsub.s32 %v6707, %v6709
        %v6711 = vrot.slane %v6704, %v6710
        %v6713 = vunpack.c.l.s4 1966171168
        %v6714 = vunpack.c.0.s8 %v6713
        %v6715 = vlaneseq
        %v6716 = vshrl.u32 %v6715, 7
        %v6717 = vsub.s32 %v6714, %v6716
        %v6718 = vrot.slane %v6215, %v6717
        %v6719 = vcombine.low %v6711, %v6718
        %v6720 = vcombine.high %v6711, %v6718
        %v6722 = vunpack.c.l.s4 1966171168
        %v6723 = vunpack.c.0.s8 %v6722
        %v6724 = vlaneseq
        %v6725 = vshrl.u32 %v6724, 7
        %v6726 = vsub.s32 %v6723, %v6725
        %v6727 = vrot.slane %v6719, %v6726
        %v6729 = vunpack.c.l.s4 1966171168
        %v6730 = vunpack.c.0.s8 %v6729
        %v6731 = vlaneseq
        %v6732 = vshrl.u32 %v6731, 7
        %v6733 = vsub.s32 %v6730, %v6732
        %v6734 = vrot.slane %v6720, %v6733
        %v6735 = vcombine.high %v6727, %v6727
        %v6760 = vmul.f32 %v2689, %v6334
        %v6761 = vmul.f32 %v2823, %v6401
        %v6762 = vmul.f32 %v2957, %v6468
        %v6763 = vmul.f32 %v3004, %v6494
        %v6764 = vmul.f32 %v2692, %v6336
        %v6765 = vmul.f32 %v2826, %v6403
        %v6766 = vmul.f32 %v2960, %v6470
        %v6767 = vmul.f32 %v3018, %v6501
        %v6768 = vmul.f32 %v2690, %v6335
        %v6769 = vmul.f32 %v2824, %v6402
        %v6770 = vmul.f32 %v2958, %v6469
        %v6771 = vmul.f32 %v3026, %v6502
        %v6772 = vmul.f32 %v2693, %v6567
        %v6773 = vmul.f32 %v2827, %v6634
        %v6774 = vmul.f32 %v2961, %v6701
        %v6775 = vmul.f32 %v3027, %v6727
        %v6776 = vmul.f32 %v2691, %v6569
        %v6777 = vmul.f32 %v2825, %v6636
        %v6778 = vmul.f32 %v2959, %v6703
        %v6779 = vmul.f32 %v3011, %v6734
        %v6780 = vmul.f32 %v2694, %v6568
        %v6781 = vmul.f32 %v2828, %v6635
        %v6782 = vmul.f32 %v2962, %v6702
        %v6783 = vmul.f32 %v3025, %v6735
        %v6784 = vadd.f32 %v5706, %v6760
        %v6785 = vadd.f32 %v5707, %v6761
        %v6786 = vadd.f32 %v5708, %v6762
        %v6787 = vadd.f32 %v5709, %v6763
        %v6788 = vadd.f32 %v5710, %v6764
        %v6789 = vadd.f32 %v5711, %v6765
        %v6790 = vadd.f32 %v5712, %v6766
        %v6791 = vadd.f32 %v5713, %v6767
        %v6792 = vadd.f32 %v5714, %v6768
        %v6793 = vadd.f32 %v5715, %v6769
        %v6794 = vadd.f32 %v5716, %v6770
        %v6795 = vadd.f32 %v5717, %v6771
        %v6796 = vadd.f32 %v5718, %v6772
        %v6797 = vadd.f32 %v5719, %v6773
        %v6798 = vadd.f32 %v5720, %v6774
        %v6799 = vadd.f32 %v5721, %v6775
        %v6800 = vadd.f32 %v5722, %v6776
        %v6801 = vadd.f32 %v5723, %v6777
        %v6802 = vadd.f32 %v5724, %v6778
        %v6803 = vadd.f32 %v5725, %v6779
        %v6804 = vadd.f32 %v5726, %v6780
        %v6805 = vadd.f32 %v5727, %v6781
        %v6806 = vadd.f32 %v5728, %v6782
        %v6807 = vadd.f32 %v5729, %v6783
        %v6808 = vadd.f32 %v6784, %v3207
        %v6809 = vadd.f32 %v6785, %v3341
        %v6810 = vadd.f32 %v6786, %v3475
        %v6811 = vadd.f32 %v6787, %v3522
        %v6812 = vadd.f32 %v6788, %v3210
        %v6813 = vadd.f32 %v6789, %v3344
        %v6814 = vadd.f32 %v6790, %v3478
        %v6815 = vadd.f32 %v6791, %v3536
        %v6816 = vadd.f32 %v6792, %v3208
        %v6817 = vadd.f32 %v6793, %v3342
        %v6818 = vadd.f32 %v6794, %v3476
        %v6819 = vadd.f32 %v6795, %v3544
        %v6820 = vadd.f32 %v6796, %v3211
        %v6821 = vadd.f32 %v6797, %v3345
        %v6822 = vadd.f32 %v6798, %v3479
        %v6823 = vadd.f32 %v6799, %v3545
        %v6824 = vadd.f32 %v6800, %v3209
        %v6825 = vadd.f32 %v6801, %v3343
        %v6826 = vadd.f32 %v6802, %v3477
        %v6827 = vadd.f32 %v6803, %v3529
        %v6828 = vadd.f32 %v6804, %v3212
        %v6829 = vadd.f32 %v6805, %v3346
        %v6830 = vadd.f32 %v6806, %v3480
        %v6831 = vadd.f32 %v6807, %v3543
        %v6856 = vcombine.low %v6808, %v6816
        %v6857 = vcombine.high %v6808, %v6816
        %v6858 = vcombine.high %v6812, %v6812
        %v6860 = vunpack.c.l.s4 1935823168
        %v6861 = vunpack.c.0.s8 %v6860
        %v6862 = vlaneseq
        %v6863 = vshrl.u32 %v6862, 7
        %v6864 = vsub.s32 %v6861, %v6863
        %v6865 = vrot.slane %v6856, %v6864
        %v6867 = vunpack.c.l.s4 1935823168
        %v6868 = vunpack.c.0.s8 %v6867
        %v6869 = vlaneseq
        %v6870 = vshrl.u32 %v6869, 7
        %v6871 = vsub.s32 %v6868, %v6870
        %v6872 = vrot.slane %v6812, %v6871
        %v6874 = vunpack.c.l.s4 1935823168
        %v6875 = vunpack.c.0.s8 %v6874
        %v6876 = vlaneseq
        %v6877 = vshrl.u32 %v6876, 7
        %v6878 = vsub.s32 %v6875, %v6877
        %v6879 = vrot.slane %v6857, %v6878
        %v6881 = vunpack.c.l.s4 1935823168
        %v6882 = vunpack.c.0.s8 %v6881
        %v6883 = vlaneseq
        %v6884 = vshrl.u32 %v6883, 7
        %v6885 = vsub.s32 %v6882, %v6884
        %v6886 = vrot.slane %v6858, %v6885
        %v6887 = vcombine.low %v6865, %v6872
        %v6888 = vcombine.high %v6865, %v6872
        %v6889 = vcombine.low %v6879, %v6886
        %v6890 = vcombine.high %v6879, %v6886
        %v6892 = vunpack.c.l.s4 1935823168
        %v6893 = vunpack.c.0.s8 %v6892
        %v6894 = vlaneseq
        %v6895 = vshrl.u32 %v6894, 7
        %v6896 = vsub.s32 %v6893, %v6895
        %v6897 = vrot.slane %v6887, %v6896
        %v6899 = vunpack.c.l.s4 1935823168
        %v6900 = vunpack.c.0.s8 %v6899
        %v6901 = vlaneseq
        %v6902 = vshrl.u32 %v6901, 7
        %v6903 = vsub.s32 %v6900, %v6902
        %v6904 = vrot.slane %v6888, %v6903
        %v6906 = vunpack.c.l.s4 1935823168
        %v6907 = vunpack.c.0.s8 %v6906
        %v6908 = vlaneseq
        %v6909 = vshrl.u32 %v6908, 7
        %v6910 = vsub.s32 %v6907, %v6909
        %v6911 = vrot.slane %v6889, %v6910
        %v6913 = vunpack.c.l.s4 1935823168
        %v6914 = vunpack.c.0.s8 %v6913
        %v6915 = vlaneseq
        %v6916 = vshrl.u32 %v6915, 7
        %v6917 = vsub.s32 %v6914, %v6916
        %v6918 = vrot.slane %v6890, %v6917
        %v6919 = vcombine.low %v6809, %v6817
        %v6920 = vcombine.high %v6809, %v6817
        %v6921 = vcombine.high %v6813, %v6813
        %v6923 = vunpack.c.l.s4 1935823168
        %v6924 = vunpack.c.0.s8 %v6923
        %v6925 = vlaneseq
        %v6926 = vshrl.u32 %v6925, 7
        %v6927 = vsub.s32 %v6924, %v6926
        %v6928 = vrot.slane %v6919, %v6927
        %v6930 = vunpack.c.l.s4 1935823168
        %v6931 = vunpack.c.0.s8 %v6930
        %v6932 = vlaneseq
        %v6933 = vshrl.u32 %v6932, 7
        %v6934 = vsub.s32 %v6931, %v6933
        %v6935 = vrot.slane %v6813, %v6934
        %v6937 = vunpack.c.l.s4 1935823168
        %v6938 = vunpack.c.0.s8 %v6937
        %v6939 = vlaneseq
        %v6940 = vshrl.u32 %v6939, 7
        %v6941 = vsub.s32 %v6938, %v6940
        %v6942 = vrot.slane %v6920, %v6941
        %v6944 = vunpack.c.l.s4 1935823168
        %v6945 = vunpack.c.0.s8 %v6944
        %v6946 = vlaneseq
        %v6947 = vshrl.u32 %v6946, 7
        %v6948 = vsub.s32 %v6945, %v6947
        %v6949 = vrot.slane %v6921, %v6948
        %v6950 = vcombine.low %v6928, %v6935
        %v6951 = vcombine.high %v6928, %v6935
        %v6952 = vcombine.low %v6942, %v6949
        %v6953 = vcombine.high %v6942, %v6949
        %v6955 = vunpack.c.l.s4 1935823168
        %v6956 = vunpack.c.0.s8 %v6955
        %v6957 = vlaneseq
        %v6958 = vshrl.u32 %v6957, 7
        %v6959 = vsub.s32 %v6956, %v6958
        %v6960 = vrot.slane %v6950, %v6959
        %v6962 = vunpack.c.l.s4 1935823168
        %v6963 = vunpack.c.0.s8 %v6962
        %v6964 = vlaneseq
        %v6965 = vshrl.u32 %v6964, 7
        %v6966 = vsub.s32 %v6963, %v6965
        %v6967 = vrot.slane %v6951, %v6966
        %v6969 = vunpack.c.l.s4 1935823168
        %v6970 = vunpack.c.0.s8 %v6969
        %v6971 = vlaneseq
        %v6972 = vshrl.u32 %v6971, 7
        %v6973 = vsub.s32 %v6970, %v6972
        %v6974 = vrot.slane %v6952, %v6973
        %v6976 = vunpack.c.l.s4 1935823168
        %v6977 = vunpack.c.0.s8 %v6976
        %v6978 = vlaneseq
        %v6979 = vshrl.u32 %v6978, 7
        %v6980 = vsub.s32 %v6977, %v6979
        %v6981 = vrot.slane %v6953, %v6980
        %v6982 = vcombine.low %v6810, %v6818
        %v6983 = vcombine.high %v6810, %v6818
        %v6984 = vcombine.high %v6814, %v6814
        %v6986 = vunpack.c.l.s4 1935823168
        %v6987 = vunpack.c.0.s8 %v6986
        %v6988 = vlaneseq
        %v6989 = vshrl.u32 %v6988, 7
        %v6990 = vsub.s32 %v6987, %v6989
        %v6991 = vrot.slane %v6982, %v6990
        %v6993 = vunpack.c.l.s4 1935823168
        %v6994 = vunpack.c.0.s8 %v6993
        %v6995 = vlaneseq
        %v6996 = vshrl.u32 %v6995, 7
        %v6997 = vsub.s32 %v6994, %v6996
        %v6998 = vrot.slane %v6814, %v6997
        %v7000 = vunpack.c.l.s4 1935823168
        %v7001 = vunpack.c.0.s8 %v7000
        %v7002 = vlaneseq
        %v7003 = vshrl.u32 %v7002, 7
        %v7004 = vsub.s32 %v7001, %v7003
        %v7005 = vrot.slane %v6983, %v7004
        %v7007 = vunpack.c.l.s4 1935823168
        %v7008 = vunpack.c.0.s8 %v7007
        %v7009 = vlaneseq
        %v7010 = vshrl.u32 %v7009, 7
        %v7011 = vsub.s32 %v7008, %v7010
        %v7012 = vrot.slane %v6984, %v7011
        %v7013 = vcombine.low %v6991, %v6998
        %v7014 = vcombine.high %v6991, %v6998
        %v7015 = vcombine.low %v7005, %v7012
        %v7016 = vcombine.high %v7005, %v7012
        %v7018 = vunpack.c.l.s4 1935823168
        %v7019 = vunpack.c.0.s8 %v7018
        %v7020 = vlaneseq
        %v7021 = vshrl.u32 %v7020, 7
        %v7022 = vsub.s32 %v7019, %v7021
        %v7023 = vrot.slane %v7013, %v7022
        %v7025 = vunpack.c.l.s4 1935823168
        %v7026 = vunpack.c.0.s8 %v7025
        %v7027 = vlaneseq
        %v7028 = vshrl.u32 %v7027, 7
        %v7029 = vsub.s32 %v7026, %v7028
        %v7030 = vrot.slane %v7014, %v7029
        %v7032 = vunpack.c.l.s4 1935823168
        %v7033 = vunpack.c.0.s8 %v7032
        %v7034 = vlaneseq
        %v7035 = vshrl.u32 %v7034, 7
        %v7036 = vsub.s32 %v7033, %v7035
        %v7037 = vrot.slane %v7015, %v7036
        %v7039 = vunpack.c.l.s4 1935823168
        %v7040 = vunpack.c.0.s8 %v7039
        %v7041 = vlaneseq
        %v7042 = vshrl.u32 %v7041, 7
        %v7043 = vsub.s32 %v7040, %v7042
        %v7044 = vrot.slane %v7016, %v7043
        %v7045 = vcombine.low %v6811, %v6819
        %v7047 = vunpack.c.l.s4 1935823168
        %v7048 = vunpack.c.0.s8 %v7047
        %v7049 = vlaneseq
        %v7050 = vshrl.u32 %v7049, 7
        %v7051 = vsub.s32 %v7048, %v7050
        %v7052 = vrot.slane %v7045, %v7051
        %v7054 = vunpack.c.l.s4 1935823168
        %v7055 = vunpack.c.0.s8 %v7054
        %v7056 = vlaneseq
        %v7057 = vshrl.u32 %v7056, 7
        %v7058 = vsub.s32 %v7055, %v7057
        %v7059 = vrot.slane %v6815, %v7058
        %v7060 = vcombine.low %v7052, %v7059
        %v7061 = vcombine.high %v7052, %v7059
        %v7063 = vunpack.c.l.s4 1935823168
        %v7064 = vunpack.c.0.s8 %v7063
        %v7065 = vlaneseq
        %v7066 = vshrl.u32 %v7065, 7
        %v7067 = vsub.s32 %v7064, %v7066
        %v7068 = vrot.slane %v7060, %v7067
        %v7070 = vunpack.c.l.s4 1935823168
        %v7071 = vunpack.c.0.s8 %v7070
        %v7072 = vlaneseq
        %v7073 = vshrl.u32 %v7072, 7
        %v7074 = vsub.s32 %v7071, %v7073
        %v7075 = vrot.slane %v7061, %v7074
        %v7076 = vcombine.low %v6820, %v6828
        %v7077 = vcombine.high %v6820, %v6828
        %v7078 = vcombine.high %v6824, %v6824
        %v7080 = vunpack.c.l.s4 1935823168
        %v7081 = vunpack.c.0.s8 %v7080
        %v7082 = vlaneseq
        %v7083 = vshrl.u32 %v7082, 7
        %v7084 = vsub.s32 %v7081, %v7083
        %v7085 = vrot.slane %v7076, %v7084
        %v7087 = vunpack.c.l.s4 1935823168
        %v7088 = vunpack.c.0.s8 %v7087
        %v7089 = vlaneseq
        %v7090 = vshrl.u32 %v7089, 7
        %v7091 = vsub.s32 %v7088, %v7090
        %v7092 = vrot.slane %v6824, %v7091
        %v7094 = vunpack.c.l.s4 1935823168
        %v7095 = vunpack.c.0.s8 %v7094
        %v7096 = vlaneseq
        %v7097 = vshrl.u32 %v7096, 7
        %v7098 = vsub.s32 %v7095, %v7097
        %v7099 = vrot.slane %v7077, %v7098
        %v7101 = vunpack.c.l.s4 1935823168
        %v7102 = vunpack.c.0.s8 %v7101
        %v7103 = vlaneseq
        %v7104 = vshrl.u32 %v7103, 7
        %v7105 = vsub.s32 %v7102, %v7104
        %v7106 = vrot.slane %v7078, %v7105
        %v7107 = vcombine.low %v7085, %v7092
        %v7108 = vcombine.high %v7085, %v7092
        %v7109 = vcombine.low %v7099, %v7106
        %v7110 = vcombine.high %v7099, %v7106
        %v7112 = vunpack.c.l.s4 1935823168
        %v7113 = vunpack.c.0.s8 %v7112
        %v7114 = vlaneseq
        %v7115 = vshrl.u32 %v7114, 7
        %v7116 = vsub.s32 %v7113, %v7115
        %v7117 = vrot.slane %v7107, %v7116
        %v7119 = vunpack.c.l.s4 1935823168
        %v7120 = vunpack.c.0.s8 %v7119
        %v7121 = vlaneseq
        %v7122 = vshrl.u32 %v7121, 7
        %v7123 = vsub.s32 %v7120, %v7122
        %v7124 = vrot.slane %v7108, %v7123
        %v7126 = vunpack.c.l.s4 1935823168
        %v7127 = vunpack.c.0.s8 %v7126
        %v7128 = vlaneseq
        %v7129 = vshrl.u32 %v7128, 7
        %v7130 = vsub.s32 %v7127, %v7129
        %v7131 = vrot.slane %v7109, %v7130
        %v7133 = vunpack.c.l.s4 1935823168
        %v7134 = vunpack.c.0.s8 %v7133
        %v7135 = vlaneseq
        %v7136 = vshrl.u32 %v7135, 7
        %v7137 = vsub.s32 %v7134, %v7136
        %v7138 = vrot.slane %v7110, %v7137
        %v7139 = vcombine.low %v6821, %v6829
        %v7140 = vcombine.high %v6821, %v6829
        %v7141 = vcombine.high %v6825, %v6825
        %v7143 = vunpack.c.l.s4 1935823168
        %v7144 = vunpack.c.0.s8 %v7143
        %v7145 = vlaneseq
        %v7146 = vshrl.u32 %v7145, 7
        %v7147 = vsub.s32 %v7144, %v7146
        %v7148 = vrot.slane %v7139, %v7147
        %v7150 = vunpack.c.l.s4 1935823168
        %v7151 = vunpack.c.0.s8 %v7150
        %v7152 = vlaneseq
        %v7153 = vshrl.u32 %v7152, 7
        %v7154 = vsub.s32 %v7151, %v7153
        %v7155 = vrot.slane %v6825, %v7154
        %v7157 = vunpack.c.l.s4 1935823168
        %v7158 = vunpack.c.0.s8 %v7157
        %v7159 = vlaneseq
        %v7160 = vshrl.u32 %v7159, 7
        %v7161 = vsub.s32 %v7158, %v7160
        %v7162 = vrot.slane %v7140, %v7161
        %v7164 = vunpack.c.l.s4 1935823168
        %v7165 = vunpack.c.0.s8 %v7164
        %v7166 = vlaneseq
        %v7167 = vshrl.u32 %v7166, 7
        %v7168 = vsub.s32 %v7165, %v7167
        %v7169 = vrot.slane %v7141, %v7168
        %v7170 = vcombine.low %v7148, %v7155
        %v7171 = vcombine.high %v7148, %v7155
        %v7172 = vcombine.low %v7162, %v7169
        %v7173 = vcombine.high %v7162, %v7169
        %v7175 = vunpack.c.l.s4 1935823168
        %v7176 = vunpack.c.0.s8 %v7175
        %v7177 = vlaneseq
        %v7178 = vshrl.u32 %v7177, 7
        %v7179 = vsub.s32 %v7176, %v7178
        %v7180 = vrot.slane %v7170, %v7179
        %v7182 = vunpack.c.l.s4 1935823168
        %v7183 = vunpack.c.0.s8 %v7182
        %v7184 = vlaneseq
        %v7185 = vshrl.u32 %v7184, 7
        %v7186 = vsub.s32 %v7183, %v7185
        %v7187 = vrot.slane %v7171, %v7186
        %v7189 = vunpack.c.l.s4 1935823168
        %v7190 = vunpack.c.0.s8 %v7189
        %v7191 = vlaneseq
        %v7192 = vshrl.u32 %v7191, 7
        %v7193 = vsub.s32 %v7190, %v7192
        %v7194 = vrot.slane %v7172, %v7193
        %v7196 = vunpack.c.l.s4 1935823168
        %v7197 = vunpack.c.0.s8 %v7196
        %v7198 = vlaneseq
        %v7199 = vshrl.u32 %v7198, 7
        %v7200 = vsub.s32 %v7197, %v7199
        %v7201 = vrot.slane %v7173, %v7200
        %v7202 = vcombine.low %v6822, %v6830
        %v7203 = vcombine.high %v6822, %v6830
        %v7204 = vcombine.high %v6826, %v6826
        %v7206 = vunpack.c.l.s4 1935823168
        %v7207 = vunpack.c.0.s8 %v7206
        %v7208 = vlaneseq
        %v7209 = vshrl.u32 %v7208, 7
        %v7210 = vsub.s32 %v7207, %v7209
        %v7211 = vrot.slane %v7202, %v7210
        %v7213 = vunpack.c.l.s4 1935823168
        %v7214 = vunpack.c.0.s8 %v7213
        %v7215 = vlaneseq
        %v7216 = vshrl.u32 %v7215, 7
        %v7217 = vsub.s32 %v7214, %v7216
        %v7218 = vrot.slane %v6826, %v7217
        %v7220 = vunpack.c.l.s4 1935823168
        %v7221 = vunpack.c.0.s8 %v7220
        %v7222 = vlaneseq
        %v7223 = vshrl.u32 %v7222, 7
        %v7224 = vsub.s32 %v7221, %v7223
        %v7225 = vrot.slane %v7203, %v7224
        %v7227 = vunpack.c.l.s4 1935823168
        %v7228 = vunpack.c.0.s8 %v7227
        %v7229 = vlaneseq
        %v7230 = vshrl.u32 %v7229, 7
        %v7231 = vsub.s32 %v7228, %v7230
        %v7232 = vrot.slane %v7204, %v7231
        %v7233 = vcombine.low %v7211, %v7218
        %v7234 = vcombine.high %v7211, %v7218
        %v7235 = vcombine.low %v7225, %v7232
        %v7236 = vcombine.high %v7225, %v7232
        %v7238 = vunpack.c.l.s4 1935823168
        %v7239 = vunpack.c.0.s8 %v7238
        %v7240 = vlaneseq
        %v7241 = vshrl.u32 %v7240, 7
        %v7242 = vsub.s32 %v7239, %v7241
        %v7243 = vrot.slane %v7233, %v7242
        %v7245 = vunpack.c.l.s4 1935823168
        %v7246 = vunpack.c.0.s8 %v7245
        %v7247 = vlaneseq
        %v7248 = vshrl.u32 %v7247, 7
        %v7249 = vsub.s32 %v7246, %v7248
        %v7250 = vrot.slane %v7234, %v7249
        %v7252 = vunpack.c.l.s4 1935823168
        %v7253 = vunpack.c.0.s8 %v7252
        %v7254 = vlaneseq
        %v7255 = vshrl.u32 %v7254, 7
        %v7256 = vsub.s32 %v7253, %v7255
        %v7257 = vrot.slane %v7235, %v7256
        %v7259 = vunpack.c.l.s4 1935823168
        %v7260 = vunpack.c.0.s8 %v7259
        %v7261 = vlaneseq
        %v7262 = vshrl.u32 %v7261, 7
        %v7263 = vsub.s32 %v7260, %v7262
        %v7264 = vrot.slane %v7236, %v7263
        %v7265 = vcombine.low %v6823, %v6831
        %v7267 = vunpack.c.l.s4 1935823168
        %v7268 = vunpack.c.0.s8 %v7267
        %v7269 = vlaneseq
        %v7270 = vshrl.u32 %v7269, 7
        %v7271 = vsub.s32 %v7268, %v7270
        %v7272 = vrot.slane %v7265, %v7271
        %v7274 = vunpack.c.l.s4 1935823168
        %v7275 = vunpack.c.0.s8 %v7274
        %v7276 = vlaneseq
        %v7277 = vshrl.u32 %v7276, 7
        %v7278 = vsub.s32 %v7275, %v7277
        %v7279 = vrot.slane %v6827, %v7278
        %v7280 = vcombine.low %v7272, %v7279
        %v7281 = vcombine.high %v7272, %v7279
        %v7283 = vunpack.c.l.s4 1935823168
        %v7284 = vunpack.c.0.s8 %v7283
        %v7285 = vlaneseq
        %v7286 = vshrl.u32 %v7285, 7
        %v7287 = vsub.s32 %v7284, %v7286
        %v7288 = vrot.slane %v7280, %v7287
        %v7290 = vunpack.c.l.s4 1935823168
        %v7291 = vunpack.c.0.s8 %v7290
        %v7292 = vlaneseq
        %v7293 = vshrl.u32 %v7292, 7
        %v7294 = vsub.s32 %v7291, %v7293
        %v7295 = vrot.slane %v7281, %v7294
        %7324 = vst [vmem:[%s378] sm:$0x77] %v6897
        %7325 = vst [vmem:[%s378 + $0x8] sm:$0x77] %v6904
        %7326 = vst [vmem:[%s378 + $0x10] sm:$0x77] %v6911
        %7327 = vst [vmem:[%s378 + $0x18] sm:$0x77] %v6918
        %7328 = vst [vmem:[%s378 + $0x20] sm:$0x77] %v6960
        %7329 = vst [vmem:[%s378 + $0x28] sm:$0x77] %v6967
        %7330 = vst [vmem:[%s378 + $0x30] sm:$0x77] %v6974
        %7331 = vst [vmem:[%s378 + $0x38] sm:$0x77] %v6981
        %7332 = vst [vmem:[%s378 + $0x40] sm:$0x77] %v7023
        %7333 = vst [vmem:[%s378 + $0x48] sm:$0x77] %v7030
        %7334 = vst [vmem:[%s378 + $0x50] sm:$0x77] %v7037
        %7335 = vst [vmem:[%s378 + $0x58] sm:$0x77] %v7044
        %7336 = vst [vmem:[%s378 + $0x60] sm:$0x77] %v7068
        %7337 = vst [vmem:[%s378 + $0x68] sm:$0x7] %v7075
        %7338 = vst [vmem:[%s378 + $0x6c] sm:$0x77] %v7117
        %7339 = vst [vmem:[%s378 + $0x74] sm:$0x77] %v7124
        %7340 = vst [vmem:[%s378 + $0x7c] sm:$0x77] %v7131
        %7341 = vst [vmem:[%s378 + $0x84] sm:$0x77] %v7138
        %7342 = vst [vmem:[%s378 + $0x8c] sm:$0x77] %v7180
        %7343 = vst [vmem:[%s378 + $0x94] sm:$0x77] %v7187
        %7344 = vst [vmem:[%s378 + $0x9c] sm:$0x77] %v7194
        %7345 = vst [vmem:[%s378 + $0xa4] sm:$0x77] %v7201
        %7346 = vst [vmem:[%s378 + $0xac] sm:$0x77] %v7243
        %7347 = vst [vmem:[%s378 + $0xb4] sm:$0x77] %v7250
        %7348 = vst [vmem:[%s378 + $0xbc] sm:$0x77] %v7257
        %7349 = vst [vmem:[%s378 + $0xc4] sm:$0x77] %v7264
        %7350 = vst [vmem:[%s378 + $0xcc] sm:$0x77] %v7288
        %7351 = vst [vmem:[%s378 + $0xd4] sm:$0x7] %v7295
        %s7352 = sand.u32 %s95, 1
        %s7353 = sand.u32 %s95, 1
        %s7354 = smul.addr %s7353, 216
        %s7355 = scalar_lea.vmem [#allocation4], %s7354
        // Predicated region
        $region85: #{star_forward.3} parent=75 // pred_check
          %p7356 = pneg %p105
        $region86: #{star_forward.3} parent=75 // pred_check_branch
          %7358 = sbr.rel (%p7356) target = $region88
        $region87: #{star_forward.3} parent=75 // pred_region
          %s7359 = smul.u32 27, %s14
          %s7360 = smul.addr %s7359, 4
          %s7361 = scalar_lea.vmem %s3, %s7360
          // Predicated region
          $region89: #{star_forward.3} parent=87 // pred_check
            _
          $region90: #{star_forward.3} parent=87 // pred_check_branch
            %7363 = sbr.rel (0) target = $region92
          $region91: #{star_forward.3} parent=87 // pred_region
            // Predicated region
            $region93: #{star_forward.3} parent=91 // pred_check
              _
            $region94: #{star_forward.3} parent=91 // pred_check_branch
              %7365 = sbr.rel (0) target = $region96
            $region95: #{star_forward.3} parent=91 // pred_region
              %s7366 = scalar_lea.vmem %s7355, 104 [#allocation4]
              %s7367 = scalar_lea.vmem %s7361, 104
              loop: start=0, step=1, limit=1
              $region97: #{star_forward.3} parent=95 // loop_pre_header
                _
              $region98: #{star_forward.3} parent=95 // loop_header
                %s7369 = sphi 0, %s7373
                %p7370 = scmp.ge.s32.totalorder %s7369, 1
                %s7374 = sphi %s7355, %s7355
                %s7375 = sphi %s7361, %s7361
              $region99: #{star_forward.3} parent=95 // loop_header_branch
                %7372 = sbr.rel (%p7370) target = $region103
              $region100: #{star_forward.3} parent=95 // loop_body
                %v7376 = vld [vmem:[%s7374] sm:$0xff]
                %7377 = vst [vmem:[%s7375] sm:$0xff] %v7376
                %v7378 = vld [vmem:[%s7374 + $0x8] sm:$0xff]
                %7379 = vst [vmem:[%s7375 + $0x8] sm:$0xff] %v7378
                %v7380 = vld [vmem:[%s7374 + $0x10] sm:$0xff]
                %7381 = vst [vmem:[%s7375 + $0x10] sm:$0xff] %v7380
                %v7382 = vld [vmem:[%s7374 + $0x18] sm:$0xff]
                %7383 = vst [vmem:[%s7375 + $0x18] sm:$0xff] %v7382
                %v7384 = vld [vmem:[%s7374 + $0x20] sm:$0xff]
                %7385 = vst [vmem:[%s7375 + $0x20] sm:$0xff] %v7384
                %v7386 = vld [vmem:[%s7374 + $0x28] sm:$0xff]
                %7387 = vst [vmem:[%s7375 + $0x28] sm:$0xff] %v7386
                %v7388 = vld [vmem:[%s7374 + $0x30] sm:$0xff]
                %7389 = vst [vmem:[%s7375 + $0x30] sm:$0xff] %v7388
                %v7390 = vld [vmem:[%s7374 + $0x38] sm:$0xff]
                %7391 = vst [vmem:[%s7375 + $0x38] sm:$0xff] %v7390
                %v7392 = vld [vmem:[%s7374 + $0x40] sm:$0xff]
                %7393 = vst [vmem:[%s7375 + $0x40] sm:$0xff] %v7392
                %v7394 = vld [vmem:[%s7374 + $0x48] sm:$0xff]
                %7395 = vst [vmem:[%s7375 + $0x48] sm:$0xff] %v7394
                %v7396 = vld [vmem:[%s7374 + $0x50] sm:$0xff]
                %7397 = vst [vmem:[%s7375 + $0x50] sm:$0xff] %v7396
                %v7398 = vld [vmem:[%s7374 + $0x58] sm:$0xff]
                %7399 = vst [vmem:[%s7375 + $0x58] sm:$0xff] %v7398
                %v7400 = vld [vmem:[%s7374 + $0x60] sm:$0xff]
                %7401 = vst [vmem:[%s7375 + $0x60] sm:$0xff] %v7400
                %v7402 = vld [vmem:[%s7374 + $0x6c] sm:$0xff]
                %7403 = vst [vmem:[%s7375 + $0xd8] sm:$0xff] %v7402
                %v7404 = vld [vmem:[%s7374 + $0x74] sm:$0xff]
                %7405 = vst [vmem:[%s7375 + $0xe0] sm:$0xff] %v7404
                %v7406 = vld [vmem:[%s7374 + $0x7c] sm:$0xff]
                %7407 = vst [vmem:[%s7375 + $0xe8] sm:$0xff] %v7406
                %v7408 = vld [vmem:[%s7374 + $0x84] sm:$0xff]
                %7409 = vst [vmem:[%s7375 + $0xf0] sm:$0xff] %v7408
                %v7410 = vld [vmem:[%s7374 + $0x8c] sm:$0xff]
                %7411 = vst [vmem:[%s7375 + $0xf8] sm:$0xff] %v7410
                %v7412 = vld [vmem:[%s7374 + $0x94] sm:$0xff]
                %7413 = vst [vmem:[%s7375 + $0x100] sm:$0xff] %v7412
                %v7414 = vld [vmem:[%s7374 + $0x9c] sm:$0xff]
                %7415 = vst [vmem:[%s7375 + $0x108] sm:$0xff] %v7414
                %v7416 = vld [vmem:[%s7374 + $0xa4] sm:$0xff]
                %7417 = vst [vmem:[%s7375 + $0x110] sm:$0xff] %v7416
                %v7418 = vld [vmem:[%s7374 + $0xac] sm:$0xff]
                %7419 = vst [vmem:[%s7375 + $0x118] sm:$0xff] %v7418
                %v7420 = vld [vmem:[%s7374 + $0xb4] sm:$0xff]
                %7421 = vst [vmem:[%s7375 + $0x120] sm:$0xff] %v7420
                %v7422 = vld [vmem:[%s7374 + $0xbc] sm:$0xff]
                %7423 = vst [vmem:[%s7375 + $0x128] sm:$0xff] %v7422
                %v7424 = vld [vmem:[%s7374 + $0xc4] sm:$0xff]
                %7425 = vst [vmem:[%s7375 + $0x130] sm:$0xff] %v7424
                %v7426 = vld [vmem:[%s7374 + $0xcc] sm:$0xff]
                %7427 = vst [vmem:[%s7375 + $0x138] sm:$0xff] %v7426
              $region101: #{star_forward.3} parent=95 // loop_footer
                %s7373 = sadd.s32 1, %s7369
              $region102: #{star_forward.3} parent=95 // loop_footer_branch
                %7368 = sbr.rel target = $region98
              $region103: #{star_forward.3} parent=95 // loop_exit
                _
              loop: start=0, step=1, limit=1
              $region104: #{star_forward.3} parent=95 // loop_pre_header
                _
              $region105: #{star_forward.3} parent=95 // loop_header
                %s7430 = sphi 0, %s7434
                %p7431 = scmp.ge.s32.totalorder %s7430, 1
                %s7435 = sphi %s7366, %s7366
                %s7436 = sphi %s7367, %s7367
              $region106: #{star_forward.3} parent=95 // loop_header_branch
                %7433 = sbr.rel (%p7431) target = $region110
              $region107: #{star_forward.3} parent=95 // loop_body
                %v7437 = vld [vmem:[%s7435] sm:$0xf]
                %7438 = vst [vmem:[%s7436] sm:$0xf] %v7437
                %v7439 = vld [vmem:[%s7435 + $0x6c] sm:$0xf]
                %7440 = vst [vmem:[%s7436 + $0xd8] sm:$0xf] %v7439
              $region108: #{star_forward.3} parent=95 // loop_footer
                %s7434 = sadd.s32 1, %s7430
              $region109: #{star_forward.3} parent=95 // loop_footer_branch
                %7429 = sbr.rel target = $region105
              $region110: #{star_forward.3} parent=95 // loop_exit
                _
            $region96: #{star_forward.3} parent=91 // pred_fallthru
              _
          $region92: #{star_forward.3} parent=87 // pred_fallthru
            _
          %7441 = vnop
        $region88: #{star_forward.3} parent=75 // pred_fallthru
          _
      $region76: #{star_forward.3} parent=5 // pred_fallthru
        _
      %p7442 = scmp.le.s32.totalorder 2, %s9
      // Predicated region
      $region111: #{star_forward.3} parent=5 // pred_check
        %p7443 = pneg %p7442
      $region112: #{star_forward.3} parent=5 // pred_check_branch
        %7445 = sbr.rel (%p7443) target = $region114
      $region113: #{star_forward.3} parent=5 // pred_region
        %s7446 = ssub.s32 %s9, 2
        // Predicated region
        $region115: #{star_forward.3} parent=113 // pred_check
          %p7447 = pneg %p111
        $region116: #{star_forward.3} parent=113 // pred_check_branch
          %7449 = sbr.rel (%p7447) target = $region118
        $region117: #{star_forward.3} parent=113 // pred_region
          %s7450 = sand.u32 %s96, 1
          %s7451 = sand.u32 %s96, 1
          %s7452 = smul.addr %s7451, 216
          %s7453 = scalar_lea.vmem [#allocation4], %s7452
        $region118: #{star_forward.3} parent=113 // pred_fallthru
          _
      $region114: #{star_forward.3} parent=5 // pred_fallthru
        _
    $region6: #{star_forward.3} parent=1 // loop_footer
      %s13 = sadd.s32 1, %s9
    $region7: #{star_forward.3} parent=1 // loop_footer_branch
      %8 = sbr.rel target = $region3
    $region8: #{star_forward.3} parent=1 // loop_exit
      _

</llo_original>
